<compile_context>
chip_gen: v7x
topology: tpu7x:2x2x1
jax: 0.10.0
libtpu: 0.0.40
codegen_flags: <defaults>
</compile_context>

<pallas_src>
import functools

import numpy as np
import jax
import jax.numpy as jnp
from jax import lax
from jax.experimental import pallas as pl
from jax.experimental.pallas import tpu as pltpu

TOKEN_LENGTH = 32      # token_length in bet7.py (binary chunk size / vocab size)
LN_EPS = 1e-5          # nn.LayerNorm default


# ----------------------------------------------------------------------------
# Fused kernel
# ----------------------------------------------------------------------------

def _layer_norm(x, g, b):
    mu = jnp.mean(x, axis=-1, keepdims=True)
    var = jnp.mean((x - mu) ** 2, axis=-1, keepdims=True)
    return (x - mu) * lax.rsqrt(var + LN_EPS) * g + b


def _fused_forward_kernel(bits_ref, base_ref,
                          wqkv_ref, bqkv_ref, wo_ref, bo_ref,
                          g1_ref, b1_ref, w1_ref, bf1_ref,
                          w2_ref, bf2_ref, g2_ref, b2_ref,
                          wfc_ref, bfc_ref,
                          out_ref,
                          ctx_ref,
                          *, num_heads, num_layers):
    BB, T = bits_ref.shape            # batch block, token_length
    H = base_ref.shape[1]
    hd = H // num_heads
    M = BB * T                        # rows fed to every MXU pass

    # --- BinaryEmbedding: emb = table[arange(T)] * (2*bit - 1) -------------
    amp = bits_ref[...] * 2.0 - 1.0                       # (BB, T)
    x3 = base_ref[...] * amp[:, :, None]                  # (BB, T, H)
    x = x3.reshape(M, H)                                  # fold batch into M

    # --- num_layers x TransformerEncoderLayer (post-norm, ReLU FFN) --------
    for l in range(num_layers):                           # static unroll
        # Fused QKV projection for the whole batch (one pass over the weight).
        qkv = jnp.dot(x, wqkv_ref[l],
                      preferred_element_type=jnp.float32) + bqkv_ref[l]
        q = qkv[:, 0:H]            # 1/sqrt(hd) already folded into Wq / bq
        k = qkv[:, H:2 * H]
        v = qkv[:, 2 * H:3 * H]

        # Multi-head self-attention: per (batch, head), scores via dot_general
        # with contracting dims ((1,),(1,)) (no K transpose); head outputs are
        # written into lane-slices of a VMEM scratch (no concatenate).
        for b in range(BB):
            rs = slice(b * T, (b + 1) * T)
            for h in range(num_heads):
                cs = slice(h * hd, (h + 1) * hd)
                qh = q[rs, cs]                             # (T, hd)
                kh = k[rs, cs]
                vh = v[rs, cs]
                s = lax.dot_general(qh, kh, (((1,), (1,)), ((), ())),
                                    preferred_element_type=jnp.float32)   # (T, T)
                s = s - jnp.max(s, axis=-1, keepdims=True)
                e = jnp.exp(s)
                # Unnormalized context, then fold 1/sum into the (T, hd)
                # result (cheaper than scaling the (T, T) probabilities).
                c = jnp.dot(e, vh, preferred_element_type=jnp.float32)
                inv = pl.reciprocal(jnp.sum(e, axis=-1, keepdims=True),
                                    approx=True)
                ctx_ref[rs, cs] = c * inv

        attn = jnp.dot(ctx_ref[...], wo_ref[l],
                       preferred_element_type=jnp.float32) + bo_ref[l]

        # Post-norm residual blocks (PyTorch norm_first=False).
        x = _layer_norm(x + attn, g1_ref[l], b1_ref[l])
        hmid = jnp.maximum(
            jnp.dot(x, w1_ref[l], preferred_element_type=jnp.float32) + bf1_ref[l],
            0.0)                                                          # (M, F)
        ff = jnp.dot(hmid, w2_ref[l],
                     preferred_element_type=jnp.float32) + bf2_ref[l]
        x = _layer_norm(x + ff, g2_ref[l], b2_ref[l])

    # --- fc_out: Linear(H -> E), fused into the same kernel ----------------
    y = jnp.dot(x, wfc_ref[...], preferred_element_type=jnp.float32) + bfc_ref[...]
    out_ref[...] = y.reshape(BB, T, -1)


# ----------------------------------------------------------------------------
# Parameter packing + wrapper
# ----------------------------------------------------------------------------

def pack_params(params, num_heads):
    """Stack per-layer weights into (L, ...) arrays, fuse QKV, fold attn scale."""
    H = params["base_emb"].shape[1]
    hd = H // num_heads
    scale = 1.0 / float(np.sqrt(hd))

    def stack(key):
        return jnp.stack([lp[key] for lp in params["layers"]], axis=0)

    wq = stack("wq") * scale          # fold 1/sqrt(hd) into Wq (and bq)
    bq = stack("bq") * scale
    wqkv = jnp.concatenate([wq, stack("wk"), stack("wv")], axis=-1)   # (L, H, 3H)
    bqkv = jnp.concatenate([bq, stack("bk"), stack("bv")], axis=-1)   # (L, 1, 3H)
    return dict(
        base_emb=params["base_emb"],
        wqkv=wqkv, bqkv=bqkv,
        wo=stack("wo"), bo=stack("bo"),
        g1=stack("g1"), b1=stack("b1"),
        w1=stack("w1"), bf1=stack("bf1"),
        w2=stack("w2"), bf2=stack("bf2"),
        g2=stack("g2"), b2=stack("b2"),
        wfc=params["w_fc"], bfc=params["b_fc"],
    )


def fused_forward(bits, packed, num_heads):
    """bits: (B, T) float32 {0,1} -> (B, T, E).  Single fused pallas_call."""
    B, T = bits.shape
    H = packed["base_emb"].shape[1]
    E = packed["wfc"].shape[1]
    L = packed["wqkv"].shape[0]
    F = packed["w1"].shape[2]

    full = lambda shape: pl.BlockSpec(shape, lambda i: tuple(0 for _ in shape))
    kernel = functools.partial(_fused_forward_kernel,
                               num_heads=num_heads, num_layers=L)

    # One grid step covers the whole batch (M = B*T rows per MXU pass).  The
    # batch-block axis is "parallel" so it can be sharded across v7x
    # TensorCores if B grows (split B into >=2 blocks there).
    return pl.pallas_call(
        kernel,
        out_shape=jax.ShapeDtypeStruct((B, T, E), jnp.float32),
        grid=(1,),
        in_specs=[
            pl.BlockSpec((B, T), lambda i: (0, 0)),
            full((T, H)),
            full((L, H, 3 * H)), full((L, 1, 3 * H)),
            full((L, H, H)), full((L, 1, H)),
            full((L, 1, H)), full((L, 1, H)),
            full((L, H, F)), full((L, 1, F)),
            full((L, F, H)), full((L, 1, H)),
            full((L, 1, H)), full((L, 1, H)),
            full((H, E)), full((1, E)),
        ],
        out_specs=pl.BlockSpec((B, T, E), lambda i: (0, 0, 0)),
        scratch_shapes=[pltpu.VMEM((B * T, H), jnp.float32)],   # attn context
        compiler_params=pltpu.CompilerParams(
            dimension_semantics=("parallel",),
            vmem_limit_bytes=64 << 20),
    )(bits, packed["base_emb"],
      packed["wqkv"], packed["bqkv"], packed["wo"], packed["bo"],
      packed["g1"], packed["b1"], packed["w1"], packed["bf1"],
      packed["w2"], packed["bf2"], packed["g2"], packed["b2"],
      packed["wfc"], packed["bfc"])


def modified_transformer_node_forward(bits, params, num_heads):
    # TODO(synk): preprocess_text (string -> bit tensor) is host-side Python; the
    # kernel takes already-binarized (B, 32) bit vectors, matching the tensor path.
    packed = pack_params(params, num_heads)
    return fused_forward(bits, packed, num_heads)


# ----------------------------------------------------------------------------
# Parameters + pure-JAX reference (same math) for correctness checking
# ----------------------------------------------------------------------------

def init_params(key, embed_size, hidden_size, num_heads, num_layers, ffn_size):
    assert hidden_size % num_heads == 0
    keys = jax.random.split(key, 2 + num_layers)
    H, F = hidden_size, ffn_size
    base_emb = 0.02 * jax.random.normal(keys[0], (TOKEN_LENGTH, H), jnp.float32)
    layers = []
    for l in range(num_layers):
        k = jax.random.split(keys[1 + l], 6)
        layers.append(dict(
            wq=0.02 * jax.random.normal(k[0], (H, H), jnp.float32), bq=jnp.zeros((1, H), jnp.float32),
            wk=0.02 * jax.random.normal(k[1], (H, H), jnp.float32), bk=jnp.zeros((1, H), jnp.float32),
            wv=0.02 * jax.random.normal(k[2], (H, H), jnp.float32), bv=jnp.zeros((1, H), jnp.float32),
            wo=0.02 * jax.random.normal(k[3], (H, H), jnp.float32), bo=jnp.zeros((1, H), jnp.float32),
            g1=jnp.ones((1, H), jnp.float32), b1=jnp.zeros((1, H), jnp.float32),
            w1=0.02 * jax.random.normal(k[4], (H, F), jnp.float32), bf1=jnp.zeros((1, F), jnp.float32),
            w2=0.02 * jax.random.normal(k[5], (F, H), jnp.float32), bf2=jnp.zeros((1, H), jnp.float32),
            g2=jnp.ones((1, H), jnp.float32), b2=jnp.zeros((1, H), jnp.float32),
        ))
    w_fc = 0.02 * jax.random.normal(keys[1 + num_layers], (H, embed_size), jnp.float32)
    b_fc = jnp.zeros((1, embed_size), jnp.float32)
    return dict(base_emb=base_emb, layers=layers, w_fc=w_fc, b_fc=b_fc)


def reference_forward(bits, params, num_heads):
    amp = bits * 2.0 - 1.0
    x = params["base_emb"][None] * amp[:, :, None]

    def ln(t, g, b):
        mu = t.mean(-1, keepdims=True)
        var = ((t - mu) ** 2).mean(-1, keepdims=True)
        return (t - mu) / jnp.sqrt(var + LN_EPS) * g + b

    for p in params["layers"]:
        B, T, H = x.shape
        hd = H // num_heads
        q = x @ p["wq"] + p["bq"][0]
        k = x @ p["wk"] + p["bk"][0]
        v = x @ p["wv"] + p["bv"][0]
        q = q.reshape(B, T, num_heads, hd).transpose(0, 2, 1, 3)
        k = k.reshape(B, T, num_heads, hd).transpose(0, 2, 1, 3)
        v = v.reshape(B, T, num_heads, hd).transpose(0, 2, 1, 3)
        s = (q @ k.transpose(0, 1, 3, 2)) / jnp.sqrt(hd).astype(jnp.float32)
        a = jax.nn.softmax(s, axis=-1)
        o = (a @ v).transpose(0, 2, 1, 3).reshape(B, T, H)
        o = o @ p["wo"] + p["bo"][0]
        x = ln(x + o, p["g1"][0], p["b1"][0])
        h = jax.nn.relu(x @ p["w1"] + p["bf1"][0])
        f = h @ p["w2"] + p["bf2"][0]
        x = ln(x + f, p["g2"][0], p["b2"][0])
    return x @ params["w_fc"] + params["b_fc"][0]


if __name__ == "__main__":
    # Small but shape-consistent hyperparameters.
    embed_size = 32
    hidden_size = 64
    num_heads = 4
    num_layers = 2
    ffn_size = 2048          # nn.TransformerEncoderLayer default dim_feedforward
    B = 2                    # batch of 2 bit-vectors of TOKEN_LENGTH bits each

    key = jax.random.PRNGKey(0)
    k_bits, k_params = jax.random.split(key)
    bits = jax.random.bernoulli(k_bits, 0.5, (B, TOKEN_LENGTH)).astype(jnp.float32)
    params = init_params(k_params, embed_size, hidden_size, num_heads,
                         num_layers, ffn_size)

    out = modified_transformer_node_forward(bits, params, num_heads)
    out = jax.block_until_ready(out)

    assert out.shape == (B, TOKEN_LENGTH, embed_size), out.shape
    ref = reference_forward(bits, params, num_heads)
    np.testing.assert_allclose(np.asarray(out), np.asarray(ref),
                               atol=2e-3, rtol=2e-3)
    print("KERNEL_OK")
</pallas_src>

<mosaic_0001>
module attributes {stable_mosaic.version = 11 : i64} {
  func.func @_fused_forward_kernel(%arg0: i32, %arg1: memref<2x32xf32, #tpu.memory_space<vmem>>, %arg2: memref<32x64xf32, #tpu.memory_space<vmem>>, %arg3: memref<2x64x192xf32, #tpu.memory_space<vmem>>, %arg4: memref<2x1x192xf32, #tpu.memory_space<vmem>>, %arg5: memref<2x64x64xf32, #tpu.memory_space<vmem>>, %arg6: memref<2x1x64xf32, #tpu.memory_space<vmem>>, %arg7: memref<2x1x64xf32, #tpu.memory_space<vmem>>, %arg8: memref<2x1x64xf32, #tpu.memory_space<vmem>>, %arg9: memref<2x64x2048xf32, #tpu.memory_space<vmem>>, %arg10: memref<2x1x2048xf32, #tpu.memory_space<vmem>>, %arg11: memref<2x2048x64xf32, #tpu.memory_space<vmem>>, %arg12: memref<2x1x64xf32, #tpu.memory_space<vmem>>, %arg13: memref<2x1x64xf32, #tpu.memory_space<vmem>>, %arg14: memref<2x1x64xf32, #tpu.memory_space<vmem>>, %arg15: memref<64x32xf32, #tpu.memory_space<vmem>>, %arg16: memref<1x32xf32, #tpu.memory_space<vmem>>, %arg17: memref<2x32x32xf32, #tpu.memory_space<vmem>>, %arg18: memref<64x64xf32, #tpu.memory_space<vmem>>) attributes {dimension_semantics = [#tpu.dimension_semantics<parallel>], iteration_bounds = array<i64: 1>, scalar_prefetch = 0 : i64, scratch_operands = 1 : i64, tpu.core_type = #tpu.core_type<tc>, window_params = [{pipeline_mode = #tpu.pipeline_mode<synchronous>, transform_indices = @transform_0, window_bounds = array<i64: 2, 32>}, {pipeline_mode = #tpu.pipeline_mode<synchronous>, transform_indices = @transform_1, window_bounds = array<i64: 32, 64>}, {pipeline_mode = #tpu.pipeline_mode<synchronous>, transform_indices = @transform_2, window_bounds = array<i64: 2, 64, 192>}, {pipeline_mode = #tpu.pipeline_mode<synchronous>, transform_indices = @transform_3, window_bounds = array<i64: 2, 1, 192>}, {pipeline_mode = #tpu.pipeline_mode<synchronous>, transform_indices = @transform_4, window_bounds = array<i64: 2, 64, 64>}, {pipeline_mode = #tpu.pipeline_mode<synchronous>, transform_indices = @transform_5, window_bounds = array<i64: 2, 1, 64>}, {pipeline_mode = #tpu.pipeline_mode<synchronous>, transform_indices = @transform_6, window_bounds = array<i64: 2, 1, 64>}, {pipeline_mode = #tpu.pipeline_mode<synchronous>, transform_indices = @transform_7, window_bounds = array<i64: 2, 1, 64>}, {pipeline_mode = #tpu.pipeline_mode<synchronous>, transform_indices = @transform_8, window_bounds = array<i64: 2, 64, 2048>}, {pipeline_mode = #tpu.pipeline_mode<synchronous>, transform_indices = @transform_9, window_bounds = array<i64: 2, 1, 2048>}, {pipeline_mode = #tpu.pipeline_mode<synchronous>, transform_indices = @transform_10, window_bounds = array<i64: 2, 2048, 64>}, {pipeline_mode = #tpu.pipeline_mode<synchronous>, transform_indices = @transform_11, window_bounds = array<i64: 2, 1, 64>}, {pipeline_mode = #tpu.pipeline_mode<synchronous>, transform_indices = @transform_12, window_bounds = array<i64: 2, 1, 64>}, {pipeline_mode = #tpu.pipeline_mode<synchronous>, transform_indices = @transform_13, window_bounds = array<i64: 2, 1, 64>}, {pipeline_mode = #tpu.pipeline_mode<synchronous>, transform_indices = @transform_14, window_bounds = array<i64: 64, 32>}, {pipeline_mode = #tpu.pipeline_mode<synchronous>, transform_indices = @transform_15, window_bounds = array<i64: 1, 32>}, {pipeline_mode = #tpu.pipeline_mode<synchronous>, transform_indices = @transform_16, window_bounds = array<i64: 2, 32, 32>}]} {
    %c0 = arith.constant 0 : index
    %c0_0 = arith.constant 0 : index
    %0 = vector.load %arg1[%c0, %c0_0] : memref<2x32xf32, #tpu.memory_space<vmem>>, vector<2x32xf32>
    %cst = arith.constant 2.000000e+00 : f32
    %1 = vector.broadcast %cst : f32 to vector<2x32xf32>
    %2 = arith.mulf %0, %1 : vector<2x32xf32>
    %cst_1 = arith.constant 1.000000e+00 : f32
    %3 = vector.broadcast %cst_1 : f32 to vector<2x32xf32>
    %4 = arith.subf %2, %3 : vector<2x32xf32>
    %c0_2 = arith.constant 0 : index
    %c0_3 = arith.constant 0 : index
    %5 = vector.load %arg2[%c0_2, %c0_3] : memref<32x64xf32, #tpu.memory_space<vmem>>, vector<32x64xf32>
    %6 = vector.shape_cast %4 : vector<2x32xf32> to vector<2x32x1xf32>
    %7 = vector.shape_cast %5 : vector<32x64xf32> to vector<1x32x64xf32>
    %8 = vector.broadcast %7 : vector<1x32x64xf32> to vector<2x32x64xf32>
    %9 = vector.broadcast %6 : vector<2x32x1xf32> to vector<2x32x64xf32>
    %10 = arith.mulf %8, %9 : vector<2x32x64xf32>
    %11 = vector.shape_cast %10 : vector<2x32x64xf32> to vector<64x64xf32>
    %c0_4 = arith.constant 0 : index
    %c0_5 = arith.constant 0 : index
    %c0_6 = arith.constant 0 : index
    %12 = vector.load %arg3[%c0_4, %c0_5, %c0_6] : memref<2x64x192xf32, #tpu.memory_space<vmem>>, vector<1x64x192xf32>
    %13 = vector.shape_cast %12 : vector<1x64x192xf32> to vector<64x192xf32>
    %cst_7 = arith.constant dense<0.000000e+00> : vector<64x192xf32>
    %14 = tpu.matmul %11, %13, %cst_7 {dimension_numbers = #tpu.dot_dimension_numbers<[1], [0], [0], [1], [0, 0, 1, 1], [], []>} : vector<64x64xf32>, vector<64x192xf32>, vector<64x192xf32> -> vector<64x192xf32>
    %c0_8 = arith.constant 0 : index
    %c0_9 = arith.constant 0 : index
    %c0_10 = arith.constant 0 : index
    %15 = vector.load %arg4[%c0_8, %c0_9, %c0_10] : memref<2x1x192xf32, #tpu.memory_space<vmem>>, vector<1x1x192xf32>
    %16 = vector.shape_cast %15 : vector<1x1x192xf32> to vector<1x192xf32>
    %17 = vector.broadcast %16 : vector<1x192xf32> to vector<64x192xf32>
    %18 = arith.addf %14, %17 : vector<64x192xf32>
    %19 = vector.extract_strided_slice %18 {offsets = [0, 0], sizes = [64, 64], strides = [1, 1]} : vector<64x192xf32> to vector<64x64xf32>
    %20 = vector.extract_strided_slice %18 {offsets = [0, 64], sizes = [64, 64], strides = [1, 1]} : vector<64x192xf32> to vector<64x64xf32>
    %21 = vector.extract_strided_slice %18 {offsets = [0, 128], sizes = [64, 64], strides = [1, 1]} : vector<64x192xf32> to vector<64x64xf32>
    %22 = vector.extract_strided_slice %19 {offsets = [0, 0], sizes = [32, 16], strides = [1, 1]} : vector<64x64xf32> to vector<32x16xf32>
    %23 = vector.extract_strided_slice %20 {offsets = [0, 0], sizes = [32, 16], strides = [1, 1]} : vector<64x64xf32> to vector<32x16xf32>
    %24 = vector.extract_strided_slice %21 {offsets = [0, 0], sizes = [32, 16], strides = [1, 1]} : vector<64x64xf32> to vector<32x16xf32>
    %cst_11 = arith.constant dense<0.000000e+00> : vector<32x32xf32>
    %25 = tpu.matmul %22, %23, %cst_11 {dimension_numbers = #tpu.dot_dimension_numbers<[1], [1], [0], [0], [0, 0, 1, 0], [], []>} : vector<32x16xf32>, vector<32x16xf32>, vector<32x32xf32> -> vector<32x32xf32>
    %cst_12 = arith.constant dense<0xFF800000> : vector<32xf32>
    %26 = vector.multi_reduction <maximumf>, %25, %cst_12 [1] : vector<32x32xf32> to vector<32xf32>
    %27 = vector.shape_cast %26 : vector<32xf32> to vector<32x1xf32>
    %28 = vector.broadcast %27 : vector<32x1xf32> to vector<32x32xf32>
    %29 = arith.subf %25, %28 : vector<32x32xf32>
    %30 = math.exp %29 : vector<32x32xf32>
    %cst_13 = arith.constant dense<0.000000e+00> : vector<32x16xf32>
    %31 = tpu.matmul %30, %24, %cst_13 {dimension_numbers = #tpu.dot_dimension_numbers<[1], [0], [0], [1], [0, 0, 1, 1], [], []>} : vector<32x32xf32>, vector<32x16xf32>, vector<32x16xf32> -> vector<32x16xf32>
    %cst_14 = arith.constant dense<0.000000e+00> : vector<32xf32>
    %32 = vector.multi_reduction <add>, %30, %cst_14 [1] : vector<32x32xf32> to vector<32xf32>
    %33 = vector.shape_cast %32 : vector<32xf32> to vector<32x1xf32>
    %34 = tpu.reciprocal %33 {approx = true} : vector<32x1xf32> -> vector<32x1xf32>
    %35 = vector.broadcast %34 : vector<32x1xf32> to vector<32x16xf32>
    %36 = arith.mulf %31, %35 : vector<32x16xf32>
    %c0_15 = arith.constant 0 : index
    %c0_16 = arith.constant 0 : index
    %37 = vector.load %arg18[%c0_15, %c0_16] : memref<64x64xf32, #tpu.memory_space<vmem>>, vector<32x16xf32>
    tpu.vector_store %arg18[%c0_15, %c0_16], %36 {strides = array<i32>} : memref<64x64xf32, #tpu.memory_space<vmem>>, vector<32x16xf32>,
    %38 = vector.extract_strided_slice %19 {offsets = [0, 16], sizes = [32, 16], strides = [1, 1]} : vector<64x64xf32> to vector<32x16xf32>
    %39 = vector.extract_strided_slice %20 {offsets = [0, 16], sizes = [32, 16], strides = [1, 1]} : vector<64x64xf32> to vector<32x16xf32>
    %40 = vector.extract_strided_slice %21 {offsets = [0, 16], sizes = [32, 16], strides = [1, 1]} : vector<64x64xf32> to vector<32x16xf32>
    %cst_17 = arith.constant dense<0.000000e+00> : vector<32x32xf32>
    %41 = tpu.matmul %38, %39, %cst_17 {dimension_numbers = #tpu.dot_dimension_numbers<[1], [1], [0], [0], [0, 0, 1, 0], [], []>} : vector<32x16xf32>, vector<32x16xf32>, vector<32x32xf32> -> vector<32x32xf32>
    %cst_18 = arith.constant dense<0xFF800000> : vector<32xf32>
    %42 = vector.multi_reduction <maximumf>, %41, %cst_18 [1] : vector<32x32xf32> to vector<32xf32>
    %43 = vector.shape_cast %42 : vector<32xf32> to vector<32x1xf32>
    %44 = vector.broadcast %43 : vector<32x1xf32> to vector<32x32xf32>
    %45 = arith.subf %41, %44 : vector<32x32xf32>
    %46 = math.exp %45 : vector<32x32xf32>
    %cst_19 = arith.constant dense<0.000000e+00> : vector<32x16xf32>
    %47 = tpu.matmul %46, %40, %cst_19 {dimension_numbers = #tpu.dot_dimension_numbers<[1], [0], [0], [1], [0, 0, 1, 1], [], []>} : vector<32x32xf32>, vector<32x16xf32>, vector<32x16xf32> -> vector<32x16xf32>
    %cst_20 = arith.constant dense<0.000000e+00> : vector<32xf32>
    %48 = vector.multi_reduction <add>, %46, %cst_20 [1] : vector<32x32xf32> to vector<32xf32>
    %49 = vector.shape_cast %48 : vector<32xf32> to vector<32x1xf32>
    %50 = tpu.reciprocal %49 {approx = true} : vector<32x1xf32> -> vector<32x1xf32>
    %51 = vector.broadcast %50 : vector<32x1xf32> to vector<32x16xf32>
    %52 = arith.mulf %47, %51 : vector<32x16xf32>
    %c0_21 = arith.constant 0 : index
    %c16 = arith.constant 16 : index
    %53 = vector.load %arg18[%c0_21, %c16] : memref<64x64xf32, #tpu.memory_space<vmem>>, vector<32x16xf32>
    tpu.vector_store %arg18[%c0_21, %c16], %52 {strides = array<i32>} : memref<64x64xf32, #tpu.memory_space<vmem>>, vector<32x16xf32>,
    %54 = vector.extract_strided_slice %19 {offsets = [0, 32], sizes = [32, 16], strides = [1, 1]} : vector<64x64xf32> to vector<32x16xf32>
    %55 = vector.extract_strided_slice %20 {offsets = [0, 32], sizes = [32, 16], strides = [1, 1]} : vector<64x64xf32> to vector<32x16xf32>
    %56 = vector.extract_strided_slice %21 {offsets = [0, 32], sizes = [32, 16], strides = [1, 1]} : vector<64x64xf32> to vector<32x16xf32>
    %cst_22 = arith.constant dense<0.000000e+00> : vector<32x32xf32>
    %57 = tpu.matmul %54, %55, %cst_22 {dimension_numbers = #tpu.dot_dimension_numbers<[1], [1], [0], [0], [0, 0, 1, 0], [], []>} : vector<32x16xf32>, vector<32x16xf32>, vector<32x32xf32> -> vector<32x32xf32>
    %cst_23 = arith.constant dense<0xFF800000> : vector<32xf32>
    %58 = vector.multi_reduction <maximumf>, %57, %cst_23 [1] : vector<32x32xf32> to vector<32xf32>
    %59 = vector.shape_cast %58 : vector<32xf32> to vector<32x1xf32>
    %60 = vector.broadcast %59 : vector<32x1xf32> to vector<32x32xf32>
    %61 = arith.subf %57, %60 : vector<32x32xf32>
    %62 = math.exp %61 : vector<32x32xf32>
    %cst_24 = arith.constant dense<0.000000e+00> : vector<32x16xf32>
    %63 = tpu.matmul %62, %56, %cst_24 {dimension_numbers = #tpu.dot_dimension_numbers<[1], [0], [0], [1], [0, 0, 1, 1], [], []>} : vector<32x32xf32>, vector<32x16xf32>, vector<32x16xf32> -> vector<32x16xf32>
    %cst_25 = arith.constant dense<0.000000e+00> : vector<32xf32>
    %64 = vector.multi_reduction <add>, %62, %cst_25 [1] : vector<32x32xf32> to vector<32xf32>
    %65 = vector.shape_cast %64 : vector<32xf32> to vector<32x1xf32>
    %66 = tpu.reciprocal %65 {approx = true} : vector<32x1xf32> -> vector<32x1xf32>
    %67 = vector.broadcast %66 : vector<32x1xf32> to vector<32x16xf32>
    %68 = arith.mulf %63, %67 : vector<32x16xf32>
    %c0_26 = arith.constant 0 : index
    %c32 = arith.constant 32 : index
    %69 = vector.load %arg18[%c0_26, %c32] : memref<64x64xf32, #tpu.memory_space<vmem>>, vector<32x16xf32>
    tpu.vector_store %arg18[%c0_26, %c32], %68 {strides = array<i32>} : memref<64x64xf32, #tpu.memory_space<vmem>>, vector<32x16xf32>,
    %70 = vector.extract_strided_slice %19 {offsets = [0, 48], sizes = [32, 16], strides = [1, 1]} : vector<64x64xf32> to vector<32x16xf32>
    %71 = vector.extract_strided_slice %20 {offsets = [0, 48], sizes = [32, 16], strides = [1, 1]} : vector<64x64xf32> to vector<32x16xf32>
    %72 = vector.extract_strided_slice %21 {offsets = [0, 48], sizes = [32, 16], strides = [1, 1]} : vector<64x64xf32> to vector<32x16xf32>
    %cst_27 = arith.constant dense<0.000000e+00> : vector<32x32xf32>
    %73 = tpu.matmul %70, %71, %cst_27 {dimension_numbers = #tpu.dot_dimension_numbers<[1], [1], [0], [0], [0, 0, 1, 0], [], []>} : vector<32x16xf32>, vector<32x16xf32>, vector<32x32xf32> -> vector<32x32xf32>
    %cst_28 = arith.constant dense<0xFF800000> : vector<32xf32>
    %74 = vector.multi_reduction <maximumf>, %73, %cst_28 [1] : vector<32x32xf32> to vector<32xf32>
    %75 = vector.shape_cast %74 : vector<32xf32> to vector<32x1xf32>
    %76 = vector.broadcast %75 : vector<32x1xf32> to vector<32x32xf32>
    %77 = arith.subf %73, %76 : vector<32x32xf32>
    %78 = math.exp %77 : vector<32x32xf32>
    %cst_29 = arith.constant dense<0.000000e+00> : vector<32x16xf32>
    %79 = tpu.matmul %78, %72, %cst_29 {dimension_numbers = #tpu.dot_dimension_numbers<[1], [0], [0], [1], [0, 0, 1, 1], [], []>} : vector<32x32xf32>, vector<32x16xf32>, vector<32x16xf32> -> vector<32x16xf32>
    %cst_30 = arith.constant dense<0.000000e+00> : vector<32xf32>
    %80 = vector.multi_reduction <add>, %78, %cst_30 [1] : vector<32x32xf32> to vector<32xf32>
    %81 = vector.shape_cast %80 : vector<32xf32> to vector<32x1xf32>
    %82 = tpu.reciprocal %81 {approx = true} : vector<32x1xf32> -> vector<32x1xf32>
    %83 = vector.broadcast %82 : vector<32x1xf32> to vector<32x16xf32>
    %84 = arith.mulf %79, %83 : vector<32x16xf32>
    %c0_31 = arith.constant 0 : index
    %c48 = arith.constant 48 : index
    %85 = vector.load %arg18[%c0_31, %c48] : memref<64x64xf32, #tpu.memory_space<vmem>>, vector<32x16xf32>
    tpu.vector_store %arg18[%c0_31, %c48], %84 {strides = array<i32>} : memref<64x64xf32, #tpu.memory_space<vmem>>, vector<32x16xf32>,
    %86 = vector.extract_strided_slice %19 {offsets = [32, 0], sizes = [32, 16], strides = [1, 1]} : vector<64x64xf32> to vector<32x16xf32>
    %87 = vector.extract_strided_slice %20 {offsets = [32, 0], sizes = [32, 16], strides = [1, 1]} : vector<64x64xf32> to vector<32x16xf32>
    %88 = vector.extract_strided_slice %21 {offsets = [32, 0], sizes = [32, 16], strides = [1, 1]} : vector<64x64xf32> to vector<32x16xf32>
    %cst_32 = arith.constant dense<0.000000e+00> : vector<32x32xf32>
    %89 = tpu.matmul %86, %87, %cst_32 {dimension_numbers = #tpu.dot_dimension_numbers<[1], [1], [0], [0], [0, 0, 1, 0], [], []>} : vector<32x16xf32>, vector<32x16xf32>, vector<32x32xf32> -> vector<32x32xf32>
    %cst_33 = arith.constant dense<0xFF800000> : vector<32xf32>
    %90 = vector.multi_reduction <maximumf>, %89, %cst_33 [1] : vector<32x32xf32> to vector<32xf32>
    %91 = vector.shape_cast %90 : vector<32xf32> to vector<32x1xf32>
    %92 = vector.broadcast %91 : vector<32x1xf32> to vector<32x32xf32>
    %93 = arith.subf %89, %92 : vector<32x32xf32>
    %94 = math.exp %93 : vector<32x32xf32>
    %cst_34 = arith.constant dense<0.000000e+00> : vector<32x16xf32>
    %95 = tpu.matmul %94, %88, %cst_34 {dimension_numbers = #tpu.dot_dimension_numbers<[1], [0], [0], [1], [0, 0, 1, 1], [], []>} : vector<32x32xf32>, vector<32x16xf32>, vector<32x16xf32> -> vector<32x16xf32>
    %cst_35 = arith.constant dense<0.000000e+00> : vector<32xf32>
    %96 = vector.multi_reduction <add>, %94, %cst_35 [1] : vector<32x32xf32> to vector<32xf32>
    %97 = vector.shape_cast %96 : vector<32xf32> to vector<32x1xf32>
    %98 = tpu.reciprocal %97 {approx = true} : vector<32x1xf32> -> vector<32x1xf32>
    %99 = vector.broadcast %98 : vector<32x1xf32> to vector<32x16xf32>
    %100 = arith.mulf %95, %99 : vector<32x16xf32>
    %c32_36 = arith.constant 32 : index
    %c0_37 = arith.constant 0 : index
    %101 = vector.load %arg18[%c32_36, %c0_37] : memref<64x64xf32, #tpu.memory_space<vmem>>, vector<32x16xf32>
    tpu.vector_store %arg18[%c32_36, %c0_37], %100 {strides = array<i32>} : memref<64x64xf32, #tpu.memory_space<vmem>>, vector<32x16xf32>,
    %102 = vector.extract_strided_slice %19 {offsets = [32, 16], sizes = [32, 16], strides = [1, 1]} : vector<64x64xf32> to vector<32x16xf32>
    %103 = vector.extract_strided_slice %20 {offsets = [32, 16], sizes = [32, 16], strides = [1, 1]} : vector<64x64xf32> to vector<32x16xf32>
    %104 = vector.extract_strided_slice %21 {offsets = [32, 16], sizes = [32, 16], strides = [1, 1]} : vector<64x64xf32> to vector<32x16xf32>
    %cst_38 = arith.constant dense<0.000000e+00> : vector<32x32xf32>
    %105 = tpu.matmul %102, %103, %cst_38 {dimension_numbers = #tpu.dot_dimension_numbers<[1], [1], [0], [0], [0, 0, 1, 0], [], []>} : vector<32x16xf32>, vector<32x16xf32>, vector<32x32xf32> -> vector<32x32xf32>
    %cst_39 = arith.constant dense<0xFF800000> : vector<32xf32>
    %106 = vector.multi_reduction <maximumf>, %105, %cst_39 [1] : vector<32x32xf32> to vector<32xf32>
    %107 = vector.shape_cast %106 : vector<32xf32> to vector<32x1xf32>
    %108 = vector.broadcast %107 : vector<32x1xf32> to vector<32x32xf32>
    %109 = arith.subf %105, %108 : vector<32x32xf32>
    %110 = math.exp %109 : vector<32x32xf32>
    %cst_40 = arith.constant dense<0.000000e+00> : vector<32x16xf32>
    %111 = tpu.matmul %110, %104, %cst_40 {dimension_numbers = #tpu.dot_dimension_numbers<[1], [0], [0], [1], [0, 0, 1, 1], [], []>} : vector<32x32xf32>, vector<32x16xf32>, vector<32x16xf32> -> vector<32x16xf32>
    %cst_41 = arith.constant dense<0.000000e+00> : vector<32xf32>
    %112 = vector.multi_reduction <add>, %110, %cst_41 [1] : vector<32x32xf32> to vector<32xf32>
    %113 = vector.shape_cast %112 : vector<32xf32> to vector<32x1xf32>
    %114 = tpu.reciprocal %113 {approx = true} : vector<32x1xf32> -> vector<32x1xf32>
    %115 = vector.broadcast %114 : vector<32x1xf32> to vector<32x16xf32>
    %116 = arith.mulf %111, %115 : vector<32x16xf32>
    %c32_42 = arith.constant 32 : index
    %c16_43 = arith.constant 16 : index
    %117 = vector.load %arg18[%c32_42, %c16_43] : memref<64x64xf32, #tpu.memory_space<vmem>>, vector<32x16xf32>
    tpu.vector_store %arg18[%c32_42, %c16_43], %116 {strides = array<i32>} : memref<64x64xf32, #tpu.memory_space<vmem>>, vector<32x16xf32>,
    %118 = vector.extract_strided_slice %19 {offsets = [32, 32], sizes = [32, 16], strides = [1, 1]} : vector<64x64xf32> to vector<32x16xf32>
    %119 = vector.extract_strided_slice %20 {offsets = [32, 32], sizes = [32, 16], strides = [1, 1]} : vector<64x64xf32> to vector<32x16xf32>
    %120 = vector.extract_strided_slice %21 {offsets = [32, 32], sizes = [32, 16], strides = [1, 1]} : vector<64x64xf32> to vector<32x16xf32>
    %cst_44 = arith.constant dense<0.000000e+00> : vector<32x32xf32>
    %121 = tpu.matmul %118, %119, %cst_44 {dimension_numbers = #tpu.dot_dimension_numbers<[1], [1], [0], [0], [0, 0, 1, 0], [], []>} : vector<32x16xf32>, vector<32x16xf32>, vector<32x32xf32> -> vector<32x32xf32>
    %cst_45 = arith.constant dense<0xFF800000> : vector<32xf32>
    %122 = vector.multi_reduction <maximumf>, %121, %cst_45 [1] : vector<32x32xf32> to vector<32xf32>
    %123 = vector.shape_cast %122 : vector<32xf32> to vector<32x1xf32>
    %124 = vector.broadcast %123 : vector<32x1xf32> to vector<32x32xf32>
    %125 = arith.subf %121, %124 : vector<32x32xf32>
    %126 = math.exp %125 : vector<32x32xf32>
    %cst_46 = arith.constant dense<0.000000e+00> : vector<32x16xf32>
    %127 = tpu.matmul %126, %120, %cst_46 {dimension_numbers = #tpu.dot_dimension_numbers<[1], [0], [0], [1], [0, 0, 1, 1], [], []>} : vector<32x32xf32>, vector<32x16xf32>, vector<32x16xf32> -> vector<32x16xf32>
    %cst_47 = arith.constant dense<0.000000e+00> : vector<32xf32>
    %128 = vector.multi_reduction <add>, %126, %cst_47 [1] : vector<32x32xf32> to vector<32xf32>
    %129 = vector.shape_cast %128 : vector<32xf32> to vector<32x1xf32>
    %130 = tpu.reciprocal %129 {approx = true} : vector<32x1xf32> -> vector<32x1xf32>
    %131 = vector.broadcast %130 : vector<32x1xf32> to vector<32x16xf32>
    %132 = arith.mulf %127, %131 : vector<32x16xf32>
    %c32_48 = arith.constant 32 : index
    %c32_49 = arith.constant 32 : index
    %133 = vector.load %arg18[%c32_48, %c32_49] : memref<64x64xf32, #tpu.memory_space<vmem>>, vector<32x16xf32>
    tpu.vector_store %arg18[%c32_48, %c32_49], %132 {strides = array<i32>} : memref<64x64xf32, #tpu.memory_space<vmem>>, vector<32x16xf32>,
    %134 = vector.extract_strided_slice %19 {offsets = [32, 48], sizes = [32, 16], strides = [1, 1]} : vector<64x64xf32> to vector<32x16xf32>
    %135 = vector.extract_strided_slice %20 {offsets = [32, 48], sizes = [32, 16], strides = [1, 1]} : vector<64x64xf32> to vector<32x16xf32>
    %136 = vector.extract_strided_slice %21 {offsets = [32, 48], sizes = [32, 16], strides = [1, 1]} : vector<64x64xf32> to vector<32x16xf32>
    %cst_50 = arith.constant dense<0.000000e+00> : vector<32x32xf32>
    %137 = tpu.matmul %134, %135, %cst_50 {dimension_numbers = #tpu.dot_dimension_numbers<[1], [1], [0], [0], [0, 0, 1, 0], [], []>} : vector<32x16xf32>, vector<32x16xf32>, vector<32x32xf32> -> vector<32x32xf32>
    %cst_51 = arith.constant dense<0xFF800000> : vector<32xf32>
    %138 = vector.multi_reduction <maximumf>, %137, %cst_51 [1] : vector<32x32xf32> to vector<32xf32>
    %139 = vector.shape_cast %138 : vector<32xf32> to vector<32x1xf32>
    %140 = vector.broadcast %139 : vector<32x1xf32> to vector<32x32xf32>
    %141 = arith.subf %137, %140 : vector<32x32xf32>
    %142 = math.exp %141 : vector<32x32xf32>
    %cst_52 = arith.constant dense<0.000000e+00> : vector<32x16xf32>
    %143 = tpu.matmul %142, %136, %cst_52 {dimension_numbers = #tpu.dot_dimension_numbers<[1], [0], [0], [1], [0, 0, 1, 1], [], []>} : vector<32x32xf32>, vector<32x16xf32>, vector<32x16xf32> -> vector<32x16xf32>
    %cst_53 = arith.constant dense<0.000000e+00> : vector<32xf32>
    %144 = vector.multi_reduction <add>, %142, %cst_53 [1] : vector<32x32xf32> to vector<32xf32>
    %145 = vector.shape_cast %144 : vector<32xf32> to vector<32x1xf32>
    %146 = tpu.reciprocal %145 {approx = true} : vector<32x1xf32> -> vector<32x1xf32>
    %147 = vector.broadcast %146 : vector<32x1xf32> to vector<32x16xf32>
    %148 = arith.mulf %143, %147 : vector<32x16xf32>
    %c32_54 = arith.constant 32 : index
    %c48_55 = arith.constant 48 : index
    %149 = vector.load %arg18[%c32_54, %c48_55] : memref<64x64xf32, #tpu.memory_space<vmem>>, vector<32x16xf32>
    tpu.vector_store %arg18[%c32_54, %c48_55], %148 {strides = array<i32>} : memref<64x64xf32, #tpu.memory_space<vmem>>, vector<32x16xf32>,
    %c0_56 = arith.constant 0 : index
    %c0_57 = arith.constant 0 : index
    %150 = vector.load %arg18[%c0_56, %c0_57] : memref<64x64xf32, #tpu.memory_space<vmem>>, vector<64x64xf32>
    %c0_58 = arith.constant 0 : index
    %c0_59 = arith.constant 0 : index
    %c0_60 = arith.constant 0 : index
    %151 = vector.load %arg5[%c0_58, %c0_59, %c0_60] : memref<2x64x64xf32, #tpu.memory_space<vmem>>, vector<1x64x64xf32>
    %152 = vector.shape_cast %151 : vector<1x64x64xf32> to vector<64x64xf32>
    %cst_61 = arith.constant dense<0.000000e+00> : vector<64x64xf32>
    %153 = tpu.matmul %150, %152, %cst_61 {dimension_numbers = #tpu.dot_dimension_numbers<[1], [0], [0], [1], [0, 0, 1, 1], [], []>} : vector<64x64xf32>, vector<64x64xf32>, vector<64x64xf32> -> vector<64x64xf32>
    %c0_62 = arith.constant 0 : index
    %c0_63 = arith.constant 0 : index
    %c0_64 = arith.constant 0 : index
    %154 = vector.load %arg6[%c0_62, %c0_63, %c0_64] : memref<2x1x64xf32, #tpu.memory_space<vmem>>, vector<1x1x64xf32>
    %155 = vector.shape_cast %154 : vector<1x1x64xf32> to vector<1x64xf32>
    %156 = vector.broadcast %155 : vector<1x64xf32> to vector<64x64xf32>
    %157 = arith.addf %153, %156 : vector<64x64xf32>
    %158 = arith.addf %11, %157 : vector<64x64xf32>
    %c0_65 = arith.constant 0 : index
    %c0_66 = arith.constant 0 : index
    %c0_67 = arith.constant 0 : index
    %159 = vector.load %arg7[%c0_65, %c0_66, %c0_67] : memref<2x1x64xf32, #tpu.memory_space<vmem>>, vector<1x1x64xf32>
    %160 = vector.shape_cast %159 : vector<1x1x64xf32> to vector<1x64xf32>
    %c0_68 = arith.constant 0 : index
    %c0_69 = arith.constant 0 : index
    %c0_70 = arith.constant 0 : index
    %161 = vector.load %arg8[%c0_68, %c0_69, %c0_70] : memref<2x1x64xf32, #tpu.memory_space<vmem>>, vector<1x1x64xf32>
    %162 = vector.shape_cast %161 : vector<1x1x64xf32> to vector<1x64xf32>
    %cst_71 = arith.constant dense<0.000000e+00> : vector<64xf32>
    %163 = vector.multi_reduction <add>, %158, %cst_71 [1] : vector<64x64xf32> to vector<64xf32>
    %164 = vector.shape_cast %163 : vector<64xf32> to vector<64x1xf32>
    %cst_72 = arith.constant 6.400000e+01 : f32
    %165 = vector.broadcast %cst_72 : f32 to vector<64x1xf32>
    %166 = arith.divf %164, %165 : vector<64x1xf32>
    %167 = vector.broadcast %166 : vector<64x1xf32> to vector<64x64xf32>
    %168 = arith.subf %158, %167 : vector<64x64xf32>
    %169 = arith.mulf %168, %168 : vector<64x64xf32>
    %cst_73 = arith.constant dense<0.000000e+00> : vector<64xf32>
    %170 = vector.multi_reduction <add>, %169, %cst_73 [1] : vector<64x64xf32> to vector<64xf32>
    %171 = vector.shape_cast %170 : vector<64xf32> to vector<64x1xf32>
    %cst_74 = arith.constant 6.400000e+01 : f32
    %172 = vector.broadcast %cst_74 : f32 to vector<64x1xf32>
    %173 = arith.divf %171, %172 : vector<64x1xf32>
    %174 = vector.broadcast %166 : vector<64x1xf32> to vector<64x64xf32>
    %175 = arith.subf %158, %174 : vector<64x64xf32>
    %cst_75 = arith.constant 9.99999974E-6 : f32
    %176 = vector.broadcast %cst_75 : f32 to vector<64x1xf32>
    %177 = arith.addf %173, %176 : vector<64x1xf32>
    %178 = math.rsqrt %177 : vector<64x1xf32>
    %179 = vector.broadcast %178 : vector<64x1xf32> to vector<64x64xf32>
    %180 = arith.mulf %175, %179 : vector<64x64xf32>
    %181 = vector.broadcast %160 : vector<1x64xf32> to vector<64x64xf32>
    %182 = arith.mulf %180, %181 : vector<64x64xf32>
    %183 = vector.broadcast %162 : vector<1x64xf32> to vector<64x64xf32>
    %184 = arith.addf %182, %183 : vector<64x64xf32>
    %c0_76 = arith.constant 0 : index
    %c0_77 = arith.constant 0 : index
    %c0_78 = arith.constant 0 : index
    %185 = vector.load %arg9[%c0_76, %c0_77, %c0_78] : memref<2x64x2048xf32, #tpu.memory_space<vmem>>, vector<1x64x2048xf32>
    %186 = vector.shape_cast %185 : vector<1x64x2048xf32> to vector<64x2048xf32>
    %cst_79 = arith.constant dense<0.000000e+00> : vector<64x2048xf32>
    %187 = tpu.matmul %184, %186, %cst_79 {dimension_numbers = #tpu.dot_dimension_numbers<[1], [0], [0], [1], [0, 0, 1, 1], [], []>} : vector<64x64xf32>, vector<64x2048xf32>, vector<64x2048xf32> -> vector<64x2048xf32>
    %c0_80 = arith.constant 0 : index
    %c0_81 = arith.constant 0 : index
    %c0_82 = arith.constant 0 : index
    %188 = vector.load %arg10[%c0_80, %c0_81, %c0_82] : memref<2x1x2048xf32, #tpu.memory_space<vmem>>, vector<1x1x2048xf32>
    %189 = vector.shape_cast %188 : vector<1x1x2048xf32> to vector<1x2048xf32>
    %190 = vector.broadcast %189 : vector<1x2048xf32> to vector<64x2048xf32>
    %191 = arith.addf %187, %190 : vector<64x2048xf32>
    %cst_83 = arith.constant 0.000000e+00 : f32
    %192 = vector.broadcast %cst_83 : f32 to vector<64x2048xf32>
    %193 = arith.maximumf %191, %192 : vector<64x2048xf32>
    %c0_84 = arith.constant 0 : index
    %c0_85 = arith.constant 0 : index
    %c0_86 = arith.constant 0 : index
    %194 = vector.load %arg11[%c0_84, %c0_85, %c0_86] : memref<2x2048x64xf32, #tpu.memory_space<vmem>>, vector<1x2048x64xf32>
    %195 = vector.shape_cast %194 : vector<1x2048x64xf32> to vector<2048x64xf32>
    %cst_87 = arith.constant dense<0.000000e+00> : vector<64x64xf32>
    %196 = tpu.matmul %193, %195, %cst_87 {dimension_numbers = #tpu.dot_dimension_numbers<[1], [0], [0], [1], [0, 0, 1, 1], [], []>} : vector<64x2048xf32>, vector<2048x64xf32>, vector<64x64xf32> -> vector<64x64xf32>
    %c0_88 = arith.constant 0 : index
    %c0_89 = arith.constant 0 : index
    %c0_90 = arith.constant 0 : index
    %197 = vector.load %arg12[%c0_88, %c0_89, %c0_90] : memref<2x1x64xf32, #tpu.memory_space<vmem>>, vector<1x1x64xf32>
    %198 = vector.shape_cast %197 : vector<1x1x64xf32> to vector<1x64xf32>
    %199 = vector.broadcast %198 : vector<1x64xf32> to vector<64x64xf32>
    %200 = arith.addf %196, %199 : vector<64x64xf32>
    %201 = arith.addf %184, %200 : vector<64x64xf32>
    %c0_91 = arith.constant 0 : index
    %c0_92 = arith.constant 0 : index
    %c0_93 = arith.constant 0 : index
    %202 = vector.load %arg13[%c0_91, %c0_92, %c0_93] : memref<2x1x64xf32, #tpu.memory_space<vmem>>, vector<1x1x64xf32>
    %203 = vector.shape_cast %202 : vector<1x1x64xf32> to vector<1x64xf32>
    %c0_94 = arith.constant 0 : index
    %c0_95 = arith.constant 0 : index
    %c0_96 = arith.constant 0 : index
    %204 = vector.load %arg14[%c0_94, %c0_95, %c0_96] : memref<2x1x64xf32, #tpu.memory_space<vmem>>, vector<1x1x64xf32>
    %205 = vector.shape_cast %204 : vector<1x1x64xf32> to vector<1x64xf32>
    %cst_97 = arith.constant dense<0.000000e+00> : vector<64xf32>
    %206 = vector.multi_reduction <add>, %201, %cst_97 [1] : vector<64x64xf32> to vector<64xf32>
    %207 = vector.shape_cast %206 : vector<64xf32> to vector<64x1xf32>
    %cst_98 = arith.constant 6.400000e+01 : f32
    %208 = vector.broadcast %cst_98 : f32 to vector<64x1xf32>
    %209 = arith.divf %207, %208 : vector<64x1xf32>
    %210 = vector.broadcast %209 : vector<64x1xf32> to vector<64x64xf32>
    %211 = arith.subf %201, %210 : vector<64x64xf32>
    %212 = arith.mulf %211, %211 : vector<64x64xf32>
    %cst_99 = arith.constant dense<0.000000e+00> : vector<64xf32>
    %213 = vector.multi_reduction <add>, %212, %cst_99 [1] : vector<64x64xf32> to vector<64xf32>
    %214 = vector.shape_cast %213 : vector<64xf32> to vector<64x1xf32>
    %cst_100 = arith.constant 6.400000e+01 : f32
    %215 = vector.broadcast %cst_100 : f32 to vector<64x1xf32>
    %216 = arith.divf %214, %215 : vector<64x1xf32>
    %217 = vector.broadcast %209 : vector<64x1xf32> to vector<64x64xf32>
    %218 = arith.subf %201, %217 : vector<64x64xf32>
    %cst_101 = arith.constant 9.99999974E-6 : f32
    %219 = vector.broadcast %cst_101 : f32 to vector<64x1xf32>
    %220 = arith.addf %216, %219 : vector<64x1xf32>
    %221 = math.rsqrt %220 : vector<64x1xf32>
    %222 = vector.broadcast %221 : vector<64x1xf32> to vector<64x64xf32>
    %223 = arith.mulf %218, %222 : vector<64x64xf32>
    %224 = vector.broadcast %203 : vector<1x64xf32> to vector<64x64xf32>
    %225 = arith.mulf %223, %224 : vector<64x64xf32>
    %226 = vector.broadcast %205 : vector<1x64xf32> to vector<64x64xf32>
    %227 = arith.addf %225, %226 : vector<64x64xf32>
    %c1 = arith.constant 1 : index
    %c0_102 = arith.constant 0 : index
    %c0_103 = arith.constant 0 : index
    %228 = vector.load %arg3[%c1, %c0_102, %c0_103] : memref<2x64x192xf32, #tpu.memory_space<vmem>>, vector<1x64x192xf32>
    %229 = vector.shape_cast %228 : vector<1x64x192xf32> to vector<64x192xf32>
    %cst_104 = arith.constant dense<0.000000e+00> : vector<64x192xf32>
    %230 = tpu.matmul %227, %229, %cst_104 {dimension_numbers = #tpu.dot_dimension_numbers<[1], [0], [0], [1], [0, 0, 1, 1], [], []>} : vector<64x64xf32>, vector<64x192xf32>, vector<64x192xf32> -> vector<64x192xf32>
    %c1_105 = arith.constant 1 : index
    %c0_106 = arith.constant 0 : index
    %c0_107 = arith.constant 0 : index
    %231 = vector.load %arg4[%c1_105, %c0_106, %c0_107] : memref<2x1x192xf32, #tpu.memory_space<vmem>>, vector<1x1x192xf32>
    %232 = vector.shape_cast %231 : vector<1x1x192xf32> to vector<1x192xf32>
    %233 = vector.broadcast %232 : vector<1x192xf32> to vector<64x192xf32>
    %234 = arith.addf %230, %233 : vector<64x192xf32>
    %235 = vector.extract_strided_slice %234 {offsets = [0, 0], sizes = [64, 64], strides = [1, 1]} : vector<64x192xf32> to vector<64x64xf32>
    %236 = vector.extract_strided_slice %234 {offsets = [0, 64], sizes = [64, 64], strides = [1, 1]} : vector<64x192xf32> to vector<64x64xf32>
    %237 = vector.extract_strided_slice %234 {offsets = [0, 128], sizes = [64, 64], strides = [1, 1]} : vector<64x192xf32> to vector<64x64xf32>
    %238 = vector.extract_strided_slice %235 {offsets = [0, 0], sizes = [32, 16], strides = [1, 1]} : vector<64x64xf32> to vector<32x16xf32>
    %239 = vector.extract_strided_slice %236 {offsets = [0, 0], sizes = [32, 16], strides = [1, 1]} : vector<64x64xf32> to vector<32x16xf32>
    %240 = vector.extract_strided_slice %237 {offsets = [0, 0], sizes = [32, 16], strides = [1, 1]} : vector<64x64xf32> to vector<32x16xf32>
    %cst_108 = arith.constant dense<0.000000e+00> : vector<32x32xf32>
    %241 = tpu.matmul %238, %239, %cst_108 {dimension_numbers = #tpu.dot_dimension_numbers<[1], [1], [0], [0], [0, 0, 1, 0], [], []>} : vector<32x16xf32>, vector<32x16xf32>, vector<32x32xf32> -> vector<32x32xf32>
    %cst_109 = arith.constant dense<0xFF800000> : vector<32xf32>
    %242 = vector.multi_reduction <maximumf>, %241, %cst_109 [1] : vector<32x32xf32> to vector<32xf32>
    %243 = vector.shape_cast %242 : vector<32xf32> to vector<32x1xf32>
    %244 = vector.broadcast %243 : vector<32x1xf32> to vector<32x32xf32>
    %245 = arith.subf %241, %244 : vector<32x32xf32>
    %246 = math.exp %245 : vector<32x32xf32>
    %cst_110 = arith.constant dense<0.000000e+00> : vector<32x16xf32>
    %247 = tpu.matmul %246, %240, %cst_110 {dimension_numbers = #tpu.dot_dimension_numbers<[1], [0], [0], [1], [0, 0, 1, 1], [], []>} : vector<32x32xf32>, vector<32x16xf32>, vector<32x16xf32> -> vector<32x16xf32>
    %cst_111 = arith.constant dense<0.000000e+00> : vector<32xf32>
    %248 = vector.multi_reduction <add>, %246, %cst_111 [1] : vector<32x32xf32> to vector<32xf32>
    %249 = vector.shape_cast %248 : vector<32xf32> to vector<32x1xf32>
    %250 = tpu.reciprocal %249 {approx = true} : vector<32x1xf32> -> vector<32x1xf32>
    %251 = vector.broadcast %250 : vector<32x1xf32> to vector<32x16xf32>
    %252 = arith.mulf %247, %251 : vector<32x16xf32>
    %c0_112 = arith.constant 0 : index
    %c0_113 = arith.constant 0 : index
    %253 = vector.load %arg18[%c0_112, %c0_113] : memref<64x64xf32, #tpu.memory_space<vmem>>, vector<32x16xf32>
    tpu.vector_store %arg18[%c0_112, %c0_113], %252 {strides = array<i32>} : memref<64x64xf32, #tpu.memory_space<vmem>>, vector<32x16xf32>,
    %254 = vector.extract_strided_slice %235 {offsets = [0, 16], sizes = [32, 16], strides = [1, 1]} : vector<64x64xf32> to vector<32x16xf32>
    %255 = vector.extract_strided_slice %236 {offsets = [0, 16], sizes = [32, 16], strides = [1, 1]} : vector<64x64xf32> to vector<32x16xf32>
    %256 = vector.extract_strided_slice %237 {offsets = [0, 16], sizes = [32, 16], strides = [1, 1]} : vector<64x64xf32> to vector<32x16xf32>
    %cst_114 = arith.constant dense<0.000000e+00> : vector<32x32xf32>
    %257 = tpu.matmul %254, %255, %cst_114 {dimension_numbers = #tpu.dot_dimension_numbers<[1], [1], [0], [0], [0, 0, 1, 0], [], []>} : vector<32x16xf32>, vector<32x16xf32>, vector<32x32xf32> -> vector<32x32xf32>
    %cst_115 = arith.constant dense<0xFF800000> : vector<32xf32>
    %258 = vector.multi_reduction <maximumf>, %257, %cst_115 [1] : vector<32x32xf32> to vector<32xf32>
    %259 = vector.shape_cast %258 : vector<32xf32> to vector<32x1xf32>
    %260 = vector.broadcast %259 : vector<32x1xf32> to vector<32x32xf32>
    %261 = arith.subf %257, %260 : vector<32x32xf32>
    %262 = math.exp %261 : vector<32x32xf32>
    %cst_116 = arith.constant dense<0.000000e+00> : vector<32x16xf32>
    %263 = tpu.matmul %262, %256, %cst_116 {dimension_numbers = #tpu.dot_dimension_numbers<[1], [0], [0], [1], [0, 0, 1, 1], [], []>} : vector<32x32xf32>, vector<32x16xf32>, vector<32x16xf32> -> vector<32x16xf32>
    %cst_117 = arith.constant dense<0.000000e+00> : vector<32xf32>
    %264 = vector.multi_reduction <add>, %262, %cst_117 [1] : vector<32x32xf32> to vector<32xf32>
    %265 = vector.shape_cast %264 : vector<32xf32> to vector<32x1xf32>
    %266 = tpu.reciprocal %265 {approx = true} : vector<32x1xf32> -> vector<32x1xf32>
    %267 = vector.broadcast %266 : vector<32x1xf32> to vector<32x16xf32>
    %268 = arith.mulf %263, %267 : vector<32x16xf32>
    %c0_118 = arith.constant 0 : index
    %c16_119 = arith.constant 16 : index
    %269 = vector.load %arg18[%c0_118, %c16_119] : memref<64x64xf32, #tpu.memory_space<vmem>>, vector<32x16xf32>
    tpu.vector_store %arg18[%c0_118, %c16_119], %268 {strides = array<i32>} : memref<64x64xf32, #tpu.memory_space<vmem>>, vector<32x16xf32>,
    %270 = vector.extract_strided_slice %235 {offsets = [0, 32], sizes = [32, 16], strides = [1, 1]} : vector<64x64xf32> to vector<32x16xf32>
    %271 = vector.extract_strided_slice %236 {offsets = [0, 32], sizes = [32, 16], strides = [1, 1]} : vector<64x64xf32> to vector<32x16xf32>
    %272 = vector.extract_strided_slice %237 {offsets = [0, 32], sizes = [32, 16], strides = [1, 1]} : vector<64x64xf32> to vector<32x16xf32>
    %cst_120 = arith.constant dense<0.000000e+00> : vector<32x32xf32>
    %273 = tpu.matmul %270, %271, %cst_120 {dimension_numbers = #tpu.dot_dimension_numbers<[1], [1], [0], [0], [0, 0, 1, 0], [], []>} : vector<32x16xf32>, vector<32x16xf32>, vector<32x32xf32> -> vector<32x32xf32>
    %cst_121 = arith.constant dense<0xFF800000> : vector<32xf32>
    %274 = vector.multi_reduction <maximumf>, %273, %cst_121 [1] : vector<32x32xf32> to vector<32xf32>
    %275 = vector.shape_cast %274 : vector<32xf32> to vector<32x1xf32>
    %276 = vector.broadcast %275 : vector<32x1xf32> to vector<32x32xf32>
    %277 = arith.subf %273, %276 : vector<32x32xf32>
    %278 = math.exp %277 : vector<32x32xf32>
    %cst_122 = arith.constant dense<0.000000e+00> : vector<32x16xf32>
    %279 = tpu.matmul %278, %272, %cst_122 {dimension_numbers = #tpu.dot_dimension_numbers<[1], [0], [0], [1], [0, 0, 1, 1], [], []>} : vector<32x32xf32>, vector<32x16xf32>, vector<32x16xf32> -> vector<32x16xf32>
    %cst_123 = arith.constant dense<0.000000e+00> : vector<32xf32>
    %280 = vector.multi_reduction <add>, %278, %cst_123 [1] : vector<32x32xf32> to vector<32xf32>
    %281 = vector.shape_cast %280 : vector<32xf32> to vector<32x1xf32>
    %282 = tpu.reciprocal %281 {approx = true} : vector<32x1xf32> -> vector<32x1xf32>
    %283 = vector.broadcast %282 : vector<32x1xf32> to vector<32x16xf32>
    %284 = arith.mulf %279, %283 : vector<32x16xf32>
    %c0_124 = arith.constant 0 : index
    %c32_125 = arith.constant 32 : index
    %285 = vector.load %arg18[%c0_124, %c32_125] : memref<64x64xf32, #tpu.memory_space<vmem>>, vector<32x16xf32>
    tpu.vector_store %arg18[%c0_124, %c32_125], %284 {strides = array<i32>} : memref<64x64xf32, #tpu.memory_space<vmem>>, vector<32x16xf32>,
    %286 = vector.extract_strided_slice %235 {offsets = [0, 48], sizes = [32, 16], strides = [1, 1]} : vector<64x64xf32> to vector<32x16xf32>
    %287 = vector.extract_strided_slice %236 {offsets = [0, 48], sizes = [32, 16], strides = [1, 1]} : vector<64x64xf32> to vector<32x16xf32>
    %288 = vector.extract_strided_slice %237 {offsets = [0, 48], sizes = [32, 16], strides = [1, 1]} : vector<64x64xf32> to vector<32x16xf32>
    %cst_126 = arith.constant dense<0.000000e+00> : vector<32x32xf32>
    %289 = tpu.matmul %286, %287, %cst_126 {dimension_numbers = #tpu.dot_dimension_numbers<[1], [1], [0], [0], [0, 0, 1, 0], [], []>} : vector<32x16xf32>, vector<32x16xf32>, vector<32x32xf32> -> vector<32x32xf32>
    %cst_127 = arith.constant dense<0xFF800000> : vector<32xf32>
    %290 = vector.multi_reduction <maximumf>, %289, %cst_127 [1] : vector<32x32xf32> to vector<32xf32>
    %291 = vector.shape_cast %290 : vector<32xf32> to vector<32x1xf32>
    %292 = vector.broadcast %291 : vector<32x1xf32> to vector<32x32xf32>
    %293 = arith.subf %289, %292 : vector<32x32xf32>
    %294 = math.exp %293 : vector<32x32xf32>
    %cst_128 = arith.constant dense<0.000000e+00> : vector<32x16xf32>
    %295 = tpu.matmul %294, %288, %cst_128 {dimension_numbers = #tpu.dot_dimension_numbers<[1], [0], [0], [1], [0, 0, 1, 1], [], []>} : vector<32x32xf32>, vector<32x16xf32>, vector<32x16xf32> -> vector<32x16xf32>
    %cst_129 = arith.constant dense<0.000000e+00> : vector<32xf32>
    %296 = vector.multi_reduction <add>, %294, %cst_129 [1] : vector<32x32xf32> to vector<32xf32>
    %297 = vector.shape_cast %296 : vector<32xf32> to vector<32x1xf32>
    %298 = tpu.reciprocal %297 {approx = true} : vector<32x1xf32> -> vector<32x1xf32>
    %299 = vector.broadcast %298 : vector<32x1xf32> to vector<32x16xf32>
    %300 = arith.mulf %295, %299 : vector<32x16xf32>
    %c0_130 = arith.constant 0 : index
    %c48_131 = arith.constant 48 : index
    %301 = vector.load %arg18[%c0_130, %c48_131] : memref<64x64xf32, #tpu.memory_space<vmem>>, vector<32x16xf32>
    tpu.vector_store %arg18[%c0_130, %c48_131], %300 {strides = array<i32>} : memref<64x64xf32, #tpu.memory_space<vmem>>, vector<32x16xf32>,
    %302 = vector.extract_strided_slice %235 {offsets = [32, 0], sizes = [32, 16], strides = [1, 1]} : vector<64x64xf32> to vector<32x16xf32>
    %303 = vector.extract_strided_slice %236 {offsets = [32, 0], sizes = [32, 16], strides = [1, 1]} : vector<64x64xf32> to vector<32x16xf32>
    %304 = vector.extract_strided_slice %237 {offsets = [32, 0], sizes = [32, 16], strides = [1, 1]} : vector<64x64xf32> to vector<32x16xf32>
    %cst_132 = arith.constant dense<0.000000e+00> : vector<32x32xf32>
    %305 = tpu.matmul %302, %303, %cst_132 {dimension_numbers = #tpu.dot_dimension_numbers<[1], [1], [0], [0], [0, 0, 1, 0], [], []>} : vector<32x16xf32>, vector<32x16xf32>, vector<32x32xf32> -> vector<32x32xf32>
    %cst_133 = arith.constant dense<0xFF800000> : vector<32xf32>
    %306 = vector.multi_reduction <maximumf>, %305, %cst_133 [1] : vector<32x32xf32> to vector<32xf32>
    %307 = vector.shape_cast %306 : vector<32xf32> to vector<32x1xf32>
    %308 = vector.broadcast %307 : vector<32x1xf32> to vector<32x32xf32>
    %309 = arith.subf %305, %308 : vector<32x32xf32>
    %310 = math.exp %309 : vector<32x32xf32>
    %cst_134 = arith.constant dense<0.000000e+00> : vector<32x16xf32>
    %311 = tpu.matmul %310, %304, %cst_134 {dimension_numbers = #tpu.dot_dimension_numbers<[1], [0], [0], [1], [0, 0, 1, 1], [], []>} : vector<32x32xf32>, vector<32x16xf32>, vector<32x16xf32> -> vector<32x16xf32>
    %cst_135 = arith.constant dense<0.000000e+00> : vector<32xf32>
    %312 = vector.multi_reduction <add>, %310, %cst_135 [1] : vector<32x32xf32> to vector<32xf32>
    %313 = vector.shape_cast %312 : vector<32xf32> to vector<32x1xf32>
    %314 = tpu.reciprocal %313 {approx = true} : vector<32x1xf32> -> vector<32x1xf32>
    %315 = vector.broadcast %314 : vector<32x1xf32> to vector<32x16xf32>
    %316 = arith.mulf %311, %315 : vector<32x16xf32>
    %c32_136 = arith.constant 32 : index
    %c0_137 = arith.constant 0 : index
    %317 = vector.load %arg18[%c32_136, %c0_137] : memref<64x64xf32, #tpu.memory_space<vmem>>, vector<32x16xf32>
    tpu.vector_store %arg18[%c32_136, %c0_137], %316 {strides = array<i32>} : memref<64x64xf32, #tpu.memory_space<vmem>>, vector<32x16xf32>,
    %318 = vector.extract_strided_slice %235 {offsets = [32, 16], sizes = [32, 16], strides = [1, 1]} : vector<64x64xf32> to vector<32x16xf32>
    %319 = vector.extract_strided_slice %236 {offsets = [32, 16], sizes = [32, 16], strides = [1, 1]} : vector<64x64xf32> to vector<32x16xf32>
    %320 = vector.extract_strided_slice %237 {offsets = [32, 16], sizes = [32, 16], strides = [1, 1]} : vector<64x64xf32> to vector<32x16xf32>
    %cst_138 = arith.constant dense<0.000000e+00> : vector<32x32xf32>
    %321 = tpu.matmul %318, %319, %cst_138 {dimension_numbers = #tpu.dot_dimension_numbers<[1], [1], [0], [0], [0, 0, 1, 0], [], []>} : vector<32x16xf32>, vector<32x16xf32>, vector<32x32xf32> -> vector<32x32xf32>
    %cst_139 = arith.constant dense<0xFF800000> : vector<32xf32>
    %322 = vector.multi_reduction <maximumf>, %321, %cst_139 [1] : vector<32x32xf32> to vector<32xf32>
    %323 = vector.shape_cast %322 : vector<32xf32> to vector<32x1xf32>
    %324 = vector.broadcast %323 : vector<32x1xf32> to vector<32x32xf32>
    %325 = arith.subf %321, %324 : vector<32x32xf32>
    %326 = math.exp %325 : vector<32x32xf32>
    %cst_140 = arith.constant dense<0.000000e+00> : vector<32x16xf32>
    %327 = tpu.matmul %326, %320, %cst_140 {dimension_numbers = #tpu.dot_dimension_numbers<[1], [0], [0], [1], [0, 0, 1, 1], [], []>} : vector<32x32xf32>, vector<32x16xf32>, vector<32x16xf32> -> vector<32x16xf32>
    %cst_141 = arith.constant dense<0.000000e+00> : vector<32xf32>
    %328 = vector.multi_reduction <add>, %326, %cst_141 [1] : vector<32x32xf32> to vector<32xf32>
    %329 = vector.shape_cast %328 : vector<32xf32> to vector<32x1xf32>
    %330 = tpu.reciprocal %329 {approx = true} : vector<32x1xf32> -> vector<32x1xf32>
    %331 = vector.broadcast %330 : vector<32x1xf32> to vector<32x16xf32>
    %332 = arith.mulf %327, %331 : vector<32x16xf32>
    %c32_142 = arith.constant 32 : index
    %c16_143 = arith.constant 16 : index
    %333 = vector.load %arg18[%c32_142, %c16_143] : memref<64x64xf32, #tpu.memory_space<vmem>>, vector<32x16xf32>
    tpu.vector_store %arg18[%c32_142, %c16_143], %332 {strides = array<i32>} : memref<64x64xf32, #tpu.memory_space<vmem>>, vector<32x16xf32>,
    %334 = vector.extract_strided_slice %235 {offsets = [32, 32], sizes = [32, 16], strides = [1, 1]} : vector<64x64xf32> to vector<32x16xf32>
    %335 = vector.extract_strided_slice %236 {offsets = [32, 32], sizes = [32, 16], strides = [1, 1]} : vector<64x64xf32> to vector<32x16xf32>
    %336 = vector.extract_strided_slice %237 {offsets = [32, 32], sizes = [32, 16], strides = [1, 1]} : vector<64x64xf32> to vector<32x16xf32>
    %cst_144 = arith.constant dense<0.000000e+00> : vector<32x32xf32>
    %337 = tpu.matmul %334, %335, %cst_144 {dimension_numbers = #tpu.dot_dimension_numbers<[1], [1], [0], [0], [0, 0, 1, 0], [], []>} : vector<32x16xf32>, vector<32x16xf32>, vector<32x32xf32> -> vector<32x32xf32>
    %cst_145 = arith.constant dense<0xFF800000> : vector<32xf32>
    %338 = vector.multi_reduction <maximumf>, %337, %cst_145 [1] : vector<32x32xf32> to vector<32xf32>
    %339 = vector.shape_cast %338 : vector<32xf32> to vector<32x1xf32>
    %340 = vector.broadcast %339 : vector<32x1xf32> to vector<32x32xf32>
    %341 = arith.subf %337, %340 : vector<32x32xf32>
    %342 = math.exp %341 : vector<32x32xf32>
    %cst_146 = arith.constant dense<0.000000e+00> : vector<32x16xf32>
    %343 = tpu.matmul %342, %336, %cst_146 {dimension_numbers = #tpu.dot_dimension_numbers<[1], [0], [0], [1], [0, 0, 1, 1], [], []>} : vector<32x32xf32>, vector<32x16xf32>, vector<32x16xf32> -> vector<32x16xf32>
    %cst_147 = arith.constant dense<0.000000e+00> : vector<32xf32>
    %344 = vector.multi_reduction <add>, %342, %cst_147 [1] : vector<32x32xf32> to vector<32xf32>
    %345 = vector.shape_cast %344 : vector<32xf32> to vector<32x1xf32>
    %346 = tpu.reciprocal %345 {approx = true} : vector<32x1xf32> -> vector<32x1xf32>
    %347 = vector.broadcast %346 : vector<32x1xf32> to vector<32x16xf32>
    %348 = arith.mulf %343, %347 : vector<32x16xf32>
    %c32_148 = arith.constant 32 : index
    %c32_149 = arith.constant 32 : index
    %349 = vector.load %arg18[%c32_148, %c32_149] : memref<64x64xf32, #tpu.memory_space<vmem>>, vector<32x16xf32>
    tpu.vector_store %arg18[%c32_148, %c32_149], %348 {strides = array<i32>} : memref<64x64xf32, #tpu.memory_space<vmem>>, vector<32x16xf32>,
    %350 = vector.extract_strided_slice %235 {offsets = [32, 48], sizes = [32, 16], strides = [1, 1]} : vector<64x64xf32> to vector<32x16xf32>
    %351 = vector.extract_strided_slice %236 {offsets = [32, 48], sizes = [32, 16], strides = [1, 1]} : vector<64x64xf32> to vector<32x16xf32>
    %352 = vector.extract_strided_slice %237 {offsets = [32, 48], sizes = [32, 16], strides = [1, 1]} : vector<64x64xf32> to vector<32x16xf32>
    %cst_150 = arith.constant dense<0.000000e+00> : vector<32x32xf32>
    %353 = tpu.matmul %350, %351, %cst_150 {dimension_numbers = #tpu.dot_dimension_numbers<[1], [1], [0], [0], [0, 0, 1, 0], [], []>} : vector<32x16xf32>, vector<32x16xf32>, vector<32x32xf32> -> vector<32x32xf32>
    %cst_151 = arith.constant dense<0xFF800000> : vector<32xf32>
    %354 = vector.multi_reduction <maximumf>, %353, %cst_151 [1] : vector<32x32xf32> to vector<32xf32>
    %355 = vector.shape_cast %354 : vector<32xf32> to vector<32x1xf32>
    %356 = vector.broadcast %355 : vector<32x1xf32> to vector<32x32xf32>
    %357 = arith.subf %353, %356 : vector<32x32xf32>
    %358 = math.exp %357 : vector<32x32xf32>
    %cst_152 = arith.constant dense<0.000000e+00> : vector<32x16xf32>
    %359 = tpu.matmul %358, %352, %cst_152 {dimension_numbers = #tpu.dot_dimension_numbers<[1], [0], [0], [1], [0, 0, 1, 1], [], []>} : vector<32x32xf32>, vector<32x16xf32>, vector<32x16xf32> -> vector<32x16xf32>
    %cst_153 = arith.constant dense<0.000000e+00> : vector<32xf32>
    %360 = vector.multi_reduction <add>, %358, %cst_153 [1] : vector<32x32xf32> to vector<32xf32>
    %361 = vector.shape_cast %360 : vector<32xf32> to vector<32x1xf32>
    %362 = tpu.reciprocal %361 {approx = true} : vector<32x1xf32> -> vector<32x1xf32>
    %363 = vector.broadcast %362 : vector<32x1xf32> to vector<32x16xf32>
    %364 = arith.mulf %359, %363 : vector<32x16xf32>
    %c32_154 = arith.constant 32 : index
    %c48_155 = arith.constant 48 : index
    %365 = vector.load %arg18[%c32_154, %c48_155] : memref<64x64xf32, #tpu.memory_space<vmem>>, vector<32x16xf32>
    tpu.vector_store %arg18[%c32_154, %c48_155], %364 {strides = array<i32>} : memref<64x64xf32, #tpu.memory_space<vmem>>, vector<32x16xf32>,
    %c0_156 = arith.constant 0 : index
    %c0_157 = arith.constant 0 : index
    %366 = vector.load %arg18[%c0_156, %c0_157] : memref<64x64xf32, #tpu.memory_space<vmem>>, vector<64x64xf32>
    %c1_158 = arith.constant 1 : index
    %c0_159 = arith.constant 0 : index
    %c0_160 = arith.constant 0 : index
    %367 = vector.load %arg5[%c1_158, %c0_159, %c0_160] : memref<2x64x64xf32, #tpu.memory_space<vmem>>, vector<1x64x64xf32>
    %368 = vector.shape_cast %367 : vector<1x64x64xf32> to vector<64x64xf32>
    %cst_161 = arith.constant dense<0.000000e+00> : vector<64x64xf32>
    %369 = tpu.matmul %366, %368, %cst_161 {dimension_numbers = #tpu.dot_dimension_numbers<[1], [0], [0], [1], [0, 0, 1, 1], [], []>} : vector<64x64xf32>, vector<64x64xf32>, vector<64x64xf32> -> vector<64x64xf32>
    %c1_162 = arith.constant 1 : index
    %c0_163 = arith.constant 0 : index
    %c0_164 = arith.constant 0 : index
    %370 = vector.load %arg6[%c1_162, %c0_163, %c0_164] : memref<2x1x64xf32, #tpu.memory_space<vmem>>, vector<1x1x64xf32>
    %371 = vector.shape_cast %370 : vector<1x1x64xf32> to vector<1x64xf32>
    %372 = vector.broadcast %371 : vector<1x64xf32> to vector<64x64xf32>
    %373 = arith.addf %369, %372 : vector<64x64xf32>
    %374 = arith.addf %227, %373 : vector<64x64xf32>
    %c1_165 = arith.constant 1 : index
    %c0_166 = arith.constant 0 : index
    %c0_167 = arith.constant 0 : index
    %375 = vector.load %arg7[%c1_165, %c0_166, %c0_167] : memref<2x1x64xf32, #tpu.memory_space<vmem>>, vector<1x1x64xf32>
    %376 = vector.shape_cast %375 : vector<1x1x64xf32> to vector<1x64xf32>
    %c1_168 = arith.constant 1 : index
    %c0_169 = arith.constant 0 : index
    %c0_170 = arith.constant 0 : index
    %377 = vector.load %arg8[%c1_168, %c0_169, %c0_170] : memref<2x1x64xf32, #tpu.memory_space<vmem>>, vector<1x1x64xf32>
    %378 = vector.shape_cast %377 : vector<1x1x64xf32> to vector<1x64xf32>
    %cst_171 = arith.constant dense<0.000000e+00> : vector<64xf32>
    %379 = vector.multi_reduction <add>, %374, %cst_171 [1] : vector<64x64xf32> to vector<64xf32>
    %380 = vector.shape_cast %379 : vector<64xf32> to vector<64x1xf32>
    %cst_172 = arith.constant 6.400000e+01 : f32
    %381 = vector.broadcast %cst_172 : f32 to vector<64x1xf32>
    %382 = arith.divf %380, %381 : vector<64x1xf32>
    %383 = vector.broadcast %382 : vector<64x1xf32> to vector<64x64xf32>
    %384 = arith.subf %374, %383 : vector<64x64xf32>
    %385 = arith.mulf %384, %384 : vector<64x64xf32>
    %cst_173 = arith.constant dense<0.000000e+00> : vector<64xf32>
    %386 = vector.multi_reduction <add>, %385, %cst_173 [1] : vector<64x64xf32> to vector<64xf32>
    %387 = vector.shape_cast %386 : vector<64xf32> to vector<64x1xf32>
    %cst_174 = arith.constant 6.400000e+01 : f32
    %388 = vector.broadcast %cst_174 : f32 to vector<64x1xf32>
    %389 = arith.divf %387, %388 : vector<64x1xf32>
    %390 = vector.broadcast %382 : vector<64x1xf32> to vector<64x64xf32>
    %391 = arith.subf %374, %390 : vector<64x64xf32>
    %cst_175 = arith.constant 9.99999974E-6 : f32
    %392 = vector.broadcast %cst_175 : f32 to vector<64x1xf32>
    %393 = arith.addf %389, %392 : vector<64x1xf32>
    %394 = math.rsqrt %393 : vector<64x1xf32>
    %395 = vector.broadcast %394 : vector<64x1xf32> to vector<64x64xf32>
    %396 = arith.mulf %391, %395 : vector<64x64xf32>
    %397 = vector.broadcast %376 : vector<1x64xf32> to vector<64x64xf32>
    %398 = arith.mulf %396, %397 : vector<64x64xf32>
    %399 = vector.broadcast %378 : vector<1x64xf32> to vector<64x64xf32>
    %400 = arith.addf %398, %399 : vector<64x64xf32>
    %c1_176 = arith.constant 1 : index
    %c0_177 = arith.constant 0 : index
    %c0_178 = arith.constant 0 : index
    %401 = vector.load %arg9[%c1_176, %c0_177, %c0_178] : memref<2x64x2048xf32, #tpu.memory_space<vmem>>, vector<1x64x2048xf32>
    %402 = vector.shape_cast %401 : vector<1x64x2048xf32> to vector<64x2048xf32>
    %cst_179 = arith.constant dense<0.000000e+00> : vector<64x2048xf32>
    %403 = tpu.matmul %400, %402, %cst_179 {dimension_numbers = #tpu.dot_dimension_numbers<[1], [0], [0], [1], [0, 0, 1, 1], [], []>} : vector<64x64xf32>, vector<64x2048xf32>, vector<64x2048xf32> -> vector<64x2048xf32>
    %c1_180 = arith.constant 1 : index
    %c0_181 = arith.constant 0 : index
    %c0_182 = arith.constant 0 : index
    %404 = vector.load %arg10[%c1_180, %c0_181, %c0_182] : memref<2x1x2048xf32, #tpu.memory_space<vmem>>, vector<1x1x2048xf32>
    %405 = vector.shape_cast %404 : vector<1x1x2048xf32> to vector<1x2048xf32>
    %406 = vector.broadcast %405 : vector<1x2048xf32> to vector<64x2048xf32>
    %407 = arith.addf %403, %406 : vector<64x2048xf32>
    %cst_183 = arith.constant 0.000000e+00 : f32
    %408 = vector.broadcast %cst_183 : f32 to vector<64x2048xf32>
    %409 = arith.maximumf %407, %408 : vector<64x2048xf32>
    %c1_184 = arith.constant 1 : index
    %c0_185 = arith.constant 0 : index
    %c0_186 = arith.constant 0 : index
    %410 = vector.load %arg11[%c1_184, %c0_185, %c0_186] : memref<2x2048x64xf32, #tpu.memory_space<vmem>>, vector<1x2048x64xf32>
    %411 = vector.shape_cast %410 : vector<1x2048x64xf32> to vector<2048x64xf32>
    %cst_187 = arith.constant dense<0.000000e+00> : vector<64x64xf32>
    %412 = tpu.matmul %409, %411, %cst_187 {dimension_numbers = #tpu.dot_dimension_numbers<[1], [0], [0], [1], [0, 0, 1, 1], [], []>} : vector<64x2048xf32>, vector<2048x64xf32>, vector<64x64xf32> -> vector<64x64xf32>
    %c1_188 = arith.constant 1 : index
    %c0_189 = arith.constant 0 : index
    %c0_190 = arith.constant 0 : index
    %413 = vector.load %arg12[%c1_188, %c0_189, %c0_190] : memref<2x1x64xf32, #tpu.memory_space<vmem>>, vector<1x1x64xf32>
    %414 = vector.shape_cast %413 : vector<1x1x64xf32> to vector<1x64xf32>
    %415 = vector.broadcast %414 : vector<1x64xf32> to vector<64x64xf32>
    %416 = arith.addf %412, %415 : vector<64x64xf32>
    %417 = arith.addf %400, %416 : vector<64x64xf32>
    %c1_191 = arith.constant 1 : index
    %c0_192 = arith.constant 0 : index
    %c0_193 = arith.constant 0 : index
    %418 = vector.load %arg13[%c1_191, %c0_192, %c0_193] : memref<2x1x64xf32, #tpu.memory_space<vmem>>, vector<1x1x64xf32>
    %419 = vector.shape_cast %418 : vector<1x1x64xf32> to vector<1x64xf32>
    %c1_194 = arith.constant 1 : index
    %c0_195 = arith.constant 0 : index
    %c0_196 = arith.constant 0 : index
    %420 = vector.load %arg14[%c1_194, %c0_195, %c0_196] : memref<2x1x64xf32, #tpu.memory_space<vmem>>, vector<1x1x64xf32>
    %421 = vector.shape_cast %420 : vector<1x1x64xf32> to vector<1x64xf32>
    %cst_197 = arith.constant dense<0.000000e+00> : vector<64xf32>
    %422 = vector.multi_reduction <add>, %417, %cst_197 [1] : vector<64x64xf32> to vector<64xf32>
    %423 = vector.shape_cast %422 : vector<64xf32> to vector<64x1xf32>
    %cst_198 = arith.constant 6.400000e+01 : f32
    %424 = vector.broadcast %cst_198 : f32 to vector<64x1xf32>
    %425 = arith.divf %423, %424 : vector<64x1xf32>
    %426 = vector.broadcast %425 : vector<64x1xf32> to vector<64x64xf32>
    %427 = arith.subf %417, %426 : vector<64x64xf32>
    %428 = arith.mulf %427, %427 : vector<64x64xf32>
    %cst_199 = arith.constant dense<0.000000e+00> : vector<64xf32>
    %429 = vector.multi_reduction <add>, %428, %cst_199 [1] : vector<64x64xf32> to vector<64xf32>
    %430 = vector.shape_cast %429 : vector<64xf32> to vector<64x1xf32>
    %cst_200 = arith.constant 6.400000e+01 : f32
    %431 = vector.broadcast %cst_200 : f32 to vector<64x1xf32>
    %432 = arith.divf %430, %431 : vector<64x1xf32>
    %433 = vector.broadcast %425 : vector<64x1xf32> to vector<64x64xf32>
    %434 = arith.subf %417, %433 : vector<64x64xf32>
    %cst_201 = arith.constant 9.99999974E-6 : f32
    %435 = vector.broadcast %cst_201 : f32 to vector<64x1xf32>
    %436 = arith.addf %432, %435 : vector<64x1xf32>
    %437 = math.rsqrt %436 : vector<64x1xf32>
    %438 = vector.broadcast %437 : vector<64x1xf32> to vector<64x64xf32>
    %439 = arith.mulf %434, %438 : vector<64x64xf32>
    %440 = vector.broadcast %419 : vector<1x64xf32> to vector<64x64xf32>
    %441 = arith.mulf %439, %440 : vector<64x64xf32>
    %442 = vector.broadcast %421 : vector<1x64xf32> to vector<64x64xf32>
    %443 = arith.addf %441, %442 : vector<64x64xf32>
    %c0_202 = arith.constant 0 : index
    %c0_203 = arith.constant 0 : index
    %444 = vector.load %arg15[%c0_202, %c0_203] : memref<64x32xf32, #tpu.memory_space<vmem>>, vector<64x32xf32>
    %cst_204 = arith.constant dense<0.000000e+00> : vector<64x32xf32>
    %445 = tpu.matmul %443, %444, %cst_204 {dimension_numbers = #tpu.dot_dimension_numbers<[1], [0], [0], [1], [0, 0, 1, 1], [], []>} : vector<64x64xf32>, vector<64x32xf32>, vector<64x32xf32> -> vector<64x32xf32>
    %c0_205 = arith.constant 0 : index
    %c0_206 = arith.constant 0 : index
    %446 = vector.load %arg16[%c0_205, %c0_206] : memref<1x32xf32, #tpu.memory_space<vmem>>, vector<1x32xf32>
    %447 = vector.broadcast %446 : vector<1x32xf32> to vector<64x32xf32>
    %448 = arith.addf %445, %447 : vector<64x32xf32>
    %449 = vector.shape_cast %448 : vector<64x32xf32> to vector<2x32x32xf32>
    %c0_207 = arith.constant 0 : index
    %c0_208 = arith.constant 0 : index
    %c0_209 = arith.constant 0 : index
    %450 = vector.load %arg17[%c0_207, %c0_208, %c0_209] : memref<2x32x32xf32, #tpu.memory_space<vmem>>, vector<2x32x32xf32>
    tpu.vector_store %arg17[%c0_207, %c0_208, %c0_209], %449 {strides = array<i32>} : memref<2x32x32xf32, #tpu.memory_space<vmem>>, vector<2x32x32xf32>,
    return
  }
  func.func @transform_0(%arg0: i32) -> (i32, i32) {
    %c0_i32 = arith.constant 0 : i32
    %c0_i32_0 = arith.constant 0 : i32
    %c0_i32_1 = arith.constant 0 : i32
    return %c0_i32, %c0_i32_0 : i32, i32
  }
  func.func @transform_1(%arg0: i32) -> (i32, i32) {
    %c0_i32 = arith.constant 0 : i32
    %c0_i32_0 = arith.constant 0 : i32
    %c0_i32_1 = arith.constant 0 : i32
    return %c0_i32, %c0_i32_0 : i32, i32
  }
  func.func @transform_2(%arg0: i32) -> (i32, i32, i32) {
    %c0_i32 = arith.constant 0 : i32
    %c0_i32_0 = arith.constant 0 : i32
    %c0_i32_1 = arith.constant 0 : i32
    %c0_i32_2 = arith.constant 0 : i32
    return %c0_i32, %c0_i32_0, %c0_i32_1 : i32, i32, i32
  }
  func.func @transform_3(%arg0: i32) -> (i32, i32, i32) {
    %c0_i32 = arith.constant 0 : i32
    %c0_i32_0 = arith.constant 0 : i32
    %c0_i32_1 = arith.constant 0 : i32
    %c0_i32_2 = arith.constant 0 : i32
    return %c0_i32, %c0_i32_0, %c0_i32_1 : i32, i32, i32
  }
  func.func @transform_4(%arg0: i32) -> (i32, i32, i32) {
    %c0_i32 = arith.constant 0 : i32
    %c0_i32_0 = arith.constant 0 : i32
    %c0_i32_1 = arith.constant 0 : i32
    %c0_i32_2 = arith.constant 0 : i32
    return %c0_i32, %c0_i32_0, %c0_i32_1 : i32, i32, i32
  }
  func.func @transform_5(%arg0: i32) -> (i32, i32, i32) {
    %c0_i32 = arith.constant 0 : i32
    %c0_i32_0 = arith.constant 0 : i32
    %c0_i32_1 = arith.constant 0 : i32
    %c0_i32_2 = arith.constant 0 : i32
    return %c0_i32, %c0_i32_0, %c0_i32_1 : i32, i32, i32
  }
  func.func @transform_6(%arg0: i32) -> (i32, i32, i32) {
    %c0_i32 = arith.constant 0 : i32
    %c0_i32_0 = arith.constant 0 : i32
    %c0_i32_1 = arith.constant 0 : i32
    %c0_i32_2 = arith.constant 0 : i32
    return %c0_i32, %c0_i32_0, %c0_i32_1 : i32, i32, i32
  }
  func.func @transform_7(%arg0: i32) -> (i32, i32, i32) {
    %c0_i32 = arith.constant 0 : i32
    %c0_i32_0 = arith.constant 0 : i32
    %c0_i32_1 = arith.constant 0 : i32
    %c0_i32_2 = arith.constant 0 : i32
    return %c0_i32, %c0_i32_0, %c0_i32_1 : i32, i32, i32
  }
  func.func @transform_8(%arg0: i32) -> (i32, i32, i32) {
    %c0_i32 = arith.constant 0 : i32
    %c0_i32_0 = arith.constant 0 : i32
    %c0_i32_1 = arith.constant 0 : i32
    %c0_i32_2 = arith.constant 0 : i32
    return %c0_i32, %c0_i32_0, %c0_i32_1 : i32, i32, i32
  }
  func.func @transform_9(%arg0: i32) -> (i32, i32, i32) {
    %c0_i32 = arith.constant 0 : i32
    %c0_i32_0 = arith.constant 0 : i32
    %c0_i32_1 = arith.constant 0 : i32
    %c0_i32_2 = arith.constant 0 : i32
    return %c0_i32, %c0_i32_0, %c0_i32_1 : i32, i32, i32
  }
  func.func @transform_10(%arg0: i32) -> (i32, i32, i32) {
    %c0_i32 = arith.constant 0 : i32
    %c0_i32_0 = arith.constant 0 : i32
    %c0_i32_1 = arith.constant 0 : i32
    %c0_i32_2 = arith.constant 0 : i32
    return %c0_i32, %c0_i32_0, %c0_i32_1 : i32, i32, i32
  }
  func.func @transform_11(%arg0: i32) -> (i32, i32, i32) {
    %c0_i32 = arith.constant 0 : i32
    %c0_i32_0 = arith.constant 0 : i32
    %c0_i32_1 = arith.constant 0 : i32
    %c0_i32_2 = arith.constant 0 : i32
    return %c0_i32, %c0_i32_0, %c0_i32_1 : i32, i32, i32
  }
  func.func @transform_12(%arg0: i32) -> (i32, i32, i32) {
    %c0_i32 = arith.constant 0 : i32
    %c0_i32_0 = arith.constant 0 : i32
    %c0_i32_1 = arith.constant 0 : i32
    %c0_i32_2 = arith.constant 0 : i32
    return %c0_i32, %c0_i32_0, %c0_i32_1 : i32, i32, i32
  }
  func.func @transform_13(%arg0: i32) -> (i32, i32, i32) {
    %c0_i32 = arith.constant 0 : i32
    %c0_i32_0 = arith.constant 0 : i32
    %c0_i32_1 = arith.constant 0 : i32
    %c0_i32_2 = arith.constant 0 : i32
    return %c0_i32, %c0_i32_0, %c0_i32_1 : i32, i32, i32
  }
  func.func @transform_14(%arg0: i32) -> (i32, i32) {
    %c0_i32 = arith.constant 0 : i32
    %c0_i32_0 = arith.constant 0 : i32
    %c0_i32_1 = arith.constant 0 : i32
    return %c0_i32, %c0_i32_0 : i32, i32
  }
  func.func @transform_15(%arg0: i32) -> (i32, i32) {
    %c0_i32 = arith.constant 0 : i32
    %c0_i32_0 = arith.constant 0 : i32
    %c0_i32_1 = arith.constant 0 : i32
    return %c0_i32, %c0_i32_0 : i32, i32
  }
  func.func @transform_16(%arg0: i32) -> (i32, i32, i32) {
    %c0_i32 = arith.constant 0 : i32
    %c0_i32_0 = arith.constant 0 : i32
    %c0_i32_1 = arith.constant 0 : i32
    %c0_i32_2 = arith.constant 0 : i32
    return %c0_i32, %c0_i32_0, %c0_i32_1 : i32, i32, i32
  }
}

</mosaic_0001>

<llo_original>
// kernel: tpu_custom_call.1
$region0: #{tpu_custom_call.1}
  #allocation0 [shape = 'u32[]', space=smem, size = 0x4, offset = 0x4, fixed_abs, tag = 'smem constant byte address 0x4 - core index']
  #allocation1 [shape = 'u32[144,128]{1,0:T(1,128)}', space=vmem, size = 0x12000, scoped, tag = 'internal scratch']
  #allocation2 [shape = 'f32[64,64]{1,0:T(8,128)}', space=vmem, size = 0x8000, scoped, tag = 'scratch operand']
  %s0 = inlined_call_operand.hbm [shape: f32[2,32], index: 0, kind: input, shape index: {}]
  %s1 = inlined_call_operand.hbm [shape: f32[32,64], index: 1, kind: input, shape index: {}]
  %s2 = inlined_call_operand.hbm [shape: f32[2,64,192], index: 2, kind: input, shape index: {}]
  %s3 = inlined_call_operand.hbm [shape: f32[2,1,192], index: 3, kind: input, shape index: {}]
  %s4 = inlined_call_operand.hbm [shape: f32[2,64,64], index: 4, kind: input, shape index: {}]
  %s5 = inlined_call_operand.hbm [shape: f32[2,1,64], index: 5, kind: input, shape index: {}]
  %s6 = inlined_call_operand.hbm [shape: f32[2,1,64], index: 6, kind: input, shape index: {}]
  %s7 = inlined_call_operand.hbm [shape: f32[2,1,64], index: 7, kind: input, shape index: {}]
  %s8 = inlined_call_operand.hbm [shape: f32[2,64,2048], index: 8, kind: input, shape index: {}]
  %s9 = inlined_call_operand.hbm [shape: f32[2,1,2048], index: 9, kind: input, shape index: {}]
  %s10 = inlined_call_operand.hbm [shape: f32[2,2048,64], index: 10, kind: input, shape index: {}]
  %s11 = inlined_call_operand.hbm [shape: f32[2,1,64], index: 11, kind: input, shape index: {}]
  %s12 = inlined_call_operand.hbm [shape: f32[2,1,64], index: 12, kind: input, shape index: {}]
  %s13 = inlined_call_operand.hbm [shape: f32[2,1,64], index: 13, kind: input, shape index: {}]
  %s14 = inlined_call_operand.hbm [shape: f32[64,32], index: 14, kind: input, shape index: {}]
  %s15 = inlined_call_operand.hbm [shape: f32[1,32], index: 15, kind: input, shape index: {}]
  %s16 = inlined_call_operand.hbm [shape: f32[2,32,32], index: 16, kind: output, shape index: {}]
  %s17 = sld [smem:[#allocation0]]
  $region138: #{tpu_custom_call.1} parent=0
    _
  %s19 = ssub.s32 1, %s17
  %s20 = scalar_select 0, %s19, %s17
  $region1: #{tpu_custom_call.1} parent=0
    #allocation3 [shape = 'u8[1024]{0}', space=vmem, size = 0x400, scoped, tag = 'input window, operand 0, single buffered']
    #allocation4 [shape = 's32[1]{0}', space=sflag, size = 0x4, scoped, tag = 'scoped memory for tpu_custom_call.1']
    #allocation5 [shape = 's32[1]{0}', space=sflag, size = 0x4, scoped, tag = 'scoped memory for tpu_custom_call.1']
    #allocation6 [shape = 'u8[16384]{0}', space=vmem, size = 0x4000, scoped, tag = 'input window, operand 1, single buffered']
    #allocation7 [shape = 's32[1]{0}', space=sflag, size = 0x4, scoped, tag = 'scoped memory for tpu_custom_call.1']
    #allocation8 [shape = 'u8[131072]{0}', space=vmem, size = 0x20000, scoped, tag = 'input window, operand 2, single buffered']
    #allocation9 [shape = 'u8[2048]{0}', space=vmem, size = 0x800, scoped, tag = 'input window, operand 3, single buffered']
    #allocation10 [shape = 's32[1]{0}', space=sflag, size = 0x4, scoped, tag = 'scoped memory for tpu_custom_call.1']
    #allocation11 [shape = 'u8[65536]{0}', space=vmem, size = 0x10000, scoped, tag = 'input window, operand 4, single buffered']
    #allocation12 [shape = 'u8[1024]{0}', space=vmem, size = 0x400, scoped, tag = 'input window, operand 5, single buffered']
    #allocation13 [shape = 's32[1]{0}', space=sflag, size = 0x4, scoped, tag = 'scoped memory for tpu_custom_call.1']
    #allocation14 [shape = 'u8[1024]{0}', space=vmem, size = 0x400, scoped, tag = 'input window, operand 6, single buffered']
    #allocation15 [shape = 'u8[1024]{0}', space=vmem, size = 0x400, scoped, tag = 'input window, operand 7, single buffered']
    #allocation16 [shape = 's32[1]{0}', space=sflag, size = 0x4, scoped, tag = 'scoped memory for tpu_custom_call.1']
    #allocation17 [shape = 'u8[1048576]{0}', space=vmem, size = 0x100000, scoped, tag = 'input window, operand 8, single buffered']
    #allocation18 [shape = 'u8[16384]{0}', space=vmem, size = 0x4000, scoped, tag = 'input window, operand 9, single buffered']
    #allocation19 [shape = 's32[1]{0}', space=sflag, size = 0x4, scoped, tag = 'scoped memory for tpu_custom_call.1']
    #allocation20 [shape = 'u8[2097152]{0}', space=vmem, size = 0x200000, scoped, tag = 'input window, operand 10, single buffered']
    #allocation21 [shape = 'u8[1024]{0}', space=vmem, size = 0x400, scoped, tag = 'input window, operand 11, single buffered']
    #allocation22 [shape = 's32[1]{0}', space=sflag, size = 0x4, scoped, tag = 'scoped memory for tpu_custom_call.1']
    #allocation23 [shape = 'u8[1024]{0}', space=vmem, size = 0x400, scoped, tag = 'input window, operand 12, single buffered']
    #allocation24 [shape = 'u8[1024]{0}', space=vmem, size = 0x400, scoped, tag = 'input window, operand 13, single buffered']
    #allocation25 [shape = 's32[1]{0}', space=sflag, size = 0x4, scoped, tag = 'scoped memory for tpu_custom_call.1']
    #allocation26 [shape = 'u8[32768]{0}', space=vmem, size = 0x8000, scoped, tag = 'input window, operand 14, single buffered']
    #allocation27 [shape = 'u8[512]{0}', space=vmem, size = 0x400, scoped, tag = 'input window, operand 15, single buffered']
    #allocation28 [shape = 's32[1]{0}', space=sflag, size = 0x4, scoped, tag = 'scoped memory for tpu_custom_call.1']
    #allocation29 [shape = 'u8[32768]{0}', space=vmem, size = 0x8000, scoped, tag = 'output window, operand 0, single buffered']
    %21 = vsyncpa [#allocation4], 0
    %22 = vsyncpa [#allocation7], 0
    %23 = vsyncpa [#allocation10], 0
    %24 = vsyncpa [#allocation13], 0
    %25 = vsyncpa [#allocation16], 0
    %26 = vsyncpa [#allocation19], 0
    %27 = vsyncpa [#allocation22], 0
    %28 = vsyncpa [#allocation25], 0
    %29 = vsyncpa [#allocation28], 0
    %30 = vsyncpa [#allocation5], 0
    // Predicated region
    $region2: #{tpu_custom_call.1} parent=1 // pred_check
      _
    $region3: #{tpu_custom_call.1} parent=1 // pred_check_branch
      %32 = sbr.rel (0) target = $region5
    $region4: #{tpu_custom_call.1} parent=1 // pred_region
      %s34 = ssub.s32 32, 32
      %35 = vsyncadd [#allocation4], %s34
      %s37 = sshll.u32 [#allocation3], 4
      %s38 = int_to_ptr.vmem [resolvable:$true] %s37
      %40 = dma.hbm_to_vmem [thread:$0]  %s0, 32, %s38, [#allocation4]
    $region5: #{tpu_custom_call.1} parent=1 // pred_fallthru
      _
    // Predicated region
    $region6: #{tpu_custom_call.1} parent=1 // pred_check
      _
    $region7: #{tpu_custom_call.1} parent=1 // pred_check_branch
      %42 = sbr.rel (0) target = $region9
    $region8: #{tpu_custom_call.1} parent=1 // pred_region
      %s44 = ssub.s32 512, 512
      %45 = vsyncadd [#allocation7], %s44
      %s46 = sshll.u32 [#allocation6], 4
      %s47 = int_to_ptr.vmem [resolvable:$true] %s46
      %52 = dma.hbm_to_vmem [thread:$0]  %s1, 512, %s47, [#allocation7], 128, 128, 8
    $region9: #{tpu_custom_call.1} parent=1 // pred_fallthru
      _
    // Predicated region
    $region10: #{tpu_custom_call.1} parent=1 // pred_check
      _
    $region11: #{tpu_custom_call.1} parent=1 // pred_check_branch
      %54 = sbr.rel (0) target = $region13
    $region12: #{tpu_custom_call.1} parent=1 // pred_region
      %s56 = ssub.s32 4096, 4096
      %57 = vsyncadd [#allocation7], %s56
      %s58 = sshll.u32 [#allocation8], 4
      %s59 = int_to_ptr.vmem [resolvable:$true] %s58
      %64 = dma.hbm_to_vmem [thread:$0]  %s2, 4096, %s59, [#allocation7], 256, 256, 16
    $region13: #{tpu_custom_call.1} parent=1 // pred_fallthru
      _
    // Predicated region
    $region14: #{tpu_custom_call.1} parent=1 // pred_check
      _
    $region15: #{tpu_custom_call.1} parent=1 // pred_check_branch
      %66 = sbr.rel (0) target = $region17
    $region16: #{tpu_custom_call.1} parent=1 // pred_region
      %s68 = ssub.s32 64, 64
      %69 = vsyncadd [#allocation10], %s68
      %s70 = sshll.u32 [#allocation9], 4
      %s71 = int_to_ptr.vmem [resolvable:$true] %s70
      %76 = dma.hbm_to_vmem [thread:$0]  %s3, 64, %s71, [#allocation10], 32, 32, 2
    $region17: #{tpu_custom_call.1} parent=1 // pred_fallthru
      _
    // Predicated region
    $region18: #{tpu_custom_call.1} parent=1 // pred_check
      _
    $region19: #{tpu_custom_call.1} parent=1 // pred_check_branch
      %78 = sbr.rel (0) target = $region21
    $region20: #{tpu_custom_call.1} parent=1 // pred_region
      %s80 = ssub.s32 2048, 2048
      %81 = vsyncadd [#allocation10], %s80
      %s82 = sshll.u32 [#allocation11], 4
      %s83 = int_to_ptr.vmem [resolvable:$true] %s82
      %88 = dma.hbm_to_vmem [thread:$0]  %s4, 2048, %s83, [#allocation10], 128, 128, 8
    $region21: #{tpu_custom_call.1} parent=1 // pred_fallthru
      _
    // Predicated region
    $region22: #{tpu_custom_call.1} parent=1 // pred_check
      _
    $region23: #{tpu_custom_call.1} parent=1 // pred_check_branch
      %90 = sbr.rel (0) target = $region25
    $region24: #{tpu_custom_call.1} parent=1 // pred_region
      %s92 = ssub.s32 32, 32
      %93 = vsyncadd [#allocation13], %s92
      %s94 = sshll.u32 [#allocation12], 4
      %s95 = int_to_ptr.vmem [resolvable:$true] %s94
      %100 = dma.hbm_to_vmem [thread:$0]  %s5, 32, %s95, [#allocation13], 16, 16, 1
    $region25: #{tpu_custom_call.1} parent=1 // pred_fallthru
      _
    // Predicated region
    $region26: #{tpu_custom_call.1} parent=1 // pred_check
      _
    $region27: #{tpu_custom_call.1} parent=1 // pred_check_branch
      %102 = sbr.rel (0) target = $region29
    $region28: #{tpu_custom_call.1} parent=1 // pred_region
      %s104 = ssub.s32 32, 32
      %105 = vsyncadd [#allocation13], %s104
      %s106 = sshll.u32 [#allocation14], 4
      %s107 = int_to_ptr.vmem [resolvable:$true] %s106
      %112 = dma.hbm_to_vmem [thread:$0]  %s6, 32, %s107, [#allocation13], 16, 16, 1
    $region29: #{tpu_custom_call.1} parent=1 // pred_fallthru
      _
    // Predicated region
    $region30: #{tpu_custom_call.1} parent=1 // pred_check
      _
    $region31: #{tpu_custom_call.1} parent=1 // pred_check_branch
      %114 = sbr.rel (0) target = $region33
    $region32: #{tpu_custom_call.1} parent=1 // pred_region
      %s116 = ssub.s32 32, 32
      %117 = vsyncadd [#allocation16], %s116
      %s118 = sshll.u32 [#allocation15], 4
      %s119 = int_to_ptr.vmem [resolvable:$true] %s118
      %124 = dma.hbm_to_vmem [thread:$0]  %s7, 32, %s119, [#allocation16], 16, 16, 1
    $region33: #{tpu_custom_call.1} parent=1 // pred_fallthru
      _
    // Predicated region
    $region34: #{tpu_custom_call.1} parent=1 // pred_check
      _
    $region35: #{tpu_custom_call.1} parent=1 // pred_check_branch
      %126 = sbr.rel (0) target = $region37
    $region36: #{tpu_custom_call.1} parent=1 // pred_region
      %s128 = ssub.s32 32768, 32768
      %129 = vsyncadd [#allocation16], %s128
      %s130 = sshll.u32 [#allocation17], 4
      %s131 = int_to_ptr.vmem [resolvable:$true] %s130
      %136 = dma.hbm_to_vmem [thread:$0]  %s8, 32768, %s131, [#allocation16], 2048, 2048, 128
    $region37: #{tpu_custom_call.1} parent=1 // pred_fallthru
      _
    // Predicated region
    $region38: #{tpu_custom_call.1} parent=1 // pred_check
      _
    $region39: #{tpu_custom_call.1} parent=1 // pred_check_branch
      %138 = sbr.rel (0) target = $region41
    $region40: #{tpu_custom_call.1} parent=1 // pred_region
      %s140 = ssub.s32 512, 512
      %141 = vsyncadd [#allocation19], %s140
      %s142 = sshll.u32 [#allocation18], 4
      %s143 = int_to_ptr.vmem [resolvable:$true] %s142
      %148 = dma.hbm_to_vmem [thread:$0]  %s9, 512, %s143, [#allocation19], 256, 256, 16
    $region41: #{tpu_custom_call.1} parent=1 // pred_fallthru
      _
    // Predicated region
    $region42: #{tpu_custom_call.1} parent=1 // pred_check
      _
    $region43: #{tpu_custom_call.1} parent=1 // pred_check_branch
      %150 = sbr.rel (0) target = $region45
    $region44: #{tpu_custom_call.1} parent=1 // pred_region
      %s152 = ssub.s32 65536, 65536
      %153 = vsyncadd [#allocation19], %s152
      %s154 = sshll.u32 [#allocation20], 4
      %s155 = int_to_ptr.vmem [resolvable:$true] %s154
      %160 = dma.hbm_to_vmem [thread:$0]  %s10, 65536, %s155, [#allocation19], 128, 128, 8
    $region45: #{tpu_custom_call.1} parent=1 // pred_fallthru
      _
    // Predicated region
    $region46: #{tpu_custom_call.1} parent=1 // pred_check
      _
    $region47: #{tpu_custom_call.1} parent=1 // pred_check_branch
      %162 = sbr.rel (0) target = $region49
    $region48: #{tpu_custom_call.1} parent=1 // pred_region
      %s164 = ssub.s32 32, 32
      %165 = vsyncadd [#allocation22], %s164
      %s166 = sshll.u32 [#allocation21], 4
      %s167 = int_to_ptr.vmem [resolvable:$true] %s166
      %172 = dma.hbm_to_vmem [thread:$0]  %s11, 32, %s167, [#allocation22], 16, 16, 1
    $region49: #{tpu_custom_call.1} parent=1 // pred_fallthru
      _
    // Predicated region
    $region50: #{tpu_custom_call.1} parent=1 // pred_check
      _
    $region51: #{tpu_custom_call.1} parent=1 // pred_check_branch
      %174 = sbr.rel (0) target = $region53
    $region52: #{tpu_custom_call.1} parent=1 // pred_region
      %s176 = ssub.s32 32, 32
      %177 = vsyncadd [#allocation22], %s176
      %s178 = sshll.u32 [#allocation23], 4
      %s179 = int_to_ptr.vmem [resolvable:$true] %s178
      %184 = dma.hbm_to_vmem [thread:$0]  %s12, 32, %s179, [#allocation22], 16, 16, 1
    $region53: #{tpu_custom_call.1} parent=1 // pred_fallthru
      _
    // Predicated region
    $region54: #{tpu_custom_call.1} parent=1 // pred_check
      _
    $region55: #{tpu_custom_call.1} parent=1 // pred_check_branch
      %186 = sbr.rel (0) target = $region57
    $region56: #{tpu_custom_call.1} parent=1 // pred_region
      %s188 = ssub.s32 32, 32
      %189 = vsyncadd [#allocation25], %s188
      %s190 = sshll.u32 [#allocation24], 4
      %s191 = int_to_ptr.vmem [resolvable:$true] %s190
      %196 = dma.hbm_to_vmem [thread:$0]  %s13, 32, %s191, [#allocation25], 16, 16, 1
    $region57: #{tpu_custom_call.1} parent=1 // pred_fallthru
      _
    // Predicated region
    $region58: #{tpu_custom_call.1} parent=1 // pred_check
      _
    $region59: #{tpu_custom_call.1} parent=1 // pred_check_branch
      %198 = sbr.rel (0) target = $region61
    $region60: #{tpu_custom_call.1} parent=1 // pred_region
      %s200 = ssub.s32 1024, 1024
      %201 = vsyncadd [#allocation25], %s200
      %s202 = sshll.u32 [#allocation26], 4
      %s203 = int_to_ptr.vmem [resolvable:$true] %s202
      %208 = dma.hbm_to_vmem [thread:$0]  %s14, 1024, %s203, [#allocation25], 128, 128, 8
    $region61: #{tpu_custom_call.1} parent=1 // pred_fallthru
      _
    // Predicated region
    $region62: #{tpu_custom_call.1} parent=1 // pred_check
      _
    $region63: #{tpu_custom_call.1} parent=1 // pred_check_branch
      %210 = sbr.rel (0) target = $region65
    $region64: #{tpu_custom_call.1} parent=1 // pred_region
      %s212 = ssub.s32 16, 16
      %213 = vsyncadd [#allocation28], %s212
      %s215 = sshll.u32 [#allocation27], 4
      %s216 = int_to_ptr.vmem [resolvable:$true] %s215
      %218 = dma.hbm_to_vmem [thread:$0]  %s15, 16, %s216, [#allocation28]
    $region65: #{tpu_custom_call.1} parent=1 // pred_fallthru
      _
    // Predicated region
    $region66: #{tpu_custom_call.1} parent=1 // pred_check
      _
    $region67: #{tpu_custom_call.1} parent=1 // pred_check_branch
      %220 = sbr.rel (0) target = $region69
    $region68: #{tpu_custom_call.1} parent=1 // pred_region
      %221 = dma.done [#allocation4], 32
    $region69: #{tpu_custom_call.1} parent=1 // pred_fallthru
      _
    // Predicated region
    $region70: #{tpu_custom_call.1} parent=1 // pred_check
      _
    $region71: #{tpu_custom_call.1} parent=1 // pred_check_branch
      %223 = sbr.rel (0) target = $region73
    $region72: #{tpu_custom_call.1} parent=1 // pred_region
      %224 = dma.done [#allocation7], 512
    $region73: #{tpu_custom_call.1} parent=1 // pred_fallthru
      _
    // Predicated region
    $region74: #{tpu_custom_call.1} parent=1 // pred_check
      _
    $region75: #{tpu_custom_call.1} parent=1 // pred_check_branch
      %226 = sbr.rel (0) target = $region77
    $region76: #{tpu_custom_call.1} parent=1 // pred_region
      %227 = dma.done [#allocation7], 4096
    $region77: #{tpu_custom_call.1} parent=1 // pred_fallthru
      _
    // Predicated region
    $region78: #{tpu_custom_call.1} parent=1 // pred_check
      _
    $region79: #{tpu_custom_call.1} parent=1 // pred_check_branch
      %229 = sbr.rel (0) target = $region81
    $region80: #{tpu_custom_call.1} parent=1 // pred_region
      %230 = dma.done [#allocation10], 64
    $region81: #{tpu_custom_call.1} parent=1 // pred_fallthru
      _
    // Predicated region
    $region82: #{tpu_custom_call.1} parent=1 // pred_check
      _
    $region83: #{tpu_custom_call.1} parent=1 // pred_check_branch
      %232 = sbr.rel (0) target = $region85
    $region84: #{tpu_custom_call.1} parent=1 // pred_region
      %233 = dma.done [#allocation10], 2048
    $region85: #{tpu_custom_call.1} parent=1 // pred_fallthru
      _
    // Predicated region
    $region86: #{tpu_custom_call.1} parent=1 // pred_check
      _
    $region87: #{tpu_custom_call.1} parent=1 // pred_check_branch
      %235 = sbr.rel (0) target = $region89
    $region88: #{tpu_custom_call.1} parent=1 // pred_region
      %236 = dma.done [#allocation13], 32
    $region89: #{tpu_custom_call.1} parent=1 // pred_fallthru
      _
    // Predicated region
    $region90: #{tpu_custom_call.1} parent=1 // pred_check
      _
    $region91: #{tpu_custom_call.1} parent=1 // pred_check_branch
      %238 = sbr.rel (0) target = $region93
    $region92: #{tpu_custom_call.1} parent=1 // pred_region
      %239 = dma.done [#allocation13], 32
    $region93: #{tpu_custom_call.1} parent=1 // pred_fallthru
      _
    // Predicated region
    $region94: #{tpu_custom_call.1} parent=1 // pred_check
      _
    $region95: #{tpu_custom_call.1} parent=1 // pred_check_branch
      %241 = sbr.rel (0) target = $region97
    $region96: #{tpu_custom_call.1} parent=1 // pred_region
      %242 = dma.done [#allocation16], 32
    $region97: #{tpu_custom_call.1} parent=1 // pred_fallthru
      _
    // Predicated region
    $region98: #{tpu_custom_call.1} parent=1 // pred_check
      _
    $region99: #{tpu_custom_call.1} parent=1 // pred_check_branch
      %244 = sbr.rel (0) target = $region101
    $region100: #{tpu_custom_call.1} parent=1 // pred_region
      %245 = dma.done [#allocation16], 32768
    $region101: #{tpu_custom_call.1} parent=1 // pred_fallthru
      _
    // Predicated region
    $region102: #{tpu_custom_call.1} parent=1 // pred_check
      _
    $region103: #{tpu_custom_call.1} parent=1 // pred_check_branch
      %247 = sbr.rel (0) target = $region105
    $region104: #{tpu_custom_call.1} parent=1 // pred_region
      %248 = dma.done [#allocation19], 512
    $region105: #{tpu_custom_call.1} parent=1 // pred_fallthru
      _
    // Predicated region
    $region106: #{tpu_custom_call.1} parent=1 // pred_check
      _
    $region107: #{tpu_custom_call.1} parent=1 // pred_check_branch
      %250 = sbr.rel (0) target = $region109
    $region108: #{tpu_custom_call.1} parent=1 // pred_region
      %251 = dma.done [#allocation19], 65536
    $region109: #{tpu_custom_call.1} parent=1 // pred_fallthru
      _
    // Predicated region
    $region110: #{tpu_custom_call.1} parent=1 // pred_check
      _
    $region111: #{tpu_custom_call.1} parent=1 // pred_check_branch
      %253 = sbr.rel (0) target = $region113
    $region112: #{tpu_custom_call.1} parent=1 // pred_region
      %254 = dma.done [#allocation22], 32
    $region113: #{tpu_custom_call.1} parent=1 // pred_fallthru
      _
    // Predicated region
    $region114: #{tpu_custom_call.1} parent=1 // pred_check
      _
    $region115: #{tpu_custom_call.1} parent=1 // pred_check_branch
      %256 = sbr.rel (0) target = $region117
    $region116: #{tpu_custom_call.1} parent=1 // pred_region
      %257 = dma.done [#allocation22], 32
    $region117: #{tpu_custom_call.1} parent=1 // pred_fallthru
      _
    // Predicated region
    $region118: #{tpu_custom_call.1} parent=1 // pred_check
      _
    $region119: #{tpu_custom_call.1} parent=1 // pred_check_branch
      %259 = sbr.rel (0) target = $region121
    $region120: #{tpu_custom_call.1} parent=1 // pred_region
      %260 = dma.done [#allocation25], 32
    $region121: #{tpu_custom_call.1} parent=1 // pred_fallthru
      _
    // Predicated region
    $region122: #{tpu_custom_call.1} parent=1 // pred_check
      _
    $region123: #{tpu_custom_call.1} parent=1 // pred_check_branch
      %262 = sbr.rel (0) target = $region125
    $region124: #{tpu_custom_call.1} parent=1 // pred_region
      %263 = dma.done [#allocation25], 1024
    $region125: #{tpu_custom_call.1} parent=1 // pred_fallthru
      _
    // Predicated region
    $region126: #{tpu_custom_call.1} parent=1 // pred_check
      _
    $region127: #{tpu_custom_call.1} parent=1 // pred_check_branch
      %265 = sbr.rel (0) target = $region129
    $region128: #{tpu_custom_call.1} parent=1 // pred_region
      %266 = dma.done [#allocation28], 16
    $region129: #{tpu_custom_call.1} parent=1 // pred_fallthru
      _
    %v267 = vld [vmem:[#allocation3] sm:$0x3]
    %v268 = vmul.f32 %v267, 2.0
    %v269 = vsub.f32 %v268, 1.0
    %v270 = vld [vmem:[#allocation6] sm:$0xff]
    %v271 = vld [vmem:[#allocation6 + $0x8] sm:$0xff]
    %v272 = vld [vmem:[#allocation6 + $0x10] sm:$0xff]
    %v273 = vld [vmem:[#allocation6 + $0x18] sm:$0xff]
    %v274 = vlaneseq
    %v275 = vshrl.u32 %v274, 7
    %v276 = vsub.s32 0, %v275
    %v277 = vrot.slane %v269, %v276
    %279 = vbcast.lane.b32.xlu0 %v277, 256
    %v280 = vpop.permute.xlu0 %279
    %s282 = sor.u32 256, 8
    %283 = vbcast.lane.b32.xlu0 %v277, %s282
    %v284 = vpop.permute.xlu0 %283
    %s286 = sor.u32 256, 16
    %287 = vbcast.lane.b32.xlu0 %v277, %s286
    %v288 = vpop.permute.xlu0 %287
    %s290 = sor.u32 256, 24
    %291 = vbcast.lane.b32.xlu0 %v277, %s290
    %v292 = vpop.permute.xlu0 %291
    %v293 = vlaneseq
    %v294 = vshrl.u32 %v293, 7
    %v295 = vsub.s32 1, %v294
    %v296 = vrot.slane %v269, %v295
    %298 = vbcast.lane.b32.xlu0 %v296, 256
    %v299 = vpop.permute.xlu0 %298
    %s301 = sor.u32 256, 8
    %302 = vbcast.lane.b32.xlu0 %v296, %s301
    %v303 = vpop.permute.xlu0 %302
    %s305 = sor.u32 256, 16
    %306 = vbcast.lane.b32.xlu0 %v296, %s305
    %v307 = vpop.permute.xlu0 %306
    %s309 = sor.u32 256, 24
    %310 = vbcast.lane.b32.xlu0 %v296, %s309
    %v311 = vpop.permute.xlu0 %310
    %v312 = vmul.f32 %v270, %v280
    %v313 = vmul.f32 %v271, %v284
    %v314 = vmul.f32 %v272, %v288
    %v315 = vmul.f32 %v273, %v292
    %v316 = vmul.f32 %v270, %v299
    %v317 = vmul.f32 %v271, %v303
    %v318 = vmul.f32 %v272, %v307
    %v319 = vmul.f32 %v273, %v311
    %v320 = vld [vmem:[#allocation8] sm:$0xff]
    %v321 = vld [vmem:[#allocation8 + $0x8] sm:$0xff]
    %v322 = vld [vmem:[#allocation8 + $0x10] sm:$0xff]
    %v323 = vld [vmem:[#allocation8 + $0x18] sm:$0xff]
    %v324 = vld [vmem:[#allocation8 + $0x20] sm:$0xff]
    %v325 = vld [vmem:[#allocation8 + $0x28] sm:$0xff]
    %v326 = vld [vmem:[#allocation8 + $0x30] sm:$0xff]
    %v327 = vld [vmem:[#allocation8 + $0x38] sm:$0xff]
    %v328 = vld [vmem:[#allocation8 + $0x40] sm:$0xff]
    %v329 = vld [vmem:[#allocation8 + $0x48] sm:$0xff]
    %v330 = vld [vmem:[#allocation8 + $0x50] sm:$0xff]
    %v331 = vld [vmem:[#allocation8 + $0x58] sm:$0xff]
    %v332 = vld [vmem:[#allocation8 + $0x60] sm:$0xff]
    %v333 = vld [vmem:[#allocation8 + $0x68] sm:$0xff]
    %v334 = vld [vmem:[#allocation8 + $0x70] sm:$0xff]
    %v335 = vld [vmem:[#allocation8 + $0x78] sm:$0xff]
    %v336 = vld [vmem:[#allocation9] sm:$0x3]
    %v338 = vlaneseq
    %v339 = vshrl.u32 %v338, 7
    %v340 = vsub.s32 0, %v339
    %v341 = vrot.slane %v336, %v340
    %v342 = vlaneseq
    %v343 = vshrl.u32 %v342, 7
    %v344 = vsub.s32 1, %v343
    %v345 = vrot.slane %v336, %v344
    %vm348 = vcmask 523264
    %v350 = vsel %vm348, %v312, 0
    %v353 = vsel %vm348, %v313, 0
    %v356 = vsel %vm348, %v314, 0
    %v359 = vsel %vm348, %v315, 0
    %v362 = vsel %vm348, %v316, 0
    %v365 = vsel %vm348, %v317, 0
    %v368 = vsel %vm348, %v318, 0
    %v371 = vsel %vm348, %v319, 0
    %373 = vmatprep.subr.mxu0 %v321
    %374 = vmatpush1.msra.mxu0 %v320
    %375 = vmatprep.subr.mxu0 %v323
    %376 = vmatpush1.msra.mxu0 %v322
    %377 = vmatprep.subr.mxu0 %v325
    %378 = vmatpush1.msra.mxu0 %v324
    %379 = vmatprep.subr.mxu0 %v327
    %380 = vmatpush1.msra.mxu0 %v326
    %381 = vmatprep.subr.mxu0 %v329
    %382 = vmatpush1.msra.mxu0 %v328
    %383 = vmatprep.subr.mxu0 %v331
    %384 = vmatpush1.msra.mxu0 %v330
    %385 = vmatprep.subr.mxu0 %v333
    %386 = vmatpush1.msra.mxu0 %v332
    %387 = vmatprep.subr.mxu0 %v335
    %388 = vmatpush1.msra.mxu0 %v334
    %389 = vmatprep.subr.mxu0 0.0
    %390 = vmatpush1.msra.mxu0 0.0
    %391 = vmatprep.subr.mxu0 0.0
    %392 = vmatpush1.msra.mxu0 0.0
    %393 = vmatprep.subr.mxu0 0.0
    %394 = vmatpush1.msra.mxu0 0.0
    %395 = vmatprep.subr.mxu0 0.0
    %396 = vmatpush1.msra.mxu0 0.0
    %397 = vmatprep.subr.mxu0 0.0
    %398 = vmatpush1.msra.mxu0 0.0
    %399 = vmatprep.subr.mxu0 0.0
    %400 = vmatpush1.msra.mxu0 0.0
    %401 = vmatprep.subr.mxu0 0.0
    %402 = vmatpush1.msra.mxu0 0.0
    %403 = vmatprep.subr.mxu0 0.0
    %404 = vmatpush1.msra.mxu0 0.0
    %405 = vmatprep.subr.mxu0 0.0
    %406 = vmatpush1.msra.mxu0 0.0
    %407 = vmatprep.subr.mxu0 0.0
    %408 = vmatpush1.msra.mxu0 0.0
    %409 = vmatprep.subr.mxu0 0.0
    %410 = vmatpush1.msra.mxu0 0.0
    %411 = vmatprep.subr.mxu0 0.0
    %412 = vmatpush1.msra.mxu0 0.0
    %413 = vmatprep.subr.mxu0 0.0
    %414 = vmatpush1.msra.mxu0 0.0
    %415 = vmatprep.subr.mxu0 0.0
    %416 = vmatpush1.msra.mxu0 0.0
    %417 = vmatprep.subr.mxu0 0.0
    %418 = vmatpush1.msra.mxu0 0.0
    %419 = vmatprep.subr.mxu0 0.0
    %420 = vmatpush1.msra.mxu0 0.0
    %421 = vmatprep.subr.mxu0 0.0
    %422 = vmatpush1.msra.mxu0 0.0
    %423 = vmatprep.subr.mxu0 0.0
    %424 = vmatpush1.msra.mxu0 0.0
    %425 = vmatprep.subr.mxu0 0.0
    %426 = vmatpush1.msra.mxu0 0.0
    %427 = vmatprep.subr.mxu0 0.0
    %428 = vmatpush1.msra.mxu0 0.0
    %429 = vmatprep.subr.mxu0 0.0
    %430 = vmatpush1.msra.mxu0 0.0
    %431 = vmatprep.subr.mxu0 0.0
    %432 = vmatpush1.msra.mxu0 0.0
    %433 = vmatprep.subr.mxu0 0.0
    %434 = vmatpush1.msra.mxu0 0.0
    %435 = vmatprep.subr.mxu0 0.0
    %436 = vmatpush1.msra.mxu0 0.0
    %437 = vmatprep.mubr.f32.mxu0 0.0
    %438 = vmatmul.mubr.f32.gmra.mrb[0].mxu0 %v350
    %v439 = vpop.f32.mrb[0].mxu0
    %v440 = vadd.f32 %v341, %v439
    %v441 = vpop.f32.mrb[0].mxu0
    %v442 = vadd.f32 %v345, %v441
    %443 = vmatprep.mubr.f32.mxu0 0.0
    %444 = vmatmul.mubr.f32.gmra.mrb[0].mxu0 %v353
    %v445 = vpop.f32.mrb[0].mxu0
    %v446 = vadd.f32 %v341, %v445
    %v447 = vpop.f32.mrb[0].mxu0
    %v448 = vadd.f32 %v345, %v447
    %449 = vmatprep.mubr.f32.mxu0 0.0
    %450 = vmatmul.mubr.f32.gmra.mrb[0].mxu0 %v356
    %v451 = vpop.f32.mrb[0].mxu0
    %v452 = vadd.f32 %v341, %v451
    %v453 = vpop.f32.mrb[0].mxu0
    %v454 = vadd.f32 %v345, %v453
    %455 = vmatprep.mubr.f32.mxu0 0.0
    %456 = vmatmul.mubr.f32.gmra.mrb[0].mxu0 %v359
    %v457 = vpop.f32.mrb[0].mxu0
    %v458 = vadd.f32 %v341, %v457
    %v459 = vpop.f32.mrb[0].mxu0
    %v460 = vadd.f32 %v345, %v459
    %461 = vmatprep.mubr.f32.mxu0 0.0
    %462 = vmatmul.mubr.f32.gmra.mrb[0].mxu0 %v362
    %v463 = vpop.f32.mrb[0].mxu0
    %v464 = vadd.f32 %v341, %v463
    %v465 = vpop.f32.mrb[0].mxu0
    %v466 = vadd.f32 %v345, %v465
    %467 = vmatprep.mubr.f32.mxu0 0.0
    %468 = vmatmul.mubr.f32.gmra.mrb[0].mxu0 %v365
    %v469 = vpop.f32.mrb[0].mxu0
    %v470 = vadd.f32 %v341, %v469
    %v471 = vpop.f32.mrb[0].mxu0
    %v472 = vadd.f32 %v345, %v471
    %473 = vmatprep.mubr.f32.mxu0 0.0
    %474 = vmatmul.mubr.f32.gmra.mrb[0].mxu0 %v368
    %v475 = vpop.f32.mrb[0].mxu0
    %v476 = vadd.f32 %v341, %v475
    %v477 = vpop.f32.mrb[0].mxu0
    %v478 = vadd.f32 %v345, %v477
    %479 = vmatprep.mubr.f32.mxu0 0.0
    %480 = vmatmul.mubr.f32.gmra.mrb[0].mxu0 %v371
    %v481 = vpop.f32.mrb[0].mxu0
    %v482 = vadd.f32 %v341, %v481
    %v483 = vpop.f32.mrb[0].mxu0
    %v484 = vadd.f32 %v345, %v483
    %485 = vdwg.mxu0
    %490 = vrot.lane.b32.xlu0 %v440, 64
    %v491 = vpop.permute.xlu0 %490
    %492 = vrot.lane.b32.xlu0 %v446, 64
    %v493 = vpop.permute.xlu0 %492
    %494 = vrot.lane.b32.xlu0 %v452, 64
    %v495 = vpop.permute.xlu0 %494
    %496 = vrot.lane.b32.xlu0 %v458, 64
    %v497 = vpop.permute.xlu0 %496
    %vm498 = vcmask 130048
    %v499 = vsel %vm498, %v440, 0
    %v501 = vsel %vm498, %v446, 0
    %v503 = vsel %vm498, %v452, 0
    %v505 = vsel %vm498, %v458, 0
    %v507 = vsel %vm498, %v491, 0
    %v509 = vsel %vm498, %v493, 0
    %v511 = vsel %vm498, %v495, 0
    %v513 = vsel %vm498, %v497, 0
    %515 = vmatprep.subr.mxu0 0.0
    %516 = vmatpush1.xpose.msra.mxu0 %v507
    %517 = vmatprep.subr.mxu0 0.0
    %518 = vmatpush1.xpose.msra.mxu0 %v509
    %519 = vmatprep.subr.mxu0 0.0
    %520 = vmatpush1.xpose.msra.mxu0 %v511
    %521 = vmatprep.subr.mxu0 0.0
    %522 = vmatpush1.xpose.msra.mxu0 %v513
    %523 = vmatprep.subr.mxu0 0.0
    %524 = vmatpush1.xpose.msra.mxu0 0.0
    %525 = vmatprep.subr.mxu0 0.0
    %526 = vmatpush1.xpose.msra.mxu0 0.0
    %527 = vmatprep.subr.mxu0 0.0
    %528 = vmatpush1.xpose.msra.mxu0 0.0
    %529 = vmatprep.subr.mxu0 0.0
    %530 = vmatpush1.xpose.msra.mxu0 0.0
    %531 = vmatprep.subr.mxu0 0.0
    %532 = vmatpush1.xpose.msra.mxu0 0.0
    %533 = vmatprep.subr.mxu0 0.0
    %534 = vmatpush1.xpose.msra.mxu0 0.0
    %535 = vmatprep.subr.mxu0 0.0
    %536 = vmatpush1.xpose.msra.mxu0 0.0
    %537 = vmatprep.subr.mxu0 0.0
    %538 = vmatpush1.xpose.msra.mxu0 0.0
    %539 = vmatprep.subr.mxu0 0.0
    %540 = vmatpush1.xpose.msra.mxu0 0.0
    %541 = vmatprep.subr.mxu0 0.0
    %542 = vmatpush1.xpose.msra.mxu0 0.0
    %543 = vmatprep.subr.mxu0 0.0
    %544 = vmatpush1.xpose.msra.mxu0 0.0
    %545 = vmatprep.subr.mxu0 0.0
    %546 = vmatpush1.xpose.msra.mxu0 0.0
    %547 = vmatprep.subr.mxu0 0.0
    %548 = vmatpush1.xpose.msra.mxu0 0.0
    %549 = vmatprep.subr.mxu0 0.0
    %550 = vmatpush1.xpose.msra.mxu0 0.0
    %551 = vmatprep.subr.mxu0 0.0
    %552 = vmatpush1.xpose.msra.mxu0 0.0
    %553 = vmatprep.subr.mxu0 0.0
    %554 = vmatpush1.xpose.msra.mxu0 0.0
    %555 = vmatprep.subr.mxu0 0.0
    %556 = vmatpush1.xpose.msra.mxu0 0.0
    %557 = vmatprep.subr.mxu0 0.0
    %558 = vmatpush1.xpose.msra.mxu0 0.0
    %559 = vmatprep.subr.mxu0 0.0
    %560 = vmatpush1.xpose.msra.mxu0 0.0
    %561 = vmatprep.subr.mxu0 0.0
    %562 = vmatpush1.xpose.msra.mxu0 0.0
    %563 = vmatprep.subr.mxu0 0.0
    %564 = vmatpush1.xpose.msra.mxu0 0.0
    %565 = vmatprep.subr.mxu0 0.0
    %566 = vmatpush1.xpose.msra.mxu0 0.0
    %567 = vmatprep.subr.mxu0 0.0
    %568 = vmatpush1.xpose.msra.mxu0 0.0
    %569 = vmatprep.subr.mxu0 0.0
    %570 = vmatpush1.xpose.msra.mxu0 0.0
    %571 = vmatprep.subr.mxu0 0.0
    %572 = vmatpush1.xpose.msra.mxu0 0.0
    %573 = vmatprep.subr.mxu0 0.0
    %574 = vmatpush1.xpose.msra.mxu0 0.0
    %575 = vmatprep.subr.mxu0 0.0
    %576 = vmatpush1.xpose.msra.mxu0 0.0
    %577 = vmatprep.subr.mxu0 0.0
    %578 = vmatpush1.xpose.msra.mxu0 0.0
    %579 = vmatprep.mubr.f32.mxu0 0.0
    %580 = vmatmul.mubr.f32.gmra.mrb[0].mxu0 %v499
    %v581 = vpop.f32.mrb[0].mxu0
    %v582 = vadd.f32 0.0, %v581
    %v583 = vpop.f32.mrb[0].mxu0
    %584 = vmatprep.mubr.f32.mxu0 0.0
    %585 = vmatmul.mubr.f32.gmra.mrb[0].mxu0 %v501
    %v586 = vpop.f32.mrb[0].mxu0
    %v587 = vadd.f32 0.0, %v586
    %v588 = vpop.f32.mrb[0].mxu0
    %589 = vmatprep.mubr.f32.mxu0 0.0
    %590 = vmatmul.mubr.f32.gmra.mrb[0].mxu0 %v503
    %v591 = vpop.f32.mrb[0].mxu0
    %v592 = vadd.f32 0.0, %v591
    %v593 = vpop.f32.mrb[0].mxu0
    %594 = vmatprep.mubr.f32.mxu0 0.0
    %595 = vmatmul.mubr.f32.gmra.mrb[0].mxu0 %v505
    %v596 = vpop.f32.mrb[0].mxu0
    %v597 = vadd.f32 0.0, %v596
    %v598 = vpop.f32.mrb[0].mxu0
    %599 = vdwg.mxu0
    %vm600 = vcmask 261120
    %v601 = vsel %vm600, %v582, -inf
    %602 = vmax.xlane.f32.xlu0 %v601
    %v603 = vpop.xlane.xlu0 %602
    %v604 = vsel %vm600, %v587, -inf
    %605 = vmax.xlane.f32.xlu0 %v604
    %v606 = vpop.xlane.xlu0 %605
    %v607 = vsel %vm600, %v592, -inf
    %608 = vmax.xlane.f32.xlu0 %v607
    %v609 = vpop.xlane.xlu0 %608
    %v610 = vsel %vm600, %v597, -inf
    %611 = vmax.xlane.f32.xlu0 %v610
    %v612 = vpop.xlane.xlu0 %611
    %v613 = vsub.f32 %v582, %v603
    %v614 = vsub.f32 %v587, %v606
    %v615 = vsub.f32 %v592, %v609
    %v616 = vsub.f32 %v597, %v612
    %v617 = vmul.f32 %v613, 1.442695
    %v618 = vpow.pop %v617
    %v619 = vmul.f32 %v614, 1.442695
    %v620 = vpow.pop %v619
    %v621 = vmul.f32 %v615, 1.442695
    %v622 = vpow.pop %v621
    %v623 = vmul.f32 %v616, 1.442695
    %v624 = vpow.pop %v623
    %v626 = vsel %vm600, %v618, 0
    %v629 = vsel %vm600, %v620, 0
    %v632 = vsel %vm600, %v622, 0
    %v635 = vsel %vm600, %v624, 0
    %637 = vmatprep.subr.mxu0 0.0
    %638 = vmatpush1.msra.mxu0 %v442
    %639 = vmatprep.subr.mxu0 0.0
    %640 = vmatpush1.msra.mxu0 %v448
    %641 = vmatprep.subr.mxu0 0.0
    %642 = vmatpush1.msra.mxu0 %v454
    %643 = vmatprep.subr.mxu0 0.0
    %644 = vmatpush1.msra.mxu0 %v460
    %645 = vmatprep.subr.mxu0 0.0
    %646 = vmatpush1.msra.mxu0 0.0
    %647 = vmatprep.subr.mxu0 0.0
    %648 = vmatpush1.msra.mxu0 0.0
    %649 = vmatprep.subr.mxu0 0.0
    %650 = vmatpush1.msra.mxu0 0.0
    %651 = vmatprep.subr.mxu0 0.0
    %652 = vmatpush1.msra.mxu0 0.0
    %653 = vmatprep.subr.mxu0 0.0
    %654 = vmatpush1.msra.mxu0 0.0
    %655 = vmatprep.subr.mxu0 0.0
    %656 = vmatpush1.msra.mxu0 0.0
    %657 = vmatprep.subr.mxu0 0.0
    %658 = vmatpush1.msra.mxu0 0.0
    %659 = vmatprep.subr.mxu0 0.0
    %660 = vmatpush1.msra.mxu0 0.0
    %661 = vmatprep.subr.mxu0 0.0
    %662 = vmatpush1.msra.mxu0 0.0
    %663 = vmatprep.subr.mxu0 0.0
    %664 = vmatpush1.msra.mxu0 0.0
    %665 = vmatprep.subr.mxu0 0.0
    %666 = vmatpush1.msra.mxu0 0.0
    %667 = vmatprep.subr.mxu0 0.0
    %668 = vmatpush1.msra.mxu0 0.0
    %669 = vmatprep.subr.mxu0 0.0
    %670 = vmatpush1.msra.mxu0 0.0
    %671 = vmatprep.subr.mxu0 0.0
    %672 = vmatpush1.msra.mxu0 0.0
    %673 = vmatprep.subr.mxu0 0.0
    %674 = vmatpush1.msra.mxu0 0.0
    %675 = vmatprep.subr.mxu0 0.0
    %676 = vmatpush1.msra.mxu0 0.0
    %677 = vmatprep.subr.mxu0 0.0
    %678 = vmatpush1.msra.mxu0 0.0
    %679 = vmatprep.subr.mxu0 0.0
    %680 = vmatpush1.msra.mxu0 0.0
    %681 = vmatprep.subr.mxu0 0.0
    %682 = vmatpush1.msra.mxu0 0.0
    %683 = vmatprep.subr.mxu0 0.0
    %684 = vmatpush1.msra.mxu0 0.0
    %685 = vmatprep.subr.mxu0 0.0
    %686 = vmatpush1.msra.mxu0 0.0
    %687 = vmatprep.subr.mxu0 0.0
    %688 = vmatpush1.msra.mxu0 0.0
    %689 = vmatprep.subr.mxu0 0.0
    %690 = vmatpush1.msra.mxu0 0.0
    %691 = vmatprep.subr.mxu0 0.0
    %692 = vmatpush1.msra.mxu0 0.0
    %693 = vmatprep.subr.mxu0 0.0
    %694 = vmatpush1.msra.mxu0 0.0
    %695 = vmatprep.subr.mxu0 0.0
    %696 = vmatpush1.msra.mxu0 0.0
    %697 = vmatprep.subr.mxu0 0.0
    %698 = vmatpush1.msra.mxu0 0.0
    %699 = vmatprep.subr.mxu0 0.0
    %700 = vmatpush1.msra.mxu0 0.0
    %701 = vmatprep.mubr.f32.mxu0 0.0
    %702 = vmatmul.mubr.f32.gmra.mrb[0].mxu0 %v626
    %v703 = vpop.f32.mrb[0].mxu0
    %v704 = vadd.f32 0.0, %v703
    %v705 = vpop.f32.mrb[0].mxu0
    %706 = vmatprep.mubr.f32.mxu0 0.0
    %707 = vmatmul.mubr.f32.gmra.mrb[0].mxu0 %v629
    %v708 = vpop.f32.mrb[0].mxu0
    %v709 = vadd.f32 0.0, %v708
    %v710 = vpop.f32.mrb[0].mxu0
    %711 = vmatprep.mubr.f32.mxu0 0.0
    %712 = vmatmul.mubr.f32.gmra.mrb[0].mxu0 %v632
    %v713 = vpop.f32.mrb[0].mxu0
    %v714 = vadd.f32 0.0, %v713
    %v715 = vpop.f32.mrb[0].mxu0
    %716 = vmatprep.mubr.f32.mxu0 0.0
    %717 = vmatmul.mubr.f32.gmra.mrb[0].mxu0 %v635
    %v718 = vpop.f32.mrb[0].mxu0
    %v719 = vadd.f32 0.0, %v718
    %v720 = vpop.f32.mrb[0].mxu0
    %721 = vdwg.mxu0
    %v722 = vsel %vm600, %v618, 0.0
    %723 = vadd.xlane.f32.xlu0 %v722
    %v724 = vpop.xlane.xlu0 %723
    %v725 = vsel %vm600, %v620, 0.0
    %726 = vadd.xlane.f32.xlu0 %v725
    %v727 = vpop.xlane.xlu0 %726
    %v728 = vsel %vm600, %v622, 0.0
    %729 = vadd.xlane.f32.xlu0 %v728
    %v730 = vpop.xlane.xlu0 %729
    %v731 = vsel %vm600, %v624, 0.0
    %732 = vadd.xlane.f32.xlu0 %v731
    %v733 = vpop.xlane.xlu0 %732
    %v734 = vrcp.pop %v724
    %v735 = vrcp.pop %v727
    %v736 = vrcp.pop %v730
    %v737 = vrcp.pop %v733
    %v738 = vmul.f32 %v704, %v734
    %v739 = vmul.f32 %v709, %v735
    %v740 = vmul.f32 %v714, %v736
    %v741 = vmul.f32 %v719, %v737
    %742 = vst.msk [vmem:[#allocation2] sm:$0xff] %vm498, %v738
    %743 = vst.msk [vmem:[#allocation2 + $0x8] sm:$0xff] %vm498, %v739
    %744 = vst.msk [vmem:[#allocation2 + $0x10] sm:$0xff] %vm498, %v740
    %745 = vst.msk [vmem:[#allocation2 + $0x18] sm:$0xff] %vm498, %v741
    %746 = vrot.lane.b32.xlu0 %v440, 112
    %v747 = vpop.permute.xlu0 %746
    %748 = vrot.lane.b32.xlu0 %v446, 112
    %v749 = vpop.permute.xlu0 %748
    %750 = vrot.lane.b32.xlu0 %v452, 112
    %v751 = vpop.permute.xlu0 %750
    %752 = vrot.lane.b32.xlu0 %v458, 112
    %v753 = vpop.permute.xlu0 %752
    %754 = vrot.lane.b32.xlu0 %v440, 48
    %v755 = vpop.permute.xlu0 %754
    %756 = vrot.lane.b32.xlu0 %v446, 48
    %v757 = vpop.permute.xlu0 %756
    %758 = vrot.lane.b32.xlu0 %v452, 48
    %v759 = vpop.permute.xlu0 %758
    %760 = vrot.lane.b32.xlu0 %v458, 48
    %v761 = vpop.permute.xlu0 %760
    %v762 = vsel %vm498, %v747, 0
    %v764 = vsel %vm498, %v749, 0
    %v766 = vsel %vm498, %v751, 0
    %v768 = vsel %vm498, %v753, 0
    %v770 = vsel %vm498, %v755, 0
    %v772 = vsel %vm498, %v757, 0
    %v774 = vsel %vm498, %v759, 0
    %v776 = vsel %vm498, %v761, 0
    %778 = vmatprep.subr.mxu0 0.0
    %779 = vmatpush1.xpose.msra.mxu0 %v770
    %780 = vmatprep.subr.mxu0 0.0
    %781 = vmatpush1.xpose.msra.mxu0 %v772
    %782 = vmatprep.subr.mxu0 0.0
    %783 = vmatpush1.xpose.msra.mxu0 %v774
    %784 = vmatprep.subr.mxu0 0.0
    %785 = vmatpush1.xpose.msra.mxu0 %v776
    %786 = vmatprep.subr.mxu0 0.0
    %787 = vmatpush1.xpose.msra.mxu0 0.0
    %788 = vmatprep.subr.mxu0 0.0
    %789 = vmatpush1.xpose.msra.mxu0 0.0
    %790 = vmatprep.subr.mxu0 0.0
    %791 = vmatpush1.xpose.msra.mxu0 0.0
    %792 = vmatprep.subr.mxu0 0.0
    %793 = vmatpush1.xpose.msra.mxu0 0.0
    %794 = vmatprep.subr.mxu0 0.0
    %795 = vmatpush1.xpose.msra.mxu0 0.0
    %796 = vmatprep.subr.mxu0 0.0
    %797 = vmatpush1.xpose.msra.mxu0 0.0
    %798 = vmatprep.subr.mxu0 0.0
    %799 = vmatpush1.xpose.msra.mxu0 0.0
    %800 = vmatprep.subr.mxu0 0.0
    %801 = vmatpush1.xpose.msra.mxu0 0.0
    %802 = vmatprep.subr.mxu0 0.0
    %803 = vmatpush1.xpose.msra.mxu0 0.0
    %804 = vmatprep.subr.mxu0 0.0
    %805 = vmatpush1.xpose.msra.mxu0 0.0
    %806 = vmatprep.subr.mxu0 0.0
    %807 = vmatpush1.xpose.msra.mxu0 0.0
    %808 = vmatprep.subr.mxu0 0.0
    %809 = vmatpush1.xpose.msra.mxu0 0.0
    %810 = vmatprep.subr.mxu0 0.0
    %811 = vmatpush1.xpose.msra.mxu0 0.0
    %812 = vmatprep.subr.mxu0 0.0
    %813 = vmatpush1.xpose.msra.mxu0 0.0
    %814 = vmatprep.subr.mxu0 0.0
    %815 = vmatpush1.xpose.msra.mxu0 0.0
    %816 = vmatprep.subr.mxu0 0.0
    %817 = vmatpush1.xpose.msra.mxu0 0.0
    %818 = vmatprep.subr.mxu0 0.0
    %819 = vmatpush1.xpose.msra.mxu0 0.0
    %820 = vmatprep.subr.mxu0 0.0
    %821 = vmatpush1.xpose.msra.mxu0 0.0
    %822 = vmatprep.subr.mxu0 0.0
    %823 = vmatpush1.xpose.msra.mxu0 0.0
    %824 = vmatprep.subr.mxu0 0.0
    %825 = vmatpush1.xpose.msra.mxu0 0.0
    %826 = vmatprep.subr.mxu0 0.0
    %827 = vmatpush1.xpose.msra.mxu0 0.0
    %828 = vmatprep.subr.mxu0 0.0
    %829 = vmatpush1.xpose.msra.mxu0 0.0
    %830 = vmatprep.subr.mxu0 0.0
    %831 = vmatpush1.xpose.msra.mxu0 0.0
    %832 = vmatprep.subr.mxu0 0.0
    %833 = vmatpush1.xpose.msra.mxu0 0.0
    %834 = vmatprep.subr.mxu0 0.0
    %835 = vmatpush1.xpose.msra.mxu0 0.0
    %836 = vmatprep.subr.mxu0 0.0
    %837 = vmatpush1.xpose.msra.mxu0 0.0
    %838 = vmatprep.subr.mxu0 0.0
    %839 = vmatpush1.xpose.msra.mxu0 0.0
    %840 = vmatprep.subr.mxu0 0.0
    %841 = vmatpush1.xpose.msra.mxu0 0.0
    %842 = vmatprep.mubr.f32.mxu0 0.0
    %843 = vmatmul.mubr.f32.gmra.mrb[0].mxu0 %v762
    %v844 = vpop.f32.mrb[0].mxu0
    %v845 = vadd.f32 0.0, %v844
    %v846 = vpop.f32.mrb[0].mxu0
    %847 = vmatprep.mubr.f32.mxu0 0.0
    %848 = vmatmul.mubr.f32.gmra.mrb[0].mxu0 %v764
    %v849 = vpop.f32.mrb[0].mxu0
    %v850 = vadd.f32 0.0, %v849
    %v851 = vpop.f32.mrb[0].mxu0
    %852 = vmatprep.mubr.f32.mxu0 0.0
    %853 = vmatmul.mubr.f32.gmra.mrb[0].mxu0 %v766
    %v854 = vpop.f32.mrb[0].mxu0
    %v855 = vadd.f32 0.0, %v854
    %v856 = vpop.f32.mrb[0].mxu0
    %857 = vmatprep.mubr.f32.mxu0 0.0
    %858 = vmatmul.mubr.f32.gmra.mrb[0].mxu0 %v768
    %v859 = vpop.f32.mrb[0].mxu0
    %v860 = vadd.f32 0.0, %v859
    %v861 = vpop.f32.mrb[0].mxu0
    %862 = vdwg.mxu0
    %v863 = vsel %vm600, %v845, -inf
    %864 = vmax.xlane.f32.xlu0 %v863
    %v865 = vpop.xlane.xlu0 %864
    %v866 = vsel %vm600, %v850, -inf
    %867 = vmax.xlane.f32.xlu0 %v866
    %v868 = vpop.xlane.xlu0 %867
    %v869 = vsel %vm600, %v855, -inf
    %870 = vmax.xlane.f32.xlu0 %v869
    %v871 = vpop.xlane.xlu0 %870
    %v872 = vsel %vm600, %v860, -inf
    %873 = vmax.xlane.f32.xlu0 %v872
    %v874 = vpop.xlane.xlu0 %873
    %v875 = vsub.f32 %v845, %v865
    %v876 = vsub.f32 %v850, %v868
    %v877 = vsub.f32 %v855, %v871
    %v878 = vsub.f32 %v860, %v874
    %v879 = vmul.f32 %v875, 1.442695
    %v880 = vpow.pop %v879
    %v881 = vmul.f32 %v876, 1.442695
    %v882 = vpow.pop %v881
    %v883 = vmul.f32 %v877, 1.442695
    %v884 = vpow.pop %v883
    %v885 = vmul.f32 %v878, 1.442695
    %v886 = vpow.pop %v885
    %891 = vrot.lane.b32.xlu0 %v442, 112
    %v892 = vpop.permute.xlu0 %891
    %893 = vrot.lane.b32.xlu0 %v448, 112
    %v894 = vpop.permute.xlu0 %893
    %895 = vrot.lane.b32.xlu0 %v454, 112
    %v896 = vpop.permute.xlu0 %895
    %897 = vrot.lane.b32.xlu0 %v460, 112
    %v898 = vpop.permute.xlu0 %897
    %v904 = vsel %vm600, %v880, 0
    %v907 = vsel %vm600, %v882, 0
    %v910 = vsel %vm600, %v884, 0
    %v913 = vsel %vm600, %v886, 0
    %915 = vmatprep.subr.mxu0 0.0
    %916 = vmatpush1.msra.mxu0 %v892
    %917 = vmatprep.subr.mxu0 0.0
    %918 = vmatpush1.msra.mxu0 %v894
    %919 = vmatprep.subr.mxu0 0.0
    %920 = vmatpush1.msra.mxu0 %v896
    %921 = vmatprep.subr.mxu0 0.0
    %922 = vmatpush1.msra.mxu0 %v898
    %923 = vmatprep.subr.mxu0 0.0
    %924 = vmatpush1.msra.mxu0 0.0
    %925 = vmatprep.subr.mxu0 0.0
    %926 = vmatpush1.msra.mxu0 0.0
    %927 = vmatprep.subr.mxu0 0.0
    %928 = vmatpush1.msra.mxu0 0.0
    %929 = vmatprep.subr.mxu0 0.0
    %930 = vmatpush1.msra.mxu0 0.0
    %931 = vmatprep.subr.mxu0 0.0
    %932 = vmatpush1.msra.mxu0 0.0
    %933 = vmatprep.subr.mxu0 0.0
    %934 = vmatpush1.msra.mxu0 0.0
    %935 = vmatprep.subr.mxu0 0.0
    %936 = vmatpush1.msra.mxu0 0.0
    %937 = vmatprep.subr.mxu0 0.0
    %938 = vmatpush1.msra.mxu0 0.0
    %939 = vmatprep.subr.mxu0 0.0
    %940 = vmatpush1.msra.mxu0 0.0
    %941 = vmatprep.subr.mxu0 0.0
    %942 = vmatpush1.msra.mxu0 0.0
    %943 = vmatprep.subr.mxu0 0.0
    %944 = vmatpush1.msra.mxu0 0.0
    %945 = vmatprep.subr.mxu0 0.0
    %946 = vmatpush1.msra.mxu0 0.0
    %947 = vmatprep.subr.mxu0 0.0
    %948 = vmatpush1.msra.mxu0 0.0
    %949 = vmatprep.subr.mxu0 0.0
    %950 = vmatpush1.msra.mxu0 0.0
    %951 = vmatprep.subr.mxu0 0.0
    %952 = vmatpush1.msra.mxu0 0.0
    %953 = vmatprep.subr.mxu0 0.0
    %954 = vmatpush1.msra.mxu0 0.0
    %955 = vmatprep.subr.mxu0 0.0
    %956 = vmatpush1.msra.mxu0 0.0
    %957 = vmatprep.subr.mxu0 0.0
    %958 = vmatpush1.msra.mxu0 0.0
    %959 = vmatprep.subr.mxu0 0.0
    %960 = vmatpush1.msra.mxu0 0.0
    %961 = vmatprep.subr.mxu0 0.0
    %962 = vmatpush1.msra.mxu0 0.0
    %963 = vmatprep.subr.mxu0 0.0
    %964 = vmatpush1.msra.mxu0 0.0
    %965 = vmatprep.subr.mxu0 0.0
    %966 = vmatpush1.msra.mxu0 0.0
    %967 = vmatprep.subr.mxu0 0.0
    %968 = vmatpush1.msra.mxu0 0.0
    %969 = vmatprep.subr.mxu0 0.0
    %970 = vmatpush1.msra.mxu0 0.0
    %971 = vmatprep.subr.mxu0 0.0
    %972 = vmatpush1.msra.mxu0 0.0
    %973 = vmatprep.subr.mxu0 0.0
    %974 = vmatpush1.msra.mxu0 0.0
    %975 = vmatprep.subr.mxu0 0.0
    %976 = vmatpush1.msra.mxu0 0.0
    %977 = vmatprep.subr.mxu0 0.0
    %978 = vmatpush1.msra.mxu0 0.0
    %979 = vmatprep.mubr.f32.mxu0 0.0
    %980 = vmatmul.mubr.f32.gmra.mrb[0].mxu0 %v904
    %v981 = vpop.f32.mrb[0].mxu0
    %v982 = vadd.f32 0.0, %v981
    %v983 = vpop.f32.mrb[0].mxu0
    %984 = vmatprep.mubr.f32.mxu0 0.0
    %985 = vmatmul.mubr.f32.gmra.mrb[0].mxu0 %v907
    %v986 = vpop.f32.mrb[0].mxu0
    %v987 = vadd.f32 0.0, %v986
    %v988 = vpop.f32.mrb[0].mxu0
    %989 = vmatprep.mubr.f32.mxu0 0.0
    %990 = vmatmul.mubr.f32.gmra.mrb[0].mxu0 %v910
    %v991 = vpop.f32.mrb[0].mxu0
    %v992 = vadd.f32 0.0, %v991
    %v993 = vpop.f32.mrb[0].mxu0
    %994 = vmatprep.mubr.f32.mxu0 0.0
    %995 = vmatmul.mubr.f32.gmra.mrb[0].mxu0 %v913
    %v996 = vpop.f32.mrb[0].mxu0
    %v997 = vadd.f32 0.0, %v996
    %v998 = vpop.f32.mrb[0].mxu0
    %999 = vdwg.mxu0
    %v1000 = vsel %vm600, %v880, 0.0
    %1001 = vadd.xlane.f32.xlu0 %v1000
    %v1002 = vpop.xlane.xlu0 %1001
    %v1003 = vsel %vm600, %v882, 0.0
    %1004 = vadd.xlane.f32.xlu0 %v1003
    %v1005 = vpop.xlane.xlu0 %1004
    %v1006 = vsel %vm600, %v884, 0.0
    %1007 = vadd.xlane.f32.xlu0 %v1006
    %v1008 = vpop.xlane.xlu0 %1007
    %v1009 = vsel %vm600, %v886, 0.0
    %1010 = vadd.xlane.f32.xlu0 %v1009
    %v1011 = vpop.xlane.xlu0 %1010
    %v1012 = vrcp.pop %v1002
    %v1013 = vrcp.pop %v1005
    %v1014 = vrcp.pop %v1008
    %v1015 = vrcp.pop %v1011
    %v1016 = vmul.f32 %v982, %v1012
    %v1017 = vmul.f32 %v987, %v1013
    %v1018 = vmul.f32 %v992, %v1014
    %v1019 = vmul.f32 %v997, %v1015
    %1024 = vrot.lane.b32.xlu0 %v1016, 16
    %v1025 = vpop.permute.xlu0 %1024
    %1026 = vrot.lane.b32.xlu0 %v1017, 16
    %v1027 = vpop.permute.xlu0 %1026
    %1028 = vrot.lane.b32.xlu0 %v1018, 16
    %v1029 = vpop.permute.xlu0 %1028
    %1030 = vrot.lane.b32.xlu0 %v1019, 16
    %v1031 = vpop.permute.xlu0 %1030
    %vm1036 = vcmask 261248
    %1037 = vst.msk [vmem:[#allocation2] sm:$0xff] %vm1036, %v1025
    %1038 = vst.msk [vmem:[#allocation2 + $0x8] sm:$0xff] %vm1036, %v1027
    %1039 = vst.msk [vmem:[#allocation2 + $0x10] sm:$0xff] %vm1036, %v1029
    %1040 = vst.msk [vmem:[#allocation2 + $0x18] sm:$0xff] %vm1036, %v1031
    %1041 = vrot.lane.b32.xlu0 %v440, 96
    %v1042 = vpop.permute.xlu0 %1041
    %1043 = vrot.lane.b32.xlu0 %v446, 96
    %v1044 = vpop.permute.xlu0 %1043
    %1045 = vrot.lane.b32.xlu0 %v452, 96
    %v1046 = vpop.permute.xlu0 %1045
    %1047 = vrot.lane.b32.xlu0 %v458, 96
    %v1048 = vpop.permute.xlu0 %1047
    %1049 = vrot.lane.b32.xlu0 %v440, 32
    %v1050 = vpop.permute.xlu0 %1049
    %1051 = vrot.lane.b32.xlu0 %v446, 32
    %v1052 = vpop.permute.xlu0 %1051
    %1053 = vrot.lane.b32.xlu0 %v452, 32
    %v1054 = vpop.permute.xlu0 %1053
    %1055 = vrot.lane.b32.xlu0 %v458, 32
    %v1056 = vpop.permute.xlu0 %1055
    %v1057 = vsel %vm498, %v1042, 0
    %v1059 = vsel %vm498, %v1044, 0
    %v1061 = vsel %vm498, %v1046, 0
    %v1063 = vsel %vm498, %v1048, 0
    %v1065 = vsel %vm498, %v1050, 0
    %v1067 = vsel %vm498, %v1052, 0
    %v1069 = vsel %vm498, %v1054, 0
    %v1071 = vsel %vm498, %v1056, 0
    %1073 = vmatprep.subr.mxu0 0.0
    %1074 = vmatpush1.xpose.msra.mxu0 %v1065
    %1075 = vmatprep.subr.mxu0 0.0
    %1076 = vmatpush1.xpose.msra.mxu0 %v1067
    %1077 = vmatprep.subr.mxu0 0.0
    %1078 = vmatpush1.xpose.msra.mxu0 %v1069
    %1079 = vmatprep.subr.mxu0 0.0
    %1080 = vmatpush1.xpose.msra.mxu0 %v1071
    %1081 = vmatprep.subr.mxu0 0.0
    %1082 = vmatpush1.xpose.msra.mxu0 0.0
    %1083 = vmatprep.subr.mxu0 0.0
    %1084 = vmatpush1.xpose.msra.mxu0 0.0
    %1085 = vmatprep.subr.mxu0 0.0
    %1086 = vmatpush1.xpose.msra.mxu0 0.0
    %1087 = vmatprep.subr.mxu0 0.0
    %1088 = vmatpush1.xpose.msra.mxu0 0.0
    %1089 = vmatprep.subr.mxu0 0.0
    %1090 = vmatpush1.xpose.msra.mxu0 0.0
    %1091 = vmatprep.subr.mxu0 0.0
    %1092 = vmatpush1.xpose.msra.mxu0 0.0
    %1093 = vmatprep.subr.mxu0 0.0
    %1094 = vmatpush1.xpose.msra.mxu0 0.0
    %1095 = vmatprep.subr.mxu0 0.0
    %1096 = vmatpush1.xpose.msra.mxu0 0.0
    %1097 = vmatprep.subr.mxu0 0.0
    %1098 = vmatpush1.xpose.msra.mxu0 0.0
    %1099 = vmatprep.subr.mxu0 0.0
    %1100 = vmatpush1.xpose.msra.mxu0 0.0
    %1101 = vmatprep.subr.mxu0 0.0
    %1102 = vmatpush1.xpose.msra.mxu0 0.0
    %1103 = vmatprep.subr.mxu0 0.0
    %1104 = vmatpush1.xpose.msra.mxu0 0.0
    %1105 = vmatprep.subr.mxu0 0.0
    %1106 = vmatpush1.xpose.msra.mxu0 0.0
    %1107 = vmatprep.subr.mxu0 0.0
    %1108 = vmatpush1.xpose.msra.mxu0 0.0
    %1109 = vmatprep.subr.mxu0 0.0
    %1110 = vmatpush1.xpose.msra.mxu0 0.0
    %1111 = vmatprep.subr.mxu0 0.0
    %1112 = vmatpush1.xpose.msra.mxu0 0.0
    %1113 = vmatprep.subr.mxu0 0.0
    %1114 = vmatpush1.xpose.msra.mxu0 0.0
    %1115 = vmatprep.subr.mxu0 0.0
    %1116 = vmatpush1.xpose.msra.mxu0 0.0
    %1117 = vmatprep.subr.mxu0 0.0
    %1118 = vmatpush1.xpose.msra.mxu0 0.0
    %1119 = vmatprep.subr.mxu0 0.0
    %1120 = vmatpush1.xpose.msra.mxu0 0.0
    %1121 = vmatprep.subr.mxu0 0.0
    %1122 = vmatpush1.xpose.msra.mxu0 0.0
    %1123 = vmatprep.subr.mxu0 0.0
    %1124 = vmatpush1.xpose.msra.mxu0 0.0
    %1125 = vmatprep.subr.mxu0 0.0
    %1126 = vmatpush1.xpose.msra.mxu0 0.0
    %1127 = vmatprep.subr.mxu0 0.0
    %1128 = vmatpush1.xpose.msra.mxu0 0.0
    %1129 = vmatprep.subr.mxu0 0.0
    %1130 = vmatpush1.xpose.msra.mxu0 0.0
    %1131 = vmatprep.subr.mxu0 0.0
    %1132 = vmatpush1.xpose.msra.mxu0 0.0
    %1133 = vmatprep.subr.mxu0 0.0
    %1134 = vmatpush1.xpose.msra.mxu0 0.0
    %1135 = vmatprep.subr.mxu0 0.0
    %1136 = vmatpush1.xpose.msra.mxu0 0.0
    %1137 = vmatprep.mubr.f32.mxu0 0.0
    %1138 = vmatmul.mubr.f32.gmra.mrb[0].mxu0 %v1057
    %v1139 = vpop.f32.mrb[0].mxu0
    %v1140 = vadd.f32 0.0, %v1139
    %v1141 = vpop.f32.mrb[0].mxu0
    %1142 = vmatprep.mubr.f32.mxu0 0.0
    %1143 = vmatmul.mubr.f32.gmra.mrb[0].mxu0 %v1059
    %v1144 = vpop.f32.mrb[0].mxu0
    %v1145 = vadd.f32 0.0, %v1144
    %v1146 = vpop.f32.mrb[0].mxu0
    %1147 = vmatprep.mubr.f32.mxu0 0.0
    %1148 = vmatmul.mubr.f32.gmra.mrb[0].mxu0 %v1061
    %v1149 = vpop.f32.mrb[0].mxu0
    %v1150 = vadd.f32 0.0, %v1149
    %v1151 = vpop.f32.mrb[0].mxu0
    %1152 = vmatprep.mubr.f32.mxu0 0.0
    %1153 = vmatmul.mubr.f32.gmra.mrb[0].mxu0 %v1063
    %v1154 = vpop.f32.mrb[0].mxu0
    %v1155 = vadd.f32 0.0, %v1154
    %v1156 = vpop.f32.mrb[0].mxu0
    %1157 = vdwg.mxu0
    %v1158 = vsel %vm600, %v1140, -inf
    %1159 = vmax.xlane.f32.xlu0 %v1158
    %v1160 = vpop.xlane.xlu0 %1159
    %v1161 = vsel %vm600, %v1145, -inf
    %1162 = vmax.xlane.f32.xlu0 %v1161
    %v1163 = vpop.xlane.xlu0 %1162
    %v1164 = vsel %vm600, %v1150, -inf
    %1165 = vmax.xlane.f32.xlu0 %v1164
    %v1166 = vpop.xlane.xlu0 %1165
    %v1167 = vsel %vm600, %v1155, -inf
    %1168 = vmax.xlane.f32.xlu0 %v1167
    %v1169 = vpop.xlane.xlu0 %1168
    %v1170 = vsub.f32 %v1140, %v1160
    %v1171 = vsub.f32 %v1145, %v1163
    %v1172 = vsub.f32 %v1150, %v1166
    %v1173 = vsub.f32 %v1155, %v1169
    %v1174 = vmul.f32 %v1170, 1.442695
    %v1175 = vpow.pop %v1174
    %v1176 = vmul.f32 %v1171, 1.442695
    %v1177 = vpow.pop %v1176
    %v1178 = vmul.f32 %v1172, 1.442695
    %v1179 = vpow.pop %v1178
    %v1180 = vmul.f32 %v1173, 1.442695
    %v1181 = vpow.pop %v1180
    %1182 = vrot.lane.b32.xlu0 %v442, 96
    %v1183 = vpop.permute.xlu0 %1182
    %1184 = vrot.lane.b32.xlu0 %v448, 96
    %v1185 = vpop.permute.xlu0 %1184
    %1186 = vrot.lane.b32.xlu0 %v454, 96
    %v1187 = vpop.permute.xlu0 %1186
    %1188 = vrot.lane.b32.xlu0 %v460, 96
    %v1189 = vpop.permute.xlu0 %1188
    %v1195 = vsel %vm600, %v1175, 0
    %v1198 = vsel %vm600, %v1177, 0
    %v1201 = vsel %vm600, %v1179, 0
    %v1204 = vsel %vm600, %v1181, 0
    %1206 = vmatprep.subr.mxu0 0.0
    %1207 = vmatpush1.msra.mxu0 %v1183
    %1208 = vmatprep.subr.mxu0 0.0
    %1209 = vmatpush1.msra.mxu0 %v1185
    %1210 = vmatprep.subr.mxu0 0.0
    %1211 = vmatpush1.msra.mxu0 %v1187
    %1212 = vmatprep.subr.mxu0 0.0
    %1213 = vmatpush1.msra.mxu0 %v1189
    %1214 = vmatprep.subr.mxu0 0.0
    %1215 = vmatpush1.msra.mxu0 0.0
    %1216 = vmatprep.subr.mxu0 0.0
    %1217 = vmatpush1.msra.mxu0 0.0
    %1218 = vmatprep.subr.mxu0 0.0
    %1219 = vmatpush1.msra.mxu0 0.0
    %1220 = vmatprep.subr.mxu0 0.0
    %1221 = vmatpush1.msra.mxu0 0.0
    %1222 = vmatprep.subr.mxu0 0.0
    %1223 = vmatpush1.msra.mxu0 0.0
    %1224 = vmatprep.subr.mxu0 0.0
    %1225 = vmatpush1.msra.mxu0 0.0
    %1226 = vmatprep.subr.mxu0 0.0
    %1227 = vmatpush1.msra.mxu0 0.0
    %1228 = vmatprep.subr.mxu0 0.0
    %1229 = vmatpush1.msra.mxu0 0.0
    %1230 = vmatprep.subr.mxu0 0.0
    %1231 = vmatpush1.msra.mxu0 0.0
    %1232 = vmatprep.subr.mxu0 0.0
    %1233 = vmatpush1.msra.mxu0 0.0
    %1234 = vmatprep.subr.mxu0 0.0
    %1235 = vmatpush1.msra.mxu0 0.0
    %1236 = vmatprep.subr.mxu0 0.0
    %1237 = vmatpush1.msra.mxu0 0.0
    %1238 = vmatprep.subr.mxu0 0.0
    %1239 = vmatpush1.msra.mxu0 0.0
    %1240 = vmatprep.subr.mxu0 0.0
    %1241 = vmatpush1.msra.mxu0 0.0
    %1242 = vmatprep.subr.mxu0 0.0
    %1243 = vmatpush1.msra.mxu0 0.0
    %1244 = vmatprep.subr.mxu0 0.0
    %1245 = vmatpush1.msra.mxu0 0.0
    %1246 = vmatprep.subr.mxu0 0.0
    %1247 = vmatpush1.msra.mxu0 0.0
    %1248 = vmatprep.subr.mxu0 0.0
    %1249 = vmatpush1.msra.mxu0 0.0
    %1250 = vmatprep.subr.mxu0 0.0
    %1251 = vmatpush1.msra.mxu0 0.0
    %1252 = vmatprep.subr.mxu0 0.0
    %1253 = vmatpush1.msra.mxu0 0.0
    %1254 = vmatprep.subr.mxu0 0.0
    %1255 = vmatpush1.msra.mxu0 0.0
    %1256 = vmatprep.subr.mxu0 0.0
    %1257 = vmatpush1.msra.mxu0 0.0
    %1258 = vmatprep.subr.mxu0 0.0
    %1259 = vmatpush1.msra.mxu0 0.0
    %1260 = vmatprep.subr.mxu0 0.0
    %1261 = vmatpush1.msra.mxu0 0.0
    %1262 = vmatprep.subr.mxu0 0.0
    %1263 = vmatpush1.msra.mxu0 0.0
    %1264 = vmatprep.subr.mxu0 0.0
    %1265 = vmatpush1.msra.mxu0 0.0
    %1266 = vmatprep.subr.mxu0 0.0
    %1267 = vmatpush1.msra.mxu0 0.0
    %1268 = vmatprep.subr.mxu0 0.0
    %1269 = vmatpush1.msra.mxu0 0.0
    %1270 = vmatprep.mubr.f32.mxu0 0.0
    %1271 = vmatmul.mubr.f32.gmra.mrb[0].mxu0 %v1195
    %v1272 = vpop.f32.mrb[0].mxu0
    %v1273 = vadd.f32 0.0, %v1272
    %v1274 = vpop.f32.mrb[0].mxu0
    %1275 = vmatprep.mubr.f32.mxu0 0.0
    %1276 = vmatmul.mubr.f32.gmra.mrb[0].mxu0 %v1198
    %v1277 = vpop.f32.mrb[0].mxu0
    %v1278 = vadd.f32 0.0, %v1277
    %v1279 = vpop.f32.mrb[0].mxu0
    %1280 = vmatprep.mubr.f32.mxu0 0.0
    %1281 = vmatmul.mubr.f32.gmra.mrb[0].mxu0 %v1201
    %v1282 = vpop.f32.mrb[0].mxu0
    %v1283 = vadd.f32 0.0, %v1282
    %v1284 = vpop.f32.mrb[0].mxu0
    %1285 = vmatprep.mubr.f32.mxu0 0.0
    %1286 = vmatmul.mubr.f32.gmra.mrb[0].mxu0 %v1204
    %v1287 = vpop.f32.mrb[0].mxu0
    %v1288 = vadd.f32 0.0, %v1287
    %v1289 = vpop.f32.mrb[0].mxu0
    %1290 = vdwg.mxu0
    %v1291 = vsel %vm600, %v1175, 0.0
    %1292 = vadd.xlane.f32.xlu0 %v1291
    %v1293 = vpop.xlane.xlu0 %1292
    %v1294 = vsel %vm600, %v1177, 0.0
    %1295 = vadd.xlane.f32.xlu0 %v1294
    %v1296 = vpop.xlane.xlu0 %1295
    %v1297 = vsel %vm600, %v1179, 0.0
    %1298 = vadd.xlane.f32.xlu0 %v1297
    %v1299 = vpop.xlane.xlu0 %1298
    %v1300 = vsel %vm600, %v1181, 0.0
    %1301 = vadd.xlane.f32.xlu0 %v1300
    %v1302 = vpop.xlane.xlu0 %1301
    %v1303 = vrcp.pop %v1293
    %v1304 = vrcp.pop %v1296
    %v1305 = vrcp.pop %v1299
    %v1306 = vrcp.pop %v1302
    %v1307 = vmul.f32 %v1273, %v1303
    %v1308 = vmul.f32 %v1278, %v1304
    %v1309 = vmul.f32 %v1283, %v1305
    %v1310 = vmul.f32 %v1288, %v1306
    %1315 = vrot.lane.b32.xlu0 %v1307, 32
    %v1316 = vpop.permute.xlu0 %1315
    %1317 = vrot.lane.b32.xlu0 %v1308, 32
    %v1318 = vpop.permute.xlu0 %1317
    %1319 = vrot.lane.b32.xlu0 %v1309, 32
    %v1320 = vpop.permute.xlu0 %1319
    %1321 = vrot.lane.b32.xlu0 %v1310, 32
    %v1322 = vpop.permute.xlu0 %1321
    %vm1327 = vcmask 392448
    %1328 = vst.msk [vmem:[#allocation2] sm:$0xff] %vm1327, %v1316
    %1329 = vst.msk [vmem:[#allocation2 + $0x8] sm:$0xff] %vm1327, %v1318
    %1330 = vst.msk [vmem:[#allocation2 + $0x10] sm:$0xff] %vm1327, %v1320
    %1331 = vst.msk [vmem:[#allocation2 + $0x18] sm:$0xff] %vm1327, %v1322
    %1332 = vrot.lane.b32.xlu0 %v440, 80
    %v1333 = vpop.permute.xlu0 %1332
    %1334 = vrot.lane.b32.xlu0 %v446, 80
    %v1335 = vpop.permute.xlu0 %1334
    %1336 = vrot.lane.b32.xlu0 %v452, 80
    %v1337 = vpop.permute.xlu0 %1336
    %1338 = vrot.lane.b32.xlu0 %v458, 80
    %v1339 = vpop.permute.xlu0 %1338
    %1340 = vrot.lane.b32.xlu0 %v440, 16
    %v1341 = vpop.permute.xlu0 %1340
    %1342 = vrot.lane.b32.xlu0 %v446, 16
    %v1343 = vpop.permute.xlu0 %1342
    %1344 = vrot.lane.b32.xlu0 %v452, 16
    %v1345 = vpop.permute.xlu0 %1344
    %1346 = vrot.lane.b32.xlu0 %v458, 16
    %v1347 = vpop.permute.xlu0 %1346
    %v1348 = vsel %vm498, %v1333, 0
    %v1350 = vsel %vm498, %v1335, 0
    %v1352 = vsel %vm498, %v1337, 0
    %v1354 = vsel %vm498, %v1339, 0
    %v1356 = vsel %vm498, %v1341, 0
    %v1358 = vsel %vm498, %v1343, 0
    %v1360 = vsel %vm498, %v1345, 0
    %v1362 = vsel %vm498, %v1347, 0
    %1364 = vmatprep.subr.mxu0 0.0
    %1365 = vmatpush1.xpose.msra.mxu0 %v1356
    %1366 = vmatprep.subr.mxu0 0.0
    %1367 = vmatpush1.xpose.msra.mxu0 %v1358
    %1368 = vmatprep.subr.mxu0 0.0
    %1369 = vmatpush1.xpose.msra.mxu0 %v1360
    %1370 = vmatprep.subr.mxu0 0.0
    %1371 = vmatpush1.xpose.msra.mxu0 %v1362
    %1372 = vmatprep.subr.mxu0 0.0
    %1373 = vmatpush1.xpose.msra.mxu0 0.0
    %1374 = vmatprep.subr.mxu0 0.0
    %1375 = vmatpush1.xpose.msra.mxu0 0.0
    %1376 = vmatprep.subr.mxu0 0.0
    %1377 = vmatpush1.xpose.msra.mxu0 0.0
    %1378 = vmatprep.subr.mxu0 0.0
    %1379 = vmatpush1.xpose.msra.mxu0 0.0
    %1380 = vmatprep.subr.mxu0 0.0
    %1381 = vmatpush1.xpose.msra.mxu0 0.0
    %1382 = vmatprep.subr.mxu0 0.0
    %1383 = vmatpush1.xpose.msra.mxu0 0.0
    %1384 = vmatprep.subr.mxu0 0.0
    %1385 = vmatpush1.xpose.msra.mxu0 0.0
    %1386 = vmatprep.subr.mxu0 0.0
    %1387 = vmatpush1.xpose.msra.mxu0 0.0
    %1388 = vmatprep.subr.mxu0 0.0
    %1389 = vmatpush1.xpose.msra.mxu0 0.0
    %1390 = vmatprep.subr.mxu0 0.0
    %1391 = vmatpush1.xpose.msra.mxu0 0.0
    %1392 = vmatprep.subr.mxu0 0.0
    %1393 = vmatpush1.xpose.msra.mxu0 0.0
    %1394 = vmatprep.subr.mxu0 0.0
    %1395 = vmatpush1.xpose.msra.mxu0 0.0
    %1396 = vmatprep.subr.mxu0 0.0
    %1397 = vmatpush1.xpose.msra.mxu0 0.0
    %1398 = vmatprep.subr.mxu0 0.0
    %1399 = vmatpush1.xpose.msra.mxu0 0.0
    %1400 = vmatprep.subr.mxu0 0.0
    %1401 = vmatpush1.xpose.msra.mxu0 0.0
    %1402 = vmatprep.subr.mxu0 0.0
    %1403 = vmatpush1.xpose.msra.mxu0 0.0
    %1404 = vmatprep.subr.mxu0 0.0
    %1405 = vmatpush1.xpose.msra.mxu0 0.0
    %1406 = vmatprep.subr.mxu0 0.0
    %1407 = vmatpush1.xpose.msra.mxu0 0.0
    %1408 = vmatprep.subr.mxu0 0.0
    %1409 = vmatpush1.xpose.msra.mxu0 0.0
    %1410 = vmatprep.subr.mxu0 0.0
    %1411 = vmatpush1.xpose.msra.mxu0 0.0
    %1412 = vmatprep.subr.mxu0 0.0
    %1413 = vmatpush1.xpose.msra.mxu0 0.0
    %1414 = vmatprep.subr.mxu0 0.0
    %1415 = vmatpush1.xpose.msra.mxu0 0.0
    %1416 = vmatprep.subr.mxu0 0.0
    %1417 = vmatpush1.xpose.msra.mxu0 0.0
    %1418 = vmatprep.subr.mxu0 0.0
    %1419 = vmatpush1.xpose.msra.mxu0 0.0
    %1420 = vmatprep.subr.mxu0 0.0
    %1421 = vmatpush1.xpose.msra.mxu0 0.0
    %1422 = vmatprep.subr.mxu0 0.0
    %1423 = vmatpush1.xpose.msra.mxu0 0.0
    %1424 = vmatprep.subr.mxu0 0.0
    %1425 = vmatpush1.xpose.msra.mxu0 0.0
    %1426 = vmatprep.subr.mxu0 0.0
    %1427 = vmatpush1.xpose.msra.mxu0 0.0
    %1428 = vmatprep.mubr.f32.mxu0 0.0
    %1429 = vmatmul.mubr.f32.gmra.mrb[0].mxu0 %v1348
    %v1430 = vpop.f32.mrb[0].mxu0
    %v1431 = vadd.f32 0.0, %v1430
    %v1432 = vpop.f32.mrb[0].mxu0
    %1433 = vmatprep.mubr.f32.mxu0 0.0
    %1434 = vmatmul.mubr.f32.gmra.mrb[0].mxu0 %v1350
    %v1435 = vpop.f32.mrb[0].mxu0
    %v1436 = vadd.f32 0.0, %v1435
    %v1437 = vpop.f32.mrb[0].mxu0
    %1438 = vmatprep.mubr.f32.mxu0 0.0
    %1439 = vmatmul.mubr.f32.gmra.mrb[0].mxu0 %v1352
    %v1440 = vpop.f32.mrb[0].mxu0
    %v1441 = vadd.f32 0.0, %v1440
    %v1442 = vpop.f32.mrb[0].mxu0
    %1443 = vmatprep.mubr.f32.mxu0 0.0
    %1444 = vmatmul.mubr.f32.gmra.mrb[0].mxu0 %v1354
    %v1445 = vpop.f32.mrb[0].mxu0
    %v1446 = vadd.f32 0.0, %v1445
    %v1447 = vpop.f32.mrb[0].mxu0
    %1448 = vdwg.mxu0
    %v1449 = vsel %vm600, %v1431, -inf
    %1450 = vmax.xlane.f32.xlu0 %v1449
    %v1451 = vpop.xlane.xlu0 %1450
    %v1452 = vsel %vm600, %v1436, -inf
    %1453 = vmax.xlane.f32.xlu0 %v1452
    %v1454 = vpop.xlane.xlu0 %1453
    %v1455 = vsel %vm600, %v1441, -inf
    %1456 = vmax.xlane.f32.xlu0 %v1455
    %v1457 = vpop.xlane.xlu0 %1456
    %v1458 = vsel %vm600, %v1446, -inf
    %1459 = vmax.xlane.f32.xlu0 %v1458
    %v1460 = vpop.xlane.xlu0 %1459
    %v1461 = vsub.f32 %v1431, %v1451
    %v1462 = vsub.f32 %v1436, %v1454
    %v1463 = vsub.f32 %v1441, %v1457
    %v1464 = vsub.f32 %v1446, %v1460
    %v1465 = vmul.f32 %v1461, 1.442695
    %v1466 = vpow.pop %v1465
    %v1467 = vmul.f32 %v1462, 1.442695
    %v1468 = vpow.pop %v1467
    %v1469 = vmul.f32 %v1463, 1.442695
    %v1470 = vpow.pop %v1469
    %v1471 = vmul.f32 %v1464, 1.442695
    %v1472 = vpow.pop %v1471
    %1473 = vrot.lane.b32.xlu0 %v442, 80
    %v1474 = vpop.permute.xlu0 %1473
    %1475 = vrot.lane.b32.xlu0 %v448, 80
    %v1476 = vpop.permute.xlu0 %1475
    %1477 = vrot.lane.b32.xlu0 %v454, 80
    %v1478 = vpop.permute.xlu0 %1477
    %1479 = vrot.lane.b32.xlu0 %v460, 80
    %v1480 = vpop.permute.xlu0 %1479
    %v1486 = vsel %vm600, %v1466, 0
    %v1489 = vsel %vm600, %v1468, 0
    %v1492 = vsel %vm600, %v1470, 0
    %v1495 = vsel %vm600, %v1472, 0
    %1497 = vmatprep.subr.mxu0 0.0
    %1498 = vmatpush1.msra.mxu0 %v1474
    %1499 = vmatprep.subr.mxu0 0.0
    %1500 = vmatpush1.msra.mxu0 %v1476
    %1501 = vmatprep.subr.mxu0 0.0
    %1502 = vmatpush1.msra.mxu0 %v1478
    %1503 = vmatprep.subr.mxu0 0.0
    %1504 = vmatpush1.msra.mxu0 %v1480
    %1505 = vmatprep.subr.mxu0 0.0
    %1506 = vmatpush1.msra.mxu0 0.0
    %1507 = vmatprep.subr.mxu0 0.0
    %1508 = vmatpush1.msra.mxu0 0.0
    %1509 = vmatprep.subr.mxu0 0.0
    %1510 = vmatpush1.msra.mxu0 0.0
    %1511 = vmatprep.subr.mxu0 0.0
    %1512 = vmatpush1.msra.mxu0 0.0
    %1513 = vmatprep.subr.mxu0 0.0
    %1514 = vmatpush1.msra.mxu0 0.0
    %1515 = vmatprep.subr.mxu0 0.0
    %1516 = vmatpush1.msra.mxu0 0.0
    %1517 = vmatprep.subr.mxu0 0.0
    %1518 = vmatpush1.msra.mxu0 0.0
    %1519 = vmatprep.subr.mxu0 0.0
    %1520 = vmatpush1.msra.mxu0 0.0
    %1521 = vmatprep.subr.mxu0 0.0
    %1522 = vmatpush1.msra.mxu0 0.0
    %1523 = vmatprep.subr.mxu0 0.0
    %1524 = vmatpush1.msra.mxu0 0.0
    %1525 = vmatprep.subr.mxu0 0.0
    %1526 = vmatpush1.msra.mxu0 0.0
    %1527 = vmatprep.subr.mxu0 0.0
    %1528 = vmatpush1.msra.mxu0 0.0
    %1529 = vmatprep.subr.mxu0 0.0
    %1530 = vmatpush1.msra.mxu0 0.0
    %1531 = vmatprep.subr.mxu0 0.0
    %1532 = vmatpush1.msra.mxu0 0.0
    %1533 = vmatprep.subr.mxu0 0.0
    %1534 = vmatpush1.msra.mxu0 0.0
    %1535 = vmatprep.subr.mxu0 0.0
    %1536 = vmatpush1.msra.mxu0 0.0
    %1537 = vmatprep.subr.mxu0 0.0
    %1538 = vmatpush1.msra.mxu0 0.0
    %1539 = vmatprep.subr.mxu0 0.0
    %1540 = vmatpush1.msra.mxu0 0.0
    %1541 = vmatprep.subr.mxu0 0.0
    %1542 = vmatpush1.msra.mxu0 0.0
    %1543 = vmatprep.subr.mxu0 0.0
    %1544 = vmatpush1.msra.mxu0 0.0
    %1545 = vmatprep.subr.mxu0 0.0
    %1546 = vmatpush1.msra.mxu0 0.0
    %1547 = vmatprep.subr.mxu0 0.0
    %1548 = vmatpush1.msra.mxu0 0.0
    %1549 = vmatprep.subr.mxu0 0.0
    %1550 = vmatpush1.msra.mxu0 0.0
    %1551 = vmatprep.subr.mxu0 0.0
    %1552 = vmatpush1.msra.mxu0 0.0
    %1553 = vmatprep.subr.mxu0 0.0
    %1554 = vmatpush1.msra.mxu0 0.0
    %1555 = vmatprep.subr.mxu0 0.0
    %1556 = vmatpush1.msra.mxu0 0.0
    %1557 = vmatprep.subr.mxu0 0.0
    %1558 = vmatpush1.msra.mxu0 0.0
    %1559 = vmatprep.subr.mxu0 0.0
    %1560 = vmatpush1.msra.mxu0 0.0
    %1561 = vmatprep.mubr.f32.mxu0 0.0
    %1562 = vmatmul.mubr.f32.gmra.mrb[0].mxu0 %v1486
    %v1563 = vpop.f32.mrb[0].mxu0
    %v1564 = vadd.f32 0.0, %v1563
    %v1565 = vpop.f32.mrb[0].mxu0
    %1566 = vmatprep.mubr.f32.mxu0 0.0
    %1567 = vmatmul.mubr.f32.gmra.mrb[0].mxu0 %v1489
    %v1568 = vpop.f32.mrb[0].mxu0
    %v1569 = vadd.f32 0.0, %v1568
    %v1570 = vpop.f32.mrb[0].mxu0
    %1571 = vmatprep.mubr.f32.mxu0 0.0
    %1572 = vmatmul.mubr.f32.gmra.mrb[0].mxu0 %v1492
    %v1573 = vpop.f32.mrb[0].mxu0
    %v1574 = vadd.f32 0.0, %v1573
    %v1575 = vpop.f32.mrb[0].mxu0
    %1576 = vmatprep.mubr.f32.mxu0 0.0
    %1577 = vmatmul.mubr.f32.gmra.mrb[0].mxu0 %v1495
    %v1578 = vpop.f32.mrb[0].mxu0
    %v1579 = vadd.f32 0.0, %v1578
    %v1580 = vpop.f32.mrb[0].mxu0
    %1581 = vdwg.mxu0
    %v1582 = vsel %vm600, %v1466, 0.0
    %1583 = vadd.xlane.f32.xlu0 %v1582
    %v1584 = vpop.xlane.xlu0 %1583
    %v1585 = vsel %vm600, %v1468, 0.0
    %1586 = vadd.xlane.f32.xlu0 %v1585
    %v1587 = vpop.xlane.xlu0 %1586
    %v1588 = vsel %vm600, %v1470, 0.0
    %1589 = vadd.xlane.f32.xlu0 %v1588
    %v1590 = vpop.xlane.xlu0 %1589
    %v1591 = vsel %vm600, %v1472, 0.0
    %1592 = vadd.xlane.f32.xlu0 %v1591
    %v1593 = vpop.xlane.xlu0 %1592
    %v1594 = vrcp.pop %v1584
    %v1595 = vrcp.pop %v1587
    %v1596 = vrcp.pop %v1590
    %v1597 = vrcp.pop %v1593
    %v1598 = vmul.f32 %v1564, %v1594
    %v1599 = vmul.f32 %v1569, %v1595
    %v1600 = vmul.f32 %v1574, %v1596
    %v1601 = vmul.f32 %v1579, %v1597
    %1606 = vrot.lane.b32.xlu0 %v1598, 48
    %v1607 = vpop.permute.xlu0 %1606
    %1608 = vrot.lane.b32.xlu0 %v1599, 48
    %v1609 = vpop.permute.xlu0 %1608
    %1610 = vrot.lane.b32.xlu0 %v1600, 48
    %v1611 = vpop.permute.xlu0 %1610
    %1612 = vrot.lane.b32.xlu0 %v1601, 48
    %v1613 = vpop.permute.xlu0 %1612
    %vm1618 = vcmask 523648
    %1619 = vst.msk [vmem:[#allocation2] sm:$0xff] %vm1618, %v1607
    %1620 = vst.msk [vmem:[#allocation2 + $0x8] sm:$0xff] %vm1618, %v1609
    %1621 = vst.msk [vmem:[#allocation2 + $0x10] sm:$0xff] %vm1618, %v1611
    %1622 = vst.msk [vmem:[#allocation2 + $0x18] sm:$0xff] %vm1618, %v1613
    %1627 = vrot.lane.b32.xlu0 %v464, 64
    %v1628 = vpop.permute.xlu0 %1627
    %1629 = vrot.lane.b32.xlu0 %v470, 64
    %v1630 = vpop.permute.xlu0 %1629
    %1631 = vrot.lane.b32.xlu0 %v476, 64
    %v1632 = vpop.permute.xlu0 %1631
    %1633 = vrot.lane.b32.xlu0 %v482, 64
    %v1634 = vpop.permute.xlu0 %1633
    %v1635 = vsel %vm498, %v464, 0
    %v1637 = vsel %vm498, %v470, 0
    %v1639 = vsel %vm498, %v476, 0
    %v1641 = vsel %vm498, %v482, 0
    %v1643 = vsel %vm498, %v1628, 0
    %v1645 = vsel %vm498, %v1630, 0
    %v1647 = vsel %vm498, %v1632, 0
    %v1649 = vsel %vm498, %v1634, 0
    %1651 = vmatprep.subr.mxu0 0.0
    %1652 = vmatpush1.xpose.msra.mxu0 %v1643
    %1653 = vmatprep.subr.mxu0 0.0
    %1654 = vmatpush1.xpose.msra.mxu0 %v1645
    %1655 = vmatprep.subr.mxu0 0.0
    %1656 = vmatpush1.xpose.msra.mxu0 %v1647
    %1657 = vmatprep.subr.mxu0 0.0
    %1658 = vmatpush1.xpose.msra.mxu0 %v1649
    %1659 = vmatprep.subr.mxu0 0.0
    %1660 = vmatpush1.xpose.msra.mxu0 0.0
    %1661 = vmatprep.subr.mxu0 0.0
    %1662 = vmatpush1.xpose.msra.mxu0 0.0
    %1663 = vmatprep.subr.mxu0 0.0
    %1664 = vmatpush1.xpose.msra.mxu0 0.0
    %1665 = vmatprep.subr.mxu0 0.0
    %1666 = vmatpush1.xpose.msra.mxu0 0.0
    %1667 = vmatprep.subr.mxu0 0.0
    %1668 = vmatpush1.xpose.msra.mxu0 0.0
    %1669 = vmatprep.subr.mxu0 0.0
    %1670 = vmatpush1.xpose.msra.mxu0 0.0
    %1671 = vmatprep.subr.mxu0 0.0
    %1672 = vmatpush1.xpose.msra.mxu0 0.0
    %1673 = vmatprep.subr.mxu0 0.0
    %1674 = vmatpush1.xpose.msra.mxu0 0.0
    %1675 = vmatprep.subr.mxu0 0.0
    %1676 = vmatpush1.xpose.msra.mxu0 0.0
    %1677 = vmatprep.subr.mxu0 0.0
    %1678 = vmatpush1.xpose.msra.mxu0 0.0
    %1679 = vmatprep.subr.mxu0 0.0
    %1680 = vmatpush1.xpose.msra.mxu0 0.0
    %1681 = vmatprep.subr.mxu0 0.0
    %1682 = vmatpush1.xpose.msra.mxu0 0.0
    %1683 = vmatprep.subr.mxu0 0.0
    %1684 = vmatpush1.xpose.msra.mxu0 0.0
    %1685 = vmatprep.subr.mxu0 0.0
    %1686 = vmatpush1.xpose.msra.mxu0 0.0
    %1687 = vmatprep.subr.mxu0 0.0
    %1688 = vmatpush1.xpose.msra.mxu0 0.0
    %1689 = vmatprep.subr.mxu0 0.0
    %1690 = vmatpush1.xpose.msra.mxu0 0.0
    %1691 = vmatprep.subr.mxu0 0.0
    %1692 = vmatpush1.xpose.msra.mxu0 0.0
    %1693 = vmatprep.subr.mxu0 0.0
    %1694 = vmatpush1.xpose.msra.mxu0 0.0
    %1695 = vmatprep.subr.mxu0 0.0
    %1696 = vmatpush1.xpose.msra.mxu0 0.0
    %1697 = vmatprep.subr.mxu0 0.0
    %1698 = vmatpush1.xpose.msra.mxu0 0.0
    %1699 = vmatprep.subr.mxu0 0.0
    %1700 = vmatpush1.xpose.msra.mxu0 0.0
    %1701 = vmatprep.subr.mxu0 0.0
    %1702 = vmatpush1.xpose.msra.mxu0 0.0
    %1703 = vmatprep.subr.mxu0 0.0
    %1704 = vmatpush1.xpose.msra.mxu0 0.0
    %1705 = vmatprep.subr.mxu0 0.0
    %1706 = vmatpush1.xpose.msra.mxu0 0.0
    %1707 = vmatprep.subr.mxu0 0.0
    %1708 = vmatpush1.xpose.msra.mxu0 0.0
    %1709 = vmatprep.subr.mxu0 0.0
    %1710 = vmatpush1.xpose.msra.mxu0 0.0
    %1711 = vmatprep.subr.mxu0 0.0
    %1712 = vmatpush1.xpose.msra.mxu0 0.0
    %1713 = vmatprep.subr.mxu0 0.0
    %1714 = vmatpush1.xpose.msra.mxu0 0.0
    %1715 = vmatprep.mubr.f32.mxu0 0.0
    %1716 = vmatmul.mubr.f32.gmra.mrb[0].mxu0 %v1635
    %v1717 = vpop.f32.mrb[0].mxu0
    %v1718 = vadd.f32 0.0, %v1717
    %v1719 = vpop.f32.mrb[0].mxu0
    %1720 = vmatprep.mubr.f32.mxu0 0.0
    %1721 = vmatmul.mubr.f32.gmra.mrb[0].mxu0 %v1637
    %v1722 = vpop.f32.mrb[0].mxu0
    %v1723 = vadd.f32 0.0, %v1722
    %v1724 = vpop.f32.mrb[0].mxu0
    %1725 = vmatprep.mubr.f32.mxu0 0.0
    %1726 = vmatmul.mubr.f32.gmra.mrb[0].mxu0 %v1639
    %v1727 = vpop.f32.mrb[0].mxu0
    %v1728 = vadd.f32 0.0, %v1727
    %v1729 = vpop.f32.mrb[0].mxu0
    %1730 = vmatprep.mubr.f32.mxu0 0.0
    %1731 = vmatmul.mubr.f32.gmra.mrb[0].mxu0 %v1641
    %v1732 = vpop.f32.mrb[0].mxu0
    %v1733 = vadd.f32 0.0, %v1732
    %v1734 = vpop.f32.mrb[0].mxu0
    %1735 = vdwg.mxu0
    %v1736 = vsel %vm600, %v1718, -inf
    %1737 = vmax.xlane.f32.xlu0 %v1736
    %v1738 = vpop.xlane.xlu0 %1737
    %v1739 = vsel %vm600, %v1723, -inf
    %1740 = vmax.xlane.f32.xlu0 %v1739
    %v1741 = vpop.xlane.xlu0 %1740
    %v1742 = vsel %vm600, %v1728, -inf
    %1743 = vmax.xlane.f32.xlu0 %v1742
    %v1744 = vpop.xlane.xlu0 %1743
    %v1745 = vsel %vm600, %v1733, -inf
    %1746 = vmax.xlane.f32.xlu0 %v1745
    %v1747 = vpop.xlane.xlu0 %1746
    %v1748 = vsub.f32 %v1718, %v1738
    %v1749 = vsub.f32 %v1723, %v1741
    %v1750 = vsub.f32 %v1728, %v1744
    %v1751 = vsub.f32 %v1733, %v1747
    %v1752 = vmul.f32 %v1748, 1.442695
    %v1753 = vpow.pop %v1752
    %v1754 = vmul.f32 %v1749, 1.442695
    %v1755 = vpow.pop %v1754
    %v1756 = vmul.f32 %v1750, 1.442695
    %v1757 = vpow.pop %v1756
    %v1758 = vmul.f32 %v1751, 1.442695
    %v1759 = vpow.pop %v1758
    %v1761 = vsel %vm600, %v1753, 0
    %v1764 = vsel %vm600, %v1755, 0
    %v1767 = vsel %vm600, %v1757, 0
    %v1770 = vsel %vm600, %v1759, 0
    %1772 = vmatprep.subr.mxu0 0.0
    %1773 = vmatpush1.msra.mxu0 %v466
    %1774 = vmatprep.subr.mxu0 0.0
    %1775 = vmatpush1.msra.mxu0 %v472
    %1776 = vmatprep.subr.mxu0 0.0
    %1777 = vmatpush1.msra.mxu0 %v478
    %1778 = vmatprep.subr.mxu0 0.0
    %1779 = vmatpush1.msra.mxu0 %v484
    %1780 = vmatprep.subr.mxu0 0.0
    %1781 = vmatpush1.msra.mxu0 0.0
    %1782 = vmatprep.subr.mxu0 0.0
    %1783 = vmatpush1.msra.mxu0 0.0
    %1784 = vmatprep.subr.mxu0 0.0
    %1785 = vmatpush1.msra.mxu0 0.0
    %1786 = vmatprep.subr.mxu0 0.0
    %1787 = vmatpush1.msra.mxu0 0.0
    %1788 = vmatprep.subr.mxu0 0.0
    %1789 = vmatpush1.msra.mxu0 0.0
    %1790 = vmatprep.subr.mxu0 0.0
    %1791 = vmatpush1.msra.mxu0 0.0
    %1792 = vmatprep.subr.mxu0 0.0
    %1793 = vmatpush1.msra.mxu0 0.0
    %1794 = vmatprep.subr.mxu0 0.0
    %1795 = vmatpush1.msra.mxu0 0.0
    %1796 = vmatprep.subr.mxu0 0.0
    %1797 = vmatpush1.msra.mxu0 0.0
    %1798 = vmatprep.subr.mxu0 0.0
    %1799 = vmatpush1.msra.mxu0 0.0
    %1800 = vmatprep.subr.mxu0 0.0
    %1801 = vmatpush1.msra.mxu0 0.0
    %1802 = vmatprep.subr.mxu0 0.0
    %1803 = vmatpush1.msra.mxu0 0.0
    %1804 = vmatprep.subr.mxu0 0.0
    %1805 = vmatpush1.msra.mxu0 0.0
    %1806 = vmatprep.subr.mxu0 0.0
    %1807 = vmatpush1.msra.mxu0 0.0
    %1808 = vmatprep.subr.mxu0 0.0
    %1809 = vmatpush1.msra.mxu0 0.0
    %1810 = vmatprep.subr.mxu0 0.0
    %1811 = vmatpush1.msra.mxu0 0.0
    %1812 = vmatprep.subr.mxu0 0.0
    %1813 = vmatpush1.msra.mxu0 0.0
    %1814 = vmatprep.subr.mxu0 0.0
    %1815 = vmatpush1.msra.mxu0 0.0
    %1816 = vmatprep.subr.mxu0 0.0
    %1817 = vmatpush1.msra.mxu0 0.0
    %1818 = vmatprep.subr.mxu0 0.0
    %1819 = vmatpush1.msra.mxu0 0.0
    %1820 = vmatprep.subr.mxu0 0.0
    %1821 = vmatpush1.msra.mxu0 0.0
    %1822 = vmatprep.subr.mxu0 0.0
    %1823 = vmatpush1.msra.mxu0 0.0
    %1824 = vmatprep.subr.mxu0 0.0
    %1825 = vmatpush1.msra.mxu0 0.0
    %1826 = vmatprep.subr.mxu0 0.0
    %1827 = vmatpush1.msra.mxu0 0.0
    %1828 = vmatprep.subr.mxu0 0.0
    %1829 = vmatpush1.msra.mxu0 0.0
    %1830 = vmatprep.subr.mxu0 0.0
    %1831 = vmatpush1.msra.mxu0 0.0
    %1832 = vmatprep.subr.mxu0 0.0
    %1833 = vmatpush1.msra.mxu0 0.0
    %1834 = vmatprep.subr.mxu0 0.0
    %1835 = vmatpush1.msra.mxu0 0.0
    %1836 = vmatprep.mubr.f32.mxu0 0.0
    %1837 = vmatmul.mubr.f32.gmra.mrb[0].mxu0 %v1761
    %v1838 = vpop.f32.mrb[0].mxu0
    %v1839 = vadd.f32 0.0, %v1838
    %v1840 = vpop.f32.mrb[0].mxu0
    %1841 = vmatprep.mubr.f32.mxu0 0.0
    %1842 = vmatmul.mubr.f32.gmra.mrb[0].mxu0 %v1764
    %v1843 = vpop.f32.mrb[0].mxu0
    %v1844 = vadd.f32 0.0, %v1843
    %v1845 = vpop.f32.mrb[0].mxu0
    %1846 = vmatprep.mubr.f32.mxu0 0.0
    %1847 = vmatmul.mubr.f32.gmra.mrb[0].mxu0 %v1767
    %v1848 = vpop.f32.mrb[0].mxu0
    %v1849 = vadd.f32 0.0, %v1848
    %v1850 = vpop.f32.mrb[0].mxu0
    %1851 = vmatprep.mubr.f32.mxu0 0.0
    %1852 = vmatmul.mubr.f32.gmra.mrb[0].mxu0 %v1770
    %v1853 = vpop.f32.mrb[0].mxu0
    %v1854 = vadd.f32 0.0, %v1853
    %v1855 = vpop.f32.mrb[0].mxu0
    %1856 = vdwg.mxu0
    %v1857 = vsel %vm600, %v1753, 0.0
    %1858 = vadd.xlane.f32.xlu0 %v1857
    %v1859 = vpop.xlane.xlu0 %1858
    %v1860 = vsel %vm600, %v1755, 0.0
    %1861 = vadd.xlane.f32.xlu0 %v1860
    %v1862 = vpop.xlane.xlu0 %1861
    %v1863 = vsel %vm600, %v1757, 0.0
    %1864 = vadd.xlane.f32.xlu0 %v1863
    %v1865 = vpop.xlane.xlu0 %1864
    %v1866 = vsel %vm600, %v1759, 0.0
    %1867 = vadd.xlane.f32.xlu0 %v1866
    %v1868 = vpop.xlane.xlu0 %1867
    %v1869 = vrcp.pop %v1859
    %v1870 = vrcp.pop %v1862
    %v1871 = vrcp.pop %v1865
    %v1872 = vrcp.pop %v1868
    %v1873 = vmul.f32 %v1839, %v1869
    %v1874 = vmul.f32 %v1844, %v1870
    %v1875 = vmul.f32 %v1849, %v1871
    %v1876 = vmul.f32 %v1854, %v1872
    %1877 = vst.msk [vmem:[#allocation2 + $0x20] sm:$0xff] %vm498, %v1873
    %1878 = vst.msk [vmem:[#allocation2 + $0x28] sm:$0xff] %vm498, %v1874
    %1879 = vst.msk [vmem:[#allocation2 + $0x30] sm:$0xff] %vm498, %v1875
    %1880 = vst.msk [vmem:[#allocation2 + $0x38] sm:$0xff] %vm498, %v1876
    %1881 = vrot.lane.b32.xlu0 %v464, 112
    %v1882 = vpop.permute.xlu0 %1881
    %1883 = vrot.lane.b32.xlu0 %v470, 112
    %v1884 = vpop.permute.xlu0 %1883
    %1885 = vrot.lane.b32.xlu0 %v476, 112
    %v1886 = vpop.permute.xlu0 %1885
    %1887 = vrot.lane.b32.xlu0 %v482, 112
    %v1888 = vpop.permute.xlu0 %1887
    %1889 = vrot.lane.b32.xlu0 %v464, 48
    %v1890 = vpop.permute.xlu0 %1889
    %1891 = vrot.lane.b32.xlu0 %v470, 48
    %v1892 = vpop.permute.xlu0 %1891
    %1893 = vrot.lane.b32.xlu0 %v476, 48
    %v1894 = vpop.permute.xlu0 %1893
    %1895 = vrot.lane.b32.xlu0 %v482, 48
    %v1896 = vpop.permute.xlu0 %1895
    %v1897 = vsel %vm498, %v1882, 0
    %v1899 = vsel %vm498, %v1884, 0
    %v1901 = vsel %vm498, %v1886, 0
    %v1903 = vsel %vm498, %v1888, 0
    %v1905 = vsel %vm498, %v1890, 0
    %v1907 = vsel %vm498, %v1892, 0
    %v1909 = vsel %vm498, %v1894, 0
    %v1911 = vsel %vm498, %v1896, 0
    %1913 = vmatprep.subr.mxu0 0.0
    %1914 = vmatpush1.xpose.msra.mxu0 %v1905
    %1915 = vmatprep.subr.mxu0 0.0
    %1916 = vmatpush1.xpose.msra.mxu0 %v1907
    %1917 = vmatprep.subr.mxu0 0.0
    %1918 = vmatpush1.xpose.msra.mxu0 %v1909
    %1919 = vmatprep.subr.mxu0 0.0
    %1920 = vmatpush1.xpose.msra.mxu0 %v1911
    %1921 = vmatprep.subr.mxu0 0.0
    %1922 = vmatpush1.xpose.msra.mxu0 0.0
    %1923 = vmatprep.subr.mxu0 0.0
    %1924 = vmatpush1.xpose.msra.mxu0 0.0
    %1925 = vmatprep.subr.mxu0 0.0
    %1926 = vmatpush1.xpose.msra.mxu0 0.0
    %1927 = vmatprep.subr.mxu0 0.0
    %1928 = vmatpush1.xpose.msra.mxu0 0.0
    %1929 = vmatprep.subr.mxu0 0.0
    %1930 = vmatpush1.xpose.msra.mxu0 0.0
    %1931 = vmatprep.subr.mxu0 0.0
    %1932 = vmatpush1.xpose.msra.mxu0 0.0
    %1933 = vmatprep.subr.mxu0 0.0
    %1934 = vmatpush1.xpose.msra.mxu0 0.0
    %1935 = vmatprep.subr.mxu0 0.0
    %1936 = vmatpush1.xpose.msra.mxu0 0.0
    %1937 = vmatprep.subr.mxu0 0.0
    %1938 = vmatpush1.xpose.msra.mxu0 0.0
    %1939 = vmatprep.subr.mxu0 0.0
    %1940 = vmatpush1.xpose.msra.mxu0 0.0
    %1941 = vmatprep.subr.mxu0 0.0
    %1942 = vmatpush1.xpose.msra.mxu0 0.0
    %1943 = vmatprep.subr.mxu0 0.0
    %1944 = vmatpush1.xpose.msra.mxu0 0.0
    %1945 = vmatprep.subr.mxu0 0.0
    %1946 = vmatpush1.xpose.msra.mxu0 0.0
    %1947 = vmatprep.subr.mxu0 0.0
    %1948 = vmatpush1.xpose.msra.mxu0 0.0
    %1949 = vmatprep.subr.mxu0 0.0
    %1950 = vmatpush1.xpose.msra.mxu0 0.0
    %1951 = vmatprep.subr.mxu0 0.0
    %1952 = vmatpush1.xpose.msra.mxu0 0.0
    %1953 = vmatprep.subr.mxu0 0.0
    %1954 = vmatpush1.xpose.msra.mxu0 0.0
    %1955 = vmatprep.subr.mxu0 0.0
    %1956 = vmatpush1.xpose.msra.mxu0 0.0
    %1957 = vmatprep.subr.mxu0 0.0
    %1958 = vmatpush1.xpose.msra.mxu0 0.0
    %1959 = vmatprep.subr.mxu0 0.0
    %1960 = vmatpush1.xpose.msra.mxu0 0.0
    %1961 = vmatprep.subr.mxu0 0.0
    %1962 = vmatpush1.xpose.msra.mxu0 0.0
    %1963 = vmatprep.subr.mxu0 0.0
    %1964 = vmatpush1.xpose.msra.mxu0 0.0
    %1965 = vmatprep.subr.mxu0 0.0
    %1966 = vmatpush1.xpose.msra.mxu0 0.0
    %1967 = vmatprep.subr.mxu0 0.0
    %1968 = vmatpush1.xpose.msra.mxu0 0.0
    %1969 = vmatprep.subr.mxu0 0.0
    %1970 = vmatpush1.xpose.msra.mxu0 0.0
    %1971 = vmatprep.subr.mxu0 0.0
    %1972 = vmatpush1.xpose.msra.mxu0 0.0
    %1973 = vmatprep.subr.mxu0 0.0
    %1974 = vmatpush1.xpose.msra.mxu0 0.0
    %1975 = vmatprep.subr.mxu0 0.0
    %1976 = vmatpush1.xpose.msra.mxu0 0.0
    %1977 = vmatprep.mubr.f32.mxu0 0.0
    %1978 = vmatmul.mubr.f32.gmra.mrb[0].mxu0 %v1897
    %v1979 = vpop.f32.mrb[0].mxu0
    %v1980 = vadd.f32 0.0, %v1979
    %v1981 = vpop.f32.mrb[0].mxu0
    %1982 = vmatprep.mubr.f32.mxu0 0.0
    %1983 = vmatmul.mubr.f32.gmra.mrb[0].mxu0 %v1899
    %v1984 = vpop.f32.mrb[0].mxu0
    %v1985 = vadd.f32 0.0, %v1984
    %v1986 = vpop.f32.mrb[0].mxu0
    %1987 = vmatprep.mubr.f32.mxu0 0.0
    %1988 = vmatmul.mubr.f32.gmra.mrb[0].mxu0 %v1901
    %v1989 = vpop.f32.mrb[0].mxu0
    %v1990 = vadd.f32 0.0, %v1989
    %v1991 = vpop.f32.mrb[0].mxu0
    %1992 = vmatprep.mubr.f32.mxu0 0.0
    %1993 = vmatmul.mubr.f32.gmra.mrb[0].mxu0 %v1903
    %v1994 = vpop.f32.mrb[0].mxu0
    %v1995 = vadd.f32 0.0, %v1994
    %v1996 = vpop.f32.mrb[0].mxu0
    %1997 = vdwg.mxu0
    %v1998 = vsel %vm600, %v1980, -inf
    %1999 = vmax.xlane.f32.xlu0 %v1998
    %v2000 = vpop.xlane.xlu0 %1999
    %v2001 = vsel %vm600, %v1985, -inf
    %2002 = vmax.xlane.f32.xlu0 %v2001
    %v2003 = vpop.xlane.xlu0 %2002
    %v2004 = vsel %vm600, %v1990, -inf
    %2005 = vmax.xlane.f32.xlu0 %v2004
    %v2006 = vpop.xlane.xlu0 %2005
    %v2007 = vsel %vm600, %v1995, -inf
    %2008 = vmax.xlane.f32.xlu0 %v2007
    %v2009 = vpop.xlane.xlu0 %2008
    %v2010 = vsub.f32 %v1980, %v2000
    %v2011 = vsub.f32 %v1985, %v2003
    %v2012 = vsub.f32 %v1990, %v2006
    %v2013 = vsub.f32 %v1995, %v2009
    %v2014 = vmul.f32 %v2010, 1.442695
    %v2015 = vpow.pop %v2014
    %v2016 = vmul.f32 %v2011, 1.442695
    %v2017 = vpow.pop %v2016
    %v2018 = vmul.f32 %v2012, 1.442695
    %v2019 = vpow.pop %v2018
    %v2020 = vmul.f32 %v2013, 1.442695
    %v2021 = vpow.pop %v2020
    %2026 = vrot.lane.b32.xlu0 %v466, 112
    %v2027 = vpop.permute.xlu0 %2026
    %2028 = vrot.lane.b32.xlu0 %v472, 112
    %v2029 = vpop.permute.xlu0 %2028
    %2030 = vrot.lane.b32.xlu0 %v478, 112
    %v2031 = vpop.permute.xlu0 %2030
    %2032 = vrot.lane.b32.xlu0 %v484, 112
    %v2033 = vpop.permute.xlu0 %2032
    %v2039 = vsel %vm600, %v2015, 0
    %v2042 = vsel %vm600, %v2017, 0
    %v2045 = vsel %vm600, %v2019, 0
    %v2048 = vsel %vm600, %v2021, 0
    %2050 = vmatprep.subr.mxu0 0.0
    %2051 = vmatpush1.msra.mxu0 %v2027
    %2052 = vmatprep.subr.mxu0 0.0
    %2053 = vmatpush1.msra.mxu0 %v2029
    %2054 = vmatprep.subr.mxu0 0.0
    %2055 = vmatpush1.msra.mxu0 %v2031
    %2056 = vmatprep.subr.mxu0 0.0
    %2057 = vmatpush1.msra.mxu0 %v2033
    %2058 = vmatprep.subr.mxu0 0.0
    %2059 = vmatpush1.msra.mxu0 0.0
    %2060 = vmatprep.subr.mxu0 0.0
    %2061 = vmatpush1.msra.mxu0 0.0
    %2062 = vmatprep.subr.mxu0 0.0
    %2063 = vmatpush1.msra.mxu0 0.0
    %2064 = vmatprep.subr.mxu0 0.0
    %2065 = vmatpush1.msra.mxu0 0.0
    %2066 = vmatprep.subr.mxu0 0.0
    %2067 = vmatpush1.msra.mxu0 0.0
    %2068 = vmatprep.subr.mxu0 0.0
    %2069 = vmatpush1.msra.mxu0 0.0
    %2070 = vmatprep.subr.mxu0 0.0
    %2071 = vmatpush1.msra.mxu0 0.0
    %2072 = vmatprep.subr.mxu0 0.0
    %2073 = vmatpush1.msra.mxu0 0.0
    %2074 = vmatprep.subr.mxu0 0.0
    %2075 = vmatpush1.msra.mxu0 0.0
    %2076 = vmatprep.subr.mxu0 0.0
    %2077 = vmatpush1.msra.mxu0 0.0
    %2078 = vmatprep.subr.mxu0 0.0
    %2079 = vmatpush1.msra.mxu0 0.0
    %2080 = vmatprep.subr.mxu0 0.0
    %2081 = vmatpush1.msra.mxu0 0.0
    %2082 = vmatprep.subr.mxu0 0.0
    %2083 = vmatpush1.msra.mxu0 0.0
    %2084 = vmatprep.subr.mxu0 0.0
    %2085 = vmatpush1.msra.mxu0 0.0
    %2086 = vmatprep.subr.mxu0 0.0
    %2087 = vmatpush1.msra.mxu0 0.0
    %2088 = vmatprep.subr.mxu0 0.0
    %2089 = vmatpush1.msra.mxu0 0.0
    %2090 = vmatprep.subr.mxu0 0.0
    %2091 = vmatpush1.msra.mxu0 0.0
    %2092 = vmatprep.subr.mxu0 0.0
    %2093 = vmatpush1.msra.mxu0 0.0
    %2094 = vmatprep.subr.mxu0 0.0
    %2095 = vmatpush1.msra.mxu0 0.0
    %2096 = vmatprep.subr.mxu0 0.0
    %2097 = vmatpush1.msra.mxu0 0.0
    %2098 = vmatprep.subr.mxu0 0.0
    %2099 = vmatpush1.msra.mxu0 0.0
    %2100 = vmatprep.subr.mxu0 0.0
    %2101 = vmatpush1.msra.mxu0 0.0
    %2102 = vmatprep.subr.mxu0 0.0
    %2103 = vmatpush1.msra.mxu0 0.0
    %2104 = vmatprep.subr.mxu0 0.0
    %2105 = vmatpush1.msra.mxu0 0.0
    %2106 = vmatprep.subr.mxu0 0.0
    %2107 = vmatpush1.msra.mxu0 0.0
    %2108 = vmatprep.subr.mxu0 0.0
    %2109 = vmatpush1.msra.mxu0 0.0
    %2110 = vmatprep.subr.mxu0 0.0
    %2111 = vmatpush1.msra.mxu0 0.0
    %2112 = vmatprep.subr.mxu0 0.0
    %2113 = vmatpush1.msra.mxu0 0.0
    %2114 = vmatprep.mubr.f32.mxu0 0.0
    %2115 = vmatmul.mubr.f32.gmra.mrb[0].mxu0 %v2039
    %v2116 = vpop.f32.mrb[0].mxu0
    %v2117 = vadd.f32 0.0, %v2116
    %v2118 = vpop.f32.mrb[0].mxu0
    %2119 = vmatprep.mubr.f32.mxu0 0.0
    %2120 = vmatmul.mubr.f32.gmra.mrb[0].mxu0 %v2042
    %v2121 = vpop.f32.mrb[0].mxu0
    %v2122 = vadd.f32 0.0, %v2121
    %v2123 = vpop.f32.mrb[0].mxu0
    %2124 = vmatprep.mubr.f32.mxu0 0.0
    %2125 = vmatmul.mubr.f32.gmra.mrb[0].mxu0 %v2045
    %v2126 = vpop.f32.mrb[0].mxu0
    %v2127 = vadd.f32 0.0, %v2126
    %v2128 = vpop.f32.mrb[0].mxu0
    %2129 = vmatprep.mubr.f32.mxu0 0.0
    %2130 = vmatmul.mubr.f32.gmra.mrb[0].mxu0 %v2048
    %v2131 = vpop.f32.mrb[0].mxu0
    %v2132 = vadd.f32 0.0, %v2131
    %v2133 = vpop.f32.mrb[0].mxu0
    %2134 = vdwg.mxu0
    %v2135 = vsel %vm600, %v2015, 0.0
    %2136 = vadd.xlane.f32.xlu0 %v2135
    %v2137 = vpop.xlane.xlu0 %2136
    %v2138 = vsel %vm600, %v2017, 0.0
    %2139 = vadd.xlane.f32.xlu0 %v2138
    %v2140 = vpop.xlane.xlu0 %2139
    %v2141 = vsel %vm600, %v2019, 0.0
    %2142 = vadd.xlane.f32.xlu0 %v2141
    %v2143 = vpop.xlane.xlu0 %2142
    %v2144 = vsel %vm600, %v2021, 0.0
    %2145 = vadd.xlane.f32.xlu0 %v2144
    %v2146 = vpop.xlane.xlu0 %2145
    %v2147 = vrcp.pop %v2137
    %v2148 = vrcp.pop %v2140
    %v2149 = vrcp.pop %v2143
    %v2150 = vrcp.pop %v2146
    %v2151 = vmul.f32 %v2117, %v2147
    %v2152 = vmul.f32 %v2122, %v2148
    %v2153 = vmul.f32 %v2127, %v2149
    %v2154 = vmul.f32 %v2132, %v2150
    %2159 = vrot.lane.b32.xlu0 %v2151, 16
    %v2160 = vpop.permute.xlu0 %2159
    %2161 = vrot.lane.b32.xlu0 %v2152, 16
    %v2162 = vpop.permute.xlu0 %2161
    %2163 = vrot.lane.b32.xlu0 %v2153, 16
    %v2164 = vpop.permute.xlu0 %2163
    %2165 = vrot.lane.b32.xlu0 %v2154, 16
    %v2166 = vpop.permute.xlu0 %2165
    %2171 = vst.msk [vmem:[#allocation2 + $0x20] sm:$0xff] %vm1036, %v2160
    %2172 = vst.msk [vmem:[#allocation2 + $0x28] sm:$0xff] %vm1036, %v2162
    %2173 = vst.msk [vmem:[#allocation2 + $0x30] sm:$0xff] %vm1036, %v2164
    %2174 = vst.msk [vmem:[#allocation2 + $0x38] sm:$0xff] %vm1036, %v2166
    %2175 = vrot.lane.b32.xlu0 %v464, 96
    %v2176 = vpop.permute.xlu0 %2175
    %2177 = vrot.lane.b32.xlu0 %v470, 96
    %v2178 = vpop.permute.xlu0 %2177
    %2179 = vrot.lane.b32.xlu0 %v476, 96
    %v2180 = vpop.permute.xlu0 %2179
    %2181 = vrot.lane.b32.xlu0 %v482, 96
    %v2182 = vpop.permute.xlu0 %2181
    %2183 = vrot.lane.b32.xlu0 %v464, 32
    %v2184 = vpop.permute.xlu0 %2183
    %2185 = vrot.lane.b32.xlu0 %v470, 32
    %v2186 = vpop.permute.xlu0 %2185
    %2187 = vrot.lane.b32.xlu0 %v476, 32
    %v2188 = vpop.permute.xlu0 %2187
    %2189 = vrot.lane.b32.xlu0 %v482, 32
    %v2190 = vpop.permute.xlu0 %2189
    %v2191 = vsel %vm498, %v2176, 0
    %v2193 = vsel %vm498, %v2178, 0
    %v2195 = vsel %vm498, %v2180, 0
    %v2197 = vsel %vm498, %v2182, 0
    %v2199 = vsel %vm498, %v2184, 0
    %v2201 = vsel %vm498, %v2186, 0
    %v2203 = vsel %vm498, %v2188, 0
    %v2205 = vsel %vm498, %v2190, 0
    %2207 = vmatprep.subr.mxu0 0.0
    %2208 = vmatpush1.xpose.msra.mxu0 %v2199
    %2209 = vmatprep.subr.mxu0 0.0
    %2210 = vmatpush1.xpose.msra.mxu0 %v2201
    %2211 = vmatprep.subr.mxu0 0.0
    %2212 = vmatpush1.xpose.msra.mxu0 %v2203
    %2213 = vmatprep.subr.mxu0 0.0
    %2214 = vmatpush1.xpose.msra.mxu0 %v2205
    %2215 = vmatprep.subr.mxu0 0.0
    %2216 = vmatpush1.xpose.msra.mxu0 0.0
    %2217 = vmatprep.subr.mxu0 0.0
    %2218 = vmatpush1.xpose.msra.mxu0 0.0
    %2219 = vmatprep.subr.mxu0 0.0
    %2220 = vmatpush1.xpose.msra.mxu0 0.0
    %2221 = vmatprep.subr.mxu0 0.0
    %2222 = vmatpush1.xpose.msra.mxu0 0.0
    %2223 = vmatprep.subr.mxu0 0.0
    %2224 = vmatpush1.xpose.msra.mxu0 0.0
    %2225 = vmatprep.subr.mxu0 0.0
    %2226 = vmatpush1.xpose.msra.mxu0 0.0
    %2227 = vmatprep.subr.mxu0 0.0
    %2228 = vmatpush1.xpose.msra.mxu0 0.0
    %2229 = vmatprep.subr.mxu0 0.0
    %2230 = vmatpush1.xpose.msra.mxu0 0.0
    %2231 = vmatprep.subr.mxu0 0.0
    %2232 = vmatpush1.xpose.msra.mxu0 0.0
    %2233 = vmatprep.subr.mxu0 0.0
    %2234 = vmatpush1.xpose.msra.mxu0 0.0
    %2235 = vmatprep.subr.mxu0 0.0
    %2236 = vmatpush1.xpose.msra.mxu0 0.0
    %2237 = vmatprep.subr.mxu0 0.0
    %2238 = vmatpush1.xpose.msra.mxu0 0.0
    %2239 = vmatprep.subr.mxu0 0.0
    %2240 = vmatpush1.xpose.msra.mxu0 0.0
    %2241 = vmatprep.subr.mxu0 0.0
    %2242 = vmatpush1.xpose.msra.mxu0 0.0
    %2243 = vmatprep.subr.mxu0 0.0
    %2244 = vmatpush1.xpose.msra.mxu0 0.0
    %2245 = vmatprep.subr.mxu0 0.0
    %2246 = vmatpush1.xpose.msra.mxu0 0.0
    %2247 = vmatprep.subr.mxu0 0.0
    %2248 = vmatpush1.xpose.msra.mxu0 0.0
    %2249 = vmatprep.subr.mxu0 0.0
    %2250 = vmatpush1.xpose.msra.mxu0 0.0
    %2251 = vmatprep.subr.mxu0 0.0
    %2252 = vmatpush1.xpose.msra.mxu0 0.0
    %2253 = vmatprep.subr.mxu0 0.0
    %2254 = vmatpush1.xpose.msra.mxu0 0.0
    %2255 = vmatprep.subr.mxu0 0.0
    %2256 = vmatpush1.xpose.msra.mxu0 0.0
    %2257 = vmatprep.subr.mxu0 0.0
    %2258 = vmatpush1.xpose.msra.mxu0 0.0
    %2259 = vmatprep.subr.mxu0 0.0
    %2260 = vmatpush1.xpose.msra.mxu0 0.0
    %2261 = vmatprep.subr.mxu0 0.0
    %2262 = vmatpush1.xpose.msra.mxu0 0.0
    %2263 = vmatprep.subr.mxu0 0.0
    %2264 = vmatpush1.xpose.msra.mxu0 0.0
    %2265 = vmatprep.subr.mxu0 0.0
    %2266 = vmatpush1.xpose.msra.mxu0 0.0
    %2267 = vmatprep.subr.mxu0 0.0
    %2268 = vmatpush1.xpose.msra.mxu0 0.0
    %2269 = vmatprep.subr.mxu0 0.0
    %2270 = vmatpush1.xpose.msra.mxu0 0.0
    %2271 = vmatprep.mubr.f32.mxu0 0.0
    %2272 = vmatmul.mubr.f32.gmra.mrb[0].mxu0 %v2191
    %v2273 = vpop.f32.mrb[0].mxu0
    %v2274 = vadd.f32 0.0, %v2273
    %v2275 = vpop.f32.mrb[0].mxu0
    %2276 = vmatprep.mubr.f32.mxu0 0.0
    %2277 = vmatmul.mubr.f32.gmra.mrb[0].mxu0 %v2193
    %v2278 = vpop.f32.mrb[0].mxu0
    %v2279 = vadd.f32 0.0, %v2278
    %v2280 = vpop.f32.mrb[0].mxu0
    %2281 = vmatprep.mubr.f32.mxu0 0.0
    %2282 = vmatmul.mubr.f32.gmra.mrb[0].mxu0 %v2195
    %v2283 = vpop.f32.mrb[0].mxu0
    %v2284 = vadd.f32 0.0, %v2283
    %v2285 = vpop.f32.mrb[0].mxu0
    %2286 = vmatprep.mubr.f32.mxu0 0.0
    %2287 = vmatmul.mubr.f32.gmra.mrb[0].mxu0 %v2197
    %v2288 = vpop.f32.mrb[0].mxu0
    %v2289 = vadd.f32 0.0, %v2288
    %v2290 = vpop.f32.mrb[0].mxu0
    %2291 = vdwg.mxu0
    %v2292 = vsel %vm600, %v2274, -inf
    %2293 = vmax.xlane.f32.xlu0 %v2292
    %v2294 = vpop.xlane.xlu0 %2293
    %v2295 = vsel %vm600, %v2279, -inf
    %2296 = vmax.xlane.f32.xlu0 %v2295
    %v2297 = vpop.xlane.xlu0 %2296
    %v2298 = vsel %vm600, %v2284, -inf
    %2299 = vmax.xlane.f32.xlu0 %v2298
    %v2300 = vpop.xlane.xlu0 %2299
    %v2301 = vsel %vm600, %v2289, -inf
    %2302 = vmax.xlane.f32.xlu0 %v2301
    %v2303 = vpop.xlane.xlu0 %2302
    %v2304 = vsub.f32 %v2274, %v2294
    %v2305 = vsub.f32 %v2279, %v2297
    %v2306 = vsub.f32 %v2284, %v2300
    %v2307 = vsub.f32 %v2289, %v2303
    %v2308 = vmul.f32 %v2304, 1.442695
    %v2309 = vpow.pop %v2308
    %v2310 = vmul.f32 %v2305, 1.442695
    %v2311 = vpow.pop %v2310
    %v2312 = vmul.f32 %v2306, 1.442695
    %v2313 = vpow.pop %v2312
    %v2314 = vmul.f32 %v2307, 1.442695
    %v2315 = vpow.pop %v2314
    %2316 = vrot.lane.b32.xlu0 %v466, 96
    %v2317 = vpop.permute.xlu0 %2316
    %2318 = vrot.lane.b32.xlu0 %v472, 96
    %v2319 = vpop.permute.xlu0 %2318
    %2320 = vrot.lane.b32.xlu0 %v478, 96
    %v2321 = vpop.permute.xlu0 %2320
    %2322 = vrot.lane.b32.xlu0 %v484, 96
    %v2323 = vpop.permute.xlu0 %2322
    %v2329 = vsel %vm600, %v2309, 0
    %v2332 = vsel %vm600, %v2311, 0
    %v2335 = vsel %vm600, %v2313, 0
    %v2338 = vsel %vm600, %v2315, 0
    %2340 = vmatprep.subr.mxu0 0.0
    %2341 = vmatpush1.msra.mxu0 %v2317
    %2342 = vmatprep.subr.mxu0 0.0
    %2343 = vmatpush1.msra.mxu0 %v2319
    %2344 = vmatprep.subr.mxu0 0.0
    %2345 = vmatpush1.msra.mxu0 %v2321
    %2346 = vmatprep.subr.mxu0 0.0
    %2347 = vmatpush1.msra.mxu0 %v2323
    %2348 = vmatprep.subr.mxu0 0.0
    %2349 = vmatpush1.msra.mxu0 0.0
    %2350 = vmatprep.subr.mxu0 0.0
    %2351 = vmatpush1.msra.mxu0 0.0
    %2352 = vmatprep.subr.mxu0 0.0
    %2353 = vmatpush1.msra.mxu0 0.0
    %2354 = vmatprep.subr.mxu0 0.0
    %2355 = vmatpush1.msra.mxu0 0.0
    %2356 = vmatprep.subr.mxu0 0.0
    %2357 = vmatpush1.msra.mxu0 0.0
    %2358 = vmatprep.subr.mxu0 0.0
    %2359 = vmatpush1.msra.mxu0 0.0
    %2360 = vmatprep.subr.mxu0 0.0
    %2361 = vmatpush1.msra.mxu0 0.0
    %2362 = vmatprep.subr.mxu0 0.0
    %2363 = vmatpush1.msra.mxu0 0.0
    %2364 = vmatprep.subr.mxu0 0.0
    %2365 = vmatpush1.msra.mxu0 0.0
    %2366 = vmatprep.subr.mxu0 0.0
    %2367 = vmatpush1.msra.mxu0 0.0
    %2368 = vmatprep.subr.mxu0 0.0
    %2369 = vmatpush1.msra.mxu0 0.0
    %2370 = vmatprep.subr.mxu0 0.0
    %2371 = vmatpush1.msra.mxu0 0.0
    %2372 = vmatprep.subr.mxu0 0.0
    %2373 = vmatpush1.msra.mxu0 0.0
    %2374 = vmatprep.subr.mxu0 0.0
    %2375 = vmatpush1.msra.mxu0 0.0
    %2376 = vmatprep.subr.mxu0 0.0
    %2377 = vmatpush1.msra.mxu0 0.0
    %2378 = vmatprep.subr.mxu0 0.0
    %2379 = vmatpush1.msra.mxu0 0.0
    %2380 = vmatprep.subr.mxu0 0.0
    %2381 = vmatpush1.msra.mxu0 0.0
    %2382 = vmatprep.subr.mxu0 0.0
    %2383 = vmatpush1.msra.mxu0 0.0
    %2384 = vmatprep.subr.mxu0 0.0
    %2385 = vmatpush1.msra.mxu0 0.0
    %2386 = vmatprep.subr.mxu0 0.0
    %2387 = vmatpush1.msra.mxu0 0.0
    %2388 = vmatprep.subr.mxu0 0.0
    %2389 = vmatpush1.msra.mxu0 0.0
    %2390 = vmatprep.subr.mxu0 0.0
    %2391 = vmatpush1.msra.mxu0 0.0
    %2392 = vmatprep.subr.mxu0 0.0
    %2393 = vmatpush1.msra.mxu0 0.0
    %2394 = vmatprep.subr.mxu0 0.0
    %2395 = vmatpush1.msra.mxu0 0.0
    %2396 = vmatprep.subr.mxu0 0.0
    %2397 = vmatpush1.msra.mxu0 0.0
    %2398 = vmatprep.subr.mxu0 0.0
    %2399 = vmatpush1.msra.mxu0 0.0
    %2400 = vmatprep.subr.mxu0 0.0
    %2401 = vmatpush1.msra.mxu0 0.0
    %2402 = vmatprep.subr.mxu0 0.0
    %2403 = vmatpush1.msra.mxu0 0.0
    %2404 = vmatprep.mubr.f32.mxu0 0.0
    %2405 = vmatmul.mubr.f32.gmra.mrb[0].mxu0 %v2329
    %v2406 = vpop.f32.mrb[0].mxu0
    %v2407 = vadd.f32 0.0, %v2406
    %v2408 = vpop.f32.mrb[0].mxu0
    %2409 = vmatprep.mubr.f32.mxu0 0.0
    %2410 = vmatmul.mubr.f32.gmra.mrb[0].mxu0 %v2332
    %v2411 = vpop.f32.mrb[0].mxu0
    %v2412 = vadd.f32 0.0, %v2411
    %v2413 = vpop.f32.mrb[0].mxu0
    %2414 = vmatprep.mubr.f32.mxu0 0.0
    %2415 = vmatmul.mubr.f32.gmra.mrb[0].mxu0 %v2335
    %v2416 = vpop.f32.mrb[0].mxu0
    %v2417 = vadd.f32 0.0, %v2416
    %v2418 = vpop.f32.mrb[0].mxu0
    %2419 = vmatprep.mubr.f32.mxu0 0.0
    %2420 = vmatmul.mubr.f32.gmra.mrb[0].mxu0 %v2338
    %v2421 = vpop.f32.mrb[0].mxu0
    %v2422 = vadd.f32 0.0, %v2421
    %v2423 = vpop.f32.mrb[0].mxu0
    %2424 = vdwg.mxu0
    %v2425 = vsel %vm600, %v2309, 0.0
    %2426 = vadd.xlane.f32.xlu0 %v2425
    %v2427 = vpop.xlane.xlu0 %2426
    %v2428 = vsel %vm600, %v2311, 0.0
    %2429 = vadd.xlane.f32.xlu0 %v2428
    %v2430 = vpop.xlane.xlu0 %2429
    %v2431 = vsel %vm600, %v2313, 0.0
    %2432 = vadd.xlane.f32.xlu0 %v2431
    %v2433 = vpop.xlane.xlu0 %2432
    %v2434 = vsel %vm600, %v2315, 0.0
    %2435 = vadd.xlane.f32.xlu0 %v2434
    %v2436 = vpop.xlane.xlu0 %2435
    %v2437 = vrcp.pop %v2427
    %v2438 = vrcp.pop %v2430
    %v2439 = vrcp.pop %v2433
    %v2440 = vrcp.pop %v2436
    %v2441 = vmul.f32 %v2407, %v2437
    %v2442 = vmul.f32 %v2412, %v2438
    %v2443 = vmul.f32 %v2417, %v2439
    %v2444 = vmul.f32 %v2422, %v2440
    %2449 = vrot.lane.b32.xlu0 %v2441, 32
    %v2450 = vpop.permute.xlu0 %2449
    %2451 = vrot.lane.b32.xlu0 %v2442, 32
    %v2452 = vpop.permute.xlu0 %2451
    %2453 = vrot.lane.b32.xlu0 %v2443, 32
    %v2454 = vpop.permute.xlu0 %2453
    %2455 = vrot.lane.b32.xlu0 %v2444, 32
    %v2456 = vpop.permute.xlu0 %2455
    %2461 = vst.msk [vmem:[#allocation2 + $0x20] sm:$0xff] %vm1327, %v2450
    %2462 = vst.msk [vmem:[#allocation2 + $0x28] sm:$0xff] %vm1327, %v2452
    %2463 = vst.msk [vmem:[#allocation2 + $0x30] sm:$0xff] %vm1327, %v2454
    %2464 = vst.msk [vmem:[#allocation2 + $0x38] sm:$0xff] %vm1327, %v2456
    %2465 = vrot.lane.b32.xlu0 %v464, 80
    %v2466 = vpop.permute.xlu0 %2465
    %2467 = vrot.lane.b32.xlu0 %v470, 80
    %v2468 = vpop.permute.xlu0 %2467
    %2469 = vrot.lane.b32.xlu0 %v476, 80
    %v2470 = vpop.permute.xlu0 %2469
    %2471 = vrot.lane.b32.xlu0 %v482, 80
    %v2472 = vpop.permute.xlu0 %2471
    %2473 = vrot.lane.b32.xlu0 %v464, 16
    %v2474 = vpop.permute.xlu0 %2473
    %2475 = vrot.lane.b32.xlu0 %v470, 16
    %v2476 = vpop.permute.xlu0 %2475
    %2477 = vrot.lane.b32.xlu0 %v476, 16
    %v2478 = vpop.permute.xlu0 %2477
    %2479 = vrot.lane.b32.xlu0 %v482, 16
    %v2480 = vpop.permute.xlu0 %2479
    %v2481 = vsel %vm498, %v2466, 0
    %v2483 = vsel %vm498, %v2468, 0
    %v2485 = vsel %vm498, %v2470, 0
    %v2487 = vsel %vm498, %v2472, 0
    %v2489 = vsel %vm498, %v2474, 0
    %v2491 = vsel %vm498, %v2476, 0
    %v2493 = vsel %vm498, %v2478, 0
    %v2495 = vsel %vm498, %v2480, 0
    %2497 = vmatprep.subr.mxu0 0.0
    %2498 = vmatpush1.xpose.msra.mxu0 %v2489
    %2499 = vmatprep.subr.mxu0 0.0
    %2500 = vmatpush1.xpose.msra.mxu0 %v2491
    %2501 = vmatprep.subr.mxu0 0.0
    %2502 = vmatpush1.xpose.msra.mxu0 %v2493
    %2503 = vmatprep.subr.mxu0 0.0
    %2504 = vmatpush1.xpose.msra.mxu0 %v2495
    %2505 = vmatprep.subr.mxu0 0.0
    %2506 = vmatpush1.xpose.msra.mxu0 0.0
    %2507 = vmatprep.subr.mxu0 0.0
    %2508 = vmatpush1.xpose.msra.mxu0 0.0
    %2509 = vmatprep.subr.mxu0 0.0
    %2510 = vmatpush1.xpose.msra.mxu0 0.0
    %2511 = vmatprep.subr.mxu0 0.0
    %2512 = vmatpush1.xpose.msra.mxu0 0.0
    %2513 = vmatprep.subr.mxu0 0.0
    %2514 = vmatpush1.xpose.msra.mxu0 0.0
    %2515 = vmatprep.subr.mxu0 0.0
    %2516 = vmatpush1.xpose.msra.mxu0 0.0
    %2517 = vmatprep.subr.mxu0 0.0
    %2518 = vmatpush1.xpose.msra.mxu0 0.0
    %2519 = vmatprep.subr.mxu0 0.0
    %2520 = vmatpush1.xpose.msra.mxu0 0.0
    %2521 = vmatprep.subr.mxu0 0.0
    %2522 = vmatpush1.xpose.msra.mxu0 0.0
    %2523 = vmatprep.subr.mxu0 0.0
    %2524 = vmatpush1.xpose.msra.mxu0 0.0
    %2525 = vmatprep.subr.mxu0 0.0
    %2526 = vmatpush1.xpose.msra.mxu0 0.0
    %2527 = vmatprep.subr.mxu0 0.0
    %2528 = vmatpush1.xpose.msra.mxu0 0.0
    %2529 = vmatprep.subr.mxu0 0.0
    %2530 = vmatpush1.xpose.msra.mxu0 0.0
    %2531 = vmatprep.subr.mxu0 0.0
    %2532 = vmatpush1.xpose.msra.mxu0 0.0
    %2533 = vmatprep.subr.mxu0 0.0
    %2534 = vmatpush1.xpose.msra.mxu0 0.0
    %2535 = vmatprep.subr.mxu0 0.0
    %2536 = vmatpush1.xpose.msra.mxu0 0.0
    %2537 = vmatprep.subr.mxu0 0.0
    %2538 = vmatpush1.xpose.msra.mxu0 0.0
    %2539 = vmatprep.subr.mxu0 0.0
    %2540 = vmatpush1.xpose.msra.mxu0 0.0
    %2541 = vmatprep.subr.mxu0 0.0
    %2542 = vmatpush1.xpose.msra.mxu0 0.0
    %2543 = vmatprep.subr.mxu0 0.0
    %2544 = vmatpush1.xpose.msra.mxu0 0.0
    %2545 = vmatprep.subr.mxu0 0.0
    %2546 = vmatpush1.xpose.msra.mxu0 0.0
    %2547 = vmatprep.subr.mxu0 0.0
    %2548 = vmatpush1.xpose.msra.mxu0 0.0
    %2549 = vmatprep.subr.mxu0 0.0
    %2550 = vmatpush1.xpose.msra.mxu0 0.0
    %2551 = vmatprep.subr.mxu0 0.0
    %2552 = vmatpush1.xpose.msra.mxu0 0.0
    %2553 = vmatprep.subr.mxu0 0.0
    %2554 = vmatpush1.xpose.msra.mxu0 0.0
    %2555 = vmatprep.subr.mxu0 0.0
    %2556 = vmatpush1.xpose.msra.mxu0 0.0
    %2557 = vmatprep.subr.mxu0 0.0
    %2558 = vmatpush1.xpose.msra.mxu0 0.0
    %2559 = vmatprep.subr.mxu0 0.0
    %2560 = vmatpush1.xpose.msra.mxu0 0.0
    %2561 = vmatprep.mubr.f32.mxu0 0.0
    %2562 = vmatmul.mubr.f32.gmra.mrb[0].mxu0 %v2481
    %v2563 = vpop.f32.mrb[0].mxu0
    %v2564 = vadd.f32 0.0, %v2563
    %v2565 = vpop.f32.mrb[0].mxu0
    %2566 = vmatprep.mubr.f32.mxu0 0.0
    %2567 = vmatmul.mubr.f32.gmra.mrb[0].mxu0 %v2483
    %v2568 = vpop.f32.mrb[0].mxu0
    %v2569 = vadd.f32 0.0, %v2568
    %v2570 = vpop.f32.mrb[0].mxu0
    %2571 = vmatprep.mubr.f32.mxu0 0.0
    %2572 = vmatmul.mubr.f32.gmra.mrb[0].mxu0 %v2485
    %v2573 = vpop.f32.mrb[0].mxu0
    %v2574 = vadd.f32 0.0, %v2573
    %v2575 = vpop.f32.mrb[0].mxu0
    %2576 = vmatprep.mubr.f32.mxu0 0.0
    %2577 = vmatmul.mubr.f32.gmra.mrb[0].mxu0 %v2487
    %v2578 = vpop.f32.mrb[0].mxu0
    %v2579 = vadd.f32 0.0, %v2578
    %v2580 = vpop.f32.mrb[0].mxu0
    %2581 = vdwg.mxu0
    %v2582 = vsel %vm600, %v2564, -inf
    %2583 = vmax.xlane.f32.xlu0 %v2582
    %v2584 = vpop.xlane.xlu0 %2583
    %v2585 = vsel %vm600, %v2569, -inf
    %2586 = vmax.xlane.f32.xlu0 %v2585
    %v2587 = vpop.xlane.xlu0 %2586
    %v2588 = vsel %vm600, %v2574, -inf
    %2589 = vmax.xlane.f32.xlu0 %v2588
    %v2590 = vpop.xlane.xlu0 %2589
    %v2591 = vsel %vm600, %v2579, -inf
    %2592 = vmax.xlane.f32.xlu0 %v2591
    %v2593 = vpop.xlane.xlu0 %2592
    %v2594 = vsub.f32 %v2564, %v2584
    %v2595 = vsub.f32 %v2569, %v2587
    %v2596 = vsub.f32 %v2574, %v2590
    %v2597 = vsub.f32 %v2579, %v2593
    %v2598 = vmul.f32 %v2594, 1.442695
    %v2599 = vpow.pop %v2598
    %v2600 = vmul.f32 %v2595, 1.442695
    %v2601 = vpow.pop %v2600
    %v2602 = vmul.f32 %v2596, 1.442695
    %v2603 = vpow.pop %v2602
    %v2604 = vmul.f32 %v2597, 1.442695
    %v2605 = vpow.pop %v2604
    %2606 = vrot.lane.b32.xlu0 %v466, 80
    %v2607 = vpop.permute.xlu0 %2606
    %2608 = vrot.lane.b32.xlu0 %v472, 80
    %v2609 = vpop.permute.xlu0 %2608
    %2610 = vrot.lane.b32.xlu0 %v478, 80
    %v2611 = vpop.permute.xlu0 %2610
    %2612 = vrot.lane.b32.xlu0 %v484, 80
    %v2613 = vpop.permute.xlu0 %2612
    %v2619 = vsel %vm600, %v2599, 0
    %v2622 = vsel %vm600, %v2601, 0
    %v2625 = vsel %vm600, %v2603, 0
    %v2628 = vsel %vm600, %v2605, 0
    %2630 = vmatprep.subr.mxu0 0.0
    %2631 = vmatpush1.msra.mxu0 %v2607
    %2632 = vmatprep.subr.mxu0 0.0
    %2633 = vmatpush1.msra.mxu0 %v2609
    %2634 = vmatprep.subr.mxu0 0.0
    %2635 = vmatpush1.msra.mxu0 %v2611
    %2636 = vmatprep.subr.mxu0 0.0
    %2637 = vmatpush1.msra.mxu0 %v2613
    %2638 = vmatprep.subr.mxu0 0.0
    %2639 = vmatpush1.msra.mxu0 0.0
    %2640 = vmatprep.subr.mxu0 0.0
    %2641 = vmatpush1.msra.mxu0 0.0
    %2642 = vmatprep.subr.mxu0 0.0
    %2643 = vmatpush1.msra.mxu0 0.0
    %2644 = vmatprep.subr.mxu0 0.0
    %2645 = vmatpush1.msra.mxu0 0.0
    %2646 = vmatprep.subr.mxu0 0.0
    %2647 = vmatpush1.msra.mxu0 0.0
    %2648 = vmatprep.subr.mxu0 0.0
    %2649 = vmatpush1.msra.mxu0 0.0
    %2650 = vmatprep.subr.mxu0 0.0
    %2651 = vmatpush1.msra.mxu0 0.0
    %2652 = vmatprep.subr.mxu0 0.0
    %2653 = vmatpush1.msra.mxu0 0.0
    %2654 = vmatprep.subr.mxu0 0.0
    %2655 = vmatpush1.msra.mxu0 0.0
    %2656 = vmatprep.subr.mxu0 0.0
    %2657 = vmatpush1.msra.mxu0 0.0
    %2658 = vmatprep.subr.mxu0 0.0
    %2659 = vmatpush1.msra.mxu0 0.0
    %2660 = vmatprep.subr.mxu0 0.0
    %2661 = vmatpush1.msra.mxu0 0.0
    %2662 = vmatprep.subr.mxu0 0.0
    %2663 = vmatpush1.msra.mxu0 0.0
    %2664 = vmatprep.subr.mxu0 0.0
    %2665 = vmatpush1.msra.mxu0 0.0
    %2666 = vmatprep.subr.mxu0 0.0
    %2667 = vmatpush1.msra.mxu0 0.0
    %2668 = vmatprep.subr.mxu0 0.0
    %2669 = vmatpush1.msra.mxu0 0.0
    %2670 = vmatprep.subr.mxu0 0.0
    %2671 = vmatpush1.msra.mxu0 0.0
    %2672 = vmatprep.subr.mxu0 0.0
    %2673 = vmatpush1.msra.mxu0 0.0
    %2674 = vmatprep.subr.mxu0 0.0
    %2675 = vmatpush1.msra.mxu0 0.0
    %2676 = vmatprep.subr.mxu0 0.0
    %2677 = vmatpush1.msra.mxu0 0.0
    %2678 = vmatprep.subr.mxu0 0.0
    %2679 = vmatpush1.msra.mxu0 0.0
    %2680 = vmatprep.subr.mxu0 0.0
    %2681 = vmatpush1.msra.mxu0 0.0
    %2682 = vmatprep.subr.mxu0 0.0
    %2683 = vmatpush1.msra.mxu0 0.0
    %2684 = vmatprep.subr.mxu0 0.0
    %2685 = vmatpush1.msra.mxu0 0.0
    %2686 = vmatprep.subr.mxu0 0.0
    %2687 = vmatpush1.msra.mxu0 0.0
    %2688 = vmatprep.subr.mxu0 0.0
    %2689 = vmatpush1.msra.mxu0 0.0
    %2690 = vmatprep.subr.mxu0 0.0
    %2691 = vmatpush1.msra.mxu0 0.0
    %2692 = vmatprep.subr.mxu0 0.0
    %2693 = vmatpush1.msra.mxu0 0.0
    %2694 = vmatprep.mubr.f32.mxu0 0.0
    %2695 = vmatmul.mubr.f32.gmra.mrb[0].mxu0 %v2619
    %v2696 = vpop.f32.mrb[0].mxu0
    %v2697 = vadd.f32 0.0, %v2696
    %v2698 = vpop.f32.mrb[0].mxu0
    %2699 = vmatprep.mubr.f32.mxu0 0.0
    %2700 = vmatmul.mubr.f32.gmra.mrb[0].mxu0 %v2622
    %v2701 = vpop.f32.mrb[0].mxu0
    %v2702 = vadd.f32 0.0, %v2701
    %v2703 = vpop.f32.mrb[0].mxu0
    %2704 = vmatprep.mubr.f32.mxu0 0.0
    %2705 = vmatmul.mubr.f32.gmra.mrb[0].mxu0 %v2625
    %v2706 = vpop.f32.mrb[0].mxu0
    %v2707 = vadd.f32 0.0, %v2706
    %v2708 = vpop.f32.mrb[0].mxu0
    %2709 = vmatprep.mubr.f32.mxu0 0.0
    %2710 = vmatmul.mubr.f32.gmra.mrb[0].mxu0 %v2628
    %v2711 = vpop.f32.mrb[0].mxu0
    %v2712 = vadd.f32 0.0, %v2711
    %v2713 = vpop.f32.mrb[0].mxu0
    %2714 = vdwg.mxu0
    %v2715 = vsel %vm600, %v2599, 0.0
    %2716 = vadd.xlane.f32.xlu0 %v2715
    %v2717 = vpop.xlane.xlu0 %2716
    %v2718 = vsel %vm600, %v2601, 0.0
    %2719 = vadd.xlane.f32.xlu0 %v2718
    %v2720 = vpop.xlane.xlu0 %2719
    %v2721 = vsel %vm600, %v2603, 0.0
    %2722 = vadd.xlane.f32.xlu0 %v2721
    %v2723 = vpop.xlane.xlu0 %2722
    %v2724 = vsel %vm600, %v2605, 0.0
    %2725 = vadd.xlane.f32.xlu0 %v2724
    %v2726 = vpop.xlane.xlu0 %2725
    %v2727 = vrcp.pop %v2717
    %v2728 = vrcp.pop %v2720
    %v2729 = vrcp.pop %v2723
    %v2730 = vrcp.pop %v2726
    %v2731 = vmul.f32 %v2697, %v2727
    %v2732 = vmul.f32 %v2702, %v2728
    %v2733 = vmul.f32 %v2707, %v2729
    %v2734 = vmul.f32 %v2712, %v2730
    %2739 = vrot.lane.b32.xlu0 %v2731, 48
    %v2740 = vpop.permute.xlu0 %2739
    %2741 = vrot.lane.b32.xlu0 %v2732, 48
    %v2742 = vpop.permute.xlu0 %2741
    %2743 = vrot.lane.b32.xlu0 %v2733, 48
    %v2744 = vpop.permute.xlu0 %2743
    %2745 = vrot.lane.b32.xlu0 %v2734, 48
    %v2746 = vpop.permute.xlu0 %2745
    %2751 = vst.msk [vmem:[#allocation2 + $0x20] sm:$0xff] %vm1618, %v2740
    %2752 = vst.msk [vmem:[#allocation2 + $0x28] sm:$0xff] %vm1618, %v2742
    %2753 = vst.msk [vmem:[#allocation2 + $0x30] sm:$0xff] %vm1618, %v2744
    %2754 = vst.msk [vmem:[#allocation2 + $0x38] sm:$0xff] %vm1618, %v2746
    %v2755 = vld [vmem:[#allocation2] sm:$0xff]
    %v2756 = vld [vmem:[#allocation2 + $0x8] sm:$0xff]
    %v2757 = vld [vmem:[#allocation2 + $0x10] sm:$0xff]
    %v2758 = vld [vmem:[#allocation2 + $0x18] sm:$0xff]
    %v2759 = vld [vmem:[#allocation2 + $0x20] sm:$0xff]
    %v2760 = vld [vmem:[#allocation2 + $0x28] sm:$0xff]
    %v2761 = vld [vmem:[#allocation2 + $0x30] sm:$0xff]
    %v2762 = vld [vmem:[#allocation2 + $0x38] sm:$0xff]
    %v2763 = vld [vmem:[#allocation11] sm:$0xff]
    %v2764 = vld [vmem:[#allocation11 + $0x8] sm:$0xff]
    %v2765 = vld [vmem:[#allocation11 + $0x10] sm:$0xff]
    %v2766 = vld [vmem:[#allocation11 + $0x18] sm:$0xff]
    %v2767 = vld [vmem:[#allocation11 + $0x20] sm:$0xff]
    %v2768 = vld [vmem:[#allocation11 + $0x28] sm:$0xff]
    %v2769 = vld [vmem:[#allocation11 + $0x30] sm:$0xff]
    %v2770 = vld [vmem:[#allocation11 + $0x38] sm:$0xff]
    %v2771 = vld [vmem:[#allocation12] sm:$0x1]
    %v2773 = vlaneseq
    %v2774 = vshrl.u32 %v2773, 7
    %v2775 = vsub.s32 0, %v2774
    %v2776 = vrot.slane %v2771, %v2775
    %v2779 = vsel %vm348, %v2755, 0
    %v2782 = vsel %vm348, %v2756, 0
    %v2785 = vsel %vm348, %v2757, 0
    %v2788 = vsel %vm348, %v2758, 0
    %v2791 = vsel %vm348, %v2759, 0
    %v2794 = vsel %vm348, %v2760, 0
    %v2797 = vsel %vm348, %v2761, 0
    %v2800 = vsel %vm348, %v2762, 0
    %2802 = vmatprep.subr.mxu0 0.0
    %2803 = vmatpush1.msra.mxu0 %v2763
    %2804 = vmatprep.subr.mxu0 0.0
    %2805 = vmatpush1.msra.mxu0 %v2764
    %2806 = vmatprep.subr.mxu0 0.0
    %2807 = vmatpush1.msra.mxu0 %v2765
    %2808 = vmatprep.subr.mxu0 0.0
    %2809 = vmatpush1.msra.mxu0 %v2766
    %2810 = vmatprep.subr.mxu0 0.0
    %2811 = vmatpush1.msra.mxu0 %v2767
    %2812 = vmatprep.subr.mxu0 0.0
    %2813 = vmatpush1.msra.mxu0 %v2768
    %2814 = vmatprep.subr.mxu0 0.0
    %2815 = vmatpush1.msra.mxu0 %v2769
    %2816 = vmatprep.subr.mxu0 0.0
    %2817 = vmatpush1.msra.mxu0 %v2770
    %2818 = vmatprep.subr.mxu0 0.0
    %2819 = vmatpush1.msra.mxu0 0.0
    %2820 = vmatprep.subr.mxu0 0.0
    %2821 = vmatpush1.msra.mxu0 0.0
    %2822 = vmatprep.subr.mxu0 0.0
    %2823 = vmatpush1.msra.mxu0 0.0
    %2824 = vmatprep.subr.mxu0 0.0
    %2825 = vmatpush1.msra.mxu0 0.0
    %2826 = vmatprep.subr.mxu0 0.0
    %2827 = vmatpush1.msra.mxu0 0.0
    %2828 = vmatprep.subr.mxu0 0.0
    %2829 = vmatpush1.msra.mxu0 0.0
    %2830 = vmatprep.subr.mxu0 0.0
    %2831 = vmatpush1.msra.mxu0 0.0
    %2832 = vmatprep.subr.mxu0 0.0
    %2833 = vmatpush1.msra.mxu0 0.0
    %2834 = vmatprep.subr.mxu0 0.0
    %2835 = vmatpush1.msra.mxu0 0.0
    %2836 = vmatprep.subr.mxu0 0.0
    %2837 = vmatpush1.msra.mxu0 0.0
    %2838 = vmatprep.subr.mxu0 0.0
    %2839 = vmatpush1.msra.mxu0 0.0
    %2840 = vmatprep.subr.mxu0 0.0
    %2841 = vmatpush1.msra.mxu0 0.0
    %2842 = vmatprep.subr.mxu0 0.0
    %2843 = vmatpush1.msra.mxu0 0.0
    %2844 = vmatprep.subr.mxu0 0.0
    %2845 = vmatpush1.msra.mxu0 0.0
    %2846 = vmatprep.subr.mxu0 0.0
    %2847 = vmatpush1.msra.mxu0 0.0
    %2848 = vmatprep.subr.mxu0 0.0
    %2849 = vmatpush1.msra.mxu0 0.0
    %2850 = vmatprep.subr.mxu0 0.0
    %2851 = vmatpush1.msra.mxu0 0.0
    %2852 = vmatprep.subr.mxu0 0.0
    %2853 = vmatpush1.msra.mxu0 0.0
    %2854 = vmatprep.subr.mxu0 0.0
    %2855 = vmatpush1.msra.mxu0 0.0
    %2856 = vmatprep.subr.mxu0 0.0
    %2857 = vmatpush1.msra.mxu0 0.0
    %2858 = vmatprep.subr.mxu0 0.0
    %2859 = vmatpush1.msra.mxu0 0.0
    %2860 = vmatprep.subr.mxu0 0.0
    %2861 = vmatpush1.msra.mxu0 0.0
    %2862 = vmatprep.subr.mxu0 0.0
    %2863 = vmatpush1.msra.mxu0 0.0
    %2864 = vmatprep.subr.mxu0 0.0
    %2865 = vmatpush1.msra.mxu0 0.0
    %2866 = vmatprep.mubr.f32.mxu0 0.0
    %2867 = vmatmul.mubr.f32.gmra.mrb[0].mxu0 %v2779
    %v2868 = vpop.f32.mrb[0].mxu0
    %v2869 = vadd.f32 %v2776, %v2868
    %v2870 = vpop.f32.mrb[0].mxu0
    %2871 = vmatprep.mubr.f32.mxu0 0.0
    %2872 = vmatmul.mubr.f32.gmra.mrb[0].mxu0 %v2782
    %v2873 = vpop.f32.mrb[0].mxu0
    %v2874 = vadd.f32 %v2776, %v2873
    %v2875 = vpop.f32.mrb[0].mxu0
    %2876 = vmatprep.mubr.f32.mxu0 0.0
    %2877 = vmatmul.mubr.f32.gmra.mrb[0].mxu0 %v2785
    %v2878 = vpop.f32.mrb[0].mxu0
    %v2879 = vadd.f32 %v2776, %v2878
    %v2880 = vpop.f32.mrb[0].mxu0
    %2881 = vmatprep.mubr.f32.mxu0 0.0
    %2882 = vmatmul.mubr.f32.gmra.mrb[0].mxu0 %v2788
    %v2883 = vpop.f32.mrb[0].mxu0
    %v2884 = vadd.f32 %v2776, %v2883
    %v2885 = vpop.f32.mrb[0].mxu0
    %2886 = vmatprep.mubr.f32.mxu0 0.0
    %2887 = vmatmul.mubr.f32.gmra.mrb[0].mxu0 %v2791
    %v2888 = vpop.f32.mrb[0].mxu0
    %v2889 = vadd.f32 %v2776, %v2888
    %v2890 = vpop.f32.mrb[0].mxu0
    %2891 = vmatprep.mubr.f32.mxu0 0.0
    %2892 = vmatmul.mubr.f32.gmra.mrb[0].mxu0 %v2794
    %v2893 = vpop.f32.mrb[0].mxu0
    %v2894 = vadd.f32 %v2776, %v2893
    %v2895 = vpop.f32.mrb[0].mxu0
    %2896 = vmatprep.mubr.f32.mxu0 0.0
    %2897 = vmatmul.mubr.f32.gmra.mrb[0].mxu0 %v2797
    %v2898 = vpop.f32.mrb[0].mxu0
    %v2899 = vadd.f32 %v2776, %v2898
    %v2900 = vpop.f32.mrb[0].mxu0
    %2901 = vmatprep.mubr.f32.mxu0 0.0
    %2902 = vmatmul.mubr.f32.gmra.mrb[0].mxu0 %v2800
    %v2903 = vpop.f32.mrb[0].mxu0
    %v2904 = vadd.f32 %v2776, %v2903
    %v2905 = vpop.f32.mrb[0].mxu0
    %2906 = vdwg.mxu0
    %v2907 = vadd.f32 %v312, %v2869
    %v2908 = vadd.f32 %v313, %v2874
    %v2909 = vadd.f32 %v314, %v2879
    %v2910 = vadd.f32 %v315, %v2884
    %v2911 = vadd.f32 %v316, %v2889
    %v2912 = vadd.f32 %v317, %v2894
    %v2913 = vadd.f32 %v318, %v2899
    %v2914 = vadd.f32 %v319, %v2904
    %v2915 = vld [vmem:[#allocation14] sm:$0x1]
    %v2916 = vld [vmem:[#allocation15] sm:$0x1]
    %v2917 = vsel %vm348, %v2907, 0.0
    %2918 = vadd.xlane.f32.xlu0 %v2917
    %v2919 = vpop.xlane.xlu0 %2918
    %v2920 = vsel %vm348, %v2908, 0.0
    %2921 = vadd.xlane.f32.xlu0 %v2920
    %v2922 = vpop.xlane.xlu0 %2921
    %v2923 = vsel %vm348, %v2909, 0.0
    %2924 = vadd.xlane.f32.xlu0 %v2923
    %v2925 = vpop.xlane.xlu0 %2924
    %v2926 = vsel %vm348, %v2910, 0.0
    %2927 = vadd.xlane.f32.xlu0 %v2926
    %v2928 = vpop.xlane.xlu0 %2927
    %v2929 = vsel %vm348, %v2911, 0.0
    %2930 = vadd.xlane.f32.xlu0 %v2929
    %v2931 = vpop.xlane.xlu0 %2930
    %v2932 = vsel %vm348, %v2912, 0.0
    %2933 = vadd.xlane.f32.xlu0 %v2932
    %v2934 = vpop.xlane.xlu0 %2933
    %v2935 = vsel %vm348, %v2913, 0.0
    %2936 = vadd.xlane.f32.xlu0 %v2935
    %v2937 = vpop.xlane.xlu0 %2936
    %v2938 = vsel %vm348, %v2914, 0.0
    %2939 = vadd.xlane.f32.xlu0 %v2938
    %v2940 = vpop.xlane.xlu0 %2939
    %v2941 = vrcp.pop 64.0
    %v2942 = vmul.f32 %v2919, %v2941
    %v2943 = vmul.f32 %v2922, %v2941
    %v2944 = vmul.f32 %v2925, %v2941
    %v2945 = vmul.f32 %v2928, %v2941
    %v2946 = vmul.f32 %v2931, %v2941
    %v2947 = vmul.f32 %v2934, %v2941
    %v2948 = vmul.f32 %v2937, %v2941
    %v2949 = vmul.f32 %v2940, %v2941
    %v2950 = vsub.f32 %v2907, %v2942
    %v2951 = vsub.f32 %v2908, %v2943
    %v2952 = vsub.f32 %v2909, %v2944
    %v2953 = vsub.f32 %v2910, %v2945
    %v2954 = vsub.f32 %v2911, %v2946
    %v2955 = vsub.f32 %v2912, %v2947
    %v2956 = vsub.f32 %v2913, %v2948
    %v2957 = vsub.f32 %v2914, %v2949
    %v2958 = vmul.f32 %v2950, %v2950
    %v2959 = vmul.f32 %v2951, %v2951
    %v2960 = vmul.f32 %v2952, %v2952
    %v2961 = vmul.f32 %v2953, %v2953
    %v2962 = vmul.f32 %v2954, %v2954
    %v2963 = vmul.f32 %v2955, %v2955
    %v2964 = vmul.f32 %v2956, %v2956
    %v2965 = vmul.f32 %v2957, %v2957
    %v2966 = vsel %vm348, %v2958, 0.0
    %2967 = vadd.xlane.f32.xlu0 %v2966
    %v2968 = vpop.xlane.xlu0 %2967
    %v2969 = vsel %vm348, %v2959, 0.0
    %2970 = vadd.xlane.f32.xlu0 %v2969
    %v2971 = vpop.xlane.xlu0 %2970
    %v2972 = vsel %vm348, %v2960, 0.0
    %2973 = vadd.xlane.f32.xlu0 %v2972
    %v2974 = vpop.xlane.xlu0 %2973
    %v2975 = vsel %vm348, %v2961, 0.0
    %2976 = vadd.xlane.f32.xlu0 %v2975
    %v2977 = vpop.xlane.xlu0 %2976
    %v2978 = vsel %vm348, %v2962, 0.0
    %2979 = vadd.xlane.f32.xlu0 %v2978
    %v2980 = vpop.xlane.xlu0 %2979
    %v2981 = vsel %vm348, %v2963, 0.0
    %2982 = vadd.xlane.f32.xlu0 %v2981
    %v2983 = vpop.xlane.xlu0 %2982
    %v2984 = vsel %vm348, %v2964, 0.0
    %2985 = vadd.xlane.f32.xlu0 %v2984
    %v2986 = vpop.xlane.xlu0 %2985
    %v2987 = vsel %vm348, %v2965, 0.0
    %2988 = vadd.xlane.f32.xlu0 %v2987
    %v2989 = vpop.xlane.xlu0 %2988
    %v2990 = vmul.f32 %v2968, %v2941
    %v2991 = vmul.f32 %v2971, %v2941
    %v2992 = vmul.f32 %v2974, %v2941
    %v2993 = vmul.f32 %v2977, %v2941
    %v2994 = vmul.f32 %v2980, %v2941
    %v2995 = vmul.f32 %v2983, %v2941
    %v2996 = vmul.f32 %v2986, %v2941
    %v2997 = vmul.f32 %v2989, %v2941
    %v2998 = vadd.f32 %v2990, 1e-05
    %v2999 = vadd.f32 %v2991, 1e-05
    %v3000 = vadd.f32 %v2992, 1e-05
    %v3001 = vadd.f32 %v2993, 1e-05
    %v3002 = vadd.f32 %v2994, 1e-05
    %v3003 = vadd.f32 %v2995, 1e-05
    %v3004 = vadd.f32 %v2996, 1e-05
    %v3005 = vadd.f32 %v2997, 1e-05
    %v3006 = vrsqrt.pop %v2998
    %v3007 = vrsqrt.pop %v2999
    %v3008 = vrsqrt.pop %v3000
    %v3009 = vrsqrt.pop %v3001
    %v3010 = vrsqrt.pop %v3002
    %v3011 = vrsqrt.pop %v3003
    %v3012 = vrsqrt.pop %v3004
    %v3013 = vrsqrt.pop %v3005
    %v3014 = vmul.f32 %v2950, %v3006
    %v3015 = vmul.f32 %v2951, %v3007
    %v3016 = vmul.f32 %v2952, %v3008
    %v3017 = vmul.f32 %v2953, %v3009
    %v3018 = vmul.f32 %v2954, %v3010
    %v3019 = vmul.f32 %v2955, %v3011
    %v3020 = vmul.f32 %v2956, %v3012
    %v3021 = vmul.f32 %v2957, %v3013
    %v3023 = vlaneseq
    %v3024 = vshrl.u32 %v3023, 7
    %v3025 = vsub.s32 0, %v3024
    %v3026 = vrot.slane %v2915, %v3025
    %v3028 = vmul.f32 %v3014, %v3026
    %v3029 = vmul.f32 %v3015, %v3026
    %v3030 = vmul.f32 %v3016, %v3026
    %v3031 = vmul.f32 %v3017, %v3026
    %v3032 = vmul.f32 %v3018, %v3026
    %v3033 = vmul.f32 %v3019, %v3026
    %v3034 = vmul.f32 %v3020, %v3026
    %v3035 = vmul.f32 %v3021, %v3026
    %v3037 = vlaneseq
    %v3038 = vshrl.u32 %v3037, 7
    %v3039 = vsub.s32 0, %v3038
    %v3040 = vrot.slane %v2916, %v3039
    %v3042 = vadd.f32 %v3028, %v3040
    %v3043 = vadd.f32 %v3029, %v3040
    %v3044 = vadd.f32 %v3030, %v3040
    %v3045 = vadd.f32 %v3031, %v3040
    %v3046 = vadd.f32 %v3032, %v3040
    %v3047 = vadd.f32 %v3033, %v3040
    %v3048 = vadd.f32 %v3034, %v3040
    %v3049 = vadd.f32 %v3035, %v3040
    %v3050 = vld [vmem:[#allocation17] sm:$0xff]
    %v3051 = vld [vmem:[#allocation17 + $0x8] sm:$0xff]
    %v3052 = vld [vmem:[#allocation17 + $0x10] sm:$0xff]
    %v3053 = vld [vmem:[#allocation17 + $0x18] sm:$0xff]
    %v3054 = vld [vmem:[#allocation17 + $0x20] sm:$0xff]
    %v3055 = vld [vmem:[#allocation17 + $0x28] sm:$0xff]
    %v3056 = vld [vmem:[#allocation17 + $0x30] sm:$0xff]
    %v3057 = vld [vmem:[#allocation17 + $0x38] sm:$0xff]
    %v3058 = vld [vmem:[#allocation17 + $0x40] sm:$0xff]
    %v3059 = vld [vmem:[#allocation17 + $0x48] sm:$0xff]
    %v3060 = vld [vmem:[#allocation17 + $0x50] sm:$0xff]
    %v3061 = vld [vmem:[#allocation17 + $0x58] sm:$0xff]
    %v3062 = vld [vmem:[#allocation17 + $0x60] sm:$0xff]
    %v3063 = vld [vmem:[#allocation17 + $0x68] sm:$0xff]
    %v3064 = vld [vmem:[#allocation17 + $0x70] sm:$0xff]
    %v3065 = vld [vmem:[#allocation17 + $0x78] sm:$0xff]
    %v3066 = vld [vmem:[#allocation17 + $0x80] sm:$0xff]
    %v3067 = vld [vmem:[#allocation17 + $0x88] sm:$0xff]
    %v3068 = vld [vmem:[#allocation17 + $0x90] sm:$0xff]
    %v3069 = vld [vmem:[#allocation17 + $0x98] sm:$0xff]
    %v3070 = vld [vmem:[#allocation17 + $0xa0] sm:$0xff]
    %v3071 = vld [vmem:[#allocation17 + $0xa8] sm:$0xff]
    %v3072 = vld [vmem:[#allocation17 + $0xb0] sm:$0xff]
    %v3073 = vld [vmem:[#allocation17 + $0xb8] sm:$0xff]
    %v3074 = vld [vmem:[#allocation17 + $0xc0] sm:$0xff]
    %v3075 = vld [vmem:[#allocation17 + $0xc8] sm:$0xff]
    %v3076 = vld [vmem:[#allocation17 + $0xd0] sm:$0xff]
    %v3077 = vld [vmem:[#allocation17 + $0xd8] sm:$0xff]
    %v3078 = vld [vmem:[#allocation17 + $0xe0] sm:$0xff]
    %v3079 = vld [vmem:[#allocation17 + $0xe8] sm:$0xff]
    %v3080 = vld [vmem:[#allocation17 + $0xf0] sm:$0xff]
    %v3081 = vld [vmem:[#allocation17 + $0xf8] sm:$0xff]
    %v3082 = vld [vmem:[#allocation17 + $0x100] sm:$0xff]
    %v3083 = vld [vmem:[#allocation17 + $0x108] sm:$0xff]
    %v3084 = vld [vmem:[#allocation17 + $0x110] sm:$0xff]
    %v3085 = vld [vmem:[#allocation17 + $0x118] sm:$0xff]
    %v3086 = vld [vmem:[#allocation17 + $0x120] sm:$0xff]
    %v3087 = vld [vmem:[#allocation17 + $0x128] sm:$0xff]
    %v3088 = vld [vmem:[#allocation17 + $0x130] sm:$0xff]
    %v3089 = vld [vmem:[#allocation17 + $0x138] sm:$0xff]
    %v3090 = vld [vmem:[#allocation17 + $0x140] sm:$0xff]
    %v3091 = vld [vmem:[#allocation17 + $0x148] sm:$0xff]
    %v3092 = vld [vmem:[#allocation17 + $0x150] sm:$0xff]
    %v3093 = vld [vmem:[#allocation17 + $0x158] sm:$0xff]
    %v3094 = vld [vmem:[#allocation17 + $0x160] sm:$0xff]
    %v3095 = vld [vmem:[#allocation17 + $0x168] sm:$0xff]
    %v3096 = vld [vmem:[#allocation17 + $0x170] sm:$0xff]
    %v3097 = vld [vmem:[#allocation17 + $0x178] sm:$0xff]
    %v3098 = vld [vmem:[#allocation17 + $0x180] sm:$0xff]
    %v3099 = vld [vmem:[#allocation17 + $0x188] sm:$0xff]
    %v3100 = vld [vmem:[#allocation17 + $0x190] sm:$0xff]
    %v3101 = vld [vmem:[#allocation17 + $0x198] sm:$0xff]
    %v3102 = vld [vmem:[#allocation17 + $0x1a0] sm:$0xff]
    %v3103 = vld [vmem:[#allocation17 + $0x1a8] sm:$0xff]
    %v3104 = vld [vmem:[#allocation17 + $0x1b0] sm:$0xff]
    %v3105 = vld [vmem:[#allocation17 + $0x1b8] sm:$0xff]
    %v3106 = vld [vmem:[#allocation17 + $0x1c0] sm:$0xff]
    %v3107 = vld [vmem:[#allocation17 + $0x1c8] sm:$0xff]
    %v3108 = vld [vmem:[#allocation17 + $0x1d0] sm:$0xff]
    %v3109 = vld [vmem:[#allocation17 + $0x1d8] sm:$0xff]
    %v3110 = vld [vmem:[#allocation17 + $0x1e0] sm:$0xff]
    %v3111 = vld [vmem:[#allocation17 + $0x1e8] sm:$0xff]
    %v3112 = vld [vmem:[#allocation17 + $0x1f0] sm:$0xff]
    %v3113 = vld [vmem:[#allocation17 + $0x1f8] sm:$0xff]
    %v3114 = vld [vmem:[#allocation17 + $0x200] sm:$0xff]
    %v3115 = vld [vmem:[#allocation17 + $0x208] sm:$0xff]
    %v3116 = vld [vmem:[#allocation17 + $0x210] sm:$0xff]
    %v3117 = vld [vmem:[#allocation17 + $0x218] sm:$0xff]
    %v3118 = vld [vmem:[#allocation17 + $0x220] sm:$0xff]
    %v3119 = vld [vmem:[#allocation17 + $0x228] sm:$0xff]
    %v3120 = vld [vmem:[#allocation17 + $0x230] sm:$0xff]
    %v3121 = vld [vmem:[#allocation17 + $0x238] sm:$0xff]
    %v3122 = vld [vmem:[#allocation17 + $0x240] sm:$0xff]
    %v3123 = vld [vmem:[#allocation17 + $0x248] sm:$0xff]
    %v3124 = vld [vmem:[#allocation17 + $0x250] sm:$0xff]
    %v3125 = vld [vmem:[#allocation17 + $0x258] sm:$0xff]
    %v3126 = vld [vmem:[#allocation17 + $0x260] sm:$0xff]
    %v3127 = vld [vmem:[#allocation17 + $0x268] sm:$0xff]
    %v3128 = vld [vmem:[#allocation17 + $0x270] sm:$0xff]
    %v3129 = vld [vmem:[#allocation17 + $0x278] sm:$0xff]
    %v3130 = vld [vmem:[#allocation17 + $0x280] sm:$0xff]
    %v3131 = vld [vmem:[#allocation17 + $0x288] sm:$0xff]
    %v3132 = vld [vmem:[#allocation17 + $0x290] sm:$0xff]
    %v3133 = vld [vmem:[#allocation17 + $0x298] sm:$0xff]
    %v3134 = vld [vmem:[#allocation17 + $0x2a0] sm:$0xff]
    %v3135 = vld [vmem:[#allocation17 + $0x2a8] sm:$0xff]
    %v3136 = vld [vmem:[#allocation17 + $0x2b0] sm:$0xff]
    %v3137 = vld [vmem:[#allocation17 + $0x2b8] sm:$0xff]
    %v3138 = vld [vmem:[#allocation17 + $0x2c0] sm:$0xff]
    %v3139 = vld [vmem:[#allocation17 + $0x2c8] sm:$0xff]
    %v3140 = vld [vmem:[#allocation17 + $0x2d0] sm:$0xff]
    %v3141 = vld [vmem:[#allocation17 + $0x2d8] sm:$0xff]
    %v3142 = vld [vmem:[#allocation17 + $0x2e0] sm:$0xff]
    %v3143 = vld [vmem:[#allocation17 + $0x2e8] sm:$0xff]
    %v3144 = vld [vmem:[#allocation17 + $0x2f0] sm:$0xff]
    %v3145 = vld [vmem:[#allocation17 + $0x2f8] sm:$0xff]
    %v3146 = vld [vmem:[#allocation17 + $0x300] sm:$0xff]
    %v3147 = vld [vmem:[#allocation17 + $0x308] sm:$0xff]
    %v3148 = vld [vmem:[#allocation17 + $0x310] sm:$0xff]
    %v3149 = vld [vmem:[#allocation17 + $0x318] sm:$0xff]
    %v3150 = vld [vmem:[#allocation17 + $0x320] sm:$0xff]
    %v3151 = vld [vmem:[#allocation17 + $0x328] sm:$0xff]
    %v3152 = vld [vmem:[#allocation17 + $0x330] sm:$0xff]
    %v3153 = vld [vmem:[#allocation17 + $0x338] sm:$0xff]
    %v3154 = vld [vmem:[#allocation17 + $0x340] sm:$0xff]
    %v3155 = vld [vmem:[#allocation17 + $0x348] sm:$0xff]
    %v3156 = vld [vmem:[#allocation17 + $0x350] sm:$0xff]
    %v3157 = vld [vmem:[#allocation17 + $0x358] sm:$0xff]
    %v3158 = vld [vmem:[#allocation17 + $0x360] sm:$0xff]
    %v3159 = vld [vmem:[#allocation17 + $0x368] sm:$0xff]
    %v3160 = vld [vmem:[#allocation17 + $0x370] sm:$0xff]
    %v3161 = vld [vmem:[#allocation17 + $0x378] sm:$0xff]
    %v3162 = vld [vmem:[#allocation17 + $0x380] sm:$0xff]
    %v3163 = vld [vmem:[#allocation17 + $0x388] sm:$0xff]
    %v3164 = vld [vmem:[#allocation17 + $0x390] sm:$0xff]
    %v3165 = vld [vmem:[#allocation17 + $0x398] sm:$0xff]
    %v3166 = vld [vmem:[#allocation17 + $0x3a0] sm:$0xff]
    %v3167 = vld [vmem:[#allocation17 + $0x3a8] sm:$0xff]
    %v3168 = vld [vmem:[#allocation17 + $0x3b0] sm:$0xff]
    %v3169 = vld [vmem:[#allocation17 + $0x3b8] sm:$0xff]
    %v3170 = vld [vmem:[#allocation17 + $0x3c0] sm:$0xff]
    %v3171 = vld [vmem:[#allocation17 + $0x3c8] sm:$0xff]
    %v3172 = vld [vmem:[#allocation17 + $0x3d0] sm:$0xff]
    %v3173 = vld [vmem:[#allocation17 + $0x3d8] sm:$0xff]
    %v3174 = vld [vmem:[#allocation17 + $0x3e0] sm:$0xff]
    %v3175 = vld [vmem:[#allocation17 + $0x3e8] sm:$0xff]
    %v3176 = vld [vmem:[#allocation17 + $0x3f0] sm:$0xff]
    %v3177 = vld [vmem:[#allocation17 + $0x3f8] sm:$0xff]
    %v3178 = vld [vmem:[#allocation18] sm:$0xff]
    %v3179 = vld [vmem:[#allocation18 + $0x8] sm:$0xff]
    %v3182 = vlaneseq
    %v3183 = vshrl.u32 %v3182, 7
    %v3184 = vsub.s32 0, %v3183
    %v3185 = vrot.slane %v3178, %v3184
    %v3186 = vlaneseq
    %v3187 = vshrl.u32 %v3186, 7
    %v3188 = vsub.s32 1, %v3187
    %v3189 = vrot.slane %v3178, %v3188
    %v3190 = vlaneseq
    %v3191 = vshrl.u32 %v3190, 7
    %v3192 = vsub.s32 2, %v3191
    %v3193 = vrot.slane %v3178, %v3192
    %v3194 = vlaneseq
    %v3195 = vshrl.u32 %v3194, 7
    %v3196 = vsub.s32 3, %v3195
    %v3197 = vrot.slane %v3178, %v3196
    %v3198 = vlaneseq
    %v3199 = vshrl.u32 %v3198, 7
    %v3200 = vsub.s32 4, %v3199
    %v3201 = vrot.slane %v3178, %v3200
    %v3202 = vlaneseq
    %v3203 = vshrl.u32 %v3202, 7
    %v3204 = vsub.s32 5, %v3203
    %v3205 = vrot.slane %v3178, %v3204
    %v3206 = vlaneseq
    %v3207 = vshrl.u32 %v3206, 7
    %v3208 = vsub.s32 6, %v3207
    %v3209 = vrot.slane %v3178, %v3208
    %v3210 = vlaneseq
    %v3211 = vshrl.u32 %v3210, 7
    %v3212 = vsub.s32 7, %v3211
    %v3213 = vrot.slane %v3178, %v3212
    %v3214 = vlaneseq
    %v3215 = vshrl.u32 %v3214, 7
    %v3216 = vsub.s32 0, %v3215
    %v3217 = vrot.slane %v3179, %v3216
    %v3218 = vlaneseq
    %v3219 = vshrl.u32 %v3218, 7
    %v3220 = vsub.s32 1, %v3219
    %v3221 = vrot.slane %v3179, %v3220
    %v3222 = vlaneseq
    %v3223 = vshrl.u32 %v3222, 7
    %v3224 = vsub.s32 2, %v3223
    %v3225 = vrot.slane %v3179, %v3224
    %v3226 = vlaneseq
    %v3227 = vshrl.u32 %v3226, 7
    %v3228 = vsub.s32 3, %v3227
    %v3229 = vrot.slane %v3179, %v3228
    %v3230 = vlaneseq
    %v3231 = vshrl.u32 %v3230, 7
    %v3232 = vsub.s32 4, %v3231
    %v3233 = vrot.slane %v3179, %v3232
    %v3234 = vlaneseq
    %v3235 = vshrl.u32 %v3234, 7
    %v3236 = vsub.s32 5, %v3235
    %v3237 = vrot.slane %v3179, %v3236
    %v3238 = vlaneseq
    %v3239 = vshrl.u32 %v3238, 7
    %v3240 = vsub.s32 6, %v3239
    %v3241 = vrot.slane %v3179, %v3240
    %v3242 = vlaneseq
    %v3243 = vshrl.u32 %v3242, 7
    %v3244 = vsub.s32 7, %v3243
    %v3245 = vrot.slane %v3179, %v3244
    %v3263 = vsel %vm348, %v3042, 0
    %v3266 = vsel %vm348, %v3043, 0
    %v3269 = vsel %vm348, %v3044, 0
    %v3272 = vsel %vm348, %v3045, 0
    %v3275 = vsel %vm348, %v3046, 0
    %v3278 = vsel %vm348, %v3047, 0
    %v3281 = vsel %vm348, %v3048, 0
    %v3284 = vsel %vm348, %v3049, 0
    %3286 = vmatprep.subr.mxu0 %v3051
    %3287 = vmatpush1.msra.mxu0 %v3050
    %3288 = vmatprep.subr.mxu0 %v3067
    %3289 = vmatpush1.msra.mxu0 %v3066
    %3290 = vmatprep.subr.mxu0 %v3083
    %3291 = vmatpush1.msra.mxu0 %v3082
    %3292 = vmatprep.subr.mxu0 %v3099
    %3293 = vmatpush1.msra.mxu0 %v3098
    %3294 = vmatprep.subr.mxu0 %v3115
    %3295 = vmatpush1.msra.mxu0 %v3114
    %3296 = vmatprep.subr.mxu0 %v3131
    %3297 = vmatpush1.msra.mxu0 %v3130
    %3298 = vmatprep.subr.mxu0 %v3147
    %3299 = vmatpush1.msra.mxu0 %v3146
    %3300 = vmatprep.subr.mxu0 %v3163
    %3301 = vmatpush1.msra.mxu0 %v3162
    %3302 = vmatprep.subr.mxu0 0.0
    %3303 = vmatpush1.msra.mxu0 0.0
    %3304 = vmatprep.subr.mxu0 0.0
    %3305 = vmatpush1.msra.mxu0 0.0
    %3306 = vmatprep.subr.mxu0 0.0
    %3307 = vmatpush1.msra.mxu0 0.0
    %3308 = vmatprep.subr.mxu0 0.0
    %3309 = vmatpush1.msra.mxu0 0.0
    %3310 = vmatprep.subr.mxu0 0.0
    %3311 = vmatpush1.msra.mxu0 0.0
    %3312 = vmatprep.subr.mxu0 0.0
    %3313 = vmatpush1.msra.mxu0 0.0
    %3314 = vmatprep.subr.mxu0 0.0
    %3315 = vmatpush1.msra.mxu0 0.0
    %3316 = vmatprep.subr.mxu0 0.0
    %3317 = vmatpush1.msra.mxu0 0.0
    %3318 = vmatprep.subr.mxu0 0.0
    %3319 = vmatpush1.msra.mxu0 0.0
    %3320 = vmatprep.subr.mxu0 0.0
    %3321 = vmatpush1.msra.mxu0 0.0
    %3322 = vmatprep.subr.mxu0 0.0
    %3323 = vmatpush1.msra.mxu0 0.0
    %3324 = vmatprep.subr.mxu0 0.0
    %3325 = vmatpush1.msra.mxu0 0.0
    %3326 = vmatprep.subr.mxu0 0.0
    %3327 = vmatpush1.msra.mxu0 0.0
    %3328 = vmatprep.subr.mxu0 0.0
    %3329 = vmatpush1.msra.mxu0 0.0
    %3330 = vmatprep.subr.mxu0 0.0
    %3331 = vmatpush1.msra.mxu0 0.0
    %3332 = vmatprep.subr.mxu0 0.0
    %3333 = vmatpush1.msra.mxu0 0.0
    %3334 = vmatprep.subr.mxu0 0.0
    %3335 = vmatpush1.msra.mxu0 0.0
    %3336 = vmatprep.subr.mxu0 0.0
    %3337 = vmatpush1.msra.mxu0 0.0
    %3338 = vmatprep.subr.mxu0 0.0
    %3339 = vmatpush1.msra.mxu0 0.0
    %3340 = vmatprep.subr.mxu0 0.0
    %3341 = vmatpush1.msra.mxu0 0.0
    %3342 = vmatprep.subr.mxu0 0.0
    %3343 = vmatpush1.msra.mxu0 0.0
    %3344 = vmatprep.subr.mxu0 0.0
    %3345 = vmatpush1.msra.mxu0 0.0
    %3346 = vmatprep.subr.mxu0 0.0
    %3347 = vmatpush1.msra.mxu0 0.0
    %3348 = vmatprep.subr.mxu0 0.0
    %3349 = vmatpush1.msra.mxu0 0.0
    %3350 = vmatprep.mubr.f32.mxu0 0.0
    %3351 = vmatmul.mubr.f32.gmra.mrb[0].mxu0 %v3263
    %v3352 = vpop.f32.mrb[0].mxu0
    %v3353 = vadd.f32 %v3185, %v3352
    %v3354 = vpop.f32.mrb[0].mxu0
    %v3355 = vadd.f32 %v3189, %v3354
    %3356 = vmatprep.mubr.f32.mxu0 0.0
    %3357 = vmatmul.mubr.f32.gmra.mrb[0].mxu0 %v3266
    %v3358 = vpop.f32.mrb[0].mxu0
    %v3359 = vadd.f32 %v3185, %v3358
    %v3360 = vpop.f32.mrb[0].mxu0
    %v3361 = vadd.f32 %v3189, %v3360
    %3362 = vmatprep.mubr.f32.mxu0 0.0
    %3363 = vmatmul.mubr.f32.gmra.mrb[0].mxu0 %v3269
    %v3364 = vpop.f32.mrb[0].mxu0
    %v3365 = vadd.f32 %v3185, %v3364
    %v3366 = vpop.f32.mrb[0].mxu0
    %v3367 = vadd.f32 %v3189, %v3366
    %3368 = vmatprep.mubr.f32.mxu0 0.0
    %3369 = vmatmul.mubr.f32.gmra.mrb[0].mxu0 %v3272
    %v3370 = vpop.f32.mrb[0].mxu0
    %v3371 = vadd.f32 %v3185, %v3370
    %v3372 = vpop.f32.mrb[0].mxu0
    %v3373 = vadd.f32 %v3189, %v3372
    %3374 = vmatprep.mubr.f32.mxu0 0.0
    %3375 = vmatmul.mubr.f32.gmra.mrb[0].mxu0 %v3275
    %v3376 = vpop.f32.mrb[0].mxu0
    %v3377 = vadd.f32 %v3185, %v3376
    %v3378 = vpop.f32.mrb[0].mxu0
    %v3379 = vadd.f32 %v3189, %v3378
    %3380 = vmatprep.mubr.f32.mxu0 0.0
    %3381 = vmatmul.mubr.f32.gmra.mrb[0].mxu0 %v3278
    %v3382 = vpop.f32.mrb[0].mxu0
    %v3383 = vadd.f32 %v3185, %v3382
    %v3384 = vpop.f32.mrb[0].mxu0
    %v3385 = vadd.f32 %v3189, %v3384
    %3386 = vmatprep.mubr.f32.mxu0 0.0
    %3387 = vmatmul.mubr.f32.gmra.mrb[0].mxu0 %v3281
    %v3388 = vpop.f32.mrb[0].mxu0
    %v3389 = vadd.f32 %v3185, %v3388
    %v3390 = vpop.f32.mrb[0].mxu0
    %v3391 = vadd.f32 %v3189, %v3390
    %3392 = vmatprep.mubr.f32.mxu0 0.0
    %3393 = vmatmul.mubr.f32.gmra.mrb[0].mxu0 %v3284
    %v3394 = vpop.f32.mrb[0].mxu0
    %v3395 = vadd.f32 %v3185, %v3394
    %v3396 = vpop.f32.mrb[0].mxu0
    %v3397 = vadd.f32 %v3189, %v3396
    %3398 = vdwg.mxu0
    %3399 = vmatprep.subr.mxu0 %v3053
    %3400 = vmatpush1.msra.mxu0 %v3052
    %3401 = vmatprep.subr.mxu0 %v3069
    %3402 = vmatpush1.msra.mxu0 %v3068
    %3403 = vmatprep.subr.mxu0 %v3085
    %3404 = vmatpush1.msra.mxu0 %v3084
    %3405 = vmatprep.subr.mxu0 %v3101
    %3406 = vmatpush1.msra.mxu0 %v3100
    %3407 = vmatprep.subr.mxu0 %v3117
    %3408 = vmatpush1.msra.mxu0 %v3116
    %3409 = vmatprep.subr.mxu0 %v3133
    %3410 = vmatpush1.msra.mxu0 %v3132
    %3411 = vmatprep.subr.mxu0 %v3149
    %3412 = vmatpush1.msra.mxu0 %v3148
    %3413 = vmatprep.subr.mxu0 %v3165
    %3414 = vmatpush1.msra.mxu0 %v3164
    %3415 = vmatprep.subr.mxu0 0.0
    %3416 = vmatpush1.msra.mxu0 0.0
    %3417 = vmatprep.subr.mxu0 0.0
    %3418 = vmatpush1.msra.mxu0 0.0
    %3419 = vmatprep.subr.mxu0 0.0
    %3420 = vmatpush1.msra.mxu0 0.0
    %3421 = vmatprep.subr.mxu0 0.0
    %3422 = vmatpush1.msra.mxu0 0.0
    %3423 = vmatprep.subr.mxu0 0.0
    %3424 = vmatpush1.msra.mxu0 0.0
    %3425 = vmatprep.subr.mxu0 0.0
    %3426 = vmatpush1.msra.mxu0 0.0
    %3427 = vmatprep.subr.mxu0 0.0
    %3428 = vmatpush1.msra.mxu0 0.0
    %3429 = vmatprep.subr.mxu0 0.0
    %3430 = vmatpush1.msra.mxu0 0.0
    %3431 = vmatprep.subr.mxu0 0.0
    %3432 = vmatpush1.msra.mxu0 0.0
    %3433 = vmatprep.subr.mxu0 0.0
    %3434 = vmatpush1.msra.mxu0 0.0
    %3435 = vmatprep.subr.mxu0 0.0
    %3436 = vmatpush1.msra.mxu0 0.0
    %3437 = vmatprep.subr.mxu0 0.0
    %3438 = vmatpush1.msra.mxu0 0.0
    %3439 = vmatprep.subr.mxu0 0.0
    %3440 = vmatpush1.msra.mxu0 0.0
    %3441 = vmatprep.subr.mxu0 0.0
    %3442 = vmatpush1.msra.mxu0 0.0
    %3443 = vmatprep.subr.mxu0 0.0
    %3444 = vmatpush1.msra.mxu0 0.0
    %3445 = vmatprep.subr.mxu0 0.0
    %3446 = vmatpush1.msra.mxu0 0.0
    %3447 = vmatprep.subr.mxu0 0.0
    %3448 = vmatpush1.msra.mxu0 0.0
    %3449 = vmatprep.subr.mxu0 0.0
    %3450 = vmatpush1.msra.mxu0 0.0
    %3451 = vmatprep.subr.mxu0 0.0
    %3452 = vmatpush1.msra.mxu0 0.0
    %3453 = vmatprep.subr.mxu0 0.0
    %3454 = vmatpush1.msra.mxu0 0.0
    %3455 = vmatprep.subr.mxu0 0.0
    %3456 = vmatpush1.msra.mxu0 0.0
    %3457 = vmatprep.subr.mxu0 0.0
    %3458 = vmatpush1.msra.mxu0 0.0
    %3459 = vmatprep.subr.mxu0 0.0
    %3460 = vmatpush1.msra.mxu0 0.0
    %3461 = vmatprep.subr.mxu0 0.0
    %3462 = vmatpush1.msra.mxu0 0.0
    %3463 = vmatprep.mubr.f32.mxu0 0.0
    %3464 = vmatmul.mubr.f32.gmra.mrb[0].mxu0 %v3263
    %v3465 = vpop.f32.mrb[0].mxu0
    %v3466 = vadd.f32 %v3193, %v3465
    %v3467 = vpop.f32.mrb[0].mxu0
    %v3468 = vadd.f32 %v3197, %v3467
    %3469 = vmatprep.mubr.f32.mxu0 0.0
    %3470 = vmatmul.mubr.f32.gmra.mrb[0].mxu0 %v3266
    %v3471 = vpop.f32.mrb[0].mxu0
    %v3472 = vadd.f32 %v3193, %v3471
    %v3473 = vpop.f32.mrb[0].mxu0
    %v3474 = vadd.f32 %v3197, %v3473
    %3475 = vmatprep.mubr.f32.mxu0 0.0
    %3476 = vmatmul.mubr.f32.gmra.mrb[0].mxu0 %v3269
    %v3477 = vpop.f32.mrb[0].mxu0
    %v3478 = vadd.f32 %v3193, %v3477
    %v3479 = vpop.f32.mrb[0].mxu0
    %v3480 = vadd.f32 %v3197, %v3479
    %3481 = vmatprep.mubr.f32.mxu0 0.0
    %3482 = vmatmul.mubr.f32.gmra.mrb[0].mxu0 %v3272
    %v3483 = vpop.f32.mrb[0].mxu0
    %v3484 = vadd.f32 %v3193, %v3483
    %v3485 = vpop.f32.mrb[0].mxu0
    %v3486 = vadd.f32 %v3197, %v3485
    %3487 = vmatprep.mubr.f32.mxu0 0.0
    %3488 = vmatmul.mubr.f32.gmra.mrb[0].mxu0 %v3275
    %v3489 = vpop.f32.mrb[0].mxu0
    %v3490 = vadd.f32 %v3193, %v3489
    %v3491 = vpop.f32.mrb[0].mxu0
    %v3492 = vadd.f32 %v3197, %v3491
    %3493 = vmatprep.mubr.f32.mxu0 0.0
    %3494 = vmatmul.mubr.f32.gmra.mrb[0].mxu0 %v3278
    %v3495 = vpop.f32.mrb[0].mxu0
    %v3496 = vadd.f32 %v3193, %v3495
    %v3497 = vpop.f32.mrb[0].mxu0
    %v3498 = vadd.f32 %v3197, %v3497
    %3499 = vmatprep.mubr.f32.mxu0 0.0
    %3500 = vmatmul.mubr.f32.gmra.mrb[0].mxu0 %v3281
    %v3501 = vpop.f32.mrb[0].mxu0
    %v3502 = vadd.f32 %v3193, %v3501
    %v3503 = vpop.f32.mrb[0].mxu0
    %v3504 = vadd.f32 %v3197, %v3503
    %3505 = vmatprep.mubr.f32.mxu0 0.0
    %3506 = vmatmul.mubr.f32.gmra.mrb[0].mxu0 %v3284
    %v3507 = vpop.f32.mrb[0].mxu0
    %v3508 = vadd.f32 %v3193, %v3507
    %v3509 = vpop.f32.mrb[0].mxu0
    %v3510 = vadd.f32 %v3197, %v3509
    %3511 = vdwg.mxu0
    %3512 = vmatprep.subr.mxu0 %v3055
    %3513 = vmatpush1.msra.mxu0 %v3054
    %3514 = vmatprep.subr.mxu0 %v3071
    %3515 = vmatpush1.msra.mxu0 %v3070
    %3516 = vmatprep.subr.mxu0 %v3087
    %3517 = vmatpush1.msra.mxu0 %v3086
    %3518 = vmatprep.subr.mxu0 %v3103
    %3519 = vmatpush1.msra.mxu0 %v3102
    %3520 = vmatprep.subr.mxu0 %v3119
    %3521 = vmatpush1.msra.mxu0 %v3118
    %3522 = vmatprep.subr.mxu0 %v3135
    %3523 = vmatpush1.msra.mxu0 %v3134
    %3524 = vmatprep.subr.mxu0 %v3151
    %3525 = vmatpush1.msra.mxu0 %v3150
    %3526 = vmatprep.subr.mxu0 %v3167
    %3527 = vmatpush1.msra.mxu0 %v3166
    %3528 = vmatprep.subr.mxu0 0.0
    %3529 = vmatpush1.msra.mxu0 0.0
    %3530 = vmatprep.subr.mxu0 0.0
    %3531 = vmatpush1.msra.mxu0 0.0
    %3532 = vmatprep.subr.mxu0 0.0
    %3533 = vmatpush1.msra.mxu0 0.0
    %3534 = vmatprep.subr.mxu0 0.0
    %3535 = vmatpush1.msra.mxu0 0.0
    %3536 = vmatprep.subr.mxu0 0.0
    %3537 = vmatpush1.msra.mxu0 0.0
    %3538 = vmatprep.subr.mxu0 0.0
    %3539 = vmatpush1.msra.mxu0 0.0
    %3540 = vmatprep.subr.mxu0 0.0
    %3541 = vmatpush1.msra.mxu0 0.0
    %3542 = vmatprep.subr.mxu0 0.0
    %3543 = vmatpush1.msra.mxu0 0.0
    %3544 = vmatprep.subr.mxu0 0.0
    %3545 = vmatpush1.msra.mxu0 0.0
    %3546 = vmatprep.subr.mxu0 0.0
    %3547 = vmatpush1.msra.mxu0 0.0
    %3548 = vmatprep.subr.mxu0 0.0
    %3549 = vmatpush1.msra.mxu0 0.0
    %3550 = vmatprep.subr.mxu0 0.0
    %3551 = vmatpush1.msra.mxu0 0.0
    %3552 = vmatprep.subr.mxu0 0.0
    %3553 = vmatpush1.msra.mxu0 0.0
    %3554 = vmatprep.subr.mxu0 0.0
    %3555 = vmatpush1.msra.mxu0 0.0
    %3556 = vmatprep.subr.mxu0 0.0
    %3557 = vmatpush1.msra.mxu0 0.0
    %3558 = vmatprep.subr.mxu0 0.0
    %3559 = vmatpush1.msra.mxu0 0.0
    %3560 = vmatprep.subr.mxu0 0.0
    %3561 = vmatpush1.msra.mxu0 0.0
    %3562 = vmatprep.subr.mxu0 0.0
    %3563 = vmatpush1.msra.mxu0 0.0
    %3564 = vmatprep.subr.mxu0 0.0
    %3565 = vmatpush1.msra.mxu0 0.0
    %3566 = vmatprep.subr.mxu0 0.0
    %3567 = vmatpush1.msra.mxu0 0.0
    %3568 = vmatprep.subr.mxu0 0.0
    %3569 = vmatpush1.msra.mxu0 0.0
    %3570 = vmatprep.subr.mxu0 0.0
    %3571 = vmatpush1.msra.mxu0 0.0
    %3572 = vmatprep.subr.mxu0 0.0
    %3573 = vmatpush1.msra.mxu0 0.0
    %3574 = vmatprep.subr.mxu0 0.0
    %3575 = vmatpush1.msra.mxu0 0.0
    %3576 = vmatprep.mubr.f32.mxu0 0.0
    %3577 = vmatmul.mubr.f32.gmra.mrb[0].mxu0 %v3263
    %v3578 = vpop.f32.mrb[0].mxu0
    %v3579 = vadd.f32 %v3201, %v3578
    %v3580 = vpop.f32.mrb[0].mxu0
    %v3581 = vadd.f32 %v3205, %v3580
    %3582 = vmatprep.mubr.f32.mxu0 0.0
    %3583 = vmatmul.mubr.f32.gmra.mrb[0].mxu0 %v3266
    %v3584 = vpop.f32.mrb[0].mxu0
    %v3585 = vadd.f32 %v3201, %v3584
    %v3586 = vpop.f32.mrb[0].mxu0
    %v3587 = vadd.f32 %v3205, %v3586
    %3588 = vmatprep.mubr.f32.mxu0 0.0
    %3589 = vmatmul.mubr.f32.gmra.mrb[0].mxu0 %v3269
    %v3590 = vpop.f32.mrb[0].mxu0
    %v3591 = vadd.f32 %v3201, %v3590
    %v3592 = vpop.f32.mrb[0].mxu0
    %v3593 = vadd.f32 %v3205, %v3592
    %3594 = vmatprep.mubr.f32.mxu0 0.0
    %3595 = vmatmul.mubr.f32.gmra.mrb[0].mxu0 %v3272
    %v3596 = vpop.f32.mrb[0].mxu0
    %v3597 = vadd.f32 %v3201, %v3596
    %v3598 = vpop.f32.mrb[0].mxu0
    %v3599 = vadd.f32 %v3205, %v3598
    %3600 = vmatprep.mubr.f32.mxu0 0.0
    %3601 = vmatmul.mubr.f32.gmra.mrb[0].mxu0 %v3275
    %v3602 = vpop.f32.mrb[0].mxu0
    %v3603 = vadd.f32 %v3201, %v3602
    %v3604 = vpop.f32.mrb[0].mxu0
    %v3605 = vadd.f32 %v3205, %v3604
    %3606 = vmatprep.mubr.f32.mxu0 0.0
    %3607 = vmatmul.mubr.f32.gmra.mrb[0].mxu0 %v3278
    %v3608 = vpop.f32.mrb[0].mxu0
    %v3609 = vadd.f32 %v3201, %v3608
    %v3610 = vpop.f32.mrb[0].mxu0
    %v3611 = vadd.f32 %v3205, %v3610
    %3612 = vmatprep.mubr.f32.mxu0 0.0
    %3613 = vmatmul.mubr.f32.gmra.mrb[0].mxu0 %v3281
    %v3614 = vpop.f32.mrb[0].mxu0
    %v3615 = vadd.f32 %v3201, %v3614
    %v3616 = vpop.f32.mrb[0].mxu0
    %v3617 = vadd.f32 %v3205, %v3616
    %3618 = vmatprep.mubr.f32.mxu0 0.0
    %3619 = vmatmul.mubr.f32.gmra.mrb[0].mxu0 %v3284
    %v3620 = vpop.f32.mrb[0].mxu0
    %v3621 = vadd.f32 %v3201, %v3620
    %v3622 = vpop.f32.mrb[0].mxu0
    %v3623 = vadd.f32 %v3205, %v3622
    %3624 = vdwg.mxu0
    %3625 = vmatprep.subr.mxu0 %v3057
    %3626 = vmatpush1.msra.mxu0 %v3056
    %3627 = vmatprep.subr.mxu0 %v3073
    %3628 = vmatpush1.msra.mxu0 %v3072
    %3629 = vmatprep.subr.mxu0 %v3089
    %3630 = vmatpush1.msra.mxu0 %v3088
    %3631 = vmatprep.subr.mxu0 %v3105
    %3632 = vmatpush1.msra.mxu0 %v3104
    %3633 = vmatprep.subr.mxu0 %v3121
    %3634 = vmatpush1.msra.mxu0 %v3120
    %3635 = vmatprep.subr.mxu0 %v3137
    %3636 = vmatpush1.msra.mxu0 %v3136
    %3637 = vmatprep.subr.mxu0 %v3153
    %3638 = vmatpush1.msra.mxu0 %v3152
    %3639 = vmatprep.subr.mxu0 %v3169
    %3640 = vmatpush1.msra.mxu0 %v3168
    %3641 = vmatprep.subr.mxu0 0.0
    %3642 = vmatpush1.msra.mxu0 0.0
    %3643 = vmatprep.subr.mxu0 0.0
    %3644 = vmatpush1.msra.mxu0 0.0
    %3645 = vmatprep.subr.mxu0 0.0
    %3646 = vmatpush1.msra.mxu0 0.0
    %3647 = vmatprep.subr.mxu0 0.0
    %3648 = vmatpush1.msra.mxu0 0.0
    %3649 = vmatprep.subr.mxu0 0.0
    %3650 = vmatpush1.msra.mxu0 0.0
    %3651 = vmatprep.subr.mxu0 0.0
    %3652 = vmatpush1.msra.mxu0 0.0
    %3653 = vmatprep.subr.mxu0 0.0
    %3654 = vmatpush1.msra.mxu0 0.0
    %3655 = vmatprep.subr.mxu0 0.0
    %3656 = vmatpush1.msra.mxu0 0.0
    %3657 = vmatprep.subr.mxu0 0.0
    %3658 = vmatpush1.msra.mxu0 0.0
    %3659 = vmatprep.subr.mxu0 0.0
    %3660 = vmatpush1.msra.mxu0 0.0
    %3661 = vmatprep.subr.mxu0 0.0
    %3662 = vmatpush1.msra.mxu0 0.0
    %3663 = vmatprep.subr.mxu0 0.0
    %3664 = vmatpush1.msra.mxu0 0.0
    %3665 = vmatprep.subr.mxu0 0.0
    %3666 = vmatpush1.msra.mxu0 0.0
    %3667 = vmatprep.subr.mxu0 0.0
    %3668 = vmatpush1.msra.mxu0 0.0
    %3669 = vmatprep.subr.mxu0 0.0
    %3670 = vmatpush1.msra.mxu0 0.0
    %3671 = vmatprep.subr.mxu0 0.0
    %3672 = vmatpush1.msra.mxu0 0.0
    %3673 = vmatprep.subr.mxu0 0.0
    %3674 = vmatpush1.msra.mxu0 0.0
    %3675 = vmatprep.subr.mxu0 0.0
    %3676 = vmatpush1.msra.mxu0 0.0
    %3677 = vmatprep.subr.mxu0 0.0
    %3678 = vmatpush1.msra.mxu0 0.0
    %3679 = vmatprep.subr.mxu0 0.0
    %3680 = vmatpush1.msra.mxu0 0.0
    %3681 = vmatprep.subr.mxu0 0.0
    %3682 = vmatpush1.msra.mxu0 0.0
    %3683 = vmatprep.subr.mxu0 0.0
    %3684 = vmatpush1.msra.mxu0 0.0
    %3685 = vmatprep.subr.mxu0 0.0
    %3686 = vmatpush1.msra.mxu0 0.0
    %3687 = vmatprep.subr.mxu0 0.0
    %3688 = vmatpush1.msra.mxu0 0.0
    %3689 = vmatprep.mubr.f32.mxu0 0.0
    %3690 = vmatmul.mubr.f32.gmra.mrb[0].mxu0 %v3263
    %v3691 = vpop.f32.mrb[0].mxu0
    %v3692 = vadd.f32 %v3209, %v3691
    %v3693 = vpop.f32.mrb[0].mxu0
    %v3694 = vadd.f32 %v3213, %v3693
    %3695 = vmatprep.mubr.f32.mxu0 0.0
    %3696 = vmatmul.mubr.f32.gmra.mrb[0].mxu0 %v3266
    %v3697 = vpop.f32.mrb[0].mxu0
    %v3698 = vadd.f32 %v3209, %v3697
    %v3699 = vpop.f32.mrb[0].mxu0
    %v3700 = vadd.f32 %v3213, %v3699
    %3701 = vmatprep.mubr.f32.mxu0 0.0
    %3702 = vmatmul.mubr.f32.gmra.mrb[0].mxu0 %v3269
    %v3703 = vpop.f32.mrb[0].mxu0
    %v3704 = vadd.f32 %v3209, %v3703
    %v3705 = vpop.f32.mrb[0].mxu0
    %v3706 = vadd.f32 %v3213, %v3705
    %3707 = vmatprep.mubr.f32.mxu0 0.0
    %3708 = vmatmul.mubr.f32.gmra.mrb[0].mxu0 %v3272
    %v3709 = vpop.f32.mrb[0].mxu0
    %v3710 = vadd.f32 %v3209, %v3709
    %v3711 = vpop.f32.mrb[0].mxu0
    %v3712 = vadd.f32 %v3213, %v3711
    %3713 = vmatprep.mubr.f32.mxu0 0.0
    %3714 = vmatmul.mubr.f32.gmra.mrb[0].mxu0 %v3275
    %v3715 = vpop.f32.mrb[0].mxu0
    %v3716 = vadd.f32 %v3209, %v3715
    %v3717 = vpop.f32.mrb[0].mxu0
    %v3718 = vadd.f32 %v3213, %v3717
    %3719 = vmatprep.mubr.f32.mxu0 0.0
    %3720 = vmatmul.mubr.f32.gmra.mrb[0].mxu0 %v3278
    %v3721 = vpop.f32.mrb[0].mxu0
    %v3722 = vadd.f32 %v3209, %v3721
    %v3723 = vpop.f32.mrb[0].mxu0
    %v3724 = vadd.f32 %v3213, %v3723
    %3725 = vmatprep.mubr.f32.mxu0 0.0
    %3726 = vmatmul.mubr.f32.gmra.mrb[0].mxu0 %v3281
    %v3727 = vpop.f32.mrb[0].mxu0
    %v3728 = vadd.f32 %v3209, %v3727
    %v3729 = vpop.f32.mrb[0].mxu0
    %v3730 = vadd.f32 %v3213, %v3729
    %3731 = vmatprep.mubr.f32.mxu0 0.0
    %3732 = vmatmul.mubr.f32.gmra.mrb[0].mxu0 %v3284
    %v3733 = vpop.f32.mrb[0].mxu0
    %v3734 = vadd.f32 %v3209, %v3733
    %v3735 = vpop.f32.mrb[0].mxu0
    %v3736 = vadd.f32 %v3213, %v3735
    %3737 = vdwg.mxu0
    %3738 = vmatprep.subr.mxu0 %v3059
    %3739 = vmatpush1.msra.mxu0 %v3058
    %3740 = vmatprep.subr.mxu0 %v3075
    %3741 = vmatpush1.msra.mxu0 %v3074
    %3742 = vmatprep.subr.mxu0 %v3091
    %3743 = vmatpush1.msra.mxu0 %v3090
    %3744 = vmatprep.subr.mxu0 %v3107
    %3745 = vmatpush1.msra.mxu0 %v3106
    %3746 = vmatprep.subr.mxu0 %v3123
    %3747 = vmatpush1.msra.mxu0 %v3122
    %3748 = vmatprep.subr.mxu0 %v3139
    %3749 = vmatpush1.msra.mxu0 %v3138
    %3750 = vmatprep.subr.mxu0 %v3155
    %3751 = vmatpush1.msra.mxu0 %v3154
    %3752 = vmatprep.subr.mxu0 %v3171
    %3753 = vmatpush1.msra.mxu0 %v3170
    %3754 = vmatprep.subr.mxu0 0.0
    %3755 = vmatpush1.msra.mxu0 0.0
    %3756 = vmatprep.subr.mxu0 0.0
    %3757 = vmatpush1.msra.mxu0 0.0
    %3758 = vmatprep.subr.mxu0 0.0
    %3759 = vmatpush1.msra.mxu0 0.0
    %3760 = vmatprep.subr.mxu0 0.0
    %3761 = vmatpush1.msra.mxu0 0.0
    %3762 = vmatprep.subr.mxu0 0.0
    %3763 = vmatpush1.msra.mxu0 0.0
    %3764 = vmatprep.subr.mxu0 0.0
    %3765 = vmatpush1.msra.mxu0 0.0
    %3766 = vmatprep.subr.mxu0 0.0
    %3767 = vmatpush1.msra.mxu0 0.0
    %3768 = vmatprep.subr.mxu0 0.0
    %3769 = vmatpush1.msra.mxu0 0.0
    %3770 = vmatprep.subr.mxu0 0.0
    %3771 = vmatpush1.msra.mxu0 0.0
    %3772 = vmatprep.subr.mxu0 0.0
    %3773 = vmatpush1.msra.mxu0 0.0
    %3774 = vmatprep.subr.mxu0 0.0
    %3775 = vmatpush1.msra.mxu0 0.0
    %3776 = vmatprep.subr.mxu0 0.0
    %3777 = vmatpush1.msra.mxu0 0.0
    %3778 = vmatprep.subr.mxu0 0.0
    %3779 = vmatpush1.msra.mxu0 0.0
    %3780 = vmatprep.subr.mxu0 0.0
    %3781 = vmatpush1.msra.mxu0 0.0
    %3782 = vmatprep.subr.mxu0 0.0
    %3783 = vmatpush1.msra.mxu0 0.0
    %3784 = vmatprep.subr.mxu0 0.0
    %3785 = vmatpush1.msra.mxu0 0.0
    %3786 = vmatprep.subr.mxu0 0.0
    %3787 = vmatpush1.msra.mxu0 0.0
    %3788 = vmatprep.subr.mxu0 0.0
    %3789 = vmatpush1.msra.mxu0 0.0
    %3790 = vmatprep.subr.mxu0 0.0
    %3791 = vmatpush1.msra.mxu0 0.0
    %3792 = vmatprep.subr.mxu0 0.0
    %3793 = vmatpush1.msra.mxu0 0.0
    %3794 = vmatprep.subr.mxu0 0.0
    %3795 = vmatpush1.msra.mxu0 0.0
    %3796 = vmatprep.subr.mxu0 0.0
    %3797 = vmatpush1.msra.mxu0 0.0
    %3798 = vmatprep.subr.mxu0 0.0
    %3799 = vmatpush1.msra.mxu0 0.0
    %3800 = vmatprep.subr.mxu0 0.0
    %3801 = vmatpush1.msra.mxu0 0.0
    %3802 = vmatprep.mubr.f32.mxu0 0.0
    %3803 = vmatmul.mubr.f32.gmra.mrb[0].mxu0 %v3263
    %v3804 = vpop.f32.mrb[0].mxu0
    %v3805 = vadd.f32 %v3217, %v3804
    %v3806 = vpop.f32.mrb[0].mxu0
    %v3807 = vadd.f32 %v3221, %v3806
    %3808 = vmatprep.mubr.f32.mxu0 0.0
    %3809 = vmatmul.mubr.f32.gmra.mrb[0].mxu0 %v3266
    %v3810 = vpop.f32.mrb[0].mxu0
    %v3811 = vadd.f32 %v3217, %v3810
    %v3812 = vpop.f32.mrb[0].mxu0
    %v3813 = vadd.f32 %v3221, %v3812
    %3814 = vmatprep.mubr.f32.mxu0 0.0
    %3815 = vmatmul.mubr.f32.gmra.mrb[0].mxu0 %v3269
    %v3816 = vpop.f32.mrb[0].mxu0
    %v3817 = vadd.f32 %v3217, %v3816
    %v3818 = vpop.f32.mrb[0].mxu0
    %v3819 = vadd.f32 %v3221, %v3818
    %3820 = vmatprep.mubr.f32.mxu0 0.0
    %3821 = vmatmul.mubr.f32.gmra.mrb[0].mxu0 %v3272
    %v3822 = vpop.f32.mrb[0].mxu0
    %v3823 = vadd.f32 %v3217, %v3822
    %v3824 = vpop.f32.mrb[0].mxu0
    %v3825 = vadd.f32 %v3221, %v3824
    %3826 = vmatprep.mubr.f32.mxu0 0.0
    %3827 = vmatmul.mubr.f32.gmra.mrb[0].mxu0 %v3275
    %v3828 = vpop.f32.mrb[0].mxu0
    %v3829 = vadd.f32 %v3217, %v3828
    %v3830 = vpop.f32.mrb[0].mxu0
    %v3831 = vadd.f32 %v3221, %v3830
    %3832 = vmatprep.mubr.f32.mxu0 0.0
    %3833 = vmatmul.mubr.f32.gmra.mrb[0].mxu0 %v3278
    %v3834 = vpop.f32.mrb[0].mxu0
    %v3835 = vadd.f32 %v3217, %v3834
    %v3836 = vpop.f32.mrb[0].mxu0
    %v3837 = vadd.f32 %v3221, %v3836
    %3838 = vmatprep.mubr.f32.mxu0 0.0
    %3839 = vmatmul.mubr.f32.gmra.mrb[0].mxu0 %v3281
    %v3840 = vpop.f32.mrb[0].mxu0
    %v3841 = vadd.f32 %v3217, %v3840
    %v3842 = vpop.f32.mrb[0].mxu0
    %v3843 = vadd.f32 %v3221, %v3842
    %3844 = vmatprep.mubr.f32.mxu0 0.0
    %3845 = vmatmul.mubr.f32.gmra.mrb[0].mxu0 %v3284
    %v3846 = vpop.f32.mrb[0].mxu0
    %v3847 = vadd.f32 %v3217, %v3846
    %v3848 = vpop.f32.mrb[0].mxu0
    %v3849 = vadd.f32 %v3221, %v3848
    %3850 = vdwg.mxu0
    %3851 = vmatprep.subr.mxu0 %v3061
    %3852 = vmatpush1.msra.mxu0 %v3060
    %3853 = vmatprep.subr.mxu0 %v3077
    %3854 = vmatpush1.msra.mxu0 %v3076
    %3855 = vmatprep.subr.mxu0 %v3093
    %3856 = vmatpush1.msra.mxu0 %v3092
    %3857 = vmatprep.subr.mxu0 %v3109
    %3858 = vmatpush1.msra.mxu0 %v3108
    %3859 = vmatprep.subr.mxu0 %v3125
    %3860 = vmatpush1.msra.mxu0 %v3124
    %3861 = vmatprep.subr.mxu0 %v3141
    %3862 = vmatpush1.msra.mxu0 %v3140
    %3863 = vmatprep.subr.mxu0 %v3157
    %3864 = vmatpush1.msra.mxu0 %v3156
    %3865 = vmatprep.subr.mxu0 %v3173
    %3866 = vmatpush1.msra.mxu0 %v3172
    %3867 = vmatprep.subr.mxu0 0.0
    %3868 = vmatpush1.msra.mxu0 0.0
    %3869 = vmatprep.subr.mxu0 0.0
    %3870 = vmatpush1.msra.mxu0 0.0
    %3871 = vmatprep.subr.mxu0 0.0
    %3872 = vmatpush1.msra.mxu0 0.0
    %3873 = vmatprep.subr.mxu0 0.0
    %3874 = vmatpush1.msra.mxu0 0.0
    %3875 = vmatprep.subr.mxu0 0.0
    %3876 = vmatpush1.msra.mxu0 0.0
    %3877 = vmatprep.subr.mxu0 0.0
    %3878 = vmatpush1.msra.mxu0 0.0
    %3879 = vmatprep.subr.mxu0 0.0
    %3880 = vmatpush1.msra.mxu0 0.0
    %3881 = vmatprep.subr.mxu0 0.0
    %3882 = vmatpush1.msra.mxu0 0.0
    %3883 = vmatprep.subr.mxu0 0.0
    %3884 = vmatpush1.msra.mxu0 0.0
    %3885 = vmatprep.subr.mxu0 0.0
    %3886 = vmatpush1.msra.mxu0 0.0
    %3887 = vmatprep.subr.mxu0 0.0
    %3888 = vmatpush1.msra.mxu0 0.0
    %3889 = vmatprep.subr.mxu0 0.0
    %3890 = vmatpush1.msra.mxu0 0.0
    %3891 = vmatprep.subr.mxu0 0.0
    %3892 = vmatpush1.msra.mxu0 0.0
    %3893 = vmatprep.subr.mxu0 0.0
    %3894 = vmatpush1.msra.mxu0 0.0
    %3895 = vmatprep.subr.mxu0 0.0
    %3896 = vmatpush1.msra.mxu0 0.0
    %3897 = vmatprep.subr.mxu0 0.0
    %3898 = vmatpush1.msra.mxu0 0.0
    %3899 = vmatprep.subr.mxu0 0.0
    %3900 = vmatpush1.msra.mxu0 0.0
    %3901 = vmatprep.subr.mxu0 0.0
    %3902 = vmatpush1.msra.mxu0 0.0
    %3903 = vmatprep.subr.mxu0 0.0
    %3904 = vmatpush1.msra.mxu0 0.0
    %3905 = vmatprep.subr.mxu0 0.0
    %3906 = vmatpush1.msra.mxu0 0.0
    %3907 = vmatprep.subr.mxu0 0.0
    %3908 = vmatpush1.msra.mxu0 0.0
    %3909 = vmatprep.subr.mxu0 0.0
    %3910 = vmatpush1.msra.mxu0 0.0
    %3911 = vmatprep.subr.mxu0 0.0
    %3912 = vmatpush1.msra.mxu0 0.0
    %3913 = vmatprep.subr.mxu0 0.0
    %3914 = vmatpush1.msra.mxu0 0.0
    %3915 = vmatprep.mubr.f32.mxu0 0.0
    %3916 = vmatmul.mubr.f32.gmra.mrb[0].mxu0 %v3263
    %v3917 = vpop.f32.mrb[0].mxu0
    %v3918 = vadd.f32 %v3225, %v3917
    %v3919 = vpop.f32.mrb[0].mxu0
    %v3920 = vadd.f32 %v3229, %v3919
    %3921 = vmatprep.mubr.f32.mxu0 0.0
    %3922 = vmatmul.mubr.f32.gmra.mrb[0].mxu0 %v3266
    %v3923 = vpop.f32.mrb[0].mxu0
    %v3924 = vadd.f32 %v3225, %v3923
    %v3925 = vpop.f32.mrb[0].mxu0
    %v3926 = vadd.f32 %v3229, %v3925
    %3927 = vmatprep.mubr.f32.mxu0 0.0
    %3928 = vmatmul.mubr.f32.gmra.mrb[0].mxu0 %v3269
    %v3929 = vpop.f32.mrb[0].mxu0
    %v3930 = vadd.f32 %v3225, %v3929
    %v3931 = vpop.f32.mrb[0].mxu0
    %v3932 = vadd.f32 %v3229, %v3931
    %3933 = vmatprep.mubr.f32.mxu0 0.0
    %3934 = vmatmul.mubr.f32.gmra.mrb[0].mxu0 %v3272
    %v3935 = vpop.f32.mrb[0].mxu0
    %v3936 = vadd.f32 %v3225, %v3935
    %v3937 = vpop.f32.mrb[0].mxu0
    %v3938 = vadd.f32 %v3229, %v3937
    %3939 = vmatprep.mubr.f32.mxu0 0.0
    %3940 = vmatmul.mubr.f32.gmra.mrb[0].mxu0 %v3275
    %v3941 = vpop.f32.mrb[0].mxu0
    %v3942 = vadd.f32 %v3225, %v3941
    %v3943 = vpop.f32.mrb[0].mxu0
    %v3944 = vadd.f32 %v3229, %v3943
    %3945 = vmatprep.mubr.f32.mxu0 0.0
    %3946 = vmatmul.mubr.f32.gmra.mrb[0].mxu0 %v3278
    %v3947 = vpop.f32.mrb[0].mxu0
    %v3948 = vadd.f32 %v3225, %v3947
    %v3949 = vpop.f32.mrb[0].mxu0
    %v3950 = vadd.f32 %v3229, %v3949
    %3951 = vmatprep.mubr.f32.mxu0 0.0
    %3952 = vmatmul.mubr.f32.gmra.mrb[0].mxu0 %v3281
    %v3953 = vpop.f32.mrb[0].mxu0
    %v3954 = vadd.f32 %v3225, %v3953
    %v3955 = vpop.f32.mrb[0].mxu0
    %v3956 = vadd.f32 %v3229, %v3955
    %3957 = vmatprep.mubr.f32.mxu0 0.0
    %3958 = vmatmul.mubr.f32.gmra.mrb[0].mxu0 %v3284
    %v3959 = vpop.f32.mrb[0].mxu0
    %v3960 = vadd.f32 %v3225, %v3959
    %v3961 = vpop.f32.mrb[0].mxu0
    %v3962 = vadd.f32 %v3229, %v3961
    %3963 = vdwg.mxu0
    %3964 = vmatprep.subr.mxu0 %v3063
    %3965 = vmatpush1.msra.mxu0 %v3062
    %3966 = vmatprep.subr.mxu0 %v3079
    %3967 = vmatpush1.msra.mxu0 %v3078
    %3968 = vmatprep.subr.mxu0 %v3095
    %3969 = vmatpush1.msra.mxu0 %v3094
    %3970 = vmatprep.subr.mxu0 %v3111
    %3971 = vmatpush1.msra.mxu0 %v3110
    %3972 = vmatprep.subr.mxu0 %v3127
    %3973 = vmatpush1.msra.mxu0 %v3126
    %3974 = vmatprep.subr.mxu0 %v3143
    %3975 = vmatpush1.msra.mxu0 %v3142
    %3976 = vmatprep.subr.mxu0 %v3159
    %3977 = vmatpush1.msra.mxu0 %v3158
    %3978 = vmatprep.subr.mxu0 %v3175
    %3979 = vmatpush1.msra.mxu0 %v3174
    %3980 = vmatprep.subr.mxu0 0.0
    %3981 = vmatpush1.msra.mxu0 0.0
    %3982 = vmatprep.subr.mxu0 0.0
    %3983 = vmatpush1.msra.mxu0 0.0
    %3984 = vmatprep.subr.mxu0 0.0
    %3985 = vmatpush1.msra.mxu0 0.0
    %3986 = vmatprep.subr.mxu0 0.0
    %3987 = vmatpush1.msra.mxu0 0.0
    %3988 = vmatprep.subr.mxu0 0.0
    %3989 = vmatpush1.msra.mxu0 0.0
    %3990 = vmatprep.subr.mxu0 0.0
    %3991 = vmatpush1.msra.mxu0 0.0
    %3992 = vmatprep.subr.mxu0 0.0
    %3993 = vmatpush1.msra.mxu0 0.0
    %3994 = vmatprep.subr.mxu0 0.0
    %3995 = vmatpush1.msra.mxu0 0.0
    %3996 = vmatprep.subr.mxu0 0.0
    %3997 = vmatpush1.msra.mxu0 0.0
    %3998 = vmatprep.subr.mxu0 0.0
    %3999 = vmatpush1.msra.mxu0 0.0
    %4000 = vmatprep.subr.mxu0 0.0
    %4001 = vmatpush1.msra.mxu0 0.0
    %4002 = vmatprep.subr.mxu0 0.0
    %4003 = vmatpush1.msra.mxu0 0.0
    %4004 = vmatprep.subr.mxu0 0.0
    %4005 = vmatpush1.msra.mxu0 0.0
    %4006 = vmatprep.subr.mxu0 0.0
    %4007 = vmatpush1.msra.mxu0 0.0
    %4008 = vmatprep.subr.mxu0 0.0
    %4009 = vmatpush1.msra.mxu0 0.0
    %4010 = vmatprep.subr.mxu0 0.0
    %4011 = vmatpush1.msra.mxu0 0.0
    %4012 = vmatprep.subr.mxu0 0.0
    %4013 = vmatpush1.msra.mxu0 0.0
    %4014 = vmatprep.subr.mxu0 0.0
    %4015 = vmatpush1.msra.mxu0 0.0
    %4016 = vmatprep.subr.mxu0 0.0
    %4017 = vmatpush1.msra.mxu0 0.0
    %4018 = vmatprep.subr.mxu0 0.0
    %4019 = vmatpush1.msra.mxu0 0.0
    %4020 = vmatprep.subr.mxu0 0.0
    %4021 = vmatpush1.msra.mxu0 0.0
    %4022 = vmatprep.subr.mxu0 0.0
    %4023 = vmatpush1.msra.mxu0 0.0
    %4024 = vmatprep.subr.mxu0 0.0
    %4025 = vmatpush1.msra.mxu0 0.0
    %4026 = vmatprep.subr.mxu0 0.0
    %4027 = vmatpush1.msra.mxu0 0.0
    %4028 = vmatprep.mubr.f32.mxu0 0.0
    %4029 = vmatmul.mubr.f32.gmra.mrb[0].mxu0 %v3263
    %v4030 = vpop.f32.mrb[0].mxu0
    %v4031 = vadd.f32 %v3233, %v4030
    %v4032 = vpop.f32.mrb[0].mxu0
    %v4033 = vadd.f32 %v3237, %v4032
    %4034 = vmatprep.mubr.f32.mxu0 0.0
    %4035 = vmatmul.mubr.f32.gmra.mrb[0].mxu0 %v3266
    %v4036 = vpop.f32.mrb[0].mxu0
    %v4037 = vadd.f32 %v3233, %v4036
    %v4038 = vpop.f32.mrb[0].mxu0
    %v4039 = vadd.f32 %v3237, %v4038
    %4040 = vmatprep.mubr.f32.mxu0 0.0
    %4041 = vmatmul.mubr.f32.gmra.mrb[0].mxu0 %v3269
    %v4042 = vpop.f32.mrb[0].mxu0
    %v4043 = vadd.f32 %v3233, %v4042
    %v4044 = vpop.f32.mrb[0].mxu0
    %v4045 = vadd.f32 %v3237, %v4044
    %4046 = vmatprep.mubr.f32.mxu0 0.0
    %4047 = vmatmul.mubr.f32.gmra.mrb[0].mxu0 %v3272
    %v4048 = vpop.f32.mrb[0].mxu0
    %v4049 = vadd.f32 %v3233, %v4048
    %v4050 = vpop.f32.mrb[0].mxu0
    %v4051 = vadd.f32 %v3237, %v4050
    %4052 = vmatprep.mubr.f32.mxu0 0.0
    %4053 = vmatmul.mubr.f32.gmra.mrb[0].mxu0 %v3275
    %v4054 = vpop.f32.mrb[0].mxu0
    %v4055 = vadd.f32 %v3233, %v4054
    %v4056 = vpop.f32.mrb[0].mxu0
    %v4057 = vadd.f32 %v3237, %v4056
    %4058 = vmatprep.mubr.f32.mxu0 0.0
    %4059 = vmatmul.mubr.f32.gmra.mrb[0].mxu0 %v3278
    %v4060 = vpop.f32.mrb[0].mxu0
    %v4061 = vadd.f32 %v3233, %v4060
    %v4062 = vpop.f32.mrb[0].mxu0
    %v4063 = vadd.f32 %v3237, %v4062
    %4064 = vmatprep.mubr.f32.mxu0 0.0
    %4065 = vmatmul.mubr.f32.gmra.mrb[0].mxu0 %v3281
    %v4066 = vpop.f32.mrb[0].mxu0
    %v4067 = vadd.f32 %v3233, %v4066
    %v4068 = vpop.f32.mrb[0].mxu0
    %v4069 = vadd.f32 %v3237, %v4068
    %4070 = vmatprep.mubr.f32.mxu0 0.0
    %4071 = vmatmul.mubr.f32.gmra.mrb[0].mxu0 %v3284
    %v4072 = vpop.f32.mrb[0].mxu0
    %v4073 = vadd.f32 %v3233, %v4072
    %v4074 = vpop.f32.mrb[0].mxu0
    %v4075 = vadd.f32 %v3237, %v4074
    %4076 = vdwg.mxu0
    %4077 = vmatprep.subr.mxu0 %v3065
    %4078 = vmatpush1.msra.mxu0 %v3064
    %4079 = vmatprep.subr.mxu0 %v3081
    %4080 = vmatpush1.msra.mxu0 %v3080
    %4081 = vmatprep.subr.mxu0 %v3097
    %4082 = vmatpush1.msra.mxu0 %v3096
    %4083 = vmatprep.subr.mxu0 %v3113
    %4084 = vmatpush1.msra.mxu0 %v3112
    %4085 = vmatprep.subr.mxu0 %v3129
    %4086 = vmatpush1.msra.mxu0 %v3128
    %4087 = vmatprep.subr.mxu0 %v3145
    %4088 = vmatpush1.msra.mxu0 %v3144
    %4089 = vmatprep.subr.mxu0 %v3161
    %4090 = vmatpush1.msra.mxu0 %v3160
    %4091 = vmatprep.subr.mxu0 %v3177
    %4092 = vmatpush1.msra.mxu0 %v3176
    %4093 = vmatprep.subr.mxu0 0.0
    %4094 = vmatpush1.msra.mxu0 0.0
    %4095 = vmatprep.subr.mxu0 0.0
    %4096 = vmatpush1.msra.mxu0 0.0
    %4097 = vmatprep.subr.mxu0 0.0
    %4098 = vmatpush1.msra.mxu0 0.0
    %4099 = vmatprep.subr.mxu0 0.0
    %4100 = vmatpush1.msra.mxu0 0.0
    %4101 = vmatprep.subr.mxu0 0.0
    %4102 = vmatpush1.msra.mxu0 0.0
    %4103 = vmatprep.subr.mxu0 0.0
    %4104 = vmatpush1.msra.mxu0 0.0
    %4105 = vmatprep.subr.mxu0 0.0
    %4106 = vmatpush1.msra.mxu0 0.0
    %4107 = vmatprep.subr.mxu0 0.0
    %4108 = vmatpush1.msra.mxu0 0.0
    %4109 = vmatprep.subr.mxu0 0.0
    %4110 = vmatpush1.msra.mxu0 0.0
    %4111 = vmatprep.subr.mxu0 0.0
    %4112 = vmatpush1.msra.mxu0 0.0
    %4113 = vmatprep.subr.mxu0 0.0
    %4114 = vmatpush1.msra.mxu0 0.0
    %4115 = vmatprep.subr.mxu0 0.0
    %4116 = vmatpush1.msra.mxu0 0.0
    %4117 = vmatprep.subr.mxu0 0.0
    %4118 = vmatpush1.msra.mxu0 0.0
    %4119 = vmatprep.subr.mxu0 0.0
    %4120 = vmatpush1.msra.mxu0 0.0
    %4121 = vmatprep.subr.mxu0 0.0
    %4122 = vmatpush1.msra.mxu0 0.0
    %4123 = vmatprep.subr.mxu0 0.0
    %4124 = vmatpush1.msra.mxu0 0.0
    %4125 = vmatprep.subr.mxu0 0.0
    %4126 = vmatpush1.msra.mxu0 0.0
    %4127 = vmatprep.subr.mxu0 0.0
    %4128 = vmatpush1.msra.mxu0 0.0
    %4129 = vmatprep.subr.mxu0 0.0
    %4130 = vmatpush1.msra.mxu0 0.0
    %4131 = vmatprep.subr.mxu0 0.0
    %4132 = vmatpush1.msra.mxu0 0.0
    %4133 = vmatprep.subr.mxu0 0.0
    %4134 = vmatpush1.msra.mxu0 0.0
    %4135 = vmatprep.subr.mxu0 0.0
    %4136 = vmatpush1.msra.mxu0 0.0
    %4137 = vmatprep.subr.mxu0 0.0
    %4138 = vmatpush1.msra.mxu0 0.0
    %4139 = vmatprep.subr.mxu0 0.0
    %4140 = vmatpush1.msra.mxu0 0.0
    %4141 = vmatprep.mubr.f32.mxu0 0.0
    %4142 = vmatmul.mubr.f32.gmra.mrb[0].mxu0 %v3263
    %v4143 = vpop.f32.mrb[0].mxu0
    %v4144 = vadd.f32 %v3241, %v4143
    %v4145 = vpop.f32.mrb[0].mxu0
    %v4146 = vadd.f32 %v3245, %v4145
    %4147 = vmatprep.mubr.f32.mxu0 0.0
    %4148 = vmatmul.mubr.f32.gmra.mrb[0].mxu0 %v3266
    %v4149 = vpop.f32.mrb[0].mxu0
    %v4150 = vadd.f32 %v3241, %v4149
    %v4151 = vpop.f32.mrb[0].mxu0
    %v4152 = vadd.f32 %v3245, %v4151
    %4153 = vmatprep.mubr.f32.mxu0 0.0
    %4154 = vmatmul.mubr.f32.gmra.mrb[0].mxu0 %v3269
    %v4155 = vpop.f32.mrb[0].mxu0
    %v4156 = vadd.f32 %v3241, %v4155
    %v4157 = vpop.f32.mrb[0].mxu0
    %v4158 = vadd.f32 %v3245, %v4157
    %4159 = vmatprep.mubr.f32.mxu0 0.0
    %4160 = vmatmul.mubr.f32.gmra.mrb[0].mxu0 %v3272
    %v4161 = vpop.f32.mrb[0].mxu0
    %v4162 = vadd.f32 %v3241, %v4161
    %v4163 = vpop.f32.mrb[0].mxu0
    %v4164 = vadd.f32 %v3245, %v4163
    %4165 = vmatprep.mubr.f32.mxu0 0.0
    %4166 = vmatmul.mubr.f32.gmra.mrb[0].mxu0 %v3275
    %v4167 = vpop.f32.mrb[0].mxu0
    %v4168 = vadd.f32 %v3241, %v4167
    %v4169 = vpop.f32.mrb[0].mxu0
    %v4170 = vadd.f32 %v3245, %v4169
    %4171 = vmatprep.mubr.f32.mxu0 0.0
    %4172 = vmatmul.mubr.f32.gmra.mrb[0].mxu0 %v3278
    %v4173 = vpop.f32.mrb[0].mxu0
    %v4174 = vadd.f32 %v3241, %v4173
    %v4175 = vpop.f32.mrb[0].mxu0
    %v4176 = vadd.f32 %v3245, %v4175
    %4177 = vmatprep.mubr.f32.mxu0 0.0
    %4178 = vmatmul.mubr.f32.gmra.mrb[0].mxu0 %v3281
    %v4179 = vpop.f32.mrb[0].mxu0
    %v4180 = vadd.f32 %v3241, %v4179
    %v4181 = vpop.f32.mrb[0].mxu0
    %v4182 = vadd.f32 %v3245, %v4181
    %4183 = vmatprep.mubr.f32.mxu0 0.0
    %4184 = vmatmul.mubr.f32.gmra.mrb[0].mxu0 %v3284
    %v4185 = vpop.f32.mrb[0].mxu0
    %v4186 = vadd.f32 %v3241, %v4185
    %v4187 = vpop.f32.mrb[0].mxu0
    %v4188 = vadd.f32 %v3245, %v4187
    %4189 = vdwg.mxu0
    %v4190 = vmax.f32 %v3353, 0.0
    %v4191 = vmax.f32 %v3355, 0.0
    %v4192 = vmax.f32 %v3466, 0.0
    %v4193 = vmax.f32 %v3468, 0.0
    %v4194 = vmax.f32 %v3579, 0.0
    %v4195 = vmax.f32 %v3581, 0.0
    %v4196 = vmax.f32 %v3692, 0.0
    %v4197 = vmax.f32 %v3694, 0.0
    %v4198 = vmax.f32 %v3805, 0.0
    %v4199 = vmax.f32 %v3807, 0.0
    %v4200 = vmax.f32 %v3918, 0.0
    %v4201 = vmax.f32 %v3920, 0.0
    %v4202 = vmax.f32 %v4031, 0.0
    %v4203 = vmax.f32 %v4033, 0.0
    %v4204 = vmax.f32 %v4144, 0.0
    %v4205 = vmax.f32 %v4146, 0.0
    %v4206 = vmax.f32 %v3359, 0.0
    %v4207 = vmax.f32 %v3361, 0.0
    %v4208 = vmax.f32 %v3472, 0.0
    %v4209 = vmax.f32 %v3474, 0.0
    %v4210 = vmax.f32 %v3585, 0.0
    %v4211 = vmax.f32 %v3587, 0.0
    %v4212 = vmax.f32 %v3698, 0.0
    %v4213 = vmax.f32 %v3700, 0.0
    %v4214 = vmax.f32 %v3811, 0.0
    %v4215 = vmax.f32 %v3813, 0.0
    %v4216 = vmax.f32 %v3924, 0.0
    %v4217 = vmax.f32 %v3926, 0.0
    %v4218 = vmax.f32 %v4037, 0.0
    %v4219 = vmax.f32 %v4039, 0.0
    %v4220 = vmax.f32 %v4150, 0.0
    %v4221 = vmax.f32 %v4152, 0.0
    %v4222 = vmax.f32 %v3365, 0.0
    %v4223 = vmax.f32 %v3367, 0.0
    %v4224 = vmax.f32 %v3478, 0.0
    %v4225 = vmax.f32 %v3480, 0.0
    %v4226 = vmax.f32 %v3591, 0.0
    %v4227 = vmax.f32 %v3593, 0.0
    %v4228 = vmax.f32 %v3704, 0.0
    %v4229 = vmax.f32 %v3706, 0.0
    %v4230 = vmax.f32 %v3817, 0.0
    %v4231 = vmax.f32 %v3819, 0.0
    %v4232 = vmax.f32 %v3930, 0.0
    %v4233 = vmax.f32 %v3932, 0.0
    %v4234 = vmax.f32 %v4043, 0.0
    %v4235 = vmax.f32 %v4045, 0.0
    %v4236 = vmax.f32 %v4156, 0.0
    %v4237 = vmax.f32 %v4158, 0.0
    %v4238 = vmax.f32 %v3371, 0.0
    %v4239 = vmax.f32 %v3373, 0.0
    %v4240 = vmax.f32 %v3484, 0.0
    %v4241 = vmax.f32 %v3486, 0.0
    %v4242 = vmax.f32 %v3597, 0.0
    %v4243 = vmax.f32 %v3599, 0.0
    %v4244 = vmax.f32 %v3710, 0.0
    %v4245 = vmax.f32 %v3712, 0.0
    %v4246 = vmax.f32 %v3823, 0.0
    %v4247 = vmax.f32 %v3825, 0.0
    %v4248 = vmax.f32 %v3936, 0.0
    %v4249 = vmax.f32 %v3938, 0.0
    %v4250 = vmax.f32 %v4049, 0.0
    %v4251 = vmax.f32 %v4051, 0.0
    %v4252 = vmax.f32 %v4162, 0.0
    %v4253 = vmax.f32 %v4164, 0.0
    %v4254 = vmax.f32 %v3377, 0.0
    %v4255 = vmax.f32 %v3379, 0.0
    %v4256 = vmax.f32 %v3490, 0.0
    %v4257 = vmax.f32 %v3492, 0.0
    %v4258 = vmax.f32 %v3603, 0.0
    %v4259 = vmax.f32 %v3605, 0.0
    %v4260 = vmax.f32 %v3716, 0.0
    %v4261 = vmax.f32 %v3718, 0.0
    %v4262 = vmax.f32 %v3829, 0.0
    %v4263 = vmax.f32 %v3831, 0.0
    %v4264 = vmax.f32 %v3942, 0.0
    %v4265 = vmax.f32 %v3944, 0.0
    %v4266 = vmax.f32 %v4055, 0.0
    %v4267 = vmax.f32 %v4057, 0.0
    %v4268 = vmax.f32 %v4168, 0.0
    %v4269 = vmax.f32 %v4170, 0.0
    %v4270 = vmax.f32 %v3383, 0.0
    %v4271 = vmax.f32 %v3385, 0.0
    %v4272 = vmax.f32 %v3496, 0.0
    %v4273 = vmax.f32 %v3498, 0.0
    %v4274 = vmax.f32 %v3609, 0.0
    %v4275 = vmax.f32 %v3611, 0.0
    %v4276 = vmax.f32 %v3722, 0.0
    %v4277 = vmax.f32 %v3724, 0.0
    %v4278 = vmax.f32 %v3835, 0.0
    %v4279 = vmax.f32 %v3837, 0.0
    %v4280 = vmax.f32 %v3948, 0.0
    %v4281 = vmax.f32 %v3950, 0.0
    %v4282 = vmax.f32 %v4061, 0.0
    %v4283 = vmax.f32 %v4063, 0.0
    %v4284 = vmax.f32 %v4174, 0.0
    %v4285 = vmax.f32 %v4176, 0.0
    %v4286 = vmax.f32 %v3389, 0.0
    %v4287 = vmax.f32 %v3391, 0.0
    %v4288 = vmax.f32 %v3502, 0.0
    %v4289 = vmax.f32 %v3504, 0.0
    %v4290 = vmax.f32 %v3615, 0.0
    %v4291 = vmax.f32 %v3617, 0.0
    %v4292 = vmax.f32 %v3728, 0.0
    %v4293 = vmax.f32 %v3730, 0.0
    %v4294 = vmax.f32 %v3841, 0.0
    %v4295 = vmax.f32 %v3843, 0.0
    %v4296 = vmax.f32 %v3954, 0.0
    %v4297 = vmax.f32 %v3956, 0.0
    %v4298 = vmax.f32 %v4067, 0.0
    %v4299 = vmax.f32 %v4069, 0.0
    %v4300 = vmax.f32 %v4180, 0.0
    %v4301 = vmax.f32 %v4182, 0.0
    %v4302 = vmax.f32 %v3395, 0.0
    %v4303 = vmax.f32 %v3397, 0.0
    %v4304 = vmax.f32 %v3508, 0.0
    %v4305 = vmax.f32 %v3510, 0.0
    %v4306 = vmax.f32 %v3621, 0.0
    %v4307 = vmax.f32 %v3623, 0.0
    %v4308 = vmax.f32 %v3734, 0.0
    %v4309 = vmax.f32 %v3736, 0.0
    %v4310 = vmax.f32 %v3847, 0.0
    %v4311 = vmax.f32 %v3849, 0.0
    %v4312 = vmax.f32 %v3960, 0.0
    %v4313 = vmax.f32 %v3962, 0.0
    %v4314 = vmax.f32 %v4073, 0.0
    %v4315 = vmax.f32 %v4075, 0.0
    %v4316 = vmax.f32 %v4186, 0.0
    %v4317 = vmax.f32 %v4188, 0.0
    %v4318 = vld [vmem:[#allocation20] sm:$0xff]
    %v4319 = vld [vmem:[#allocation20 + $0x8] sm:$0xff]
    %v4320 = vld [vmem:[#allocation20 + $0x10] sm:$0xff]
    %v4321 = vld [vmem:[#allocation20 + $0x18] sm:$0xff]
    %v4322 = vld [vmem:[#allocation20 + $0x20] sm:$0xff]
    %v4323 = vld [vmem:[#allocation20 + $0x28] sm:$0xff]
    %v4324 = vld [vmem:[#allocation20 + $0x30] sm:$0xff]
    %v4325 = vld [vmem:[#allocation20 + $0x38] sm:$0xff]
    %v4326 = vld [vmem:[#allocation20 + $0x40] sm:$0xff]
    %v4327 = vld [vmem:[#allocation20 + $0x48] sm:$0xff]
    %v4328 = vld [vmem:[#allocation20 + $0x50] sm:$0xff]
    %v4329 = vld [vmem:[#allocation20 + $0x58] sm:$0xff]
    %v4330 = vld [vmem:[#allocation20 + $0x60] sm:$0xff]
    %v4331 = vld [vmem:[#allocation20 + $0x68] sm:$0xff]
    %v4332 = vld [vmem:[#allocation20 + $0x70] sm:$0xff]
    %v4333 = vld [vmem:[#allocation20 + $0x78] sm:$0xff]
    %v4334 = vld [vmem:[#allocation20 + $0x80] sm:$0xff]
    %v4335 = vld [vmem:[#allocation20 + $0x88] sm:$0xff]
    %v4336 = vld [vmem:[#allocation20 + $0x90] sm:$0xff]
    %v4337 = vld [vmem:[#allocation20 + $0x98] sm:$0xff]
    %v4338 = vld [vmem:[#allocation20 + $0xa0] sm:$0xff]
    %v4339 = vld [vmem:[#allocation20 + $0xa8] sm:$0xff]
    %v4340 = vld [vmem:[#allocation20 + $0xb0] sm:$0xff]
    %v4341 = vld [vmem:[#allocation20 + $0xb8] sm:$0xff]
    %v4342 = vld [vmem:[#allocation20 + $0xc0] sm:$0xff]
    %v4343 = vld [vmem:[#allocation20 + $0xc8] sm:$0xff]
    %v4344 = vld [vmem:[#allocation20 + $0xd0] sm:$0xff]
    %v4345 = vld [vmem:[#allocation20 + $0xd8] sm:$0xff]
    %v4346 = vld [vmem:[#allocation20 + $0xe0] sm:$0xff]
    %v4347 = vld [vmem:[#allocation20 + $0xe8] sm:$0xff]
    %v4348 = vld [vmem:[#allocation20 + $0xf0] sm:$0xff]
    %v4349 = vld [vmem:[#allocation20 + $0xf8] sm:$0xff]
    %v4350 = vld [vmem:[#allocation20 + $0x100] sm:$0xff]
    %v4351 = vld [vmem:[#allocation20 + $0x108] sm:$0xff]
    %v4352 = vld [vmem:[#allocation20 + $0x110] sm:$0xff]
    %v4353 = vld [vmem:[#allocation20 + $0x118] sm:$0xff]
    %v4354 = vld [vmem:[#allocation20 + $0x120] sm:$0xff]
    %v4355 = vld [vmem:[#allocation20 + $0x128] sm:$0xff]
    %v4356 = vld [vmem:[#allocation20 + $0x130] sm:$0xff]
    %v4357 = vld [vmem:[#allocation20 + $0x138] sm:$0xff]
    %v4358 = vld [vmem:[#allocation20 + $0x140] sm:$0xff]
    %v4359 = vld [vmem:[#allocation20 + $0x148] sm:$0xff]
    %v4360 = vld [vmem:[#allocation20 + $0x150] sm:$0xff]
    %v4361 = vld [vmem:[#allocation20 + $0x158] sm:$0xff]
    %v4362 = vld [vmem:[#allocation20 + $0x160] sm:$0xff]
    %v4363 = vld [vmem:[#allocation20 + $0x168] sm:$0xff]
    %v4364 = vld [vmem:[#allocation20 + $0x170] sm:$0xff]
    %v4365 = vld [vmem:[#allocation20 + $0x178] sm:$0xff]
    %v4366 = vld [vmem:[#allocation20 + $0x180] sm:$0xff]
    %v4367 = vld [vmem:[#allocation20 + $0x188] sm:$0xff]
    %v4368 = vld [vmem:[#allocation20 + $0x190] sm:$0xff]
    %v4369 = vld [vmem:[#allocation20 + $0x198] sm:$0xff]
    %v4370 = vld [vmem:[#allocation20 + $0x1a0] sm:$0xff]
    %v4371 = vld [vmem:[#allocation20 + $0x1a8] sm:$0xff]
    %v4372 = vld [vmem:[#allocation20 + $0x1b0] sm:$0xff]
    %v4373 = vld [vmem:[#allocation20 + $0x1b8] sm:$0xff]
    %v4374 = vld [vmem:[#allocation20 + $0x1c0] sm:$0xff]
    %v4375 = vld [vmem:[#allocation20 + $0x1c8] sm:$0xff]
    %v4376 = vld [vmem:[#allocation20 + $0x1d0] sm:$0xff]
    %v4377 = vld [vmem:[#allocation20 + $0x1d8] sm:$0xff]
    %v4378 = vld [vmem:[#allocation20 + $0x1e0] sm:$0xff]
    %v4379 = vld [vmem:[#allocation20 + $0x1e8] sm:$0xff]
    %v4380 = vld [vmem:[#allocation20 + $0x1f0] sm:$0xff]
    %v4381 = vld [vmem:[#allocation20 + $0x1f8] sm:$0xff]
    %v4382 = vld [vmem:[#allocation20 + $0x200] sm:$0xff]
    %v4383 = vld [vmem:[#allocation20 + $0x208] sm:$0xff]
    %v4384 = vld [vmem:[#allocation20 + $0x210] sm:$0xff]
    %v4385 = vld [vmem:[#allocation20 + $0x218] sm:$0xff]
    %v4386 = vld [vmem:[#allocation20 + $0x220] sm:$0xff]
    %v4387 = vld [vmem:[#allocation20 + $0x228] sm:$0xff]
    %v4388 = vld [vmem:[#allocation20 + $0x230] sm:$0xff]
    %v4389 = vld [vmem:[#allocation20 + $0x238] sm:$0xff]
    %v4390 = vld [vmem:[#allocation20 + $0x240] sm:$0xff]
    %v4391 = vld [vmem:[#allocation20 + $0x248] sm:$0xff]
    %v4392 = vld [vmem:[#allocation20 + $0x250] sm:$0xff]
    %v4393 = vld [vmem:[#allocation20 + $0x258] sm:$0xff]
    %v4394 = vld [vmem:[#allocation20 + $0x260] sm:$0xff]
    %v4395 = vld [vmem:[#allocation20 + $0x268] sm:$0xff]
    %v4396 = vld [vmem:[#allocation20 + $0x270] sm:$0xff]
    %v4397 = vld [vmem:[#allocation20 + $0x278] sm:$0xff]
    %v4398 = vld [vmem:[#allocation20 + $0x280] sm:$0xff]
    %v4399 = vld [vmem:[#allocation20 + $0x288] sm:$0xff]
    %v4400 = vld [vmem:[#allocation20 + $0x290] sm:$0xff]
    %v4401 = vld [vmem:[#allocation20 + $0x298] sm:$0xff]
    %v4402 = vld [vmem:[#allocation20 + $0x2a0] sm:$0xff]
    %v4403 = vld [vmem:[#allocation20 + $0x2a8] sm:$0xff]
    %v4404 = vld [vmem:[#allocation20 + $0x2b0] sm:$0xff]
    %v4405 = vld [vmem:[#allocation20 + $0x2b8] sm:$0xff]
    %v4406 = vld [vmem:[#allocation20 + $0x2c0] sm:$0xff]
    %v4407 = vld [vmem:[#allocation20 + $0x2c8] sm:$0xff]
    %v4408 = vld [vmem:[#allocation20 + $0x2d0] sm:$0xff]
    %v4409 = vld [vmem:[#allocation20 + $0x2d8] sm:$0xff]
    %v4410 = vld [vmem:[#allocation20 + $0x2e0] sm:$0xff]
    %v4411 = vld [vmem:[#allocation20 + $0x2e8] sm:$0xff]
    %v4412 = vld [vmem:[#allocation20 + $0x2f0] sm:$0xff]
    %v4413 = vld [vmem:[#allocation20 + $0x2f8] sm:$0xff]
    %v4414 = vld [vmem:[#allocation20 + $0x300] sm:$0xff]
    %v4415 = vld [vmem:[#allocation20 + $0x308] sm:$0xff]
    %v4416 = vld [vmem:[#allocation20 + $0x310] sm:$0xff]
    %v4417 = vld [vmem:[#allocation20 + $0x318] sm:$0xff]
    %v4418 = vld [vmem:[#allocation20 + $0x320] sm:$0xff]
    %v4419 = vld [vmem:[#allocation20 + $0x328] sm:$0xff]
    %v4420 = vld [vmem:[#allocation20 + $0x330] sm:$0xff]
    %v4421 = vld [vmem:[#allocation20 + $0x338] sm:$0xff]
    %v4422 = vld [vmem:[#allocation20 + $0x340] sm:$0xff]
    %v4423 = vld [vmem:[#allocation20 + $0x348] sm:$0xff]
    %v4424 = vld [vmem:[#allocation20 + $0x350] sm:$0xff]
    %v4425 = vld [vmem:[#allocation20 + $0x358] sm:$0xff]
    %v4426 = vld [vmem:[#allocation20 + $0x360] sm:$0xff]
    %v4427 = vld [vmem:[#allocation20 + $0x368] sm:$0xff]
    %v4428 = vld [vmem:[#allocation20 + $0x370] sm:$0xff]
    %v4429 = vld [vmem:[#allocation20 + $0x378] sm:$0xff]
    %v4430 = vld [vmem:[#allocation20 + $0x380] sm:$0xff]
    %v4431 = vld [vmem:[#allocation20 + $0x388] sm:$0xff]
    %v4432 = vld [vmem:[#allocation20 + $0x390] sm:$0xff]
    %v4433 = vld [vmem:[#allocation20 + $0x398] sm:$0xff]
    %v4434 = vld [vmem:[#allocation20 + $0x3a0] sm:$0xff]
    %v4435 = vld [vmem:[#allocation20 + $0x3a8] sm:$0xff]
    %v4436 = vld [vmem:[#allocation20 + $0x3b0] sm:$0xff]
    %v4437 = vld [vmem:[#allocation20 + $0x3b8] sm:$0xff]
    %v4438 = vld [vmem:[#allocation20 + $0x3c0] sm:$0xff]
    %v4439 = vld [vmem:[#allocation20 + $0x3c8] sm:$0xff]
    %v4440 = vld [vmem:[#allocation20 + $0x3d0] sm:$0xff]
    %v4441 = vld [vmem:[#allocation20 + $0x3d8] sm:$0xff]
    %v4442 = vld [vmem:[#allocation20 + $0x3e0] sm:$0xff]
    %v4443 = vld [vmem:[#allocation20 + $0x3e8] sm:$0xff]
    %v4444 = vld [vmem:[#allocation20 + $0x3f0] sm:$0xff]
    %v4445 = vld [vmem:[#allocation20 + $0x3f8] sm:$0xff]
    %v4446 = vld [vmem:[#allocation20 + $0x400] sm:$0xff]
    %v4447 = vld [vmem:[#allocation20 + $0x408] sm:$0xff]
    %v4448 = vld [vmem:[#allocation20 + $0x410] sm:$0xff]
    %v4449 = vld [vmem:[#allocation20 + $0x418] sm:$0xff]
    %v4450 = vld [vmem:[#allocation20 + $0x420] sm:$0xff]
    %v4451 = vld [vmem:[#allocation20 + $0x428] sm:$0xff]
    %v4452 = vld [vmem:[#allocation20 + $0x430] sm:$0xff]
    %v4453 = vld [vmem:[#allocation20 + $0x438] sm:$0xff]
    %v4454 = vld [vmem:[#allocation20 + $0x440] sm:$0xff]
    %v4455 = vld [vmem:[#allocation20 + $0x448] sm:$0xff]
    %v4456 = vld [vmem:[#allocation20 + $0x450] sm:$0xff]
    %v4457 = vld [vmem:[#allocation20 + $0x458] sm:$0xff]
    %v4458 = vld [vmem:[#allocation20 + $0x460] sm:$0xff]
    %v4459 = vld [vmem:[#allocation20 + $0x468] sm:$0xff]
    %v4460 = vld [vmem:[#allocation20 + $0x470] sm:$0xff]
    %v4461 = vld [vmem:[#allocation20 + $0x478] sm:$0xff]
    %v4462 = vld [vmem:[#allocation20 + $0x480] sm:$0xff]
    %v4463 = vld [vmem:[#allocation20 + $0x488] sm:$0xff]
    %v4464 = vld [vmem:[#allocation20 + $0x490] sm:$0xff]
    %v4465 = vld [vmem:[#allocation20 + $0x498] sm:$0xff]
    %v4466 = vld [vmem:[#allocation20 + $0x4a0] sm:$0xff]
    %v4467 = vld [vmem:[#allocation20 + $0x4a8] sm:$0xff]
    %v4468 = vld [vmem:[#allocation20 + $0x4b0] sm:$0xff]
    %v4469 = vld [vmem:[#allocation20 + $0x4b8] sm:$0xff]
    %v4470 = vld [vmem:[#allocation20 + $0x4c0] sm:$0xff]
    %v4471 = vld [vmem:[#allocation20 + $0x4c8] sm:$0xff]
    %v4472 = vld [vmem:[#allocation20 + $0x4d0] sm:$0xff]
    %v4473 = vld [vmem:[#allocation20 + $0x4d8] sm:$0xff]
    %v4474 = vld [vmem:[#allocation20 + $0x4e0] sm:$0xff]
    %v4475 = vld [vmem:[#allocation20 + $0x4e8] sm:$0xff]
    %v4476 = vld [vmem:[#allocation20 + $0x4f0] sm:$0xff]
    %v4477 = vld [vmem:[#allocation20 + $0x4f8] sm:$0xff]
    %v4478 = vld [vmem:[#allocation20 + $0x500] sm:$0xff]
    %v4479 = vld [vmem:[#allocation20 + $0x508] sm:$0xff]
    %v4480 = vld [vmem:[#allocation20 + $0x510] sm:$0xff]
    %v4481 = vld [vmem:[#allocation20 + $0x518] sm:$0xff]
    %v4482 = vld [vmem:[#allocation20 + $0x520] sm:$0xff]
    %v4483 = vld [vmem:[#allocation20 + $0x528] sm:$0xff]
    %v4484 = vld [vmem:[#allocation20 + $0x530] sm:$0xff]
    %v4485 = vld [vmem:[#allocation20 + $0x538] sm:$0xff]
    %v4486 = vld [vmem:[#allocation20 + $0x540] sm:$0xff]
    %v4487 = vld [vmem:[#allocation20 + $0x548] sm:$0xff]
    %v4488 = vld [vmem:[#allocation20 + $0x550] sm:$0xff]
    %v4489 = vld [vmem:[#allocation20 + $0x558] sm:$0xff]
    %v4490 = vld [vmem:[#allocation20 + $0x560] sm:$0xff]
    %v4491 = vld [vmem:[#allocation20 + $0x568] sm:$0xff]
    %v4492 = vld [vmem:[#allocation20 + $0x570] sm:$0xff]
    %v4493 = vld [vmem:[#allocation20 + $0x578] sm:$0xff]
    %v4494 = vld [vmem:[#allocation20 + $0x580] sm:$0xff]
    %v4495 = vld [vmem:[#allocation20 + $0x588] sm:$0xff]
    %v4496 = vld [vmem:[#allocation20 + $0x590] sm:$0xff]
    %v4497 = vld [vmem:[#allocation20 + $0x598] sm:$0xff]
    %v4498 = vld [vmem:[#allocation20 + $0x5a0] sm:$0xff]
    %v4499 = vld [vmem:[#allocation20 + $0x5a8] sm:$0xff]
    %v4500 = vld [vmem:[#allocation20 + $0x5b0] sm:$0xff]
    %v4501 = vld [vmem:[#allocation20 + $0x5b8] sm:$0xff]
    %v4502 = vld [vmem:[#allocation20 + $0x5c0] sm:$0xff]
    %v4503 = vld [vmem:[#allocation20 + $0x5c8] sm:$0xff]
    %v4504 = vld [vmem:[#allocation20 + $0x5d0] sm:$0xff]
    %v4505 = vld [vmem:[#allocation20 + $0x5d8] sm:$0xff]
    %v4506 = vld [vmem:[#allocation20 + $0x5e0] sm:$0xff]
    %v4507 = vld [vmem:[#allocation20 + $0x5e8] sm:$0xff]
    %v4508 = vld [vmem:[#allocation20 + $0x5f0] sm:$0xff]
    %v4509 = vld [vmem:[#allocation20 + $0x5f8] sm:$0xff]
    %v4510 = vld [vmem:[#allocation20 + $0x600] sm:$0xff]
    %v4511 = vld [vmem:[#allocation20 + $0x608] sm:$0xff]
    %v4512 = vld [vmem:[#allocation20 + $0x610] sm:$0xff]
    %v4513 = vld [vmem:[#allocation20 + $0x618] sm:$0xff]
    %v4514 = vld [vmem:[#allocation20 + $0x620] sm:$0xff]
    %v4515 = vld [vmem:[#allocation20 + $0x628] sm:$0xff]
    %v4516 = vld [vmem:[#allocation20 + $0x630] sm:$0xff]
    %v4517 = vld [vmem:[#allocation20 + $0x638] sm:$0xff]
    %v4518 = vld [vmem:[#allocation20 + $0x640] sm:$0xff]
    %v4519 = vld [vmem:[#allocation20 + $0x648] sm:$0xff]
    %v4520 = vld [vmem:[#allocation20 + $0x650] sm:$0xff]
    %v4521 = vld [vmem:[#allocation20 + $0x658] sm:$0xff]
    %v4522 = vld [vmem:[#allocation20 + $0x660] sm:$0xff]
    %v4523 = vld [vmem:[#allocation20 + $0x668] sm:$0xff]
    %v4524 = vld [vmem:[#allocation20 + $0x670] sm:$0xff]
    %v4525 = vld [vmem:[#allocation20 + $0x678] sm:$0xff]
    %v4526 = vld [vmem:[#allocation20 + $0x680] sm:$0xff]
    %v4527 = vld [vmem:[#allocation20 + $0x688] sm:$0xff]
    %v4528 = vld [vmem:[#allocation20 + $0x690] sm:$0xff]
    %v4529 = vld [vmem:[#allocation20 + $0x698] sm:$0xff]
    %v4530 = vld [vmem:[#allocation20 + $0x6a0] sm:$0xff]
    %v4531 = vld [vmem:[#allocation20 + $0x6a8] sm:$0xff]
    %v4532 = vld [vmem:[#allocation20 + $0x6b0] sm:$0xff]
    %v4533 = vld [vmem:[#allocation20 + $0x6b8] sm:$0xff]
    %v4534 = vld [vmem:[#allocation20 + $0x6c0] sm:$0xff]
    %v4535 = vld [vmem:[#allocation20 + $0x6c8] sm:$0xff]
    %v4536 = vld [vmem:[#allocation20 + $0x6d0] sm:$0xff]
    %v4537 = vld [vmem:[#allocation20 + $0x6d8] sm:$0xff]
    %v4538 = vld [vmem:[#allocation20 + $0x6e0] sm:$0xff]
    %v4539 = vld [vmem:[#allocation20 + $0x6e8] sm:$0xff]
    %v4540 = vld [vmem:[#allocation20 + $0x6f0] sm:$0xff]
    %v4541 = vld [vmem:[#allocation20 + $0x6f8] sm:$0xff]
    %v4542 = vld [vmem:[#allocation20 + $0x700] sm:$0xff]
    %v4543 = vld [vmem:[#allocation20 + $0x708] sm:$0xff]
    %v4544 = vld [vmem:[#allocation20 + $0x710] sm:$0xff]
    %v4545 = vld [vmem:[#allocation20 + $0x718] sm:$0xff]
    %v4546 = vld [vmem:[#allocation20 + $0x720] sm:$0xff]
    %v4547 = vld [vmem:[#allocation20 + $0x728] sm:$0xff]
    %v4548 = vld [vmem:[#allocation20 + $0x730] sm:$0xff]
    %v4549 = vld [vmem:[#allocation20 + $0x738] sm:$0xff]
    %v4550 = vld [vmem:[#allocation20 + $0x740] sm:$0xff]
    %v4551 = vld [vmem:[#allocation20 + $0x748] sm:$0xff]
    %v4552 = vld [vmem:[#allocation20 + $0x750] sm:$0xff]
    %v4553 = vld [vmem:[#allocation20 + $0x758] sm:$0xff]
    %v4554 = vld [vmem:[#allocation20 + $0x760] sm:$0xff]
    %v4555 = vld [vmem:[#allocation20 + $0x768] sm:$0xff]
    %v4556 = vld [vmem:[#allocation20 + $0x770] sm:$0xff]
    %v4557 = vld [vmem:[#allocation20 + $0x778] sm:$0xff]
    %v4558 = vld [vmem:[#allocation20 + $0x780] sm:$0xff]
    %v4559 = vld [vmem:[#allocation20 + $0x788] sm:$0xff]
    %v4560 = vld [vmem:[#allocation20 + $0x790] sm:$0xff]
    %v4561 = vld [vmem:[#allocation20 + $0x798] sm:$0xff]
    %v4562 = vld [vmem:[#allocation20 + $0x7a0] sm:$0xff]
    %v4563 = vld [vmem:[#allocation20 + $0x7a8] sm:$0xff]
    %v4564 = vld [vmem:[#allocation20 + $0x7b0] sm:$0xff]
    %v4565 = vld [vmem:[#allocation20 + $0x7b8] sm:$0xff]
    %v4566 = vld [vmem:[#allocation20 + $0x7c0] sm:$0xff]
    %v4567 = vld [vmem:[#allocation20 + $0x7c8] sm:$0xff]
    %v4568 = vld [vmem:[#allocation20 + $0x7d0] sm:$0xff]
    %v4569 = vld [vmem:[#allocation20 + $0x7d8] sm:$0xff]
    %v4570 = vld [vmem:[#allocation20 + $0x7e0] sm:$0xff]
    %v4571 = vld [vmem:[#allocation20 + $0x7e8] sm:$0xff]
    %v4572 = vld [vmem:[#allocation20 + $0x7f0] sm:$0xff]
    %v4573 = vld [vmem:[#allocation20 + $0x7f8] sm:$0xff]
    %v4574 = vld [vmem:[#allocation21] sm:$0x1]
    %v4576 = vlaneseq
    %v4577 = vshrl.u32 %v4576, 7
    %v4578 = vsub.s32 0, %v4577
    %v4579 = vrot.slane %v4574, %v4578
    %4581 = vmatprep.subr.mxu0 0.0
    %4582 = vmatpush1.msra.mxu0 %v4318
    %4583 = vmatprep.subr.mxu0 0.0
    %4584 = vmatpush1.msra.mxu0 %v4319
    %4585 = vmatprep.subr.mxu0 0.0
    %4586 = vmatpush1.msra.mxu0 %v4320
    %4587 = vmatprep.subr.mxu0 0.0
    %4588 = vmatpush1.msra.mxu0 %v4321
    %4589 = vmatprep.subr.mxu0 0.0
    %4590 = vmatpush1.msra.mxu0 %v4322
    %4591 = vmatprep.subr.mxu0 0.0
    %4592 = vmatpush1.msra.mxu0 %v4323
    %4593 = vmatprep.subr.mxu0 0.0
    %4594 = vmatpush1.msra.mxu0 %v4324
    %4595 = vmatprep.subr.mxu0 0.0
    %4596 = vmatpush1.msra.mxu0 %v4325
    %4597 = vmatprep.subr.mxu0 0.0
    %4598 = vmatpush1.msra.mxu0 %v4326
    %4599 = vmatprep.subr.mxu0 0.0
    %4600 = vmatpush1.msra.mxu0 %v4327
    %4601 = vmatprep.subr.mxu0 0.0
    %4602 = vmatpush1.msra.mxu0 %v4328
    %4603 = vmatprep.subr.mxu0 0.0
    %4604 = vmatpush1.msra.mxu0 %v4329
    %4605 = vmatprep.subr.mxu0 0.0
    %4606 = vmatpush1.msra.mxu0 %v4330
    %4607 = vmatprep.subr.mxu0 0.0
    %4608 = vmatpush1.msra.mxu0 %v4331
    %4609 = vmatprep.subr.mxu0 0.0
    %4610 = vmatpush1.msra.mxu0 %v4332
    %4611 = vmatprep.subr.mxu0 0.0
    %4612 = vmatpush1.msra.mxu0 %v4333
    %4613 = vmatprep.subr.mxu0 0.0
    %4614 = vmatpush1.msra.mxu0 %v4334
    %4615 = vmatprep.subr.mxu0 0.0
    %4616 = vmatpush1.msra.mxu0 %v4335
    %4617 = vmatprep.subr.mxu0 0.0
    %4618 = vmatpush1.msra.mxu0 %v4336
    %4619 = vmatprep.subr.mxu0 0.0
    %4620 = vmatpush1.msra.mxu0 %v4337
    %4621 = vmatprep.subr.mxu0 0.0
    %4622 = vmatpush1.msra.mxu0 %v4338
    %4623 = vmatprep.subr.mxu0 0.0
    %4624 = vmatpush1.msra.mxu0 %v4339
    %4625 = vmatprep.subr.mxu0 0.0
    %4626 = vmatpush1.msra.mxu0 %v4340
    %4627 = vmatprep.subr.mxu0 0.0
    %4628 = vmatpush1.msra.mxu0 %v4341
    %4629 = vmatprep.subr.mxu0 0.0
    %4630 = vmatpush1.msra.mxu0 %v4342
    %4631 = vmatprep.subr.mxu0 0.0
    %4632 = vmatpush1.msra.mxu0 %v4343
    %4633 = vmatprep.subr.mxu0 0.0
    %4634 = vmatpush1.msra.mxu0 %v4344
    %4635 = vmatprep.subr.mxu0 0.0
    %4636 = vmatpush1.msra.mxu0 %v4345
    %4637 = vmatprep.subr.mxu0 0.0
    %4638 = vmatpush1.msra.mxu0 %v4346
    %4639 = vmatprep.subr.mxu0 0.0
    %4640 = vmatpush1.msra.mxu0 %v4347
    %4641 = vmatprep.subr.mxu0 0.0
    %4642 = vmatpush1.msra.mxu0 %v4348
    %4643 = vmatprep.subr.mxu0 0.0
    %4644 = vmatpush1.msra.mxu0 %v4349
    %4645 = vmatprep.mubr.f32.mxu0 %v4191
    %4646 = vmatmul.mubr.f32.gmra.mrb[0].mxu0 %v4190
    %v4647 = vpop.f32.mrb[0].mxu0
    %v4648 = vadd.f32 %v4579, %v4647
    %v4649 = vpop.f32.mrb[0].mxu0
    %4650 = vmatprep.mubr.f32.mxu0 %v4207
    %4651 = vmatmul.mubr.f32.gmra.mrb[0].mxu0 %v4206
    %v4652 = vpop.f32.mrb[0].mxu0
    %v4653 = vadd.f32 %v4579, %v4652
    %v4654 = vpop.f32.mrb[0].mxu0
    %4655 = vmatprep.mubr.f32.mxu0 %v4223
    %4656 = vmatmul.mubr.f32.gmra.mrb[0].mxu0 %v4222
    %v4657 = vpop.f32.mrb[0].mxu0
    %v4658 = vadd.f32 %v4579, %v4657
    %v4659 = vpop.f32.mrb[0].mxu0
    %4660 = vmatprep.mubr.f32.mxu0 %v4239
    %4661 = vmatmul.mubr.f32.gmra.mrb[0].mxu0 %v4238
    %v4662 = vpop.f32.mrb[0].mxu0
    %v4663 = vadd.f32 %v4579, %v4662
    %v4664 = vpop.f32.mrb[0].mxu0
    %4665 = vmatprep.mubr.f32.mxu0 %v4255
    %4666 = vmatmul.mubr.f32.gmra.mrb[0].mxu0 %v4254
    %v4667 = vpop.f32.mrb[0].mxu0
    %v4668 = vadd.f32 %v4579, %v4667
    %v4669 = vpop.f32.mrb[0].mxu0
    %4670 = vmatprep.mubr.f32.mxu0 %v4271
    %4671 = vmatmul.mubr.f32.gmra.mrb[0].mxu0 %v4270
    %v4672 = vpop.f32.mrb[0].mxu0
    %v4673 = vadd.f32 %v4579, %v4672
    %v4674 = vpop.f32.mrb[0].mxu0
    %4675 = vmatprep.mubr.f32.mxu0 %v4287
    %4676 = vmatmul.mubr.f32.gmra.mrb[0].mxu0 %v4286
    %v4677 = vpop.f32.mrb[0].mxu0
    %v4678 = vadd.f32 %v4579, %v4677
    %v4679 = vpop.f32.mrb[0].mxu0
    %4680 = vmatprep.mubr.f32.mxu0 %v4303
    %4681 = vmatmul.mubr.f32.gmra.mrb[0].mxu0 %v4302
    %v4682 = vpop.f32.mrb[0].mxu0
    %v4683 = vadd.f32 %v4579, %v4682
    %v4684 = vpop.f32.mrb[0].mxu0
    %4685 = vdwg.mxu0
    %4686 = vmatprep.subr.mxu0 0.0
    %4687 = vmatpush1.msra.mxu0 %v4350
    %4688 = vmatprep.subr.mxu0 0.0
    %4689 = vmatpush1.msra.mxu0 %v4351
    %4690 = vmatprep.subr.mxu0 0.0
    %4691 = vmatpush1.msra.mxu0 %v4352
    %4692 = vmatprep.subr.mxu0 0.0
    %4693 = vmatpush1.msra.mxu0 %v4353
    %4694 = vmatprep.subr.mxu0 0.0
    %4695 = vmatpush1.msra.mxu0 %v4354
    %4696 = vmatprep.subr.mxu0 0.0
    %4697 = vmatpush1.msra.mxu0 %v4355
    %4698 = vmatprep.subr.mxu0 0.0
    %4699 = vmatpush1.msra.mxu0 %v4356
    %4700 = vmatprep.subr.mxu0 0.0
    %4701 = vmatpush1.msra.mxu0 %v4357
    %4702 = vmatprep.subr.mxu0 0.0
    %4703 = vmatpush1.msra.mxu0 %v4358
    %4704 = vmatprep.subr.mxu0 0.0
    %4705 = vmatpush1.msra.mxu0 %v4359
    %4706 = vmatprep.subr.mxu0 0.0
    %4707 = vmatpush1.msra.mxu0 %v4360
    %4708 = vmatprep.subr.mxu0 0.0
    %4709 = vmatpush1.msra.mxu0 %v4361
    %4710 = vmatprep.subr.mxu0 0.0
    %4711 = vmatpush1.msra.mxu0 %v4362
    %4712 = vmatprep.subr.mxu0 0.0
    %4713 = vmatpush1.msra.mxu0 %v4363
    %4714 = vmatprep.subr.mxu0 0.0
    %4715 = vmatpush1.msra.mxu0 %v4364
    %4716 = vmatprep.subr.mxu0 0.0
    %4717 = vmatpush1.msra.mxu0 %v4365
    %4718 = vmatprep.subr.mxu0 0.0
    %4719 = vmatpush1.msra.mxu0 %v4366
    %4720 = vmatprep.subr.mxu0 0.0
    %4721 = vmatpush1.msra.mxu0 %v4367
    %4722 = vmatprep.subr.mxu0 0.0
    %4723 = vmatpush1.msra.mxu0 %v4368
    %4724 = vmatprep.subr.mxu0 0.0
    %4725 = vmatpush1.msra.mxu0 %v4369
    %4726 = vmatprep.subr.mxu0 0.0
    %4727 = vmatpush1.msra.mxu0 %v4370
    %4728 = vmatprep.subr.mxu0 0.0
    %4729 = vmatpush1.msra.mxu0 %v4371
    %4730 = vmatprep.subr.mxu0 0.0
    %4731 = vmatpush1.msra.mxu0 %v4372
    %4732 = vmatprep.subr.mxu0 0.0
    %4733 = vmatpush1.msra.mxu0 %v4373
    %4734 = vmatprep.subr.mxu0 0.0
    %4735 = vmatpush1.msra.mxu0 %v4374
    %4736 = vmatprep.subr.mxu0 0.0
    %4737 = vmatpush1.msra.mxu0 %v4375
    %4738 = vmatprep.subr.mxu0 0.0
    %4739 = vmatpush1.msra.mxu0 %v4376
    %4740 = vmatprep.subr.mxu0 0.0
    %4741 = vmatpush1.msra.mxu0 %v4377
    %4742 = vmatprep.subr.mxu0 0.0
    %4743 = vmatpush1.msra.mxu0 %v4378
    %4744 = vmatprep.subr.mxu0 0.0
    %4745 = vmatpush1.msra.mxu0 %v4379
    %4746 = vmatprep.subr.mxu0 0.0
    %4747 = vmatpush1.msra.mxu0 %v4380
    %4748 = vmatprep.subr.mxu0 0.0
    %4749 = vmatpush1.msra.mxu0 %v4381
    %4750 = vmatprep.mubr.f32.mxu0 %v4193
    %4751 = vmatmul.mubr.f32.gmra.mrb[0].mxu0 %v4192
    %v4752 = vpop.f32.mrb[0].mxu0
    %v4753 = vadd.f32 %v4648, %v4752
    %v4754 = vpop.f32.mrb[0].mxu0
    %4755 = vmatprep.mubr.f32.mxu0 %v4209
    %4756 = vmatmul.mubr.f32.gmra.mrb[0].mxu0 %v4208
    %v4757 = vpop.f32.mrb[0].mxu0
    %v4758 = vadd.f32 %v4653, %v4757
    %v4759 = vpop.f32.mrb[0].mxu0
    %4760 = vmatprep.mubr.f32.mxu0 %v4225
    %4761 = vmatmul.mubr.f32.gmra.mrb[0].mxu0 %v4224
    %v4762 = vpop.f32.mrb[0].mxu0
    %v4763 = vadd.f32 %v4658, %v4762
    %v4764 = vpop.f32.mrb[0].mxu0
    %4765 = vmatprep.mubr.f32.mxu0 %v4241
    %4766 = vmatmul.mubr.f32.gmra.mrb[0].mxu0 %v4240
    %v4767 = vpop.f32.mrb[0].mxu0
    %v4768 = vadd.f32 %v4663, %v4767
    %v4769 = vpop.f32.mrb[0].mxu0
    %4770 = vmatprep.mubr.f32.mxu0 %v4257
    %4771 = vmatmul.mubr.f32.gmra.mrb[0].mxu0 %v4256
    %v4772 = vpop.f32.mrb[0].mxu0
    %v4773 = vadd.f32 %v4668, %v4772
    %v4774 = vpop.f32.mrb[0].mxu0
    %4775 = vmatprep.mubr.f32.mxu0 %v4273
    %4776 = vmatmul.mubr.f32.gmra.mrb[0].mxu0 %v4272
    %v4777 = vpop.f32.mrb[0].mxu0
    %v4778 = vadd.f32 %v4673, %v4777
    %v4779 = vpop.f32.mrb[0].mxu0
    %4780 = vmatprep.mubr.f32.mxu0 %v4289
    %4781 = vmatmul.mubr.f32.gmra.mrb[0].mxu0 %v4288
    %v4782 = vpop.f32.mrb[0].mxu0
    %v4783 = vadd.f32 %v4678, %v4782
    %v4784 = vpop.f32.mrb[0].mxu0
    %4785 = vmatprep.mubr.f32.mxu0 %v4305
    %4786 = vmatmul.mubr.f32.gmra.mrb[0].mxu0 %v4304
    %v4787 = vpop.f32.mrb[0].mxu0
    %v4788 = vadd.f32 %v4683, %v4787
    %v4789 = vpop.f32.mrb[0].mxu0
    %4790 = vdwg.mxu0
    %4791 = vmatprep.subr.mxu0 0.0
    %4792 = vmatpush1.msra.mxu0 %v4382
    %4793 = vmatprep.subr.mxu0 0.0
    %4794 = vmatpush1.msra.mxu0 %v4383
    %4795 = vmatprep.subr.mxu0 0.0
    %4796 = vmatpush1.msra.mxu0 %v4384
    %4797 = vmatprep.subr.mxu0 0.0
    %4798 = vmatpush1.msra.mxu0 %v4385
    %4799 = vmatprep.subr.mxu0 0.0
    %4800 = vmatpush1.msra.mxu0 %v4386
    %4801 = vmatprep.subr.mxu0 0.0
    %4802 = vmatpush1.msra.mxu0 %v4387
    %4803 = vmatprep.subr.mxu0 0.0
    %4804 = vmatpush1.msra.mxu0 %v4388
    %4805 = vmatprep.subr.mxu0 0.0
    %4806 = vmatpush1.msra.mxu0 %v4389
    %4807 = vmatprep.subr.mxu0 0.0
    %4808 = vmatpush1.msra.mxu0 %v4390
    %4809 = vmatprep.subr.mxu0 0.0
    %4810 = vmatpush1.msra.mxu0 %v4391
    %4811 = vmatprep.subr.mxu0 0.0
    %4812 = vmatpush1.msra.mxu0 %v4392
    %4813 = vmatprep.subr.mxu0 0.0
    %4814 = vmatpush1.msra.mxu0 %v4393
    %4815 = vmatprep.subr.mxu0 0.0
    %4816 = vmatpush1.msra.mxu0 %v4394
    %4817 = vmatprep.subr.mxu0 0.0
    %4818 = vmatpush1.msra.mxu0 %v4395
    %4819 = vmatprep.subr.mxu0 0.0
    %4820 = vmatpush1.msra.mxu0 %v4396
    %4821 = vmatprep.subr.mxu0 0.0
    %4822 = vmatpush1.msra.mxu0 %v4397
    %4823 = vmatprep.subr.mxu0 0.0
    %4824 = vmatpush1.msra.mxu0 %v4398
    %4825 = vmatprep.subr.mxu0 0.0
    %4826 = vmatpush1.msra.mxu0 %v4399
    %4827 = vmatprep.subr.mxu0 0.0
    %4828 = vmatpush1.msra.mxu0 %v4400
    %4829 = vmatprep.subr.mxu0 0.0
    %4830 = vmatpush1.msra.mxu0 %v4401
    %4831 = vmatprep.subr.mxu0 0.0
    %4832 = vmatpush1.msra.mxu0 %v4402
    %4833 = vmatprep.subr.mxu0 0.0
    %4834 = vmatpush1.msra.mxu0 %v4403
    %4835 = vmatprep.subr.mxu0 0.0
    %4836 = vmatpush1.msra.mxu0 %v4404
    %4837 = vmatprep.subr.mxu0 0.0
    %4838 = vmatpush1.msra.mxu0 %v4405
    %4839 = vmatprep.subr.mxu0 0.0
    %4840 = vmatpush1.msra.mxu0 %v4406
    %4841 = vmatprep.subr.mxu0 0.0
    %4842 = vmatpush1.msra.mxu0 %v4407
    %4843 = vmatprep.subr.mxu0 0.0
    %4844 = vmatpush1.msra.mxu0 %v4408
    %4845 = vmatprep.subr.mxu0 0.0
    %4846 = vmatpush1.msra.mxu0 %v4409
    %4847 = vmatprep.subr.mxu0 0.0
    %4848 = vmatpush1.msra.mxu0 %v4410
    %4849 = vmatprep.subr.mxu0 0.0
    %4850 = vmatpush1.msra.mxu0 %v4411
    %4851 = vmatprep.subr.mxu0 0.0
    %4852 = vmatpush1.msra.mxu0 %v4412
    %4853 = vmatprep.subr.mxu0 0.0
    %4854 = vmatpush1.msra.mxu0 %v4413
    %4855 = vmatprep.mubr.f32.mxu0 %v4195
    %4856 = vmatmul.mubr.f32.gmra.mrb[0].mxu0 %v4194
    %v4857 = vpop.f32.mrb[0].mxu0
    %v4858 = vadd.f32 %v4753, %v4857
    %v4859 = vpop.f32.mrb[0].mxu0
    %4860 = vmatprep.mubr.f32.mxu0 %v4211
    %4861 = vmatmul.mubr.f32.gmra.mrb[0].mxu0 %v4210
    %v4862 = vpop.f32.mrb[0].mxu0
    %v4863 = vadd.f32 %v4758, %v4862
    %v4864 = vpop.f32.mrb[0].mxu0
    %4865 = vmatprep.mubr.f32.mxu0 %v4227
    %4866 = vmatmul.mubr.f32.gmra.mrb[0].mxu0 %v4226
    %v4867 = vpop.f32.mrb[0].mxu0
    %v4868 = vadd.f32 %v4763, %v4867
    %v4869 = vpop.f32.mrb[0].mxu0
    %4870 = vmatprep.mubr.f32.mxu0 %v4243
    %4871 = vmatmul.mubr.f32.gmra.mrb[0].mxu0 %v4242
    %v4872 = vpop.f32.mrb[0].mxu0
    %v4873 = vadd.f32 %v4768, %v4872
    %v4874 = vpop.f32.mrb[0].mxu0
    %4875 = vmatprep.mubr.f32.mxu0 %v4259
    %4876 = vmatmul.mubr.f32.gmra.mrb[0].mxu0 %v4258
    %v4877 = vpop.f32.mrb[0].mxu0
    %v4878 = vadd.f32 %v4773, %v4877
    %v4879 = vpop.f32.mrb[0].mxu0
    %4880 = vmatprep.mubr.f32.mxu0 %v4275
    %4881 = vmatmul.mubr.f32.gmra.mrb[0].mxu0 %v4274
    %v4882 = vpop.f32.mrb[0].mxu0
    %v4883 = vadd.f32 %v4778, %v4882
    %v4884 = vpop.f32.mrb[0].mxu0
    %4885 = vmatprep.mubr.f32.mxu0 %v4291
    %4886 = vmatmul.mubr.f32.gmra.mrb[0].mxu0 %v4290
    %v4887 = vpop.f32.mrb[0].mxu0
    %v4888 = vadd.f32 %v4783, %v4887
    %v4889 = vpop.f32.mrb[0].mxu0
    %4890 = vmatprep.mubr.f32.mxu0 %v4307
    %4891 = vmatmul.mubr.f32.gmra.mrb[0].mxu0 %v4306
    %v4892 = vpop.f32.mrb[0].mxu0
    %v4893 = vadd.f32 %v4788, %v4892
    %v4894 = vpop.f32.mrb[0].mxu0
    %4895 = vdwg.mxu0
    %4896 = vmatprep.subr.mxu0 0.0
    %4897 = vmatpush1.msra.mxu0 %v4414
    %4898 = vmatprep.subr.mxu0 0.0
    %4899 = vmatpush1.msra.mxu0 %v4415
    %4900 = vmatprep.subr.mxu0 0.0
    %4901 = vmatpush1.msra.mxu0 %v4416
    %4902 = vmatprep.subr.mxu0 0.0
    %4903 = vmatpush1.msra.mxu0 %v4417
    %4904 = vmatprep.subr.mxu0 0.0
    %4905 = vmatpush1.msra.mxu0 %v4418
    %4906 = vmatprep.subr.mxu0 0.0
    %4907 = vmatpush1.msra.mxu0 %v4419
    %4908 = vmatprep.subr.mxu0 0.0
    %4909 = vmatpush1.msra.mxu0 %v4420
    %4910 = vmatprep.subr.mxu0 0.0
    %4911 = vmatpush1.msra.mxu0 %v4421
    %4912 = vmatprep.subr.mxu0 0.0
    %4913 = vmatpush1.msra.mxu0 %v4422
    %4914 = vmatprep.subr.mxu0 0.0
    %4915 = vmatpush1.msra.mxu0 %v4423
    %4916 = vmatprep.subr.mxu0 0.0
    %4917 = vmatpush1.msra.mxu0 %v4424
    %4918 = vmatprep.subr.mxu0 0.0
    %4919 = vmatpush1.msra.mxu0 %v4425
    %4920 = vmatprep.subr.mxu0 0.0
    %4921 = vmatpush1.msra.mxu0 %v4426
    %4922 = vmatprep.subr.mxu0 0.0
    %4923 = vmatpush1.msra.mxu0 %v4427
    %4924 = vmatprep.subr.mxu0 0.0
    %4925 = vmatpush1.msra.mxu0 %v4428
    %4926 = vmatprep.subr.mxu0 0.0
    %4927 = vmatpush1.msra.mxu0 %v4429
    %4928 = vmatprep.subr.mxu0 0.0
    %4929 = vmatpush1.msra.mxu0 %v4430
    %4930 = vmatprep.subr.mxu0 0.0
    %4931 = vmatpush1.msra.mxu0 %v4431
    %4932 = vmatprep.subr.mxu0 0.0
    %4933 = vmatpush1.msra.mxu0 %v4432
    %4934 = vmatprep.subr.mxu0 0.0
    %4935 = vmatpush1.msra.mxu0 %v4433
    %4936 = vmatprep.subr.mxu0 0.0
    %4937 = vmatpush1.msra.mxu0 %v4434
    %4938 = vmatprep.subr.mxu0 0.0
    %4939 = vmatpush1.msra.mxu0 %v4435
    %4940 = vmatprep.subr.mxu0 0.0
    %4941 = vmatpush1.msra.mxu0 %v4436
    %4942 = vmatprep.subr.mxu0 0.0
    %4943 = vmatpush1.msra.mxu0 %v4437
    %4944 = vmatprep.subr.mxu0 0.0
    %4945 = vmatpush1.msra.mxu0 %v4438
    %4946 = vmatprep.subr.mxu0 0.0
    %4947 = vmatpush1.msra.mxu0 %v4439
    %4948 = vmatprep.subr.mxu0 0.0
    %4949 = vmatpush1.msra.mxu0 %v4440
    %4950 = vmatprep.subr.mxu0 0.0
    %4951 = vmatpush1.msra.mxu0 %v4441
    %4952 = vmatprep.subr.mxu0 0.0
    %4953 = vmatpush1.msra.mxu0 %v4442
    %4954 = vmatprep.subr.mxu0 0.0
    %4955 = vmatpush1.msra.mxu0 %v4443
    %4956 = vmatprep.subr.mxu0 0.0
    %4957 = vmatpush1.msra.mxu0 %v4444
    %4958 = vmatprep.subr.mxu0 0.0
    %4959 = vmatpush1.msra.mxu0 %v4445
    %4960 = vmatprep.mubr.f32.mxu0 %v4197
    %4961 = vmatmul.mubr.f32.gmra.mrb[0].mxu0 %v4196
    %v4962 = vpop.f32.mrb[0].mxu0
    %v4963 = vadd.f32 %v4858, %v4962
    %v4964 = vpop.f32.mrb[0].mxu0
    %4965 = vmatprep.mubr.f32.mxu0 %v4213
    %4966 = vmatmul.mubr.f32.gmra.mrb[0].mxu0 %v4212
    %v4967 = vpop.f32.mrb[0].mxu0
    %v4968 = vadd.f32 %v4863, %v4967
    %v4969 = vpop.f32.mrb[0].mxu0
    %4970 = vmatprep.mubr.f32.mxu0 %v4229
    %4971 = vmatmul.mubr.f32.gmra.mrb[0].mxu0 %v4228
    %v4972 = vpop.f32.mrb[0].mxu0
    %v4973 = vadd.f32 %v4868, %v4972
    %v4974 = vpop.f32.mrb[0].mxu0
    %4975 = vmatprep.mubr.f32.mxu0 %v4245
    %4976 = vmatmul.mubr.f32.gmra.mrb[0].mxu0 %v4244
    %v4977 = vpop.f32.mrb[0].mxu0
    %v4978 = vadd.f32 %v4873, %v4977
    %v4979 = vpop.f32.mrb[0].mxu0
    %4980 = vmatprep.mubr.f32.mxu0 %v4261
    %4981 = vmatmul.mubr.f32.gmra.mrb[0].mxu0 %v4260
    %v4982 = vpop.f32.mrb[0].mxu0
    %v4983 = vadd.f32 %v4878, %v4982
    %v4984 = vpop.f32.mrb[0].mxu0
    %4985 = vmatprep.mubr.f32.mxu0 %v4277
    %4986 = vmatmul.mubr.f32.gmra.mrb[0].mxu0 %v4276
    %v4987 = vpop.f32.mrb[0].mxu0
    %v4988 = vadd.f32 %v4883, %v4987
    %v4989 = vpop.f32.mrb[0].mxu0
    %4990 = vmatprep.mubr.f32.mxu0 %v4293
    %4991 = vmatmul.mubr.f32.gmra.mrb[0].mxu0 %v4292
    %v4992 = vpop.f32.mrb[0].mxu0
    %v4993 = vadd.f32 %v4888, %v4992
    %v4994 = vpop.f32.mrb[0].mxu0
    %4995 = vmatprep.mubr.f32.mxu0 %v4309
    %4996 = vmatmul.mubr.f32.gmra.mrb[0].mxu0 %v4308
    %v4997 = vpop.f32.mrb[0].mxu0
    %v4998 = vadd.f32 %v4893, %v4997
    %v4999 = vpop.f32.mrb[0].mxu0
    %5000 = vdwg.mxu0
    %5001 = vmatprep.subr.mxu0 0.0
    %5002 = vmatpush1.msra.mxu0 %v4446
    %5003 = vmatprep.subr.mxu0 0.0
    %5004 = vmatpush1.msra.mxu0 %v4447
    %5005 = vmatprep.subr.mxu0 0.0
    %5006 = vmatpush1.msra.mxu0 %v4448
    %5007 = vmatprep.subr.mxu0 0.0
    %5008 = vmatpush1.msra.mxu0 %v4449
    %5009 = vmatprep.subr.mxu0 0.0
    %5010 = vmatpush1.msra.mxu0 %v4450
    %5011 = vmatprep.subr.mxu0 0.0
    %5012 = vmatpush1.msra.mxu0 %v4451
    %5013 = vmatprep.subr.mxu0 0.0
    %5014 = vmatpush1.msra.mxu0 %v4452
    %5015 = vmatprep.subr.mxu0 0.0
    %5016 = vmatpush1.msra.mxu0 %v4453
    %5017 = vmatprep.subr.mxu0 0.0
    %5018 = vmatpush1.msra.mxu0 %v4454
    %5019 = vmatprep.subr.mxu0 0.0
    %5020 = vmatpush1.msra.mxu0 %v4455
    %5021 = vmatprep.subr.mxu0 0.0
    %5022 = vmatpush1.msra.mxu0 %v4456
    %5023 = vmatprep.subr.mxu0 0.0
    %5024 = vmatpush1.msra.mxu0 %v4457
    %5025 = vmatprep.subr.mxu0 0.0
    %5026 = vmatpush1.msra.mxu0 %v4458
    %5027 = vmatprep.subr.mxu0 0.0
    %5028 = vmatpush1.msra.mxu0 %v4459
    %5029 = vmatprep.subr.mxu0 0.0
    %5030 = vmatpush1.msra.mxu0 %v4460
    %5031 = vmatprep.subr.mxu0 0.0
    %5032 = vmatpush1.msra.mxu0 %v4461
    %5033 = vmatprep.subr.mxu0 0.0
    %5034 = vmatpush1.msra.mxu0 %v4462
    %5035 = vmatprep.subr.mxu0 0.0
    %5036 = vmatpush1.msra.mxu0 %v4463
    %5037 = vmatprep.subr.mxu0 0.0
    %5038 = vmatpush1.msra.mxu0 %v4464
    %5039 = vmatprep.subr.mxu0 0.0
    %5040 = vmatpush1.msra.mxu0 %v4465
    %5041 = vmatprep.subr.mxu0 0.0
    %5042 = vmatpush1.msra.mxu0 %v4466
    %5043 = vmatprep.subr.mxu0 0.0
    %5044 = vmatpush1.msra.mxu0 %v4467
    %5045 = vmatprep.subr.mxu0 0.0
    %5046 = vmatpush1.msra.mxu0 %v4468
    %5047 = vmatprep.subr.mxu0 0.0
    %5048 = vmatpush1.msra.mxu0 %v4469
    %5049 = vmatprep.subr.mxu0 0.0
    %5050 = vmatpush1.msra.mxu0 %v4470
    %5051 = vmatprep.subr.mxu0 0.0
    %5052 = vmatpush1.msra.mxu0 %v4471
    %5053 = vmatprep.subr.mxu0 0.0
    %5054 = vmatpush1.msra.mxu0 %v4472
    %5055 = vmatprep.subr.mxu0 0.0
    %5056 = vmatpush1.msra.mxu0 %v4473
    %5057 = vmatprep.subr.mxu0 0.0
    %5058 = vmatpush1.msra.mxu0 %v4474
    %5059 = vmatprep.subr.mxu0 0.0
    %5060 = vmatpush1.msra.mxu0 %v4475
    %5061 = vmatprep.subr.mxu0 0.0
    %5062 = vmatpush1.msra.mxu0 %v4476
    %5063 = vmatprep.subr.mxu0 0.0
    %5064 = vmatpush1.msra.mxu0 %v4477
    %5065 = vmatprep.mubr.f32.mxu0 %v4199
    %5066 = vmatmul.mubr.f32.gmra.mrb[0].mxu0 %v4198
    %v5067 = vpop.f32.mrb[0].mxu0
    %v5068 = vadd.f32 %v4963, %v5067
    %v5069 = vpop.f32.mrb[0].mxu0
    %5070 = vmatprep.mubr.f32.mxu0 %v4215
    %5071 = vmatmul.mubr.f32.gmra.mrb[0].mxu0 %v4214
    %v5072 = vpop.f32.mrb[0].mxu0
    %v5073 = vadd.f32 %v4968, %v5072
    %v5074 = vpop.f32.mrb[0].mxu0
    %5075 = vmatprep.mubr.f32.mxu0 %v4231
    %5076 = vmatmul.mubr.f32.gmra.mrb[0].mxu0 %v4230
    %v5077 = vpop.f32.mrb[0].mxu0
    %v5078 = vadd.f32 %v4973, %v5077
    %v5079 = vpop.f32.mrb[0].mxu0
    %5080 = vmatprep.mubr.f32.mxu0 %v4247
    %5081 = vmatmul.mubr.f32.gmra.mrb[0].mxu0 %v4246
    %v5082 = vpop.f32.mrb[0].mxu0
    %v5083 = vadd.f32 %v4978, %v5082
    %v5084 = vpop.f32.mrb[0].mxu0
    %5085 = vmatprep.mubr.f32.mxu0 %v4263
    %5086 = vmatmul.mubr.f32.gmra.mrb[0].mxu0 %v4262
    %v5087 = vpop.f32.mrb[0].mxu0
    %v5088 = vadd.f32 %v4983, %v5087
    %v5089 = vpop.f32.mrb[0].mxu0
    %5090 = vmatprep.mubr.f32.mxu0 %v4279
    %5091 = vmatmul.mubr.f32.gmra.mrb[0].mxu0 %v4278
    %v5092 = vpop.f32.mrb[0].mxu0
    %v5093 = vadd.f32 %v4988, %v5092
    %v5094 = vpop.f32.mrb[0].mxu0
    %5095 = vmatprep.mubr.f32.mxu0 %v4295
    %5096 = vmatmul.mubr.f32.gmra.mrb[0].mxu0 %v4294
    %v5097 = vpop.f32.mrb[0].mxu0
    %v5098 = vadd.f32 %v4993, %v5097
    %v5099 = vpop.f32.mrb[0].mxu0
    %5100 = vmatprep.mubr.f32.mxu0 %v4311
    %5101 = vmatmul.mubr.f32.gmra.mrb[0].mxu0 %v4310
    %v5102 = vpop.f32.mrb[0].mxu0
    %v5103 = vadd.f32 %v4998, %v5102
    %v5104 = vpop.f32.mrb[0].mxu0
    %5105 = vdwg.mxu0
    %5106 = vmatprep.subr.mxu0 0.0
    %5107 = vmatpush1.msra.mxu0 %v4478
    %5108 = vmatprep.subr.mxu0 0.0
    %5109 = vmatpush1.msra.mxu0 %v4479
    %5110 = vmatprep.subr.mxu0 0.0
    %5111 = vmatpush1.msra.mxu0 %v4480
    %5112 = vmatprep.subr.mxu0 0.0
    %5113 = vmatpush1.msra.mxu0 %v4481
    %5114 = vmatprep.subr.mxu0 0.0
    %5115 = vmatpush1.msra.mxu0 %v4482
    %5116 = vmatprep.subr.mxu0 0.0
    %5117 = vmatpush1.msra.mxu0 %v4483
    %5118 = vmatprep.subr.mxu0 0.0
    %5119 = vmatpush1.msra.mxu0 %v4484
    %5120 = vmatprep.subr.mxu0 0.0
    %5121 = vmatpush1.msra.mxu0 %v4485
    %5122 = vmatprep.subr.mxu0 0.0
    %5123 = vmatpush1.msra.mxu0 %v4486
    %5124 = vmatprep.subr.mxu0 0.0
    %5125 = vmatpush1.msra.mxu0 %v4487
    %5126 = vmatprep.subr.mxu0 0.0
    %5127 = vmatpush1.msra.mxu0 %v4488
    %5128 = vmatprep.subr.mxu0 0.0
    %5129 = vmatpush1.msra.mxu0 %v4489
    %5130 = vmatprep.subr.mxu0 0.0
    %5131 = vmatpush1.msra.mxu0 %v4490
    %5132 = vmatprep.subr.mxu0 0.0
    %5133 = vmatpush1.msra.mxu0 %v4491
    %5134 = vmatprep.subr.mxu0 0.0
    %5135 = vmatpush1.msra.mxu0 %v4492
    %5136 = vmatprep.subr.mxu0 0.0
    %5137 = vmatpush1.msra.mxu0 %v4493
    %5138 = vmatprep.subr.mxu0 0.0
    %5139 = vmatpush1.msra.mxu0 %v4494
    %5140 = vmatprep.subr.mxu0 0.0
    %5141 = vmatpush1.msra.mxu0 %v4495
    %5142 = vmatprep.subr.mxu0 0.0
    %5143 = vmatpush1.msra.mxu0 %v4496
    %5144 = vmatprep.subr.mxu0 0.0
    %5145 = vmatpush1.msra.mxu0 %v4497
    %5146 = vmatprep.subr.mxu0 0.0
    %5147 = vmatpush1.msra.mxu0 %v4498
    %5148 = vmatprep.subr.mxu0 0.0
    %5149 = vmatpush1.msra.mxu0 %v4499
    %5150 = vmatprep.subr.mxu0 0.0
    %5151 = vmatpush1.msra.mxu0 %v4500
    %5152 = vmatprep.subr.mxu0 0.0
    %5153 = vmatpush1.msra.mxu0 %v4501
    %5154 = vmatprep.subr.mxu0 0.0
    %5155 = vmatpush1.msra.mxu0 %v4502
    %5156 = vmatprep.subr.mxu0 0.0
    %5157 = vmatpush1.msra.mxu0 %v4503
    %5158 = vmatprep.subr.mxu0 0.0
    %5159 = vmatpush1.msra.mxu0 %v4504
    %5160 = vmatprep.subr.mxu0 0.0
    %5161 = vmatpush1.msra.mxu0 %v4505
    %5162 = vmatprep.subr.mxu0 0.0
    %5163 = vmatpush1.msra.mxu0 %v4506
    %5164 = vmatprep.subr.mxu0 0.0
    %5165 = vmatpush1.msra.mxu0 %v4507
    %5166 = vmatprep.subr.mxu0 0.0
    %5167 = vmatpush1.msra.mxu0 %v4508
    %5168 = vmatprep.subr.mxu0 0.0
    %5169 = vmatpush1.msra.mxu0 %v4509
    %5170 = vmatprep.mubr.f32.mxu0 %v4201
    %5171 = vmatmul.mubr.f32.gmra.mrb[0].mxu0 %v4200
    %v5172 = vpop.f32.mrb[0].mxu0
    %v5173 = vadd.f32 %v5068, %v5172
    %v5174 = vpop.f32.mrb[0].mxu0
    %5175 = vmatprep.mubr.f32.mxu0 %v4217
    %5176 = vmatmul.mubr.f32.gmra.mrb[0].mxu0 %v4216
    %v5177 = vpop.f32.mrb[0].mxu0
    %v5178 = vadd.f32 %v5073, %v5177
    %v5179 = vpop.f32.mrb[0].mxu0
    %5180 = vmatprep.mubr.f32.mxu0 %v4233
    %5181 = vmatmul.mubr.f32.gmra.mrb[0].mxu0 %v4232
    %v5182 = vpop.f32.mrb[0].mxu0
    %v5183 = vadd.f32 %v5078, %v5182
    %v5184 = vpop.f32.mrb[0].mxu0
    %5185 = vmatprep.mubr.f32.mxu0 %v4249
    %5186 = vmatmul.mubr.f32.gmra.mrb[0].mxu0 %v4248
    %v5187 = vpop.f32.mrb[0].mxu0
    %v5188 = vadd.f32 %v5083, %v5187
    %v5189 = vpop.f32.mrb[0].mxu0
    %5190 = vmatprep.mubr.f32.mxu0 %v4265
    %5191 = vmatmul.mubr.f32.gmra.mrb[0].mxu0 %v4264
    %v5192 = vpop.f32.mrb[0].mxu0
    %v5193 = vadd.f32 %v5088, %v5192
    %v5194 = vpop.f32.mrb[0].mxu0
    %5195 = vmatprep.mubr.f32.mxu0 %v4281
    %5196 = vmatmul.mubr.f32.gmra.mrb[0].mxu0 %v4280
    %v5197 = vpop.f32.mrb[0].mxu0
    %v5198 = vadd.f32 %v5093, %v5197
    %v5199 = vpop.f32.mrb[0].mxu0
    %5200 = vmatprep.mubr.f32.mxu0 %v4297
    %5201 = vmatmul.mubr.f32.gmra.mrb[0].mxu0 %v4296
    %v5202 = vpop.f32.mrb[0].mxu0
    %v5203 = vadd.f32 %v5098, %v5202
    %v5204 = vpop.f32.mrb[0].mxu0
    %5205 = vmatprep.mubr.f32.mxu0 %v4313
    %5206 = vmatmul.mubr.f32.gmra.mrb[0].mxu0 %v4312
    %v5207 = vpop.f32.mrb[0].mxu0
    %v5208 = vadd.f32 %v5103, %v5207
    %v5209 = vpop.f32.mrb[0].mxu0
    %5210 = vdwg.mxu0
    %5211 = vmatprep.subr.mxu0 0.0
    %5212 = vmatpush1.msra.mxu0 %v4510
    %5213 = vmatprep.subr.mxu0 0.0
    %5214 = vmatpush1.msra.mxu0 %v4511
    %5215 = vmatprep.subr.mxu0 0.0
    %5216 = vmatpush1.msra.mxu0 %v4512
    %5217 = vmatprep.subr.mxu0 0.0
    %5218 = vmatpush1.msra.mxu0 %v4513
    %5219 = vmatprep.subr.mxu0 0.0
    %5220 = vmatpush1.msra.mxu0 %v4514
    %5221 = vmatprep.subr.mxu0 0.0
    %5222 = vmatpush1.msra.mxu0 %v4515
    %5223 = vmatprep.subr.mxu0 0.0
    %5224 = vmatpush1.msra.mxu0 %v4516
    %5225 = vmatprep.subr.mxu0 0.0
    %5226 = vmatpush1.msra.mxu0 %v4517
    %5227 = vmatprep.subr.mxu0 0.0
    %5228 = vmatpush1.msra.mxu0 %v4518
    %5229 = vmatprep.subr.mxu0 0.0
    %5230 = vmatpush1.msra.mxu0 %v4519
    %5231 = vmatprep.subr.mxu0 0.0
    %5232 = vmatpush1.msra.mxu0 %v4520
    %5233 = vmatprep.subr.mxu0 0.0
    %5234 = vmatpush1.msra.mxu0 %v4521
    %5235 = vmatprep.subr.mxu0 0.0
    %5236 = vmatpush1.msra.mxu0 %v4522
    %5237 = vmatprep.subr.mxu0 0.0
    %5238 = vmatpush1.msra.mxu0 %v4523
    %5239 = vmatprep.subr.mxu0 0.0
    %5240 = vmatpush1.msra.mxu0 %v4524
    %5241 = vmatprep.subr.mxu0 0.0
    %5242 = vmatpush1.msra.mxu0 %v4525
    %5243 = vmatprep.subr.mxu0 0.0
    %5244 = vmatpush1.msra.mxu0 %v4526
    %5245 = vmatprep.subr.mxu0 0.0
    %5246 = vmatpush1.msra.mxu0 %v4527
    %5247 = vmatprep.subr.mxu0 0.0
    %5248 = vmatpush1.msra.mxu0 %v4528
    %5249 = vmatprep.subr.mxu0 0.0
    %5250 = vmatpush1.msra.mxu0 %v4529
    %5251 = vmatprep.subr.mxu0 0.0
    %5252 = vmatpush1.msra.mxu0 %v4530
    %5253 = vmatprep.subr.mxu0 0.0
    %5254 = vmatpush1.msra.mxu0 %v4531
    %5255 = vmatprep.subr.mxu0 0.0
    %5256 = vmatpush1.msra.mxu0 %v4532
    %5257 = vmatprep.subr.mxu0 0.0
    %5258 = vmatpush1.msra.mxu0 %v4533
    %5259 = vmatprep.subr.mxu0 0.0
    %5260 = vmatpush1.msra.mxu0 %v4534
    %5261 = vmatprep.subr.mxu0 0.0
    %5262 = vmatpush1.msra.mxu0 %v4535
    %5263 = vmatprep.subr.mxu0 0.0
    %5264 = vmatpush1.msra.mxu0 %v4536
    %5265 = vmatprep.subr.mxu0 0.0
    %5266 = vmatpush1.msra.mxu0 %v4537
    %5267 = vmatprep.subr.mxu0 0.0
    %5268 = vmatpush1.msra.mxu0 %v4538
    %5269 = vmatprep.subr.mxu0 0.0
    %5270 = vmatpush1.msra.mxu0 %v4539
    %5271 = vmatprep.subr.mxu0 0.0
    %5272 = vmatpush1.msra.mxu0 %v4540
    %5273 = vmatprep.subr.mxu0 0.0
    %5274 = vmatpush1.msra.mxu0 %v4541
    %5275 = vmatprep.mubr.f32.mxu0 %v4203
    %5276 = vmatmul.mubr.f32.gmra.mrb[0].mxu0 %v4202
    %v5277 = vpop.f32.mrb[0].mxu0
    %v5278 = vadd.f32 %v5173, %v5277
    %v5279 = vpop.f32.mrb[0].mxu0
    %5280 = vmatprep.mubr.f32.mxu0 %v4219
    %5281 = vmatmul.mubr.f32.gmra.mrb[0].mxu0 %v4218
    %v5282 = vpop.f32.mrb[0].mxu0
    %v5283 = vadd.f32 %v5178, %v5282
    %v5284 = vpop.f32.mrb[0].mxu0
    %5285 = vmatprep.mubr.f32.mxu0 %v4235
    %5286 = vmatmul.mubr.f32.gmra.mrb[0].mxu0 %v4234
    %v5287 = vpop.f32.mrb[0].mxu0
    %v5288 = vadd.f32 %v5183, %v5287
    %v5289 = vpop.f32.mrb[0].mxu0
    %5290 = vmatprep.mubr.f32.mxu0 %v4251
    %5291 = vmatmul.mubr.f32.gmra.mrb[0].mxu0 %v4250
    %v5292 = vpop.f32.mrb[0].mxu0
    %v5293 = vadd.f32 %v5188, %v5292
    %v5294 = vpop.f32.mrb[0].mxu0
    %5295 = vmatprep.mubr.f32.mxu0 %v4267
    %5296 = vmatmul.mubr.f32.gmra.mrb[0].mxu0 %v4266
    %v5297 = vpop.f32.mrb[0].mxu0
    %v5298 = vadd.f32 %v5193, %v5297
    %v5299 = vpop.f32.mrb[0].mxu0
    %5300 = vmatprep.mubr.f32.mxu0 %v4283
    %5301 = vmatmul.mubr.f32.gmra.mrb[0].mxu0 %v4282
    %v5302 = vpop.f32.mrb[0].mxu0
    %v5303 = vadd.f32 %v5198, %v5302
    %v5304 = vpop.f32.mrb[0].mxu0
    %5305 = vmatprep.mubr.f32.mxu0 %v4299
    %5306 = vmatmul.mubr.f32.gmra.mrb[0].mxu0 %v4298
    %v5307 = vpop.f32.mrb[0].mxu0
    %v5308 = vadd.f32 %v5203, %v5307
    %v5309 = vpop.f32.mrb[0].mxu0
    %5310 = vmatprep.mubr.f32.mxu0 %v4315
    %5311 = vmatmul.mubr.f32.gmra.mrb[0].mxu0 %v4314
    %v5312 = vpop.f32.mrb[0].mxu0
    %v5313 = vadd.f32 %v5208, %v5312
    %v5314 = vpop.f32.mrb[0].mxu0
    %5315 = vdwg.mxu0
    %5316 = vmatprep.subr.mxu0 0.0
    %5317 = vmatpush1.msra.mxu0 %v4542
    %5318 = vmatprep.subr.mxu0 0.0
    %5319 = vmatpush1.msra.mxu0 %v4543
    %5320 = vmatprep.subr.mxu0 0.0
    %5321 = vmatpush1.msra.mxu0 %v4544
    %5322 = vmatprep.subr.mxu0 0.0
    %5323 = vmatpush1.msra.mxu0 %v4545
    %5324 = vmatprep.subr.mxu0 0.0
    %5325 = vmatpush1.msra.mxu0 %v4546
    %5326 = vmatprep.subr.mxu0 0.0
    %5327 = vmatpush1.msra.mxu0 %v4547
    %5328 = vmatprep.subr.mxu0 0.0
    %5329 = vmatpush1.msra.mxu0 %v4548
    %5330 = vmatprep.subr.mxu0 0.0
    %5331 = vmatpush1.msra.mxu0 %v4549
    %5332 = vmatprep.subr.mxu0 0.0
    %5333 = vmatpush1.msra.mxu0 %v4550
    %5334 = vmatprep.subr.mxu0 0.0
    %5335 = vmatpush1.msra.mxu0 %v4551
    %5336 = vmatprep.subr.mxu0 0.0
    %5337 = vmatpush1.msra.mxu0 %v4552
    %5338 = vmatprep.subr.mxu0 0.0
    %5339 = vmatpush1.msra.mxu0 %v4553
    %5340 = vmatprep.subr.mxu0 0.0
    %5341 = vmatpush1.msra.mxu0 %v4554
    %5342 = vmatprep.subr.mxu0 0.0
    %5343 = vmatpush1.msra.mxu0 %v4555
    %5344 = vmatprep.subr.mxu0 0.0
    %5345 = vmatpush1.msra.mxu0 %v4556
    %5346 = vmatprep.subr.mxu0 0.0
    %5347 = vmatpush1.msra.mxu0 %v4557
    %5348 = vmatprep.subr.mxu0 0.0
    %5349 = vmatpush1.msra.mxu0 %v4558
    %5350 = vmatprep.subr.mxu0 0.0
    %5351 = vmatpush1.msra.mxu0 %v4559
    %5352 = vmatprep.subr.mxu0 0.0
    %5353 = vmatpush1.msra.mxu0 %v4560
    %5354 = vmatprep.subr.mxu0 0.0
    %5355 = vmatpush1.msra.mxu0 %v4561
    %5356 = vmatprep.subr.mxu0 0.0
    %5357 = vmatpush1.msra.mxu0 %v4562
    %5358 = vmatprep.subr.mxu0 0.0
    %5359 = vmatpush1.msra.mxu0 %v4563
    %5360 = vmatprep.subr.mxu0 0.0
    %5361 = vmatpush1.msra.mxu0 %v4564
    %5362 = vmatprep.subr.mxu0 0.0
    %5363 = vmatpush1.msra.mxu0 %v4565
    %5364 = vmatprep.subr.mxu0 0.0
    %5365 = vmatpush1.msra.mxu0 %v4566
    %5366 = vmatprep.subr.mxu0 0.0
    %5367 = vmatpush1.msra.mxu0 %v4567
    %5368 = vmatprep.subr.mxu0 0.0
    %5369 = vmatpush1.msra.mxu0 %v4568
    %5370 = vmatprep.subr.mxu0 0.0
    %5371 = vmatpush1.msra.mxu0 %v4569
    %5372 = vmatprep.subr.mxu0 0.0
    %5373 = vmatpush1.msra.mxu0 %v4570
    %5374 = vmatprep.subr.mxu0 0.0
    %5375 = vmatpush1.msra.mxu0 %v4571
    %5376 = vmatprep.subr.mxu0 0.0
    %5377 = vmatpush1.msra.mxu0 %v4572
    %5378 = vmatprep.subr.mxu0 0.0
    %5379 = vmatpush1.msra.mxu0 %v4573
    %5380 = vmatprep.mubr.f32.mxu0 %v4205
    %5381 = vmatmul.mubr.f32.gmra.mrb[0].mxu0 %v4204
    %v5382 = vpop.f32.mrb[0].mxu0
    %v5383 = vadd.f32 %v5278, %v5382
    %v5384 = vpop.f32.mrb[0].mxu0
    %5385 = vmatprep.mubr.f32.mxu0 %v4221
    %5386 = vmatmul.mubr.f32.gmra.mrb[0].mxu0 %v4220
    %v5387 = vpop.f32.mrb[0].mxu0
    %v5388 = vadd.f32 %v5283, %v5387
    %v5389 = vpop.f32.mrb[0].mxu0
    %5390 = vmatprep.mubr.f32.mxu0 %v4237
    %5391 = vmatmul.mubr.f32.gmra.mrb[0].mxu0 %v4236
    %v5392 = vpop.f32.mrb[0].mxu0
    %v5393 = vadd.f32 %v5288, %v5392
    %v5394 = vpop.f32.mrb[0].mxu0
    %5395 = vmatprep.mubr.f32.mxu0 %v4253
    %5396 = vmatmul.mubr.f32.gmra.mrb[0].mxu0 %v4252
    %v5397 = vpop.f32.mrb[0].mxu0
    %v5398 = vadd.f32 %v5293, %v5397
    %v5399 = vpop.f32.mrb[0].mxu0
    %5400 = vmatprep.mubr.f32.mxu0 %v4269
    %5401 = vmatmul.mubr.f32.gmra.mrb[0].mxu0 %v4268
    %v5402 = vpop.f32.mrb[0].mxu0
    %v5403 = vadd.f32 %v5298, %v5402
    %v5404 = vpop.f32.mrb[0].mxu0
    %5405 = vmatprep.mubr.f32.mxu0 %v4285
    %5406 = vmatmul.mubr.f32.gmra.mrb[0].mxu0 %v4284
    %v5407 = vpop.f32.mrb[0].mxu0
    %v5408 = vadd.f32 %v5303, %v5407
    %v5409 = vpop.f32.mrb[0].mxu0
    %5410 = vmatprep.mubr.f32.mxu0 %v4301
    %5411 = vmatmul.mubr.f32.gmra.mrb[0].mxu0 %v4300
    %v5412 = vpop.f32.mrb[0].mxu0
    %v5413 = vadd.f32 %v5308, %v5412
    %v5414 = vpop.f32.mrb[0].mxu0
    %5415 = vmatprep.mubr.f32.mxu0 %v4317
    %5416 = vmatmul.mubr.f32.gmra.mrb[0].mxu0 %v4316
    %v5417 = vpop.f32.mrb[0].mxu0
    %v5418 = vadd.f32 %v5313, %v5417
    %v5419 = vpop.f32.mrb[0].mxu0
    %5420 = vdwg.mxu0
    %v5421 = vadd.f32 %v3042, %v5383
    %v5422 = vadd.f32 %v3043, %v5388
    %v5423 = vadd.f32 %v3044, %v5393
    %v5424 = vadd.f32 %v3045, %v5398
    %v5425 = vadd.f32 %v3046, %v5403
    %v5426 = vadd.f32 %v3047, %v5408
    %v5427 = vadd.f32 %v3048, %v5413
    %v5428 = vadd.f32 %v3049, %v5418
    %v5429 = vld [vmem:[#allocation23] sm:$0x1]
    %v5430 = vld [vmem:[#allocation24] sm:$0x1]
    %v5431 = vsel %vm348, %v5421, 0.0
    %5432 = vadd.xlane.f32.xlu0 %v5431
    %v5433 = vpop.xlane.xlu0 %5432
    %v5434 = vsel %vm348, %v5422, 0.0
    %5435 = vadd.xlane.f32.xlu0 %v5434
    %v5436 = vpop.xlane.xlu0 %5435
    %v5437 = vsel %vm348, %v5423, 0.0
    %5438 = vadd.xlane.f32.xlu0 %v5437
    %v5439 = vpop.xlane.xlu0 %5438
    %v5440 = vsel %vm348, %v5424, 0.0
    %5441 = vadd.xlane.f32.xlu0 %v5440
    %v5442 = vpop.xlane.xlu0 %5441
    %v5443 = vsel %vm348, %v5425, 0.0
    %5444 = vadd.xlane.f32.xlu0 %v5443
    %v5445 = vpop.xlane.xlu0 %5444
    %v5446 = vsel %vm348, %v5426, 0.0
    %5447 = vadd.xlane.f32.xlu0 %v5446
    %v5448 = vpop.xlane.xlu0 %5447
    %v5449 = vsel %vm348, %v5427, 0.0
    %5450 = vadd.xlane.f32.xlu0 %v5449
    %v5451 = vpop.xlane.xlu0 %5450
    %v5452 = vsel %vm348, %v5428, 0.0
    %5453 = vadd.xlane.f32.xlu0 %v5452
    %v5454 = vpop.xlane.xlu0 %5453
    %v5455 = vmul.f32 %v5433, %v2941
    %v5456 = vmul.f32 %v5436, %v2941
    %v5457 = vmul.f32 %v5439, %v2941
    %v5458 = vmul.f32 %v5442, %v2941
    %v5459 = vmul.f32 %v5445, %v2941
    %v5460 = vmul.f32 %v5448, %v2941
    %v5461 = vmul.f32 %v5451, %v2941
    %v5462 = vmul.f32 %v5454, %v2941
    %v5463 = vsub.f32 %v5421, %v5455
    %v5464 = vsub.f32 %v5422, %v5456
    %v5465 = vsub.f32 %v5423, %v5457
    %v5466 = vsub.f32 %v5424, %v5458
    %v5467 = vsub.f32 %v5425, %v5459
    %v5468 = vsub.f32 %v5426, %v5460
    %v5469 = vsub.f32 %v5427, %v5461
    %v5470 = vsub.f32 %v5428, %v5462
    %v5471 = vmul.f32 %v5463, %v5463
    %v5472 = vmul.f32 %v5464, %v5464
    %v5473 = vmul.f32 %v5465, %v5465
    %v5474 = vmul.f32 %v5466, %v5466
    %v5475 = vmul.f32 %v5467, %v5467
    %v5476 = vmul.f32 %v5468, %v5468
    %v5477 = vmul.f32 %v5469, %v5469
    %v5478 = vmul.f32 %v5470, %v5470
    %v5479 = vsel %vm348, %v5471, 0.0
    %5480 = vadd.xlane.f32.xlu0 %v5479
    %v5481 = vpop.xlane.xlu0 %5480
    %v5482 = vsel %vm348, %v5472, 0.0
    %5483 = vadd.xlane.f32.xlu0 %v5482
    %v5484 = vpop.xlane.xlu0 %5483
    %v5485 = vsel %vm348, %v5473, 0.0
    %5486 = vadd.xlane.f32.xlu0 %v5485
    %v5487 = vpop.xlane.xlu0 %5486
    %v5488 = vsel %vm348, %v5474, 0.0
    %5489 = vadd.xlane.f32.xlu0 %v5488
    %v5490 = vpop.xlane.xlu0 %5489
    %v5491 = vsel %vm348, %v5475, 0.0
    %5492 = vadd.xlane.f32.xlu0 %v5491
    %v5493 = vpop.xlane.xlu0 %5492
    %v5494 = vsel %vm348, %v5476, 0.0
    %5495 = vadd.xlane.f32.xlu0 %v5494
    %v5496 = vpop.xlane.xlu0 %5495
    %v5497 = vsel %vm348, %v5477, 0.0
    %5498 = vadd.xlane.f32.xlu0 %v5497
    %v5499 = vpop.xlane.xlu0 %5498
    %v5500 = vsel %vm348, %v5478, 0.0
    %5501 = vadd.xlane.f32.xlu0 %v5500
    %v5502 = vpop.xlane.xlu0 %5501
    %v5503 = vmul.f32 %v5481, %v2941
    %v5504 = vmul.f32 %v5484, %v2941
    %v5505 = vmul.f32 %v5487, %v2941
    %v5506 = vmul.f32 %v5490, %v2941
    %v5507 = vmul.f32 %v5493, %v2941
    %v5508 = vmul.f32 %v5496, %v2941
    %v5509 = vmul.f32 %v5499, %v2941
    %v5510 = vmul.f32 %v5502, %v2941
    %v5511 = vadd.f32 %v5503, 1e-05
    %v5512 = vadd.f32 %v5504, 1e-05
    %v5513 = vadd.f32 %v5505, 1e-05
    %v5514 = vadd.f32 %v5506, 1e-05
    %v5515 = vadd.f32 %v5507, 1e-05
    %v5516 = vadd.f32 %v5508, 1e-05
    %v5517 = vadd.f32 %v5509, 1e-05
    %v5518 = vadd.f32 %v5510, 1e-05
    %v5519 = vrsqrt.pop %v5511
    %v5520 = vrsqrt.pop %v5512
    %v5521 = vrsqrt.pop %v5513
    %v5522 = vrsqrt.pop %v5514
    %v5523 = vrsqrt.pop %v5515
    %v5524 = vrsqrt.pop %v5516
    %v5525 = vrsqrt.pop %v5517
    %v5526 = vrsqrt.pop %v5518
    %v5527 = vmul.f32 %v5463, %v5519
    %v5528 = vmul.f32 %v5464, %v5520
    %v5529 = vmul.f32 %v5465, %v5521
    %v5530 = vmul.f32 %v5466, %v5522
    %v5531 = vmul.f32 %v5467, %v5523
    %v5532 = vmul.f32 %v5468, %v5524
    %v5533 = vmul.f32 %v5469, %v5525
    %v5534 = vmul.f32 %v5470, %v5526
    %v5536 = vlaneseq
    %v5537 = vshrl.u32 %v5536, 7
    %v5538 = vsub.s32 0, %v5537
    %v5539 = vrot.slane %v5429, %v5538
    %v5541 = vmul.f32 %v5527, %v5539
    %v5542 = vmul.f32 %v5528, %v5539
    %v5543 = vmul.f32 %v5529, %v5539
    %v5544 = vmul.f32 %v5530, %v5539
    %v5545 = vmul.f32 %v5531, %v5539
    %v5546 = vmul.f32 %v5532, %v5539
    %v5547 = vmul.f32 %v5533, %v5539
    %v5548 = vmul.f32 %v5534, %v5539
    %v5550 = vlaneseq
    %v5551 = vshrl.u32 %v5550, 7
    %v5552 = vsub.s32 0, %v5551
    %v5553 = vrot.slane %v5430, %v5552
    %v5555 = vadd.f32 %v5541, %v5553
    %v5556 = vadd.f32 %v5542, %v5553
    %v5557 = vadd.f32 %v5543, %v5553
    %v5558 = vadd.f32 %v5544, %v5553
    %v5559 = vadd.f32 %v5545, %v5553
    %v5560 = vadd.f32 %v5546, %v5553
    %v5561 = vadd.f32 %v5547, %v5553
    %v5562 = vadd.f32 %v5548, %v5553
    %s5563 = scalar_lea.vmem [#allocation8], 128
    %v5564 = vld [vmem:[%s5563] sm:$0xff]
    %v5565 = vld [vmem:[%s5563 + $0x8] sm:$0xff]
    %v5566 = vld [vmem:[%s5563 + $0x10] sm:$0xff]
    %v5567 = vld [vmem:[%s5563 + $0x18] sm:$0xff]
    %v5568 = vld [vmem:[%s5563 + $0x20] sm:$0xff]
    %v5569 = vld [vmem:[%s5563 + $0x28] sm:$0xff]
    %v5570 = vld [vmem:[%s5563 + $0x30] sm:$0xff]
    %v5571 = vld [vmem:[%s5563 + $0x38] sm:$0xff]
    %v5572 = vld [vmem:[%s5563 + $0x40] sm:$0xff]
    %v5573 = vld [vmem:[%s5563 + $0x48] sm:$0xff]
    %v5574 = vld [vmem:[%s5563 + $0x50] sm:$0xff]
    %v5575 = vld [vmem:[%s5563 + $0x58] sm:$0xff]
    %v5576 = vld [vmem:[%s5563 + $0x60] sm:$0xff]
    %v5577 = vld [vmem:[%s5563 + $0x68] sm:$0xff]
    %v5578 = vld [vmem:[%s5563 + $0x70] sm:$0xff]
    %v5579 = vld [vmem:[%s5563 + $0x78] sm:$0xff]
    %s5580 = scalar_lea.vmem [#allocation9], 2
    %v5581 = vld [vmem:[%s5580] sm:$0x3]
    %v5583 = vlaneseq
    %v5584 = vshrl.u32 %v5583, 7
    %v5585 = vsub.s32 0, %v5584
    %v5586 = vrot.slane %v5581, %v5585
    %v5587 = vlaneseq
    %v5588 = vshrl.u32 %v5587, 7
    %v5589 = vsub.s32 1, %v5588
    %v5590 = vrot.slane %v5581, %v5589
    %v5594 = vsel %vm348, %v5555, 0
    %v5597 = vsel %vm348, %v5556, 0
    %v5600 = vsel %vm348, %v5557, 0
    %v5603 = vsel %vm348, %v5558, 0
    %v5606 = vsel %vm348, %v5559, 0
    %v5609 = vsel %vm348, %v5560, 0
    %v5612 = vsel %vm348, %v5561, 0
    %v5615 = vsel %vm348, %v5562, 0
    %5617 = vmatprep.subr.mxu0 %v5565
    %5618 = vmatpush1.msra.mxu0 %v5564
    %5619 = vmatprep.subr.mxu0 %v5567
    %5620 = vmatpush1.msra.mxu0 %v5566
    %5621 = vmatprep.subr.mxu0 %v5569
    %5622 = vmatpush1.msra.mxu0 %v5568
    %5623 = vmatprep.subr.mxu0 %v5571
    %5624 = vmatpush1.msra.mxu0 %v5570
    %5625 = vmatprep.subr.mxu0 %v5573
    %5626 = vmatpush1.msra.mxu0 %v5572
    %5627 = vmatprep.subr.mxu0 %v5575
    %5628 = vmatpush1.msra.mxu0 %v5574
    %5629 = vmatprep.subr.mxu0 %v5577
    %5630 = vmatpush1.msra.mxu0 %v5576
    %5631 = vmatprep.subr.mxu0 %v5579
    %5632 = vmatpush1.msra.mxu0 %v5578
    %5633 = vmatprep.subr.mxu0 0.0
    %5634 = vmatpush1.msra.mxu0 0.0
    %5635 = vmatprep.subr.mxu0 0.0
    %5636 = vmatpush1.msra.mxu0 0.0
    %5637 = vmatprep.subr.mxu0 0.0
    %5638 = vmatpush1.msra.mxu0 0.0
    %5639 = vmatprep.subr.mxu0 0.0
    %5640 = vmatpush1.msra.mxu0 0.0
    %5641 = vmatprep.subr.mxu0 0.0
    %5642 = vmatpush1.msra.mxu0 0.0
    %5643 = vmatprep.subr.mxu0 0.0
    %5644 = vmatpush1.msra.mxu0 0.0
    %5645 = vmatprep.subr.mxu0 0.0
    %5646 = vmatpush1.msra.mxu0 0.0
    %5647 = vmatprep.subr.mxu0 0.0
    %5648 = vmatpush1.msra.mxu0 0.0
    %5649 = vmatprep.subr.mxu0 0.0
    %5650 = vmatpush1.msra.mxu0 0.0
    %5651 = vmatprep.subr.mxu0 0.0
    %5652 = vmatpush1.msra.mxu0 0.0
    %5653 = vmatprep.subr.mxu0 0.0
    %5654 = vmatpush1.msra.mxu0 0.0
    %5655 = vmatprep.subr.mxu0 0.0
    %5656 = vmatpush1.msra.mxu0 0.0
    %5657 = vmatprep.subr.mxu0 0.0
    %5658 = vmatpush1.msra.mxu0 0.0
    %5659 = vmatprep.subr.mxu0 0.0
    %5660 = vmatpush1.msra.mxu0 0.0
    %5661 = vmatprep.subr.mxu0 0.0
    %5662 = vmatpush1.msra.mxu0 0.0
    %5663 = vmatprep.subr.mxu0 0.0
    %5664 = vmatpush1.msra.mxu0 0.0
    %5665 = vmatprep.subr.mxu0 0.0
    %5666 = vmatpush1.msra.mxu0 0.0
    %5667 = vmatprep.subr.mxu0 0.0
    %5668 = vmatpush1.msra.mxu0 0.0
    %5669 = vmatprep.subr.mxu0 0.0
    %5670 = vmatpush1.msra.mxu0 0.0
    %5671 = vmatprep.subr.mxu0 0.0
    %5672 = vmatpush1.msra.mxu0 0.0
    %5673 = vmatprep.subr.mxu0 0.0
    %5674 = vmatpush1.msra.mxu0 0.0
    %5675 = vmatprep.subr.mxu0 0.0
    %5676 = vmatpush1.msra.mxu0 0.0
    %5677 = vmatprep.subr.mxu0 0.0
    %5678 = vmatpush1.msra.mxu0 0.0
    %5679 = vmatprep.subr.mxu0 0.0
    %5680 = vmatpush1.msra.mxu0 0.0
    %5681 = vmatprep.mubr.f32.mxu0 0.0
    %5682 = vmatmul.mubr.f32.gmra.mrb[0].mxu0 %v5594
    %v5683 = vpop.f32.mrb[0].mxu0
    %v5684 = vadd.f32 %v5586, %v5683
    %v5685 = vpop.f32.mrb[0].mxu0
    %v5686 = vadd.f32 %v5590, %v5685
    %5687 = vmatprep.mubr.f32.mxu0 0.0
    %5688 = vmatmul.mubr.f32.gmra.mrb[0].mxu0 %v5597
    %v5689 = vpop.f32.mrb[0].mxu0
    %v5690 = vadd.f32 %v5586, %v5689
    %v5691 = vpop.f32.mrb[0].mxu0
    %v5692 = vadd.f32 %v5590, %v5691
    %5693 = vmatprep.mubr.f32.mxu0 0.0
    %5694 = vmatmul.mubr.f32.gmra.mrb[0].mxu0 %v5600
    %v5695 = vpop.f32.mrb[0].mxu0
    %v5696 = vadd.f32 %v5586, %v5695
    %v5697 = vpop.f32.mrb[0].mxu0
    %v5698 = vadd.f32 %v5590, %v5697
    %5699 = vmatprep.mubr.f32.mxu0 0.0
    %5700 = vmatmul.mubr.f32.gmra.mrb[0].mxu0 %v5603
    %v5701 = vpop.f32.mrb[0].mxu0
    %v5702 = vadd.f32 %v5586, %v5701
    %v5703 = vpop.f32.mrb[0].mxu0
    %v5704 = vadd.f32 %v5590, %v5703
    %5705 = vmatprep.mubr.f32.mxu0 0.0
    %5706 = vmatmul.mubr.f32.gmra.mrb[0].mxu0 %v5606
    %v5707 = vpop.f32.mrb[0].mxu0
    %v5708 = vadd.f32 %v5586, %v5707
    %v5709 = vpop.f32.mrb[0].mxu0
    %v5710 = vadd.f32 %v5590, %v5709
    %5711 = vmatprep.mubr.f32.mxu0 0.0
    %5712 = vmatmul.mubr.f32.gmra.mrb[0].mxu0 %v5609
    %v5713 = vpop.f32.mrb[0].mxu0
    %v5714 = vadd.f32 %v5586, %v5713
    %v5715 = vpop.f32.mrb[0].mxu0
    %v5716 = vadd.f32 %v5590, %v5715
    %5717 = vmatprep.mubr.f32.mxu0 0.0
    %5718 = vmatmul.mubr.f32.gmra.mrb[0].mxu0 %v5612
    %v5719 = vpop.f32.mrb[0].mxu0
    %v5720 = vadd.f32 %v5586, %v5719
    %v5721 = vpop.f32.mrb[0].mxu0
    %v5722 = vadd.f32 %v5590, %v5721
    %5723 = vmatprep.mubr.f32.mxu0 0.0
    %5724 = vmatmul.mubr.f32.gmra.mrb[0].mxu0 %v5615
    %v5725 = vpop.f32.mrb[0].mxu0
    %v5726 = vadd.f32 %v5586, %v5725
    %v5727 = vpop.f32.mrb[0].mxu0
    %v5728 = vadd.f32 %v5590, %v5727
    %5729 = vdwg.mxu0
    %5734 = vrot.lane.b32.xlu0 %v5684, 64
    %v5735 = vpop.permute.xlu0 %5734
    %5736 = vrot.lane.b32.xlu0 %v5690, 64
    %v5737 = vpop.permute.xlu0 %5736
    %5738 = vrot.lane.b32.xlu0 %v5696, 64
    %v5739 = vpop.permute.xlu0 %5738
    %5740 = vrot.lane.b32.xlu0 %v5702, 64
    %v5741 = vpop.permute.xlu0 %5740
    %v5742 = vsel %vm498, %v5684, 0
    %v5744 = vsel %vm498, %v5690, 0
    %v5746 = vsel %vm498, %v5696, 0
    %v5748 = vsel %vm498, %v5702, 0
    %v5750 = vsel %vm498, %v5735, 0
    %v5752 = vsel %vm498, %v5737, 0
    %v5754 = vsel %vm498, %v5739, 0
    %v5756 = vsel %vm498, %v5741, 0
    %5758 = vmatprep.subr.mxu0 0.0
    %5759 = vmatpush1.xpose.msra.mxu0 %v5750
    %5760 = vmatprep.subr.mxu0 0.0
    %5761 = vmatpush1.xpose.msra.mxu0 %v5752
    %5762 = vmatprep.subr.mxu0 0.0
    %5763 = vmatpush1.xpose.msra.mxu0 %v5754
    %5764 = vmatprep.subr.mxu0 0.0
    %5765 = vmatpush1.xpose.msra.mxu0 %v5756
    %5766 = vmatprep.subr.mxu0 0.0
    %5767 = vmatpush1.xpose.msra.mxu0 0.0
    %5768 = vmatprep.subr.mxu0 0.0
    %5769 = vmatpush1.xpose.msra.mxu0 0.0
    %5770 = vmatprep.subr.mxu0 0.0
    %5771 = vmatpush1.xpose.msra.mxu0 0.0
    %5772 = vmatprep.subr.mxu0 0.0
    %5773 = vmatpush1.xpose.msra.mxu0 0.0
    %5774 = vmatprep.subr.mxu0 0.0
    %5775 = vmatpush1.xpose.msra.mxu0 0.0
    %5776 = vmatprep.subr.mxu0 0.0
    %5777 = vmatpush1.xpose.msra.mxu0 0.0
    %5778 = vmatprep.subr.mxu0 0.0
    %5779 = vmatpush1.xpose.msra.mxu0 0.0
    %5780 = vmatprep.subr.mxu0 0.0
    %5781 = vmatpush1.xpose.msra.mxu0 0.0
    %5782 = vmatprep.subr.mxu0 0.0
    %5783 = vmatpush1.xpose.msra.mxu0 0.0
    %5784 = vmatprep.subr.mxu0 0.0
    %5785 = vmatpush1.xpose.msra.mxu0 0.0
    %5786 = vmatprep.subr.mxu0 0.0
    %5787 = vmatpush1.xpose.msra.mxu0 0.0
    %5788 = vmatprep.subr.mxu0 0.0
    %5789 = vmatpush1.xpose.msra.mxu0 0.0
    %5790 = vmatprep.subr.mxu0 0.0
    %5791 = vmatpush1.xpose.msra.mxu0 0.0
    %5792 = vmatprep.subr.mxu0 0.0
    %5793 = vmatpush1.xpose.msra.mxu0 0.0
    %5794 = vmatprep.subr.mxu0 0.0
    %5795 = vmatpush1.xpose.msra.mxu0 0.0
    %5796 = vmatprep.subr.mxu0 0.0
    %5797 = vmatpush1.xpose.msra.mxu0 0.0
    %5798 = vmatprep.subr.mxu0 0.0
    %5799 = vmatpush1.xpose.msra.mxu0 0.0
    %5800 = vmatprep.subr.mxu0 0.0
    %5801 = vmatpush1.xpose.msra.mxu0 0.0
    %5802 = vmatprep.subr.mxu0 0.0
    %5803 = vmatpush1.xpose.msra.mxu0 0.0
    %5804 = vmatprep.subr.mxu0 0.0
    %5805 = vmatpush1.xpose.msra.mxu0 0.0
    %5806 = vmatprep.subr.mxu0 0.0
    %5807 = vmatpush1.xpose.msra.mxu0 0.0
    %5808 = vmatprep.subr.mxu0 0.0
    %5809 = vmatpush1.xpose.msra.mxu0 0.0
    %5810 = vmatprep.subr.mxu0 0.0
    %5811 = vmatpush1.xpose.msra.mxu0 0.0
    %5812 = vmatprep.subr.mxu0 0.0
    %5813 = vmatpush1.xpose.msra.mxu0 0.0
    %5814 = vmatprep.subr.mxu0 0.0
    %5815 = vmatpush1.xpose.msra.mxu0 0.0
    %5816 = vmatprep.subr.mxu0 0.0
    %5817 = vmatpush1.xpose.msra.mxu0 0.0
    %5818 = vmatprep.subr.mxu0 0.0
    %5819 = vmatpush1.xpose.msra.mxu0 0.0
    %5820 = vmatprep.subr.mxu0 0.0
    %5821 = vmatpush1.xpose.msra.mxu0 0.0
    %5822 = vmatprep.mubr.f32.mxu0 0.0
    %5823 = vmatmul.mubr.f32.gmra.mrb[0].mxu0 %v5742
    %v5824 = vpop.f32.mrb[0].mxu0
    %v5825 = vadd.f32 0.0, %v5824
    %v5826 = vpop.f32.mrb[0].mxu0
    %5827 = vmatprep.mubr.f32.mxu0 0.0
    %5828 = vmatmul.mubr.f32.gmra.mrb[0].mxu0 %v5744
    %v5829 = vpop.f32.mrb[0].mxu0
    %v5830 = vadd.f32 0.0, %v5829
    %v5831 = vpop.f32.mrb[0].mxu0
    %5832 = vmatprep.mubr.f32.mxu0 0.0
    %5833 = vmatmul.mubr.f32.gmra.mrb[0].mxu0 %v5746
    %v5834 = vpop.f32.mrb[0].mxu0
    %v5835 = vadd.f32 0.0, %v5834
    %v5836 = vpop.f32.mrb[0].mxu0
    %5837 = vmatprep.mubr.f32.mxu0 0.0
    %5838 = vmatmul.mubr.f32.gmra.mrb[0].mxu0 %v5748
    %v5839 = vpop.f32.mrb[0].mxu0
    %v5840 = vadd.f32 0.0, %v5839
    %v5841 = vpop.f32.mrb[0].mxu0
    %5842 = vdwg.mxu0
    %v5843 = vsel %vm600, %v5825, -inf
    %5844 = vmax.xlane.f32.xlu0 %v5843
    %v5845 = vpop.xlane.xlu0 %5844
    %v5846 = vsel %vm600, %v5830, -inf
    %5847 = vmax.xlane.f32.xlu0 %v5846
    %v5848 = vpop.xlane.xlu0 %5847
    %v5849 = vsel %vm600, %v5835, -inf
    %5850 = vmax.xlane.f32.xlu0 %v5849
    %v5851 = vpop.xlane.xlu0 %5850
    %v5852 = vsel %vm600, %v5840, -inf
    %5853 = vmax.xlane.f32.xlu0 %v5852
    %v5854 = vpop.xlane.xlu0 %5853
    %v5855 = vsub.f32 %v5825, %v5845
    %v5856 = vsub.f32 %v5830, %v5848
    %v5857 = vsub.f32 %v5835, %v5851
    %v5858 = vsub.f32 %v5840, %v5854
    %v5859 = vmul.f32 %v5855, 1.442695
    %v5860 = vpow.pop %v5859
    %v5861 = vmul.f32 %v5856, 1.442695
    %v5862 = vpow.pop %v5861
    %v5863 = vmul.f32 %v5857, 1.442695
    %v5864 = vpow.pop %v5863
    %v5865 = vmul.f32 %v5858, 1.442695
    %v5866 = vpow.pop %v5865
    %v5868 = vsel %vm600, %v5860, 0
    %v5871 = vsel %vm600, %v5862, 0
    %v5874 = vsel %vm600, %v5864, 0
    %v5877 = vsel %vm600, %v5866, 0
    %5879 = vmatprep.subr.mxu0 0.0
    %5880 = vmatpush1.msra.mxu0 %v5686
    %5881 = vmatprep.subr.mxu0 0.0
    %5882 = vmatpush1.msra.mxu0 %v5692
    %5883 = vmatprep.subr.mxu0 0.0
    %5884 = vmatpush1.msra.mxu0 %v5698
    %5885 = vmatprep.subr.mxu0 0.0
    %5886 = vmatpush1.msra.mxu0 %v5704
    %5887 = vmatprep.subr.mxu0 0.0
    %5888 = vmatpush1.msra.mxu0 0.0
    %5889 = vmatprep.subr.mxu0 0.0
    %5890 = vmatpush1.msra.mxu0 0.0
    %5891 = vmatprep.subr.mxu0 0.0
    %5892 = vmatpush1.msra.mxu0 0.0
    %5893 = vmatprep.subr.mxu0 0.0
    %5894 = vmatpush1.msra.mxu0 0.0
    %5895 = vmatprep.subr.mxu0 0.0
    %5896 = vmatpush1.msra.mxu0 0.0
    %5897 = vmatprep.subr.mxu0 0.0
    %5898 = vmatpush1.msra.mxu0 0.0
    %5899 = vmatprep.subr.mxu0 0.0
    %5900 = vmatpush1.msra.mxu0 0.0
    %5901 = vmatprep.subr.mxu0 0.0
    %5902 = vmatpush1.msra.mxu0 0.0
    %5903 = vmatprep.subr.mxu0 0.0
    %5904 = vmatpush1.msra.mxu0 0.0
    %5905 = vmatprep.subr.mxu0 0.0
    %5906 = vmatpush1.msra.mxu0 0.0
    %5907 = vmatprep.subr.mxu0 0.0
    %5908 = vmatpush1.msra.mxu0 0.0
    %5909 = vmatprep.subr.mxu0 0.0
    %5910 = vmatpush1.msra.mxu0 0.0
    %5911 = vmatprep.subr.mxu0 0.0
    %5912 = vmatpush1.msra.mxu0 0.0
    %5913 = vmatprep.subr.mxu0 0.0
    %5914 = vmatpush1.msra.mxu0 0.0
    %5915 = vmatprep.subr.mxu0 0.0
    %5916 = vmatpush1.msra.mxu0 0.0
    %5917 = vmatprep.subr.mxu0 0.0
    %5918 = vmatpush1.msra.mxu0 0.0
    %5919 = vmatprep.subr.mxu0 0.0
    %5920 = vmatpush1.msra.mxu0 0.0
    %5921 = vmatprep.subr.mxu0 0.0
    %5922 = vmatpush1.msra.mxu0 0.0
    %5923 = vmatprep.subr.mxu0 0.0
    %5924 = vmatpush1.msra.mxu0 0.0
    %5925 = vmatprep.subr.mxu0 0.0
    %5926 = vmatpush1.msra.mxu0 0.0
    %5927 = vmatprep.subr.mxu0 0.0
    %5928 = vmatpush1.msra.mxu0 0.0
    %5929 = vmatprep.subr.mxu0 0.0
    %5930 = vmatpush1.msra.mxu0 0.0
    %5931 = vmatprep.subr.mxu0 0.0
    %5932 = vmatpush1.msra.mxu0 0.0
    %5933 = vmatprep.subr.mxu0 0.0
    %5934 = vmatpush1.msra.mxu0 0.0
    %5935 = vmatprep.subr.mxu0 0.0
    %5936 = vmatpush1.msra.mxu0 0.0
    %5937 = vmatprep.subr.mxu0 0.0
    %5938 = vmatpush1.msra.mxu0 0.0
    %5939 = vmatprep.subr.mxu0 0.0
    %5940 = vmatpush1.msra.mxu0 0.0
    %5941 = vmatprep.subr.mxu0 0.0
    %5942 = vmatpush1.msra.mxu0 0.0
    %5943 = vmatprep.mubr.f32.mxu0 0.0
    %5944 = vmatmul.mubr.f32.gmra.mrb[0].mxu0 %v5868
    %v5945 = vpop.f32.mrb[0].mxu0
    %v5946 = vadd.f32 0.0, %v5945
    %v5947 = vpop.f32.mrb[0].mxu0
    %5948 = vmatprep.mubr.f32.mxu0 0.0
    %5949 = vmatmul.mubr.f32.gmra.mrb[0].mxu0 %v5871
    %v5950 = vpop.f32.mrb[0].mxu0
    %v5951 = vadd.f32 0.0, %v5950
    %v5952 = vpop.f32.mrb[0].mxu0
    %5953 = vmatprep.mubr.f32.mxu0 0.0
    %5954 = vmatmul.mubr.f32.gmra.mrb[0].mxu0 %v5874
    %v5955 = vpop.f32.mrb[0].mxu0
    %v5956 = vadd.f32 0.0, %v5955
    %v5957 = vpop.f32.mrb[0].mxu0
    %5958 = vmatprep.mubr.f32.mxu0 0.0
    %5959 = vmatmul.mubr.f32.gmra.mrb[0].mxu0 %v5877
    %v5960 = vpop.f32.mrb[0].mxu0
    %v5961 = vadd.f32 0.0, %v5960
    %v5962 = vpop.f32.mrb[0].mxu0
    %5963 = vdwg.mxu0
    %v5964 = vsel %vm600, %v5860, 0.0
    %5965 = vadd.xlane.f32.xlu0 %v5964
    %v5966 = vpop.xlane.xlu0 %5965
    %v5967 = vsel %vm600, %v5862, 0.0
    %5968 = vadd.xlane.f32.xlu0 %v5967
    %v5969 = vpop.xlane.xlu0 %5968
    %v5970 = vsel %vm600, %v5864, 0.0
    %5971 = vadd.xlane.f32.xlu0 %v5970
    %v5972 = vpop.xlane.xlu0 %5971
    %v5973 = vsel %vm600, %v5866, 0.0
    %5974 = vadd.xlane.f32.xlu0 %v5973
    %v5975 = vpop.xlane.xlu0 %5974
    %v5976 = vrcp.pop %v5966
    %v5977 = vrcp.pop %v5969
    %v5978 = vrcp.pop %v5972
    %v5979 = vrcp.pop %v5975
    %v5980 = vmul.f32 %v5946, %v5976
    %v5981 = vmul.f32 %v5951, %v5977
    %v5982 = vmul.f32 %v5956, %v5978
    %v5983 = vmul.f32 %v5961, %v5979
    %5984 = vst.msk [vmem:[#allocation2] sm:$0xff] %vm498, %v5980
    %5985 = vst.msk [vmem:[#allocation2 + $0x8] sm:$0xff] %vm498, %v5981
    %5986 = vst.msk [vmem:[#allocation2 + $0x10] sm:$0xff] %vm498, %v5982
    %5987 = vst.msk [vmem:[#allocation2 + $0x18] sm:$0xff] %vm498, %v5983
    %5988 = vrot.lane.b32.xlu0 %v5684, 112
    %v5989 = vpop.permute.xlu0 %5988
    %5990 = vrot.lane.b32.xlu0 %v5690, 112
    %v5991 = vpop.permute.xlu0 %5990
    %5992 = vrot.lane.b32.xlu0 %v5696, 112
    %v5993 = vpop.permute.xlu0 %5992
    %5994 = vrot.lane.b32.xlu0 %v5702, 112
    %v5995 = vpop.permute.xlu0 %5994
    %5996 = vrot.lane.b32.xlu0 %v5684, 48
    %v5997 = vpop.permute.xlu0 %5996
    %5998 = vrot.lane.b32.xlu0 %v5690, 48
    %v5999 = vpop.permute.xlu0 %5998
    %6000 = vrot.lane.b32.xlu0 %v5696, 48
    %v6001 = vpop.permute.xlu0 %6000
    %6002 = vrot.lane.b32.xlu0 %v5702, 48
    %v6003 = vpop.permute.xlu0 %6002
    %v6004 = vsel %vm498, %v5989, 0
    %v6006 = vsel %vm498, %v5991, 0
    %v6008 = vsel %vm498, %v5993, 0
    %v6010 = vsel %vm498, %v5995, 0
    %v6012 = vsel %vm498, %v5997, 0
    %v6014 = vsel %vm498, %v5999, 0
    %v6016 = vsel %vm498, %v6001, 0
    %v6018 = vsel %vm498, %v6003, 0
    %6020 = vmatprep.subr.mxu0 0.0
    %6021 = vmatpush1.xpose.msra.mxu0 %v6012
    %6022 = vmatprep.subr.mxu0 0.0
    %6023 = vmatpush1.xpose.msra.mxu0 %v6014
    %6024 = vmatprep.subr.mxu0 0.0
    %6025 = vmatpush1.xpose.msra.mxu0 %v6016
    %6026 = vmatprep.subr.mxu0 0.0
    %6027 = vmatpush1.xpose.msra.mxu0 %v6018
    %6028 = vmatprep.subr.mxu0 0.0
    %6029 = vmatpush1.xpose.msra.mxu0 0.0
    %6030 = vmatprep.subr.mxu0 0.0
    %6031 = vmatpush1.xpose.msra.mxu0 0.0
    %6032 = vmatprep.subr.mxu0 0.0
    %6033 = vmatpush1.xpose.msra.mxu0 0.0
    %6034 = vmatprep.subr.mxu0 0.0
    %6035 = vmatpush1.xpose.msra.mxu0 0.0
    %6036 = vmatprep.subr.mxu0 0.0
    %6037 = vmatpush1.xpose.msra.mxu0 0.0
    %6038 = vmatprep.subr.mxu0 0.0
    %6039 = vmatpush1.xpose.msra.mxu0 0.0
    %6040 = vmatprep.subr.mxu0 0.0
    %6041 = vmatpush1.xpose.msra.mxu0 0.0
    %6042 = vmatprep.subr.mxu0 0.0
    %6043 = vmatpush1.xpose.msra.mxu0 0.0
    %6044 = vmatprep.subr.mxu0 0.0
    %6045 = vmatpush1.xpose.msra.mxu0 0.0
    %6046 = vmatprep.subr.mxu0 0.0
    %6047 = vmatpush1.xpose.msra.mxu0 0.0
    %6048 = vmatprep.subr.mxu0 0.0
    %6049 = vmatpush1.xpose.msra.mxu0 0.0
    %6050 = vmatprep.subr.mxu0 0.0
    %6051 = vmatpush1.xpose.msra.mxu0 0.0
    %6052 = vmatprep.subr.mxu0 0.0
    %6053 = vmatpush1.xpose.msra.mxu0 0.0
    %6054 = vmatprep.subr.mxu0 0.0
    %6055 = vmatpush1.xpose.msra.mxu0 0.0
    %6056 = vmatprep.subr.mxu0 0.0
    %6057 = vmatpush1.xpose.msra.mxu0 0.0
    %6058 = vmatprep.subr.mxu0 0.0
    %6059 = vmatpush1.xpose.msra.mxu0 0.0
    %6060 = vmatprep.subr.mxu0 0.0
    %6061 = vmatpush1.xpose.msra.mxu0 0.0
    %6062 = vmatprep.subr.mxu0 0.0
    %6063 = vmatpush1.xpose.msra.mxu0 0.0
    %6064 = vmatprep.subr.mxu0 0.0
    %6065 = vmatpush1.xpose.msra.mxu0 0.0
    %6066 = vmatprep.subr.mxu0 0.0
    %6067 = vmatpush1.xpose.msra.mxu0 0.0
    %6068 = vmatprep.subr.mxu0 0.0
    %6069 = vmatpush1.xpose.msra.mxu0 0.0
    %6070 = vmatprep.subr.mxu0 0.0
    %6071 = vmatpush1.xpose.msra.mxu0 0.0
    %6072 = vmatprep.subr.mxu0 0.0
    %6073 = vmatpush1.xpose.msra.mxu0 0.0
    %6074 = vmatprep.subr.mxu0 0.0
    %6075 = vmatpush1.xpose.msra.mxu0 0.0
    %6076 = vmatprep.subr.mxu0 0.0
    %6077 = vmatpush1.xpose.msra.mxu0 0.0
    %6078 = vmatprep.subr.mxu0 0.0
    %6079 = vmatpush1.xpose.msra.mxu0 0.0
    %6080 = vmatprep.subr.mxu0 0.0
    %6081 = vmatpush1.xpose.msra.mxu0 0.0
    %6082 = vmatprep.subr.mxu0 0.0
    %6083 = vmatpush1.xpose.msra.mxu0 0.0
    %6084 = vmatprep.mubr.f32.mxu0 0.0
    %6085 = vmatmul.mubr.f32.gmra.mrb[0].mxu0 %v6004
    %v6086 = vpop.f32.mrb[0].mxu0
    %v6087 = vadd.f32 0.0, %v6086
    %v6088 = vpop.f32.mrb[0].mxu0
    %6089 = vmatprep.mubr.f32.mxu0 0.0
    %6090 = vmatmul.mubr.f32.gmra.mrb[0].mxu0 %v6006
    %v6091 = vpop.f32.mrb[0].mxu0
    %v6092 = vadd.f32 0.0, %v6091
    %v6093 = vpop.f32.mrb[0].mxu0
    %6094 = vmatprep.mubr.f32.mxu0 0.0
    %6095 = vmatmul.mubr.f32.gmra.mrb[0].mxu0 %v6008
    %v6096 = vpop.f32.mrb[0].mxu0
    %v6097 = vadd.f32 0.0, %v6096
    %v6098 = vpop.f32.mrb[0].mxu0
    %6099 = vmatprep.mubr.f32.mxu0 0.0
    %6100 = vmatmul.mubr.f32.gmra.mrb[0].mxu0 %v6010
    %v6101 = vpop.f32.mrb[0].mxu0
    %v6102 = vadd.f32 0.0, %v6101
    %v6103 = vpop.f32.mrb[0].mxu0
    %6104 = vdwg.mxu0
    %v6105 = vsel %vm600, %v6087, -inf
    %6106 = vmax.xlane.f32.xlu0 %v6105
    %v6107 = vpop.xlane.xlu0 %6106
    %v6108 = vsel %vm600, %v6092, -inf
    %6109 = vmax.xlane.f32.xlu0 %v6108
    %v6110 = vpop.xlane.xlu0 %6109
    %v6111 = vsel %vm600, %v6097, -inf
    %6112 = vmax.xlane.f32.xlu0 %v6111
    %v6113 = vpop.xlane.xlu0 %6112
    %v6114 = vsel %vm600, %v6102, -inf
    %6115 = vmax.xlane.f32.xlu0 %v6114
    %v6116 = vpop.xlane.xlu0 %6115
    %v6117 = vsub.f32 %v6087, %v6107
    %v6118 = vsub.f32 %v6092, %v6110
    %v6119 = vsub.f32 %v6097, %v6113
    %v6120 = vsub.f32 %v6102, %v6116
    %v6121 = vmul.f32 %v6117, 1.442695
    %v6122 = vpow.pop %v6121
    %v6123 = vmul.f32 %v6118, 1.442695
    %v6124 = vpow.pop %v6123
    %v6125 = vmul.f32 %v6119, 1.442695
    %v6126 = vpow.pop %v6125
    %v6127 = vmul.f32 %v6120, 1.442695
    %v6128 = vpow.pop %v6127
    %6133 = vrot.lane.b32.xlu0 %v5686, 112
    %v6134 = vpop.permute.xlu0 %6133
    %6135 = vrot.lane.b32.xlu0 %v5692, 112
    %v6136 = vpop.permute.xlu0 %6135
    %6137 = vrot.lane.b32.xlu0 %v5698, 112
    %v6138 = vpop.permute.xlu0 %6137
    %6139 = vrot.lane.b32.xlu0 %v5704, 112
    %v6140 = vpop.permute.xlu0 %6139
    %v6146 = vsel %vm600, %v6122, 0
    %v6149 = vsel %vm600, %v6124, 0
    %v6152 = vsel %vm600, %v6126, 0
    %v6155 = vsel %vm600, %v6128, 0
    %6157 = vmatprep.subr.mxu0 0.0
    %6158 = vmatpush1.msra.mxu0 %v6134
    %6159 = vmatprep.subr.mxu0 0.0
    %6160 = vmatpush1.msra.mxu0 %v6136
    %6161 = vmatprep.subr.mxu0 0.0
    %6162 = vmatpush1.msra.mxu0 %v6138
    %6163 = vmatprep.subr.mxu0 0.0
    %6164 = vmatpush1.msra.mxu0 %v6140
    %6165 = vmatprep.subr.mxu0 0.0
    %6166 = vmatpush1.msra.mxu0 0.0
    %6167 = vmatprep.subr.mxu0 0.0
    %6168 = vmatpush1.msra.mxu0 0.0
    %6169 = vmatprep.subr.mxu0 0.0
    %6170 = vmatpush1.msra.mxu0 0.0
    %6171 = vmatprep.subr.mxu0 0.0
    %6172 = vmatpush1.msra.mxu0 0.0
    %6173 = vmatprep.subr.mxu0 0.0
    %6174 = vmatpush1.msra.mxu0 0.0
    %6175 = vmatprep.subr.mxu0 0.0
    %6176 = vmatpush1.msra.mxu0 0.0
    %6177 = vmatprep.subr.mxu0 0.0
    %6178 = vmatpush1.msra.mxu0 0.0
    %6179 = vmatprep.subr.mxu0 0.0
    %6180 = vmatpush1.msra.mxu0 0.0
    %6181 = vmatprep.subr.mxu0 0.0
    %6182 = vmatpush1.msra.mxu0 0.0
    %6183 = vmatprep.subr.mxu0 0.0
    %6184 = vmatpush1.msra.mxu0 0.0
    %6185 = vmatprep.subr.mxu0 0.0
    %6186 = vmatpush1.msra.mxu0 0.0
    %6187 = vmatprep.subr.mxu0 0.0
    %6188 = vmatpush1.msra.mxu0 0.0
    %6189 = vmatprep.subr.mxu0 0.0
    %6190 = vmatpush1.msra.mxu0 0.0
    %6191 = vmatprep.subr.mxu0 0.0
    %6192 = vmatpush1.msra.mxu0 0.0
    %6193 = vmatprep.subr.mxu0 0.0
    %6194 = vmatpush1.msra.mxu0 0.0
    %6195 = vmatprep.subr.mxu0 0.0
    %6196 = vmatpush1.msra.mxu0 0.0
    %6197 = vmatprep.subr.mxu0 0.0
    %6198 = vmatpush1.msra.mxu0 0.0
    %6199 = vmatprep.subr.mxu0 0.0
    %6200 = vmatpush1.msra.mxu0 0.0
    %6201 = vmatprep.subr.mxu0 0.0
    %6202 = vmatpush1.msra.mxu0 0.0
    %6203 = vmatprep.subr.mxu0 0.0
    %6204 = vmatpush1.msra.mxu0 0.0
    %6205 = vmatprep.subr.mxu0 0.0
    %6206 = vmatpush1.msra.mxu0 0.0
    %6207 = vmatprep.subr.mxu0 0.0
    %6208 = vmatpush1.msra.mxu0 0.0
    %6209 = vmatprep.subr.mxu0 0.0
    %6210 = vmatpush1.msra.mxu0 0.0
    %6211 = vmatprep.subr.mxu0 0.0
    %6212 = vmatpush1.msra.mxu0 0.0
    %6213 = vmatprep.subr.mxu0 0.0
    %6214 = vmatpush1.msra.mxu0 0.0
    %6215 = vmatprep.subr.mxu0 0.0
    %6216 = vmatpush1.msra.mxu0 0.0
    %6217 = vmatprep.subr.mxu0 0.0
    %6218 = vmatpush1.msra.mxu0 0.0
    %6219 = vmatprep.subr.mxu0 0.0
    %6220 = vmatpush1.msra.mxu0 0.0
    %6221 = vmatprep.mubr.f32.mxu0 0.0
    %6222 = vmatmul.mubr.f32.gmra.mrb[0].mxu0 %v6146
    %v6223 = vpop.f32.mrb[0].mxu0
    %v6224 = vadd.f32 0.0, %v6223
    %v6225 = vpop.f32.mrb[0].mxu0
    %6226 = vmatprep.mubr.f32.mxu0 0.0
    %6227 = vmatmul.mubr.f32.gmra.mrb[0].mxu0 %v6149
    %v6228 = vpop.f32.mrb[0].mxu0
    %v6229 = vadd.f32 0.0, %v6228
    %v6230 = vpop.f32.mrb[0].mxu0
    %6231 = vmatprep.mubr.f32.mxu0 0.0
    %6232 = vmatmul.mubr.f32.gmra.mrb[0].mxu0 %v6152
    %v6233 = vpop.f32.mrb[0].mxu0
    %v6234 = vadd.f32 0.0, %v6233
    %v6235 = vpop.f32.mrb[0].mxu0
    %6236 = vmatprep.mubr.f32.mxu0 0.0
    %6237 = vmatmul.mubr.f32.gmra.mrb[0].mxu0 %v6155
    %v6238 = vpop.f32.mrb[0].mxu0
    %v6239 = vadd.f32 0.0, %v6238
    %v6240 = vpop.f32.mrb[0].mxu0
    %6241 = vdwg.mxu0
    %v6242 = vsel %vm600, %v6122, 0.0
    %6243 = vadd.xlane.f32.xlu0 %v6242
    %v6244 = vpop.xlane.xlu0 %6243
    %v6245 = vsel %vm600, %v6124, 0.0
    %6246 = vadd.xlane.f32.xlu0 %v6245
    %v6247 = vpop.xlane.xlu0 %6246
    %v6248 = vsel %vm600, %v6126, 0.0
    %6249 = vadd.xlane.f32.xlu0 %v6248
    %v6250 = vpop.xlane.xlu0 %6249
    %v6251 = vsel %vm600, %v6128, 0.0
    %6252 = vadd.xlane.f32.xlu0 %v6251
    %v6253 = vpop.xlane.xlu0 %6252
    %v6254 = vrcp.pop %v6244
    %v6255 = vrcp.pop %v6247
    %v6256 = vrcp.pop %v6250
    %v6257 = vrcp.pop %v6253
    %v6258 = vmul.f32 %v6224, %v6254
    %v6259 = vmul.f32 %v6229, %v6255
    %v6260 = vmul.f32 %v6234, %v6256
    %v6261 = vmul.f32 %v6239, %v6257
    %6266 = vrot.lane.b32.xlu0 %v6258, 16
    %v6267 = vpop.permute.xlu0 %6266
    %6268 = vrot.lane.b32.xlu0 %v6259, 16
    %v6269 = vpop.permute.xlu0 %6268
    %6270 = vrot.lane.b32.xlu0 %v6260, 16
    %v6271 = vpop.permute.xlu0 %6270
    %6272 = vrot.lane.b32.xlu0 %v6261, 16
    %v6273 = vpop.permute.xlu0 %6272
    %6278 = vst.msk [vmem:[#allocation2] sm:$0xff] %vm1036, %v6267
    %6279 = vst.msk [vmem:[#allocation2 + $0x8] sm:$0xff] %vm1036, %v6269
    %6280 = vst.msk [vmem:[#allocation2 + $0x10] sm:$0xff] %vm1036, %v6271
    %6281 = vst.msk [vmem:[#allocation2 + $0x18] sm:$0xff] %vm1036, %v6273
    %6282 = vrot.lane.b32.xlu0 %v5684, 96
    %v6283 = vpop.permute.xlu0 %6282
    %6284 = vrot.lane.b32.xlu0 %v5690, 96
    %v6285 = vpop.permute.xlu0 %6284
    %6286 = vrot.lane.b32.xlu0 %v5696, 96
    %v6287 = vpop.permute.xlu0 %6286
    %6288 = vrot.lane.b32.xlu0 %v5702, 96
    %v6289 = vpop.permute.xlu0 %6288
    %6290 = vrot.lane.b32.xlu0 %v5684, 32
    %v6291 = vpop.permute.xlu0 %6290
    %6292 = vrot.lane.b32.xlu0 %v5690, 32
    %v6293 = vpop.permute.xlu0 %6292
    %6294 = vrot.lane.b32.xlu0 %v5696, 32
    %v6295 = vpop.permute.xlu0 %6294
    %6296 = vrot.lane.b32.xlu0 %v5702, 32
    %v6297 = vpop.permute.xlu0 %6296
    %v6298 = vsel %vm498, %v6283, 0
    %v6300 = vsel %vm498, %v6285, 0
    %v6302 = vsel %vm498, %v6287, 0
    %v6304 = vsel %vm498, %v6289, 0
    %v6306 = vsel %vm498, %v6291, 0
    %v6308 = vsel %vm498, %v6293, 0
    %v6310 = vsel %vm498, %v6295, 0
    %v6312 = vsel %vm498, %v6297, 0
    %6314 = vmatprep.subr.mxu0 0.0
    %6315 = vmatpush1.xpose.msra.mxu0 %v6306
    %6316 = vmatprep.subr.mxu0 0.0
    %6317 = vmatpush1.xpose.msra.mxu0 %v6308
    %6318 = vmatprep.subr.mxu0 0.0
    %6319 = vmatpush1.xpose.msra.mxu0 %v6310
    %6320 = vmatprep.subr.mxu0 0.0
    %6321 = vmatpush1.xpose.msra.mxu0 %v6312
    %6322 = vmatprep.subr.mxu0 0.0
    %6323 = vmatpush1.xpose.msra.mxu0 0.0
    %6324 = vmatprep.subr.mxu0 0.0
    %6325 = vmatpush1.xpose.msra.mxu0 0.0
    %6326 = vmatprep.subr.mxu0 0.0
    %6327 = vmatpush1.xpose.msra.mxu0 0.0
    %6328 = vmatprep.subr.mxu0 0.0
    %6329 = vmatpush1.xpose.msra.mxu0 0.0
    %6330 = vmatprep.subr.mxu0 0.0
    %6331 = vmatpush1.xpose.msra.mxu0 0.0
    %6332 = vmatprep.subr.mxu0 0.0
    %6333 = vmatpush1.xpose.msra.mxu0 0.0
    %6334 = vmatprep.subr.mxu0 0.0
    %6335 = vmatpush1.xpose.msra.mxu0 0.0
    %6336 = vmatprep.subr.mxu0 0.0
    %6337 = vmatpush1.xpose.msra.mxu0 0.0
    %6338 = vmatprep.subr.mxu0 0.0
    %6339 = vmatpush1.xpose.msra.mxu0 0.0
    %6340 = vmatprep.subr.mxu0 0.0
    %6341 = vmatpush1.xpose.msra.mxu0 0.0
    %6342 = vmatprep.subr.mxu0 0.0
    %6343 = vmatpush1.xpose.msra.mxu0 0.0
    %6344 = vmatprep.subr.mxu0 0.0
    %6345 = vmatpush1.xpose.msra.mxu0 0.0
    %6346 = vmatprep.subr.mxu0 0.0
    %6347 = vmatpush1.xpose.msra.mxu0 0.0
    %6348 = vmatprep.subr.mxu0 0.0
    %6349 = vmatpush1.xpose.msra.mxu0 0.0
    %6350 = vmatprep.subr.mxu0 0.0
    %6351 = vmatpush1.xpose.msra.mxu0 0.0
    %6352 = vmatprep.subr.mxu0 0.0
    %6353 = vmatpush1.xpose.msra.mxu0 0.0
    %6354 = vmatprep.subr.mxu0 0.0
    %6355 = vmatpush1.xpose.msra.mxu0 0.0
    %6356 = vmatprep.subr.mxu0 0.0
    %6357 = vmatpush1.xpose.msra.mxu0 0.0
    %6358 = vmatprep.subr.mxu0 0.0
    %6359 = vmatpush1.xpose.msra.mxu0 0.0
    %6360 = vmatprep.subr.mxu0 0.0
    %6361 = vmatpush1.xpose.msra.mxu0 0.0
    %6362 = vmatprep.subr.mxu0 0.0
    %6363 = vmatpush1.xpose.msra.mxu0 0.0
    %6364 = vmatprep.subr.mxu0 0.0
    %6365 = vmatpush1.xpose.msra.mxu0 0.0
    %6366 = vmatprep.subr.mxu0 0.0
    %6367 = vmatpush1.xpose.msra.mxu0 0.0
    %6368 = vmatprep.subr.mxu0 0.0
    %6369 = vmatpush1.xpose.msra.mxu0 0.0
    %6370 = vmatprep.subr.mxu0 0.0
    %6371 = vmatpush1.xpose.msra.mxu0 0.0
    %6372 = vmatprep.subr.mxu0 0.0
    %6373 = vmatpush1.xpose.msra.mxu0 0.0
    %6374 = vmatprep.subr.mxu0 0.0
    %6375 = vmatpush1.xpose.msra.mxu0 0.0
    %6376 = vmatprep.subr.mxu0 0.0
    %6377 = vmatpush1.xpose.msra.mxu0 0.0
    %6378 = vmatprep.mubr.f32.mxu0 0.0
    %6379 = vmatmul.mubr.f32.gmra.mrb[0].mxu0 %v6298
    %v6380 = vpop.f32.mrb[0].mxu0
    %v6381 = vadd.f32 0.0, %v6380
    %v6382 = vpop.f32.mrb[0].mxu0
    %6383 = vmatprep.mubr.f32.mxu0 0.0
    %6384 = vmatmul.mubr.f32.gmra.mrb[0].mxu0 %v6300
    %v6385 = vpop.f32.mrb[0].mxu0
    %v6386 = vadd.f32 0.0, %v6385
    %v6387 = vpop.f32.mrb[0].mxu0
    %6388 = vmatprep.mubr.f32.mxu0 0.0
    %6389 = vmatmul.mubr.f32.gmra.mrb[0].mxu0 %v6302
    %v6390 = vpop.f32.mrb[0].mxu0
    %v6391 = vadd.f32 0.0, %v6390
    %v6392 = vpop.f32.mrb[0].mxu0
    %6393 = vmatprep.mubr.f32.mxu0 0.0
    %6394 = vmatmul.mubr.f32.gmra.mrb[0].mxu0 %v6304
    %v6395 = vpop.f32.mrb[0].mxu0
    %v6396 = vadd.f32 0.0, %v6395
    %v6397 = vpop.f32.mrb[0].mxu0
    %6398 = vdwg.mxu0
    %v6399 = vsel %vm600, %v6381, -inf
    %6400 = vmax.xlane.f32.xlu0 %v6399
    %v6401 = vpop.xlane.xlu0 %6400
    %v6402 = vsel %vm600, %v6386, -inf
    %6403 = vmax.xlane.f32.xlu0 %v6402
    %v6404 = vpop.xlane.xlu0 %6403
    %v6405 = vsel %vm600, %v6391, -inf
    %6406 = vmax.xlane.f32.xlu0 %v6405
    %v6407 = vpop.xlane.xlu0 %6406
    %v6408 = vsel %vm600, %v6396, -inf
    %6409 = vmax.xlane.f32.xlu0 %v6408
    %v6410 = vpop.xlane.xlu0 %6409
    %v6411 = vsub.f32 %v6381, %v6401
    %v6412 = vsub.f32 %v6386, %v6404
    %v6413 = vsub.f32 %v6391, %v6407
    %v6414 = vsub.f32 %v6396, %v6410
    %v6415 = vmul.f32 %v6411, 1.442695
    %v6416 = vpow.pop %v6415
    %v6417 = vmul.f32 %v6412, 1.442695
    %v6418 = vpow.pop %v6417
    %v6419 = vmul.f32 %v6413, 1.442695
    %v6420 = vpow.pop %v6419
    %v6421 = vmul.f32 %v6414, 1.442695
    %v6422 = vpow.pop %v6421
    %6423 = vrot.lane.b32.xlu0 %v5686, 96
    %v6424 = vpop.permute.xlu0 %6423
    %6425 = vrot.lane.b32.xlu0 %v5692, 96
    %v6426 = vpop.permute.xlu0 %6425
    %6427 = vrot.lane.b32.xlu0 %v5698, 96
    %v6428 = vpop.permute.xlu0 %6427
    %6429 = vrot.lane.b32.xlu0 %v5704, 96
    %v6430 = vpop.permute.xlu0 %6429
    %v6436 = vsel %vm600, %v6416, 0
    %v6439 = vsel %vm600, %v6418, 0
    %v6442 = vsel %vm600, %v6420, 0
    %v6445 = vsel %vm600, %v6422, 0
    %6447 = vmatprep.subr.mxu0 0.0
    %6448 = vmatpush1.msra.mxu0 %v6424
    %6449 = vmatprep.subr.mxu0 0.0
    %6450 = vmatpush1.msra.mxu0 %v6426
    %6451 = vmatprep.subr.mxu0 0.0
    %6452 = vmatpush1.msra.mxu0 %v6428
    %6453 = vmatprep.subr.mxu0 0.0
    %6454 = vmatpush1.msra.mxu0 %v6430
    %6455 = vmatprep.subr.mxu0 0.0
    %6456 = vmatpush1.msra.mxu0 0.0
    %6457 = vmatprep.subr.mxu0 0.0
    %6458 = vmatpush1.msra.mxu0 0.0
    %6459 = vmatprep.subr.mxu0 0.0
    %6460 = vmatpush1.msra.mxu0 0.0
    %6461 = vmatprep.subr.mxu0 0.0
    %6462 = vmatpush1.msra.mxu0 0.0
    %6463 = vmatprep.subr.mxu0 0.0
    %6464 = vmatpush1.msra.mxu0 0.0
    %6465 = vmatprep.subr.mxu0 0.0
    %6466 = vmatpush1.msra.mxu0 0.0
    %6467 = vmatprep.subr.mxu0 0.0
    %6468 = vmatpush1.msra.mxu0 0.0
    %6469 = vmatprep.subr.mxu0 0.0
    %6470 = vmatpush1.msra.mxu0 0.0
    %6471 = vmatprep.subr.mxu0 0.0
    %6472 = vmatpush1.msra.mxu0 0.0
    %6473 = vmatprep.subr.mxu0 0.0
    %6474 = vmatpush1.msra.mxu0 0.0
    %6475 = vmatprep.subr.mxu0 0.0
    %6476 = vmatpush1.msra.mxu0 0.0
    %6477 = vmatprep.subr.mxu0 0.0
    %6478 = vmatpush1.msra.mxu0 0.0
    %6479 = vmatprep.subr.mxu0 0.0
    %6480 = vmatpush1.msra.mxu0 0.0
    %6481 = vmatprep.subr.mxu0 0.0
    %6482 = vmatpush1.msra.mxu0 0.0
    %6483 = vmatprep.subr.mxu0 0.0
    %6484 = vmatpush1.msra.mxu0 0.0
    %6485 = vmatprep.subr.mxu0 0.0
    %6486 = vmatpush1.msra.mxu0 0.0
    %6487 = vmatprep.subr.mxu0 0.0
    %6488 = vmatpush1.msra.mxu0 0.0
    %6489 = vmatprep.subr.mxu0 0.0
    %6490 = vmatpush1.msra.mxu0 0.0
    %6491 = vmatprep.subr.mxu0 0.0
    %6492 = vmatpush1.msra.mxu0 0.0
    %6493 = vmatprep.subr.mxu0 0.0
    %6494 = vmatpush1.msra.mxu0 0.0
    %6495 = vmatprep.subr.mxu0 0.0
    %6496 = vmatpush1.msra.mxu0 0.0
    %6497 = vmatprep.subr.mxu0 0.0
    %6498 = vmatpush1.msra.mxu0 0.0
    %6499 = vmatprep.subr.mxu0 0.0
    %6500 = vmatpush1.msra.mxu0 0.0
    %6501 = vmatprep.subr.mxu0 0.0
    %6502 = vmatpush1.msra.mxu0 0.0
    %6503 = vmatprep.subr.mxu0 0.0
    %6504 = vmatpush1.msra.mxu0 0.0
    %6505 = vmatprep.subr.mxu0 0.0
    %6506 = vmatpush1.msra.mxu0 0.0
    %6507 = vmatprep.subr.mxu0 0.0
    %6508 = vmatpush1.msra.mxu0 0.0
    %6509 = vmatprep.subr.mxu0 0.0
    %6510 = vmatpush1.msra.mxu0 0.0
    %6511 = vmatprep.mubr.f32.mxu0 0.0
    %6512 = vmatmul.mubr.f32.gmra.mrb[0].mxu0 %v6436
    %v6513 = vpop.f32.mrb[0].mxu0
    %v6514 = vadd.f32 0.0, %v6513
    %v6515 = vpop.f32.mrb[0].mxu0
    %6516 = vmatprep.mubr.f32.mxu0 0.0
    %6517 = vmatmul.mubr.f32.gmra.mrb[0].mxu0 %v6439
    %v6518 = vpop.f32.mrb[0].mxu0
    %v6519 = vadd.f32 0.0, %v6518
    %v6520 = vpop.f32.mrb[0].mxu0
    %6521 = vmatprep.mubr.f32.mxu0 0.0
    %6522 = vmatmul.mubr.f32.gmra.mrb[0].mxu0 %v6442
    %v6523 = vpop.f32.mrb[0].mxu0
    %v6524 = vadd.f32 0.0, %v6523
    %v6525 = vpop.f32.mrb[0].mxu0
    %6526 = vmatprep.mubr.f32.mxu0 0.0
    %6527 = vmatmul.mubr.f32.gmra.mrb[0].mxu0 %v6445
    %v6528 = vpop.f32.mrb[0].mxu0
    %v6529 = vadd.f32 0.0, %v6528
    %v6530 = vpop.f32.mrb[0].mxu0
    %6531 = vdwg.mxu0
    %v6532 = vsel %vm600, %v6416, 0.0
    %6533 = vadd.xlane.f32.xlu0 %v6532
    %v6534 = vpop.xlane.xlu0 %6533
    %v6535 = vsel %vm600, %v6418, 0.0
    %6536 = vadd.xlane.f32.xlu0 %v6535
    %v6537 = vpop.xlane.xlu0 %6536
    %v6538 = vsel %vm600, %v6420, 0.0
    %6539 = vadd.xlane.f32.xlu0 %v6538
    %v6540 = vpop.xlane.xlu0 %6539
    %v6541 = vsel %vm600, %v6422, 0.0
    %6542 = vadd.xlane.f32.xlu0 %v6541
    %v6543 = vpop.xlane.xlu0 %6542
    %v6544 = vrcp.pop %v6534
    %v6545 = vrcp.pop %v6537
    %v6546 = vrcp.pop %v6540
    %v6547 = vrcp.pop %v6543
    %v6548 = vmul.f32 %v6514, %v6544
    %v6549 = vmul.f32 %v6519, %v6545
    %v6550 = vmul.f32 %v6524, %v6546
    %v6551 = vmul.f32 %v6529, %v6547
    %6556 = vrot.lane.b32.xlu0 %v6548, 32
    %v6557 = vpop.permute.xlu0 %6556
    %6558 = vrot.lane.b32.xlu0 %v6549, 32
    %v6559 = vpop.permute.xlu0 %6558
    %6560 = vrot.lane.b32.xlu0 %v6550, 32
    %v6561 = vpop.permute.xlu0 %6560
    %6562 = vrot.lane.b32.xlu0 %v6551, 32
    %v6563 = vpop.permute.xlu0 %6562
    %6568 = vst.msk [vmem:[#allocation2] sm:$0xff] %vm1327, %v6557
    %6569 = vst.msk [vmem:[#allocation2 + $0x8] sm:$0xff] %vm1327, %v6559
    %6570 = vst.msk [vmem:[#allocation2 + $0x10] sm:$0xff] %vm1327, %v6561
    %6571 = vst.msk [vmem:[#allocation2 + $0x18] sm:$0xff] %vm1327, %v6563
    %6572 = vrot.lane.b32.xlu0 %v5684, 80
    %v6573 = vpop.permute.xlu0 %6572
    %6574 = vrot.lane.b32.xlu0 %v5690, 80
    %v6575 = vpop.permute.xlu0 %6574
    %6576 = vrot.lane.b32.xlu0 %v5696, 80
    %v6577 = vpop.permute.xlu0 %6576
    %6578 = vrot.lane.b32.xlu0 %v5702, 80
    %v6579 = vpop.permute.xlu0 %6578
    %6580 = vrot.lane.b32.xlu0 %v5684, 16
    %v6581 = vpop.permute.xlu0 %6580
    %6582 = vrot.lane.b32.xlu0 %v5690, 16
    %v6583 = vpop.permute.xlu0 %6582
    %6584 = vrot.lane.b32.xlu0 %v5696, 16
    %v6585 = vpop.permute.xlu0 %6584
    %6586 = vrot.lane.b32.xlu0 %v5702, 16
    %v6587 = vpop.permute.xlu0 %6586
    %v6588 = vsel %vm498, %v6573, 0
    %v6590 = vsel %vm498, %v6575, 0
    %v6592 = vsel %vm498, %v6577, 0
    %v6594 = vsel %vm498, %v6579, 0
    %v6596 = vsel %vm498, %v6581, 0
    %v6598 = vsel %vm498, %v6583, 0
    %v6600 = vsel %vm498, %v6585, 0
    %v6602 = vsel %vm498, %v6587, 0
    %6604 = vmatprep.subr.mxu0 0.0
    %6605 = vmatpush1.xpose.msra.mxu0 %v6596
    %6606 = vmatprep.subr.mxu0 0.0
    %6607 = vmatpush1.xpose.msra.mxu0 %v6598
    %6608 = vmatprep.subr.mxu0 0.0
    %6609 = vmatpush1.xpose.msra.mxu0 %v6600
    %6610 = vmatprep.subr.mxu0 0.0
    %6611 = vmatpush1.xpose.msra.mxu0 %v6602
    %6612 = vmatprep.subr.mxu0 0.0
    %6613 = vmatpush1.xpose.msra.mxu0 0.0
    %6614 = vmatprep.subr.mxu0 0.0
    %6615 = vmatpush1.xpose.msra.mxu0 0.0
    %6616 = vmatprep.subr.mxu0 0.0
    %6617 = vmatpush1.xpose.msra.mxu0 0.0
    %6618 = vmatprep.subr.mxu0 0.0
    %6619 = vmatpush1.xpose.msra.mxu0 0.0
    %6620 = vmatprep.subr.mxu0 0.0
    %6621 = vmatpush1.xpose.msra.mxu0 0.0
    %6622 = vmatprep.subr.mxu0 0.0
    %6623 = vmatpush1.xpose.msra.mxu0 0.0
    %6624 = vmatprep.subr.mxu0 0.0
    %6625 = vmatpush1.xpose.msra.mxu0 0.0
    %6626 = vmatprep.subr.mxu0 0.0
    %6627 = vmatpush1.xpose.msra.mxu0 0.0
    %6628 = vmatprep.subr.mxu0 0.0
    %6629 = vmatpush1.xpose.msra.mxu0 0.0
    %6630 = vmatprep.subr.mxu0 0.0
    %6631 = vmatpush1.xpose.msra.mxu0 0.0
    %6632 = vmatprep.subr.mxu0 0.0
    %6633 = vmatpush1.xpose.msra.mxu0 0.0
    %6634 = vmatprep.subr.mxu0 0.0
    %6635 = vmatpush1.xpose.msra.mxu0 0.0
    %6636 = vmatprep.subr.mxu0 0.0
    %6637 = vmatpush1.xpose.msra.mxu0 0.0
    %6638 = vmatprep.subr.mxu0 0.0
    %6639 = vmatpush1.xpose.msra.mxu0 0.0
    %6640 = vmatprep.subr.mxu0 0.0
    %6641 = vmatpush1.xpose.msra.mxu0 0.0
    %6642 = vmatprep.subr.mxu0 0.0
    %6643 = vmatpush1.xpose.msra.mxu0 0.0
    %6644 = vmatprep.subr.mxu0 0.0
    %6645 = vmatpush1.xpose.msra.mxu0 0.0
    %6646 = vmatprep.subr.mxu0 0.0
    %6647 = vmatpush1.xpose.msra.mxu0 0.0
    %6648 = vmatprep.subr.mxu0 0.0
    %6649 = vmatpush1.xpose.msra.mxu0 0.0
    %6650 = vmatprep.subr.mxu0 0.0
    %6651 = vmatpush1.xpose.msra.mxu0 0.0
    %6652 = vmatprep.subr.mxu0 0.0
    %6653 = vmatpush1.xpose.msra.mxu0 0.0
    %6654 = vmatprep.subr.mxu0 0.0
    %6655 = vmatpush1.xpose.msra.mxu0 0.0
    %6656 = vmatprep.subr.mxu0 0.0
    %6657 = vmatpush1.xpose.msra.mxu0 0.0
    %6658 = vmatprep.subr.mxu0 0.0
    %6659 = vmatpush1.xpose.msra.mxu0 0.0
    %6660 = vmatprep.subr.mxu0 0.0
    %6661 = vmatpush1.xpose.msra.mxu0 0.0
    %6662 = vmatprep.subr.mxu0 0.0
    %6663 = vmatpush1.xpose.msra.mxu0 0.0
    %6664 = vmatprep.subr.mxu0 0.0
    %6665 = vmatpush1.xpose.msra.mxu0 0.0
    %6666 = vmatprep.subr.mxu0 0.0
    %6667 = vmatpush1.xpose.msra.mxu0 0.0
    %6668 = vmatprep.mubr.f32.mxu0 0.0
    %6669 = vmatmul.mubr.f32.gmra.mrb[0].mxu0 %v6588
    %v6670 = vpop.f32.mrb[0].mxu0
    %v6671 = vadd.f32 0.0, %v6670
    %v6672 = vpop.f32.mrb[0].mxu0
    %6673 = vmatprep.mubr.f32.mxu0 0.0
    %6674 = vmatmul.mubr.f32.gmra.mrb[0].mxu0 %v6590
    %v6675 = vpop.f32.mrb[0].mxu0
    %v6676 = vadd.f32 0.0, %v6675
    %v6677 = vpop.f32.mrb[0].mxu0
    %6678 = vmatprep.mubr.f32.mxu0 0.0
    %6679 = vmatmul.mubr.f32.gmra.mrb[0].mxu0 %v6592
    %v6680 = vpop.f32.mrb[0].mxu0
    %v6681 = vadd.f32 0.0, %v6680
    %v6682 = vpop.f32.mrb[0].mxu0
    %6683 = vmatprep.mubr.f32.mxu0 0.0
    %6684 = vmatmul.mubr.f32.gmra.mrb[0].mxu0 %v6594
    %v6685 = vpop.f32.mrb[0].mxu0
    %v6686 = vadd.f32 0.0, %v6685
    %v6687 = vpop.f32.mrb[0].mxu0
    %6688 = vdwg.mxu0
    %v6689 = vsel %vm600, %v6671, -inf
    %6690 = vmax.xlane.f32.xlu0 %v6689
    %v6691 = vpop.xlane.xlu0 %6690
    %v6692 = vsel %vm600, %v6676, -inf
    %6693 = vmax.xlane.f32.xlu0 %v6692
    %v6694 = vpop.xlane.xlu0 %6693
    %v6695 = vsel %vm600, %v6681, -inf
    %6696 = vmax.xlane.f32.xlu0 %v6695
    %v6697 = vpop.xlane.xlu0 %6696
    %v6698 = vsel %vm600, %v6686, -inf
    %6699 = vmax.xlane.f32.xlu0 %v6698
    %v6700 = vpop.xlane.xlu0 %6699
    %v6701 = vsub.f32 %v6671, %v6691
    %v6702 = vsub.f32 %v6676, %v6694
    %v6703 = vsub.f32 %v6681, %v6697
    %v6704 = vsub.f32 %v6686, %v6700
    %v6705 = vmul.f32 %v6701, 1.442695
    %v6706 = vpow.pop %v6705
    %v6707 = vmul.f32 %v6702, 1.442695
    %v6708 = vpow.pop %v6707
    %v6709 = vmul.f32 %v6703, 1.442695
    %v6710 = vpow.pop %v6709
    %v6711 = vmul.f32 %v6704, 1.442695
    %v6712 = vpow.pop %v6711
    %6713 = vrot.lane.b32.xlu0 %v5686, 80
    %v6714 = vpop.permute.xlu0 %6713
    %6715 = vrot.lane.b32.xlu0 %v5692, 80
    %v6716 = vpop.permute.xlu0 %6715
    %6717 = vrot.lane.b32.xlu0 %v5698, 80
    %v6718 = vpop.permute.xlu0 %6717
    %6719 = vrot.lane.b32.xlu0 %v5704, 80
    %v6720 = vpop.permute.xlu0 %6719
    %v6726 = vsel %vm600, %v6706, 0
    %v6729 = vsel %vm600, %v6708, 0
    %v6732 = vsel %vm600, %v6710, 0
    %v6735 = vsel %vm600, %v6712, 0
    %6737 = vmatprep.subr.mxu0 0.0
    %6738 = vmatpush1.msra.mxu0 %v6714
    %6739 = vmatprep.subr.mxu0 0.0
    %6740 = vmatpush1.msra.mxu0 %v6716
    %6741 = vmatprep.subr.mxu0 0.0
    %6742 = vmatpush1.msra.mxu0 %v6718
    %6743 = vmatprep.subr.mxu0 0.0
    %6744 = vmatpush1.msra.mxu0 %v6720
    %6745 = vmatprep.subr.mxu0 0.0
    %6746 = vmatpush1.msra.mxu0 0.0
    %6747 = vmatprep.subr.mxu0 0.0
    %6748 = vmatpush1.msra.mxu0 0.0
    %6749 = vmatprep.subr.mxu0 0.0
    %6750 = vmatpush1.msra.mxu0 0.0
    %6751 = vmatprep.subr.mxu0 0.0
    %6752 = vmatpush1.msra.mxu0 0.0
    %6753 = vmatprep.subr.mxu0 0.0
    %6754 = vmatpush1.msra.mxu0 0.0
    %6755 = vmatprep.subr.mxu0 0.0
    %6756 = vmatpush1.msra.mxu0 0.0
    %6757 = vmatprep.subr.mxu0 0.0
    %6758 = vmatpush1.msra.mxu0 0.0
    %6759 = vmatprep.subr.mxu0 0.0
    %6760 = vmatpush1.msra.mxu0 0.0
    %6761 = vmatprep.subr.mxu0 0.0
    %6762 = vmatpush1.msra.mxu0 0.0
    %6763 = vmatprep.subr.mxu0 0.0
    %6764 = vmatpush1.msra.mxu0 0.0
    %6765 = vmatprep.subr.mxu0 0.0
    %6766 = vmatpush1.msra.mxu0 0.0
    %6767 = vmatprep.subr.mxu0 0.0
    %6768 = vmatpush1.msra.mxu0 0.0
    %6769 = vmatprep.subr.mxu0 0.0
    %6770 = vmatpush1.msra.mxu0 0.0
    %6771 = vmatprep.subr.mxu0 0.0
    %6772 = vmatpush1.msra.mxu0 0.0
    %6773 = vmatprep.subr.mxu0 0.0
    %6774 = vmatpush1.msra.mxu0 0.0
    %6775 = vmatprep.subr.mxu0 0.0
    %6776 = vmatpush1.msra.mxu0 0.0
    %6777 = vmatprep.subr.mxu0 0.0
    %6778 = vmatpush1.msra.mxu0 0.0
    %6779 = vmatprep.subr.mxu0 0.0
    %6780 = vmatpush1.msra.mxu0 0.0
    %6781 = vmatprep.subr.mxu0 0.0
    %6782 = vmatpush1.msra.mxu0 0.0
    %6783 = vmatprep.subr.mxu0 0.0
    %6784 = vmatpush1.msra.mxu0 0.0
    %6785 = vmatprep.subr.mxu0 0.0
    %6786 = vmatpush1.msra.mxu0 0.0
    %6787 = vmatprep.subr.mxu0 0.0
    %6788 = vmatpush1.msra.mxu0 0.0
    %6789 = vmatprep.subr.mxu0 0.0
    %6790 = vmatpush1.msra.mxu0 0.0
    %6791 = vmatprep.subr.mxu0 0.0
    %6792 = vmatpush1.msra.mxu0 0.0
    %6793 = vmatprep.subr.mxu0 0.0
    %6794 = vmatpush1.msra.mxu0 0.0
    %6795 = vmatprep.subr.mxu0 0.0
    %6796 = vmatpush1.msra.mxu0 0.0
    %6797 = vmatprep.subr.mxu0 0.0
    %6798 = vmatpush1.msra.mxu0 0.0
    %6799 = vmatprep.subr.mxu0 0.0
    %6800 = vmatpush1.msra.mxu0 0.0
    %6801 = vmatprep.mubr.f32.mxu0 0.0
    %6802 = vmatmul.mubr.f32.gmra.mrb[0].mxu0 %v6726
    %v6803 = vpop.f32.mrb[0].mxu0
    %v6804 = vadd.f32 0.0, %v6803
    %v6805 = vpop.f32.mrb[0].mxu0
    %6806 = vmatprep.mubr.f32.mxu0 0.0
    %6807 = vmatmul.mubr.f32.gmra.mrb[0].mxu0 %v6729
    %v6808 = vpop.f32.mrb[0].mxu0
    %v6809 = vadd.f32 0.0, %v6808
    %v6810 = vpop.f32.mrb[0].mxu0
    %6811 = vmatprep.mubr.f32.mxu0 0.0
    %6812 = vmatmul.mubr.f32.gmra.mrb[0].mxu0 %v6732
    %v6813 = vpop.f32.mrb[0].mxu0
    %v6814 = vadd.f32 0.0, %v6813
    %v6815 = vpop.f32.mrb[0].mxu0
    %6816 = vmatprep.mubr.f32.mxu0 0.0
    %6817 = vmatmul.mubr.f32.gmra.mrb[0].mxu0 %v6735
    %v6818 = vpop.f32.mrb[0].mxu0
    %v6819 = vadd.f32 0.0, %v6818
    %v6820 = vpop.f32.mrb[0].mxu0
    %6821 = vdwg.mxu0
    %v6822 = vsel %vm600, %v6706, 0.0
    %6823 = vadd.xlane.f32.xlu0 %v6822
    %v6824 = vpop.xlane.xlu0 %6823
    %v6825 = vsel %vm600, %v6708, 0.0
    %6826 = vadd.xlane.f32.xlu0 %v6825
    %v6827 = vpop.xlane.xlu0 %6826
    %v6828 = vsel %vm600, %v6710, 0.0
    %6829 = vadd.xlane.f32.xlu0 %v6828
    %v6830 = vpop.xlane.xlu0 %6829
    %v6831 = vsel %vm600, %v6712, 0.0
    %6832 = vadd.xlane.f32.xlu0 %v6831
    %v6833 = vpop.xlane.xlu0 %6832
    %v6834 = vrcp.pop %v6824
    %v6835 = vrcp.pop %v6827
    %v6836 = vrcp.pop %v6830
    %v6837 = vrcp.pop %v6833
    %v6838 = vmul.f32 %v6804, %v6834
    %v6839 = vmul.f32 %v6809, %v6835
    %v6840 = vmul.f32 %v6814, %v6836
    %v6841 = vmul.f32 %v6819, %v6837
    %6846 = vrot.lane.b32.xlu0 %v6838, 48
    %v6847 = vpop.permute.xlu0 %6846
    %6848 = vrot.lane.b32.xlu0 %v6839, 48
    %v6849 = vpop.permute.xlu0 %6848
    %6850 = vrot.lane.b32.xlu0 %v6840, 48
    %v6851 = vpop.permute.xlu0 %6850
    %6852 = vrot.lane.b32.xlu0 %v6841, 48
    %v6853 = vpop.permute.xlu0 %6852
    %6858 = vst.msk [vmem:[#allocation2] sm:$0xff] %vm1618, %v6847
    %6859 = vst.msk [vmem:[#allocation2 + $0x8] sm:$0xff] %vm1618, %v6849
    %6860 = vst.msk [vmem:[#allocation2 + $0x10] sm:$0xff] %vm1618, %v6851
    %6861 = vst.msk [vmem:[#allocation2 + $0x18] sm:$0xff] %vm1618, %v6853
    %6866 = vrot.lane.b32.xlu0 %v5708, 64
    %v6867 = vpop.permute.xlu0 %6866
    %6868 = vrot.lane.b32.xlu0 %v5714, 64
    %v6869 = vpop.permute.xlu0 %6868
    %6870 = vrot.lane.b32.xlu0 %v5720, 64
    %v6871 = vpop.permute.xlu0 %6870
    %6872 = vrot.lane.b32.xlu0 %v5726, 64
    %v6873 = vpop.permute.xlu0 %6872
    %v6874 = vsel %vm498, %v5708, 0
    %v6876 = vsel %vm498, %v5714, 0
    %v6878 = vsel %vm498, %v5720, 0
    %v6880 = vsel %vm498, %v5726, 0
    %v6882 = vsel %vm498, %v6867, 0
    %v6884 = vsel %vm498, %v6869, 0
    %v6886 = vsel %vm498, %v6871, 0
    %v6888 = vsel %vm498, %v6873, 0
    %6890 = vmatprep.subr.mxu0 0.0
    %6891 = vmatpush1.xpose.msra.mxu0 %v6882
    %6892 = vmatprep.subr.mxu0 0.0
    %6893 = vmatpush1.xpose.msra.mxu0 %v6884
    %6894 = vmatprep.subr.mxu0 0.0
    %6895 = vmatpush1.xpose.msra.mxu0 %v6886
    %6896 = vmatprep.subr.mxu0 0.0
    %6897 = vmatpush1.xpose.msra.mxu0 %v6888
    %6898 = vmatprep.subr.mxu0 0.0
    %6899 = vmatpush1.xpose.msra.mxu0 0.0
    %6900 = vmatprep.subr.mxu0 0.0
    %6901 = vmatpush1.xpose.msra.mxu0 0.0
    %6902 = vmatprep.subr.mxu0 0.0
    %6903 = vmatpush1.xpose.msra.mxu0 0.0
    %6904 = vmatprep.subr.mxu0 0.0
    %6905 = vmatpush1.xpose.msra.mxu0 0.0
    %6906 = vmatprep.subr.mxu0 0.0
    %6907 = vmatpush1.xpose.msra.mxu0 0.0
    %6908 = vmatprep.subr.mxu0 0.0
    %6909 = vmatpush1.xpose.msra.mxu0 0.0
    %6910 = vmatprep.subr.mxu0 0.0
    %6911 = vmatpush1.xpose.msra.mxu0 0.0
    %6912 = vmatprep.subr.mxu0 0.0
    %6913 = vmatpush1.xpose.msra.mxu0 0.0
    %6914 = vmatprep.subr.mxu0 0.0
    %6915 = vmatpush1.xpose.msra.mxu0 0.0
    %6916 = vmatprep.subr.mxu0 0.0
    %6917 = vmatpush1.xpose.msra.mxu0 0.0
    %6918 = vmatprep.subr.mxu0 0.0
    %6919 = vmatpush1.xpose.msra.mxu0 0.0
    %6920 = vmatprep.subr.mxu0 0.0
    %6921 = vmatpush1.xpose.msra.mxu0 0.0
    %6922 = vmatprep.subr.mxu0 0.0
    %6923 = vmatpush1.xpose.msra.mxu0 0.0
    %6924 = vmatprep.subr.mxu0 0.0
    %6925 = vmatpush1.xpose.msra.mxu0 0.0
    %6926 = vmatprep.subr.mxu0 0.0
    %6927 = vmatpush1.xpose.msra.mxu0 0.0
    %6928 = vmatprep.subr.mxu0 0.0
    %6929 = vmatpush1.xpose.msra.mxu0 0.0
    %6930 = vmatprep.subr.mxu0 0.0
    %6931 = vmatpush1.xpose.msra.mxu0 0.0
    %6932 = vmatprep.subr.mxu0 0.0
    %6933 = vmatpush1.xpose.msra.mxu0 0.0
    %6934 = vmatprep.subr.mxu0 0.0
    %6935 = vmatpush1.xpose.msra.mxu0 0.0
    %6936 = vmatprep.subr.mxu0 0.0
    %6937 = vmatpush1.xpose.msra.mxu0 0.0
    %6938 = vmatprep.subr.mxu0 0.0
    %6939 = vmatpush1.xpose.msra.mxu0 0.0
    %6940 = vmatprep.subr.mxu0 0.0
    %6941 = vmatpush1.xpose.msra.mxu0 0.0
    %6942 = vmatprep.subr.mxu0 0.0
    %6943 = vmatpush1.xpose.msra.mxu0 0.0
    %6944 = vmatprep.subr.mxu0 0.0
    %6945 = vmatpush1.xpose.msra.mxu0 0.0
    %6946 = vmatprep.subr.mxu0 0.0
    %6947 = vmatpush1.xpose.msra.mxu0 0.0
    %6948 = vmatprep.subr.mxu0 0.0
    %6949 = vmatpush1.xpose.msra.mxu0 0.0
    %6950 = vmatprep.subr.mxu0 0.0
    %6951 = vmatpush1.xpose.msra.mxu0 0.0
    %6952 = vmatprep.subr.mxu0 0.0
    %6953 = vmatpush1.xpose.msra.mxu0 0.0
    %6954 = vmatprep.mubr.f32.mxu0 0.0
    %6955 = vmatmul.mubr.f32.gmra.mrb[0].mxu0 %v6874
    %v6956 = vpop.f32.mrb[0].mxu0
    %v6957 = vadd.f32 0.0, %v6956
    %v6958 = vpop.f32.mrb[0].mxu0
    %6959 = vmatprep.mubr.f32.mxu0 0.0
    %6960 = vmatmul.mubr.f32.gmra.mrb[0].mxu0 %v6876
    %v6961 = vpop.f32.mrb[0].mxu0
    %v6962 = vadd.f32 0.0, %v6961
    %v6963 = vpop.f32.mrb[0].mxu0
    %6964 = vmatprep.mubr.f32.mxu0 0.0
    %6965 = vmatmul.mubr.f32.gmra.mrb[0].mxu0 %v6878
    %v6966 = vpop.f32.mrb[0].mxu0
    %v6967 = vadd.f32 0.0, %v6966
    %v6968 = vpop.f32.mrb[0].mxu0
    %6969 = vmatprep.mubr.f32.mxu0 0.0
    %6970 = vmatmul.mubr.f32.gmra.mrb[0].mxu0 %v6880
    %v6971 = vpop.f32.mrb[0].mxu0
    %v6972 = vadd.f32 0.0, %v6971
    %v6973 = vpop.f32.mrb[0].mxu0
    %6974 = vdwg.mxu0
    %v6975 = vsel %vm600, %v6957, -inf
    %6976 = vmax.xlane.f32.xlu0 %v6975
    %v6977 = vpop.xlane.xlu0 %6976
    %v6978 = vsel %vm600, %v6962, -inf
    %6979 = vmax.xlane.f32.xlu0 %v6978
    %v6980 = vpop.xlane.xlu0 %6979
    %v6981 = vsel %vm600, %v6967, -inf
    %6982 = vmax.xlane.f32.xlu0 %v6981
    %v6983 = vpop.xlane.xlu0 %6982
    %v6984 = vsel %vm600, %v6972, -inf
    %6985 = vmax.xlane.f32.xlu0 %v6984
    %v6986 = vpop.xlane.xlu0 %6985
    %v6987 = vsub.f32 %v6957, %v6977
    %v6988 = vsub.f32 %v6962, %v6980
    %v6989 = vsub.f32 %v6967, %v6983
    %v6990 = vsub.f32 %v6972, %v6986
    %v6991 = vmul.f32 %v6987, 1.442695
    %v6992 = vpow.pop %v6991
    %v6993 = vmul.f32 %v6988, 1.442695
    %v6994 = vpow.pop %v6993
    %v6995 = vmul.f32 %v6989, 1.442695
    %v6996 = vpow.pop %v6995
    %v6997 = vmul.f32 %v6990, 1.442695
    %v6998 = vpow.pop %v6997
    %v7000 = vsel %vm600, %v6992, 0
    %v7003 = vsel %vm600, %v6994, 0
    %v7006 = vsel %vm600, %v6996, 0
    %v7009 = vsel %vm600, %v6998, 0
    %7011 = vmatprep.subr.mxu0 0.0
    %7012 = vmatpush1.msra.mxu0 %v5710
    %7013 = vmatprep.subr.mxu0 0.0
    %7014 = vmatpush1.msra.mxu0 %v5716
    %7015 = vmatprep.subr.mxu0 0.0
    %7016 = vmatpush1.msra.mxu0 %v5722
    %7017 = vmatprep.subr.mxu0 0.0
    %7018 = vmatpush1.msra.mxu0 %v5728
    %7019 = vmatprep.subr.mxu0 0.0
    %7020 = vmatpush1.msra.mxu0 0.0
    %7021 = vmatprep.subr.mxu0 0.0
    %7022 = vmatpush1.msra.mxu0 0.0
    %7023 = vmatprep.subr.mxu0 0.0
    %7024 = vmatpush1.msra.mxu0 0.0
    %7025 = vmatprep.subr.mxu0 0.0
    %7026 = vmatpush1.msra.mxu0 0.0
    %7027 = vmatprep.subr.mxu0 0.0
    %7028 = vmatpush1.msra.mxu0 0.0
    %7029 = vmatprep.subr.mxu0 0.0
    %7030 = vmatpush1.msra.mxu0 0.0
    %7031 = vmatprep.subr.mxu0 0.0
    %7032 = vmatpush1.msra.mxu0 0.0
    %7033 = vmatprep.subr.mxu0 0.0
    %7034 = vmatpush1.msra.mxu0 0.0
    %7035 = vmatprep.subr.mxu0 0.0
    %7036 = vmatpush1.msra.mxu0 0.0
    %7037 = vmatprep.subr.mxu0 0.0
    %7038 = vmatpush1.msra.mxu0 0.0
    %7039 = vmatprep.subr.mxu0 0.0
    %7040 = vmatpush1.msra.mxu0 0.0
    %7041 = vmatprep.subr.mxu0 0.0
    %7042 = vmatpush1.msra.mxu0 0.0
    %7043 = vmatprep.subr.mxu0 0.0
    %7044 = vmatpush1.msra.mxu0 0.0
    %7045 = vmatprep.subr.mxu0 0.0
    %7046 = vmatpush1.msra.mxu0 0.0
    %7047 = vmatprep.subr.mxu0 0.0
    %7048 = vmatpush1.msra.mxu0 0.0
    %7049 = vmatprep.subr.mxu0 0.0
    %7050 = vmatpush1.msra.mxu0 0.0
    %7051 = vmatprep.subr.mxu0 0.0
    %7052 = vmatpush1.msra.mxu0 0.0
    %7053 = vmatprep.subr.mxu0 0.0
    %7054 = vmatpush1.msra.mxu0 0.0
    %7055 = vmatprep.subr.mxu0 0.0
    %7056 = vmatpush1.msra.mxu0 0.0
    %7057 = vmatprep.subr.mxu0 0.0
    %7058 = vmatpush1.msra.mxu0 0.0
    %7059 = vmatprep.subr.mxu0 0.0
    %7060 = vmatpush1.msra.mxu0 0.0
    %7061 = vmatprep.subr.mxu0 0.0
    %7062 = vmatpush1.msra.mxu0 0.0
    %7063 = vmatprep.subr.mxu0 0.0
    %7064 = vmatpush1.msra.mxu0 0.0
    %7065 = vmatprep.subr.mxu0 0.0
    %7066 = vmatpush1.msra.mxu0 0.0
    %7067 = vmatprep.subr.mxu0 0.0
    %7068 = vmatpush1.msra.mxu0 0.0
    %7069 = vmatprep.subr.mxu0 0.0
    %7070 = vmatpush1.msra.mxu0 0.0
    %7071 = vmatprep.subr.mxu0 0.0
    %7072 = vmatpush1.msra.mxu0 0.0
    %7073 = vmatprep.subr.mxu0 0.0
    %7074 = vmatpush1.msra.mxu0 0.0
    %7075 = vmatprep.mubr.f32.mxu0 0.0
    %7076 = vmatmul.mubr.f32.gmra.mrb[0].mxu0 %v7000
    %v7077 = vpop.f32.mrb[0].mxu0
    %v7078 = vadd.f32 0.0, %v7077
    %v7079 = vpop.f32.mrb[0].mxu0
    %7080 = vmatprep.mubr.f32.mxu0 0.0
    %7081 = vmatmul.mubr.f32.gmra.mrb[0].mxu0 %v7003
    %v7082 = vpop.f32.mrb[0].mxu0
    %v7083 = vadd.f32 0.0, %v7082
    %v7084 = vpop.f32.mrb[0].mxu0
    %7085 = vmatprep.mubr.f32.mxu0 0.0
    %7086 = vmatmul.mubr.f32.gmra.mrb[0].mxu0 %v7006
    %v7087 = vpop.f32.mrb[0].mxu0
    %v7088 = vadd.f32 0.0, %v7087
    %v7089 = vpop.f32.mrb[0].mxu0
    %7090 = vmatprep.mubr.f32.mxu0 0.0
    %7091 = vmatmul.mubr.f32.gmra.mrb[0].mxu0 %v7009
    %v7092 = vpop.f32.mrb[0].mxu0
    %v7093 = vadd.f32 0.0, %v7092
    %v7094 = vpop.f32.mrb[0].mxu0
    %7095 = vdwg.mxu0
    %v7096 = vsel %vm600, %v6992, 0.0
    %7097 = vadd.xlane.f32.xlu0 %v7096
    %v7098 = vpop.xlane.xlu0 %7097
    %v7099 = vsel %vm600, %v6994, 0.0
    %7100 = vadd.xlane.f32.xlu0 %v7099
    %v7101 = vpop.xlane.xlu0 %7100
    %v7102 = vsel %vm600, %v6996, 0.0
    %7103 = vadd.xlane.f32.xlu0 %v7102
    %v7104 = vpop.xlane.xlu0 %7103
    %v7105 = vsel %vm600, %v6998, 0.0
    %7106 = vadd.xlane.f32.xlu0 %v7105
    %v7107 = vpop.xlane.xlu0 %7106
    %v7108 = vrcp.pop %v7098
    %v7109 = vrcp.pop %v7101
    %v7110 = vrcp.pop %v7104
    %v7111 = vrcp.pop %v7107
    %v7112 = vmul.f32 %v7078, %v7108
    %v7113 = vmul.f32 %v7083, %v7109
    %v7114 = vmul.f32 %v7088, %v7110
    %v7115 = vmul.f32 %v7093, %v7111
    %7116 = vst.msk [vmem:[#allocation2 + $0x20] sm:$0xff] %vm498, %v7112
    %7117 = vst.msk [vmem:[#allocation2 + $0x28] sm:$0xff] %vm498, %v7113
    %7118 = vst.msk [vmem:[#allocation2 + $0x30] sm:$0xff] %vm498, %v7114
    %7119 = vst.msk [vmem:[#allocation2 + $0x38] sm:$0xff] %vm498, %v7115
    %7120 = vrot.lane.b32.xlu0 %v5708, 112
    %v7121 = vpop.permute.xlu0 %7120
    %7122 = vrot.lane.b32.xlu0 %v5714, 112
    %v7123 = vpop.permute.xlu0 %7122
    %7124 = vrot.lane.b32.xlu0 %v5720, 112
    %v7125 = vpop.permute.xlu0 %7124
    %7126 = vrot.lane.b32.xlu0 %v5726, 112
    %v7127 = vpop.permute.xlu0 %7126
    %7128 = vrot.lane.b32.xlu0 %v5708, 48
    %v7129 = vpop.permute.xlu0 %7128
    %7130 = vrot.lane.b32.xlu0 %v5714, 48
    %v7131 = vpop.permute.xlu0 %7130
    %7132 = vrot.lane.b32.xlu0 %v5720, 48
    %v7133 = vpop.permute.xlu0 %7132
    %7134 = vrot.lane.b32.xlu0 %v5726, 48
    %v7135 = vpop.permute.xlu0 %7134
    %v7136 = vsel %vm498, %v7121, 0
    %v7138 = vsel %vm498, %v7123, 0
    %v7140 = vsel %vm498, %v7125, 0
    %v7142 = vsel %vm498, %v7127, 0
    %v7144 = vsel %vm498, %v7129, 0
    %v7146 = vsel %vm498, %v7131, 0
    %v7148 = vsel %vm498, %v7133, 0
    %v7150 = vsel %vm498, %v7135, 0
    %7152 = vmatprep.subr.mxu0 0.0
    %7153 = vmatpush1.xpose.msra.mxu0 %v7144
    %7154 = vmatprep.subr.mxu0 0.0
    %7155 = vmatpush1.xpose.msra.mxu0 %v7146
    %7156 = vmatprep.subr.mxu0 0.0
    %7157 = vmatpush1.xpose.msra.mxu0 %v7148
    %7158 = vmatprep.subr.mxu0 0.0
    %7159 = vmatpush1.xpose.msra.mxu0 %v7150
    %7160 = vmatprep.subr.mxu0 0.0
    %7161 = vmatpush1.xpose.msra.mxu0 0.0
    %7162 = vmatprep.subr.mxu0 0.0
    %7163 = vmatpush1.xpose.msra.mxu0 0.0
    %7164 = vmatprep.subr.mxu0 0.0
    %7165 = vmatpush1.xpose.msra.mxu0 0.0
    %7166 = vmatprep.subr.mxu0 0.0
    %7167 = vmatpush1.xpose.msra.mxu0 0.0
    %7168 = vmatprep.subr.mxu0 0.0
    %7169 = vmatpush1.xpose.msra.mxu0 0.0
    %7170 = vmatprep.subr.mxu0 0.0
    %7171 = vmatpush1.xpose.msra.mxu0 0.0
    %7172 = vmatprep.subr.mxu0 0.0
    %7173 = vmatpush1.xpose.msra.mxu0 0.0
    %7174 = vmatprep.subr.mxu0 0.0
    %7175 = vmatpush1.xpose.msra.mxu0 0.0
    %7176 = vmatprep.subr.mxu0 0.0
    %7177 = vmatpush1.xpose.msra.mxu0 0.0
    %7178 = vmatprep.subr.mxu0 0.0
    %7179 = vmatpush1.xpose.msra.mxu0 0.0
    %7180 = vmatprep.subr.mxu0 0.0
    %7181 = vmatpush1.xpose.msra.mxu0 0.0
    %7182 = vmatprep.subr.mxu0 0.0
    %7183 = vmatpush1.xpose.msra.mxu0 0.0
    %7184 = vmatprep.subr.mxu0 0.0
    %7185 = vmatpush1.xpose.msra.mxu0 0.0
    %7186 = vmatprep.subr.mxu0 0.0
    %7187 = vmatpush1.xpose.msra.mxu0 0.0
    %7188 = vmatprep.subr.mxu0 0.0
    %7189 = vmatpush1.xpose.msra.mxu0 0.0
    %7190 = vmatprep.subr.mxu0 0.0
    %7191 = vmatpush1.xpose.msra.mxu0 0.0
    %7192 = vmatprep.subr.mxu0 0.0
    %7193 = vmatpush1.xpose.msra.mxu0 0.0
    %7194 = vmatprep.subr.mxu0 0.0
    %7195 = vmatpush1.xpose.msra.mxu0 0.0
    %7196 = vmatprep.subr.mxu0 0.0
    %7197 = vmatpush1.xpose.msra.mxu0 0.0
    %7198 = vmatprep.subr.mxu0 0.0
    %7199 = vmatpush1.xpose.msra.mxu0 0.0
    %7200 = vmatprep.subr.mxu0 0.0
    %7201 = vmatpush1.xpose.msra.mxu0 0.0
    %7202 = vmatprep.subr.mxu0 0.0
    %7203 = vmatpush1.xpose.msra.mxu0 0.0
    %7204 = vmatprep.subr.mxu0 0.0
    %7205 = vmatpush1.xpose.msra.mxu0 0.0
    %7206 = vmatprep.subr.mxu0 0.0
    %7207 = vmatpush1.xpose.msra.mxu0 0.0
    %7208 = vmatprep.subr.mxu0 0.0
    %7209 = vmatpush1.xpose.msra.mxu0 0.0
    %7210 = vmatprep.subr.mxu0 0.0
    %7211 = vmatpush1.xpose.msra.mxu0 0.0
    %7212 = vmatprep.subr.mxu0 0.0
    %7213 = vmatpush1.xpose.msra.mxu0 0.0
    %7214 = vmatprep.subr.mxu0 0.0
    %7215 = vmatpush1.xpose.msra.mxu0 0.0
    %7216 = vmatprep.mubr.f32.mxu0 0.0
    %7217 = vmatmul.mubr.f32.gmra.mrb[0].mxu0 %v7136
    %v7218 = vpop.f32.mrb[0].mxu0
    %v7219 = vadd.f32 0.0, %v7218
    %v7220 = vpop.f32.mrb[0].mxu0
    %7221 = vmatprep.mubr.f32.mxu0 0.0
    %7222 = vmatmul.mubr.f32.gmra.mrb[0].mxu0 %v7138
    %v7223 = vpop.f32.mrb[0].mxu0
    %v7224 = vadd.f32 0.0, %v7223
    %v7225 = vpop.f32.mrb[0].mxu0
    %7226 = vmatprep.mubr.f32.mxu0 0.0
    %7227 = vmatmul.mubr.f32.gmra.mrb[0].mxu0 %v7140
    %v7228 = vpop.f32.mrb[0].mxu0
    %v7229 = vadd.f32 0.0, %v7228
    %v7230 = vpop.f32.mrb[0].mxu0
    %7231 = vmatprep.mubr.f32.mxu0 0.0
    %7232 = vmatmul.mubr.f32.gmra.mrb[0].mxu0 %v7142
    %v7233 = vpop.f32.mrb[0].mxu0
    %v7234 = vadd.f32 0.0, %v7233
    %v7235 = vpop.f32.mrb[0].mxu0
    %7236 = vdwg.mxu0
    %v7237 = vsel %vm600, %v7219, -inf
    %7238 = vmax.xlane.f32.xlu0 %v7237
    %v7239 = vpop.xlane.xlu0 %7238
    %v7240 = vsel %vm600, %v7224, -inf
    %7241 = vmax.xlane.f32.xlu0 %v7240
    %v7242 = vpop.xlane.xlu0 %7241
    %v7243 = vsel %vm600, %v7229, -inf
    %7244 = vmax.xlane.f32.xlu0 %v7243
    %v7245 = vpop.xlane.xlu0 %7244
    %v7246 = vsel %vm600, %v7234, -inf
    %7247 = vmax.xlane.f32.xlu0 %v7246
    %v7248 = vpop.xlane.xlu0 %7247
    %v7249 = vsub.f32 %v7219, %v7239
    %v7250 = vsub.f32 %v7224, %v7242
    %v7251 = vsub.f32 %v7229, %v7245
    %v7252 = vsub.f32 %v7234, %v7248
    %v7253 = vmul.f32 %v7249, 1.442695
    %v7254 = vpow.pop %v7253
    %v7255 = vmul.f32 %v7250, 1.442695
    %v7256 = vpow.pop %v7255
    %v7257 = vmul.f32 %v7251, 1.442695
    %v7258 = vpow.pop %v7257
    %v7259 = vmul.f32 %v7252, 1.442695
    %v7260 = vpow.pop %v7259
    %7265 = vrot.lane.b32.xlu0 %v5710, 112
    %v7266 = vpop.permute.xlu0 %7265
    %7267 = vrot.lane.b32.xlu0 %v5716, 112
    %v7268 = vpop.permute.xlu0 %7267
    %7269 = vrot.lane.b32.xlu0 %v5722, 112
    %v7270 = vpop.permute.xlu0 %7269
    %7271 = vrot.lane.b32.xlu0 %v5728, 112
    %v7272 = vpop.permute.xlu0 %7271
    %v7278 = vsel %vm600, %v7254, 0
    %v7281 = vsel %vm600, %v7256, 0
    %v7284 = vsel %vm600, %v7258, 0
    %v7287 = vsel %vm600, %v7260, 0
    %7289 = vmatprep.subr.mxu0 0.0
    %7290 = vmatpush1.msra.mxu0 %v7266
    %7291 = vmatprep.subr.mxu0 0.0
    %7292 = vmatpush1.msra.mxu0 %v7268
    %7293 = vmatprep.subr.mxu0 0.0
    %7294 = vmatpush1.msra.mxu0 %v7270
    %7295 = vmatprep.subr.mxu0 0.0
    %7296 = vmatpush1.msra.mxu0 %v7272
    %7297 = vmatprep.subr.mxu0 0.0
    %7298 = vmatpush1.msra.mxu0 0.0
    %7299 = vmatprep.subr.mxu0 0.0
    %7300 = vmatpush1.msra.mxu0 0.0
    %7301 = vmatprep.subr.mxu0 0.0
    %7302 = vmatpush1.msra.mxu0 0.0
    %7303 = vmatprep.subr.mxu0 0.0
    %7304 = vmatpush1.msra.mxu0 0.0
    %7305 = vmatprep.subr.mxu0 0.0
    %7306 = vmatpush1.msra.mxu0 0.0
    %7307 = vmatprep.subr.mxu0 0.0
    %7308 = vmatpush1.msra.mxu0 0.0
    %7309 = vmatprep.subr.mxu0 0.0
    %7310 = vmatpush1.msra.mxu0 0.0
    %7311 = vmatprep.subr.mxu0 0.0
    %7312 = vmatpush1.msra.mxu0 0.0
    %7313 = vmatprep.subr.mxu0 0.0
    %7314 = vmatpush1.msra.mxu0 0.0
    %7315 = vmatprep.subr.mxu0 0.0
    %7316 = vmatpush1.msra.mxu0 0.0
    %7317 = vmatprep.subr.mxu0 0.0
    %7318 = vmatpush1.msra.mxu0 0.0
    %7319 = vmatprep.subr.mxu0 0.0
    %7320 = vmatpush1.msra.mxu0 0.0
    %7321 = vmatprep.subr.mxu0 0.0
    %7322 = vmatpush1.msra.mxu0 0.0
    %7323 = vmatprep.subr.mxu0 0.0
    %7324 = vmatpush1.msra.mxu0 0.0
    %7325 = vmatprep.subr.mxu0 0.0
    %7326 = vmatpush1.msra.mxu0 0.0
    %7327 = vmatprep.subr.mxu0 0.0
    %7328 = vmatpush1.msra.mxu0 0.0
    %7329 = vmatprep.subr.mxu0 0.0
    %7330 = vmatpush1.msra.mxu0 0.0
    %7331 = vmatprep.subr.mxu0 0.0
    %7332 = vmatpush1.msra.mxu0 0.0
    %7333 = vmatprep.subr.mxu0 0.0
    %7334 = vmatpush1.msra.mxu0 0.0
    %7335 = vmatprep.subr.mxu0 0.0
    %7336 = vmatpush1.msra.mxu0 0.0
    %7337 = vmatprep.subr.mxu0 0.0
    %7338 = vmatpush1.msra.mxu0 0.0
    %7339 = vmatprep.subr.mxu0 0.0
    %7340 = vmatpush1.msra.mxu0 0.0
    %7341 = vmatprep.subr.mxu0 0.0
    %7342 = vmatpush1.msra.mxu0 0.0
    %7343 = vmatprep.subr.mxu0 0.0
    %7344 = vmatpush1.msra.mxu0 0.0
    %7345 = vmatprep.subr.mxu0 0.0
    %7346 = vmatpush1.msra.mxu0 0.0
    %7347 = vmatprep.subr.mxu0 0.0
    %7348 = vmatpush1.msra.mxu0 0.0
    %7349 = vmatprep.subr.mxu0 0.0
    %7350 = vmatpush1.msra.mxu0 0.0
    %7351 = vmatprep.subr.mxu0 0.0
    %7352 = vmatpush1.msra.mxu0 0.0
    %7353 = vmatprep.mubr.f32.mxu0 0.0
    %7354 = vmatmul.mubr.f32.gmra.mrb[0].mxu0 %v7278
    %v7355 = vpop.f32.mrb[0].mxu0
    %v7356 = vadd.f32 0.0, %v7355
    %v7357 = vpop.f32.mrb[0].mxu0
    %7358 = vmatprep.mubr.f32.mxu0 0.0
    %7359 = vmatmul.mubr.f32.gmra.mrb[0].mxu0 %v7281
    %v7360 = vpop.f32.mrb[0].mxu0
    %v7361 = vadd.f32 0.0, %v7360
    %v7362 = vpop.f32.mrb[0].mxu0
    %7363 = vmatprep.mubr.f32.mxu0 0.0
    %7364 = vmatmul.mubr.f32.gmra.mrb[0].mxu0 %v7284
    %v7365 = vpop.f32.mrb[0].mxu0
    %v7366 = vadd.f32 0.0, %v7365
    %v7367 = vpop.f32.mrb[0].mxu0
    %7368 = vmatprep.mubr.f32.mxu0 0.0
    %7369 = vmatmul.mubr.f32.gmra.mrb[0].mxu0 %v7287
    %v7370 = vpop.f32.mrb[0].mxu0
    %v7371 = vadd.f32 0.0, %v7370
    %v7372 = vpop.f32.mrb[0].mxu0
    %7373 = vdwg.mxu0
    %v7374 = vsel %vm600, %v7254, 0.0
    %7375 = vadd.xlane.f32.xlu0 %v7374
    %v7376 = vpop.xlane.xlu0 %7375
    %v7377 = vsel %vm600, %v7256, 0.0
    %7378 = vadd.xlane.f32.xlu0 %v7377
    %v7379 = vpop.xlane.xlu0 %7378
    %v7380 = vsel %vm600, %v7258, 0.0
    %7381 = vadd.xlane.f32.xlu0 %v7380
    %v7382 = vpop.xlane.xlu0 %7381
    %v7383 = vsel %vm600, %v7260, 0.0
    %7384 = vadd.xlane.f32.xlu0 %v7383
    %v7385 = vpop.xlane.xlu0 %7384
    %v7386 = vrcp.pop %v7376
    %v7387 = vrcp.pop %v7379
    %v7388 = vrcp.pop %v7382
    %v7389 = vrcp.pop %v7385
    %v7390 = vmul.f32 %v7356, %v7386
    %v7391 = vmul.f32 %v7361, %v7387
    %v7392 = vmul.f32 %v7366, %v7388
    %v7393 = vmul.f32 %v7371, %v7389
    %7398 = vrot.lane.b32.xlu0 %v7390, 16
    %v7399 = vpop.permute.xlu0 %7398
    %7400 = vrot.lane.b32.xlu0 %v7391, 16
    %v7401 = vpop.permute.xlu0 %7400
    %7402 = vrot.lane.b32.xlu0 %v7392, 16
    %v7403 = vpop.permute.xlu0 %7402
    %7404 = vrot.lane.b32.xlu0 %v7393, 16
    %v7405 = vpop.permute.xlu0 %7404
    %7410 = vst.msk [vmem:[#allocation2 + $0x20] sm:$0xff] %vm1036, %v7399
    %7411 = vst.msk [vmem:[#allocation2 + $0x28] sm:$0xff] %vm1036, %v7401
    %7412 = vst.msk [vmem:[#allocation2 + $0x30] sm:$0xff] %vm1036, %v7403
    %7413 = vst.msk [vmem:[#allocation2 + $0x38] sm:$0xff] %vm1036, %v7405
    %7414 = vrot.lane.b32.xlu0 %v5708, 96
    %v7415 = vpop.permute.xlu0 %7414
    %7416 = vrot.lane.b32.xlu0 %v5714, 96
    %v7417 = vpop.permute.xlu0 %7416
    %7418 = vrot.lane.b32.xlu0 %v5720, 96
    %v7419 = vpop.permute.xlu0 %7418
    %7420 = vrot.lane.b32.xlu0 %v5726, 96
    %v7421 = vpop.permute.xlu0 %7420
    %7422 = vrot.lane.b32.xlu0 %v5708, 32
    %v7423 = vpop.permute.xlu0 %7422
    %7424 = vrot.lane.b32.xlu0 %v5714, 32
    %v7425 = vpop.permute.xlu0 %7424
    %7426 = vrot.lane.b32.xlu0 %v5720, 32
    %v7427 = vpop.permute.xlu0 %7426
    %7428 = vrot.lane.b32.xlu0 %v5726, 32
    %v7429 = vpop.permute.xlu0 %7428
    %v7430 = vsel %vm498, %v7415, 0
    %v7432 = vsel %vm498, %v7417, 0
    %v7434 = vsel %vm498, %v7419, 0
    %v7436 = vsel %vm498, %v7421, 0
    %v7438 = vsel %vm498, %v7423, 0
    %v7440 = vsel %vm498, %v7425, 0
    %v7442 = vsel %vm498, %v7427, 0
    %v7444 = vsel %vm498, %v7429, 0
    %7446 = vmatprep.subr.mxu0 0.0
    %7447 = vmatpush1.xpose.msra.mxu0 %v7438
    %7448 = vmatprep.subr.mxu0 0.0
    %7449 = vmatpush1.xpose.msra.mxu0 %v7440
    %7450 = vmatprep.subr.mxu0 0.0
    %7451 = vmatpush1.xpose.msra.mxu0 %v7442
    %7452 = vmatprep.subr.mxu0 0.0
    %7453 = vmatpush1.xpose.msra.mxu0 %v7444
    %7454 = vmatprep.subr.mxu0 0.0
    %7455 = vmatpush1.xpose.msra.mxu0 0.0
    %7456 = vmatprep.subr.mxu0 0.0
    %7457 = vmatpush1.xpose.msra.mxu0 0.0
    %7458 = vmatprep.subr.mxu0 0.0
    %7459 = vmatpush1.xpose.msra.mxu0 0.0
    %7460 = vmatprep.subr.mxu0 0.0
    %7461 = vmatpush1.xpose.msra.mxu0 0.0
    %7462 = vmatprep.subr.mxu0 0.0
    %7463 = vmatpush1.xpose.msra.mxu0 0.0
    %7464 = vmatprep.subr.mxu0 0.0
    %7465 = vmatpush1.xpose.msra.mxu0 0.0
    %7466 = vmatprep.subr.mxu0 0.0
    %7467 = vmatpush1.xpose.msra.mxu0 0.0
    %7468 = vmatprep.subr.mxu0 0.0
    %7469 = vmatpush1.xpose.msra.mxu0 0.0
    %7470 = vmatprep.subr.mxu0 0.0
    %7471 = vmatpush1.xpose.msra.mxu0 0.0
    %7472 = vmatprep.subr.mxu0 0.0
    %7473 = vmatpush1.xpose.msra.mxu0 0.0
    %7474 = vmatprep.subr.mxu0 0.0
    %7475 = vmatpush1.xpose.msra.mxu0 0.0
    %7476 = vmatprep.subr.mxu0 0.0
    %7477 = vmatpush1.xpose.msra.mxu0 0.0
    %7478 = vmatprep.subr.mxu0 0.0
    %7479 = vmatpush1.xpose.msra.mxu0 0.0
    %7480 = vmatprep.subr.mxu0 0.0
    %7481 = vmatpush1.xpose.msra.mxu0 0.0
    %7482 = vmatprep.subr.mxu0 0.0
    %7483 = vmatpush1.xpose.msra.mxu0 0.0
    %7484 = vmatprep.subr.mxu0 0.0
    %7485 = vmatpush1.xpose.msra.mxu0 0.0
    %7486 = vmatprep.subr.mxu0 0.0
    %7487 = vmatpush1.xpose.msra.mxu0 0.0
    %7488 = vmatprep.subr.mxu0 0.0
    %7489 = vmatpush1.xpose.msra.mxu0 0.0
    %7490 = vmatprep.subr.mxu0 0.0
    %7491 = vmatpush1.xpose.msra.mxu0 0.0
    %7492 = vmatprep.subr.mxu0 0.0
    %7493 = vmatpush1.xpose.msra.mxu0 0.0
    %7494 = vmatprep.subr.mxu0 0.0
    %7495 = vmatpush1.xpose.msra.mxu0 0.0
    %7496 = vmatprep.subr.mxu0 0.0
    %7497 = vmatpush1.xpose.msra.mxu0 0.0
    %7498 = vmatprep.subr.mxu0 0.0
    %7499 = vmatpush1.xpose.msra.mxu0 0.0
    %7500 = vmatprep.subr.mxu0 0.0
    %7501 = vmatpush1.xpose.msra.mxu0 0.0
    %7502 = vmatprep.subr.mxu0 0.0
    %7503 = vmatpush1.xpose.msra.mxu0 0.0
    %7504 = vmatprep.subr.mxu0 0.0
    %7505 = vmatpush1.xpose.msra.mxu0 0.0
    %7506 = vmatprep.subr.mxu0 0.0
    %7507 = vmatpush1.xpose.msra.mxu0 0.0
    %7508 = vmatprep.subr.mxu0 0.0
    %7509 = vmatpush1.xpose.msra.mxu0 0.0
    %7510 = vmatprep.mubr.f32.mxu0 0.0
    %7511 = vmatmul.mubr.f32.gmra.mrb[0].mxu0 %v7430
    %v7512 = vpop.f32.mrb[0].mxu0
    %v7513 = vadd.f32 0.0, %v7512
    %v7514 = vpop.f32.mrb[0].mxu0
    %7515 = vmatprep.mubr.f32.mxu0 0.0
    %7516 = vmatmul.mubr.f32.gmra.mrb[0].mxu0 %v7432
    %v7517 = vpop.f32.mrb[0].mxu0
    %v7518 = vadd.f32 0.0, %v7517
    %v7519 = vpop.f32.mrb[0].mxu0
    %7520 = vmatprep.mubr.f32.mxu0 0.0
    %7521 = vmatmul.mubr.f32.gmra.mrb[0].mxu0 %v7434
    %v7522 = vpop.f32.mrb[0].mxu0
    %v7523 = vadd.f32 0.0, %v7522
    %v7524 = vpop.f32.mrb[0].mxu0
    %7525 = vmatprep.mubr.f32.mxu0 0.0
    %7526 = vmatmul.mubr.f32.gmra.mrb[0].mxu0 %v7436
    %v7527 = vpop.f32.mrb[0].mxu0
    %v7528 = vadd.f32 0.0, %v7527
    %v7529 = vpop.f32.mrb[0].mxu0
    %7530 = vdwg.mxu0
    %v7531 = vsel %vm600, %v7513, -inf
    %7532 = vmax.xlane.f32.xlu0 %v7531
    %v7533 = vpop.xlane.xlu0 %7532
    %v7534 = vsel %vm600, %v7518, -inf
    %7535 = vmax.xlane.f32.xlu0 %v7534
    %v7536 = vpop.xlane.xlu0 %7535
    %v7537 = vsel %vm600, %v7523, -inf
    %7538 = vmax.xlane.f32.xlu0 %v7537
    %v7539 = vpop.xlane.xlu0 %7538
    %v7540 = vsel %vm600, %v7528, -inf
    %7541 = vmax.xlane.f32.xlu0 %v7540
    %v7542 = vpop.xlane.xlu0 %7541
    %v7543 = vsub.f32 %v7513, %v7533
    %v7544 = vsub.f32 %v7518, %v7536
    %v7545 = vsub.f32 %v7523, %v7539
    %v7546 = vsub.f32 %v7528, %v7542
    %v7547 = vmul.f32 %v7543, 1.442695
    %v7548 = vpow.pop %v7547
    %v7549 = vmul.f32 %v7544, 1.442695
    %v7550 = vpow.pop %v7549
    %v7551 = vmul.f32 %v7545, 1.442695
    %v7552 = vpow.pop %v7551
    %v7553 = vmul.f32 %v7546, 1.442695
    %v7554 = vpow.pop %v7553
    %7555 = vrot.lane.b32.xlu0 %v5710, 96
    %v7556 = vpop.permute.xlu0 %7555
    %7557 = vrot.lane.b32.xlu0 %v5716, 96
    %v7558 = vpop.permute.xlu0 %7557
    %7559 = vrot.lane.b32.xlu0 %v5722, 96
    %v7560 = vpop.permute.xlu0 %7559
    %7561 = vrot.lane.b32.xlu0 %v5728, 96
    %v7562 = vpop.permute.xlu0 %7561
    %v7568 = vsel %vm600, %v7548, 0
    %v7571 = vsel %vm600, %v7550, 0
    %v7574 = vsel %vm600, %v7552, 0
    %v7577 = vsel %vm600, %v7554, 0
    %7579 = vmatprep.subr.mxu0 0.0
    %7580 = vmatpush1.msra.mxu0 %v7556
    %7581 = vmatprep.subr.mxu0 0.0
    %7582 = vmatpush1.msra.mxu0 %v7558
    %7583 = vmatprep.subr.mxu0 0.0
    %7584 = vmatpush1.msra.mxu0 %v7560
    %7585 = vmatprep.subr.mxu0 0.0
    %7586 = vmatpush1.msra.mxu0 %v7562
    %7587 = vmatprep.subr.mxu0 0.0
    %7588 = vmatpush1.msra.mxu0 0.0
    %7589 = vmatprep.subr.mxu0 0.0
    %7590 = vmatpush1.msra.mxu0 0.0
    %7591 = vmatprep.subr.mxu0 0.0
    %7592 = vmatpush1.msra.mxu0 0.0
    %7593 = vmatprep.subr.mxu0 0.0
    %7594 = vmatpush1.msra.mxu0 0.0
    %7595 = vmatprep.subr.mxu0 0.0
    %7596 = vmatpush1.msra.mxu0 0.0
    %7597 = vmatprep.subr.mxu0 0.0
    %7598 = vmatpush1.msra.mxu0 0.0
    %7599 = vmatprep.subr.mxu0 0.0
    %7600 = vmatpush1.msra.mxu0 0.0
    %7601 = vmatprep.subr.mxu0 0.0
    %7602 = vmatpush1.msra.mxu0 0.0
    %7603 = vmatprep.subr.mxu0 0.0
    %7604 = vmatpush1.msra.mxu0 0.0
    %7605 = vmatprep.subr.mxu0 0.0
    %7606 = vmatpush1.msra.mxu0 0.0
    %7607 = vmatprep.subr.mxu0 0.0
    %7608 = vmatpush1.msra.mxu0 0.0
    %7609 = vmatprep.subr.mxu0 0.0
    %7610 = vmatpush1.msra.mxu0 0.0
    %7611 = vmatprep.subr.mxu0 0.0
    %7612 = vmatpush1.msra.mxu0 0.0
    %7613 = vmatprep.subr.mxu0 0.0
    %7614 = vmatpush1.msra.mxu0 0.0
    %7615 = vmatprep.subr.mxu0 0.0
    %7616 = vmatpush1.msra.mxu0 0.0
    %7617 = vmatprep.subr.mxu0 0.0
    %7618 = vmatpush1.msra.mxu0 0.0
    %7619 = vmatprep.subr.mxu0 0.0
    %7620 = vmatpush1.msra.mxu0 0.0
    %7621 = vmatprep.subr.mxu0 0.0
    %7622 = vmatpush1.msra.mxu0 0.0
    %7623 = vmatprep.subr.mxu0 0.0
    %7624 = vmatpush1.msra.mxu0 0.0
    %7625 = vmatprep.subr.mxu0 0.0
    %7626 = vmatpush1.msra.mxu0 0.0
    %7627 = vmatprep.subr.mxu0 0.0
    %7628 = vmatpush1.msra.mxu0 0.0
    %7629 = vmatprep.subr.mxu0 0.0
    %7630 = vmatpush1.msra.mxu0 0.0
    %7631 = vmatprep.subr.mxu0 0.0
    %7632 = vmatpush1.msra.mxu0 0.0
    %7633 = vmatprep.subr.mxu0 0.0
    %7634 = vmatpush1.msra.mxu0 0.0
    %7635 = vmatprep.subr.mxu0 0.0
    %7636 = vmatpush1.msra.mxu0 0.0
    %7637 = vmatprep.subr.mxu0 0.0
    %7638 = vmatpush1.msra.mxu0 0.0
    %7639 = vmatprep.subr.mxu0 0.0
    %7640 = vmatpush1.msra.mxu0 0.0
    %7641 = vmatprep.subr.mxu0 0.0
    %7642 = vmatpush1.msra.mxu0 0.0
    %7643 = vmatprep.mubr.f32.mxu0 0.0
    %7644 = vmatmul.mubr.f32.gmra.mrb[0].mxu0 %v7568
    %v7645 = vpop.f32.mrb[0].mxu0
    %v7646 = vadd.f32 0.0, %v7645
    %v7647 = vpop.f32.mrb[0].mxu0
    %7648 = vmatprep.mubr.f32.mxu0 0.0
    %7649 = vmatmul.mubr.f32.gmra.mrb[0].mxu0 %v7571
    %v7650 = vpop.f32.mrb[0].mxu0
    %v7651 = vadd.f32 0.0, %v7650
    %v7652 = vpop.f32.mrb[0].mxu0
    %7653 = vmatprep.mubr.f32.mxu0 0.0
    %7654 = vmatmul.mubr.f32.gmra.mrb[0].mxu0 %v7574
    %v7655 = vpop.f32.mrb[0].mxu0
    %v7656 = vadd.f32 0.0, %v7655
    %v7657 = vpop.f32.mrb[0].mxu0
    %7658 = vmatprep.mubr.f32.mxu0 0.0
    %7659 = vmatmul.mubr.f32.gmra.mrb[0].mxu0 %v7577
    %v7660 = vpop.f32.mrb[0].mxu0
    %v7661 = vadd.f32 0.0, %v7660
    %v7662 = vpop.f32.mrb[0].mxu0
    %7663 = vdwg.mxu0
    %v7664 = vsel %vm600, %v7548, 0.0
    %7665 = vadd.xlane.f32.xlu0 %v7664
    %v7666 = vpop.xlane.xlu0 %7665
    %v7667 = vsel %vm600, %v7550, 0.0
    %7668 = vadd.xlane.f32.xlu0 %v7667
    %v7669 = vpop.xlane.xlu0 %7668
    %v7670 = vsel %vm600, %v7552, 0.0
    %7671 = vadd.xlane.f32.xlu0 %v7670
    %v7672 = vpop.xlane.xlu0 %7671
    %v7673 = vsel %vm600, %v7554, 0.0
    %7674 = vadd.xlane.f32.xlu0 %v7673
    %v7675 = vpop.xlane.xlu0 %7674
    %v7676 = vrcp.pop %v7666
    %v7677 = vrcp.pop %v7669
    %v7678 = vrcp.pop %v7672
    %v7679 = vrcp.pop %v7675
    %v7680 = vmul.f32 %v7646, %v7676
    %v7681 = vmul.f32 %v7651, %v7677
    %v7682 = vmul.f32 %v7656, %v7678
    %v7683 = vmul.f32 %v7661, %v7679
    %7688 = vrot.lane.b32.xlu0 %v7680, 32
    %v7689 = vpop.permute.xlu0 %7688
    %7690 = vrot.lane.b32.xlu0 %v7681, 32
    %v7691 = vpop.permute.xlu0 %7690
    %7692 = vrot.lane.b32.xlu0 %v7682, 32
    %v7693 = vpop.permute.xlu0 %7692
    %7694 = vrot.lane.b32.xlu0 %v7683, 32
    %v7695 = vpop.permute.xlu0 %7694
    %7700 = vst.msk [vmem:[#allocation2 + $0x20] sm:$0xff] %vm1327, %v7689
    %7701 = vst.msk [vmem:[#allocation2 + $0x28] sm:$0xff] %vm1327, %v7691
    %7702 = vst.msk [vmem:[#allocation2 + $0x30] sm:$0xff] %vm1327, %v7693
    %7703 = vst.msk [vmem:[#allocation2 + $0x38] sm:$0xff] %vm1327, %v7695
    %7704 = vrot.lane.b32.xlu0 %v5708, 80
    %v7705 = vpop.permute.xlu0 %7704
    %7706 = vrot.lane.b32.xlu0 %v5714, 80
    %v7707 = vpop.permute.xlu0 %7706
    %7708 = vrot.lane.b32.xlu0 %v5720, 80
    %v7709 = vpop.permute.xlu0 %7708
    %7710 = vrot.lane.b32.xlu0 %v5726, 80
    %v7711 = vpop.permute.xlu0 %7710
    %7712 = vrot.lane.b32.xlu0 %v5708, 16
    %v7713 = vpop.permute.xlu0 %7712
    %7714 = vrot.lane.b32.xlu0 %v5714, 16
    %v7715 = vpop.permute.xlu0 %7714
    %7716 = vrot.lane.b32.xlu0 %v5720, 16
    %v7717 = vpop.permute.xlu0 %7716
    %7718 = vrot.lane.b32.xlu0 %v5726, 16
    %v7719 = vpop.permute.xlu0 %7718
    %v7720 = vsel %vm498, %v7705, 0
    %v7722 = vsel %vm498, %v7707, 0
    %v7724 = vsel %vm498, %v7709, 0
    %v7726 = vsel %vm498, %v7711, 0
    %v7728 = vsel %vm498, %v7713, 0
    %v7730 = vsel %vm498, %v7715, 0
    %v7732 = vsel %vm498, %v7717, 0
    %v7734 = vsel %vm498, %v7719, 0
    %7736 = vmatprep.subr.mxu0 0.0
    %7737 = vmatpush1.xpose.msra.mxu0 %v7728
    %7738 = vmatprep.subr.mxu0 0.0
    %7739 = vmatpush1.xpose.msra.mxu0 %v7730
    %7740 = vmatprep.subr.mxu0 0.0
    %7741 = vmatpush1.xpose.msra.mxu0 %v7732
    %7742 = vmatprep.subr.mxu0 0.0
    %7743 = vmatpush1.xpose.msra.mxu0 %v7734
    %7744 = vmatprep.subr.mxu0 0.0
    %7745 = vmatpush1.xpose.msra.mxu0 0.0
    %7746 = vmatprep.subr.mxu0 0.0
    %7747 = vmatpush1.xpose.msra.mxu0 0.0
    %7748 = vmatprep.subr.mxu0 0.0
    %7749 = vmatpush1.xpose.msra.mxu0 0.0
    %7750 = vmatprep.subr.mxu0 0.0
    %7751 = vmatpush1.xpose.msra.mxu0 0.0
    %7752 = vmatprep.subr.mxu0 0.0
    %7753 = vmatpush1.xpose.msra.mxu0 0.0
    %7754 = vmatprep.subr.mxu0 0.0
    %7755 = vmatpush1.xpose.msra.mxu0 0.0
    %7756 = vmatprep.subr.mxu0 0.0
    %7757 = vmatpush1.xpose.msra.mxu0 0.0
    %7758 = vmatprep.subr.mxu0 0.0
    %7759 = vmatpush1.xpose.msra.mxu0 0.0
    %7760 = vmatprep.subr.mxu0 0.0
    %7761 = vmatpush1.xpose.msra.mxu0 0.0
    %7762 = vmatprep.subr.mxu0 0.0
    %7763 = vmatpush1.xpose.msra.mxu0 0.0
    %7764 = vmatprep.subr.mxu0 0.0
    %7765 = vmatpush1.xpose.msra.mxu0 0.0
    %7766 = vmatprep.subr.mxu0 0.0
    %7767 = vmatpush1.xpose.msra.mxu0 0.0
    %7768 = vmatprep.subr.mxu0 0.0
    %7769 = vmatpush1.xpose.msra.mxu0 0.0
    %7770 = vmatprep.subr.mxu0 0.0
    %7771 = vmatpush1.xpose.msra.mxu0 0.0
    %7772 = vmatprep.subr.mxu0 0.0
    %7773 = vmatpush1.xpose.msra.mxu0 0.0
    %7774 = vmatprep.subr.mxu0 0.0
    %7775 = vmatpush1.xpose.msra.mxu0 0.0
    %7776 = vmatprep.subr.mxu0 0.0
    %7777 = vmatpush1.xpose.msra.mxu0 0.0
    %7778 = vmatprep.subr.mxu0 0.0
    %7779 = vmatpush1.xpose.msra.mxu0 0.0
    %7780 = vmatprep.subr.mxu0 0.0
    %7781 = vmatpush1.xpose.msra.mxu0 0.0
    %7782 = vmatprep.subr.mxu0 0.0
    %7783 = vmatpush1.xpose.msra.mxu0 0.0
    %7784 = vmatprep.subr.mxu0 0.0
    %7785 = vmatpush1.xpose.msra.mxu0 0.0
    %7786 = vmatprep.subr.mxu0 0.0
    %7787 = vmatpush1.xpose.msra.mxu0 0.0
    %7788 = vmatprep.subr.mxu0 0.0
    %7789 = vmatpush1.xpose.msra.mxu0 0.0
    %7790 = vmatprep.subr.mxu0 0.0
    %7791 = vmatpush1.xpose.msra.mxu0 0.0
    %7792 = vmatprep.subr.mxu0 0.0
    %7793 = vmatpush1.xpose.msra.mxu0 0.0
    %7794 = vmatprep.subr.mxu0 0.0
    %7795 = vmatpush1.xpose.msra.mxu0 0.0
    %7796 = vmatprep.subr.mxu0 0.0
    %7797 = vmatpush1.xpose.msra.mxu0 0.0
    %7798 = vmatprep.subr.mxu0 0.0
    %7799 = vmatpush1.xpose.msra.mxu0 0.0
    %7800 = vmatprep.mubr.f32.mxu0 0.0
    %7801 = vmatmul.mubr.f32.gmra.mrb[0].mxu0 %v7720
    %v7802 = vpop.f32.mrb[0].mxu0
    %v7803 = vadd.f32 0.0, %v7802
    %v7804 = vpop.f32.mrb[0].mxu0
    %7805 = vmatprep.mubr.f32.mxu0 0.0
    %7806 = vmatmul.mubr.f32.gmra.mrb[0].mxu0 %v7722
    %v7807 = vpop.f32.mrb[0].mxu0
    %v7808 = vadd.f32 0.0, %v7807
    %v7809 = vpop.f32.mrb[0].mxu0
    %7810 = vmatprep.mubr.f32.mxu0 0.0
    %7811 = vmatmul.mubr.f32.gmra.mrb[0].mxu0 %v7724
    %v7812 = vpop.f32.mrb[0].mxu0
    %v7813 = vadd.f32 0.0, %v7812
    %v7814 = vpop.f32.mrb[0].mxu0
    %7815 = vmatprep.mubr.f32.mxu0 0.0
    %7816 = vmatmul.mubr.f32.gmra.mrb[0].mxu0 %v7726
    %v7817 = vpop.f32.mrb[0].mxu0
    %v7818 = vadd.f32 0.0, %v7817
    %v7819 = vpop.f32.mrb[0].mxu0
    %7820 = vdwg.mxu0
    %v7821 = vsel %vm600, %v7803, -inf
    %7822 = vmax.xlane.f32.xlu0 %v7821
    %v7823 = vpop.xlane.xlu0 %7822
    %v7824 = vsel %vm600, %v7808, -inf
    %7825 = vmax.xlane.f32.xlu0 %v7824
    %v7826 = vpop.xlane.xlu0 %7825
    %v7827 = vsel %vm600, %v7813, -inf
    %7828 = vmax.xlane.f32.xlu0 %v7827
    %v7829 = vpop.xlane.xlu0 %7828
    %v7830 = vsel %vm600, %v7818, -inf
    %7831 = vmax.xlane.f32.xlu0 %v7830
    %v7832 = vpop.xlane.xlu0 %7831
    %v7833 = vsub.f32 %v7803, %v7823
    %v7834 = vsub.f32 %v7808, %v7826
    %v7835 = vsub.f32 %v7813, %v7829
    %v7836 = vsub.f32 %v7818, %v7832
    %v7837 = vmul.f32 %v7833, 1.442695
    %v7838 = vpow.pop %v7837
    %v7839 = vmul.f32 %v7834, 1.442695
    %v7840 = vpow.pop %v7839
    %v7841 = vmul.f32 %v7835, 1.442695
    %v7842 = vpow.pop %v7841
    %v7843 = vmul.f32 %v7836, 1.442695
    %v7844 = vpow.pop %v7843
    %7845 = vrot.lane.b32.xlu0 %v5710, 80
    %v7846 = vpop.permute.xlu0 %7845
    %7847 = vrot.lane.b32.xlu0 %v5716, 80
    %v7848 = vpop.permute.xlu0 %7847
    %7849 = vrot.lane.b32.xlu0 %v5722, 80
    %v7850 = vpop.permute.xlu0 %7849
    %7851 = vrot.lane.b32.xlu0 %v5728, 80
    %v7852 = vpop.permute.xlu0 %7851
    %v7858 = vsel %vm600, %v7838, 0
    %v7861 = vsel %vm600, %v7840, 0
    %v7864 = vsel %vm600, %v7842, 0
    %v7867 = vsel %vm600, %v7844, 0
    %7869 = vmatprep.subr.mxu0 0.0
    %7870 = vmatpush1.msra.mxu0 %v7846
    %7871 = vmatprep.subr.mxu0 0.0
    %7872 = vmatpush1.msra.mxu0 %v7848
    %7873 = vmatprep.subr.mxu0 0.0
    %7874 = vmatpush1.msra.mxu0 %v7850
    %7875 = vmatprep.subr.mxu0 0.0
    %7876 = vmatpush1.msra.mxu0 %v7852
    %7877 = vmatprep.subr.mxu0 0.0
    %7878 = vmatpush1.msra.mxu0 0.0
    %7879 = vmatprep.subr.mxu0 0.0
    %7880 = vmatpush1.msra.mxu0 0.0
    %7881 = vmatprep.subr.mxu0 0.0
    %7882 = vmatpush1.msra.mxu0 0.0
    %7883 = vmatprep.subr.mxu0 0.0
    %7884 = vmatpush1.msra.mxu0 0.0
    %7885 = vmatprep.subr.mxu0 0.0
    %7886 = vmatpush1.msra.mxu0 0.0
    %7887 = vmatprep.subr.mxu0 0.0
    %7888 = vmatpush1.msra.mxu0 0.0
    %7889 = vmatprep.subr.mxu0 0.0
    %7890 = vmatpush1.msra.mxu0 0.0
    %7891 = vmatprep.subr.mxu0 0.0
    %7892 = vmatpush1.msra.mxu0 0.0
    %7893 = vmatprep.subr.mxu0 0.0
    %7894 = vmatpush1.msra.mxu0 0.0
    %7895 = vmatprep.subr.mxu0 0.0
    %7896 = vmatpush1.msra.mxu0 0.0
    %7897 = vmatprep.subr.mxu0 0.0
    %7898 = vmatpush1.msra.mxu0 0.0
    %7899 = vmatprep.subr.mxu0 0.0
    %7900 = vmatpush1.msra.mxu0 0.0
    %7901 = vmatprep.subr.mxu0 0.0
    %7902 = vmatpush1.msra.mxu0 0.0
    %7903 = vmatprep.subr.mxu0 0.0
    %7904 = vmatpush1.msra.mxu0 0.0
    %7905 = vmatprep.subr.mxu0 0.0
    %7906 = vmatpush1.msra.mxu0 0.0
    %7907 = vmatprep.subr.mxu0 0.0
    %7908 = vmatpush1.msra.mxu0 0.0
    %7909 = vmatprep.subr.mxu0 0.0
    %7910 = vmatpush1.msra.mxu0 0.0
    %7911 = vmatprep.subr.mxu0 0.0
    %7912 = vmatpush1.msra.mxu0 0.0
    %7913 = vmatprep.subr.mxu0 0.0
    %7914 = vmatpush1.msra.mxu0 0.0
    %7915 = vmatprep.subr.mxu0 0.0
    %7916 = vmatpush1.msra.mxu0 0.0
    %7917 = vmatprep.subr.mxu0 0.0
    %7918 = vmatpush1.msra.mxu0 0.0
    %7919 = vmatprep.subr.mxu0 0.0
    %7920 = vmatpush1.msra.mxu0 0.0
    %7921 = vmatprep.subr.mxu0 0.0
    %7922 = vmatpush1.msra.mxu0 0.0
    %7923 = vmatprep.subr.mxu0 0.0
    %7924 = vmatpush1.msra.mxu0 0.0
    %7925 = vmatprep.subr.mxu0 0.0
    %7926 = vmatpush1.msra.mxu0 0.0
    %7927 = vmatprep.subr.mxu0 0.0
    %7928 = vmatpush1.msra.mxu0 0.0
    %7929 = vmatprep.subr.mxu0 0.0
    %7930 = vmatpush1.msra.mxu0 0.0
    %7931 = vmatprep.subr.mxu0 0.0
    %7932 = vmatpush1.msra.mxu0 0.0
    %7933 = vmatprep.mubr.f32.mxu0 0.0
    %7934 = vmatmul.mubr.f32.gmra.mrb[0].mxu0 %v7858
    %v7935 = vpop.f32.mrb[0].mxu0
    %v7936 = vadd.f32 0.0, %v7935
    %v7937 = vpop.f32.mrb[0].mxu0
    %7938 = vmatprep.mubr.f32.mxu0 0.0
    %7939 = vmatmul.mubr.f32.gmra.mrb[0].mxu0 %v7861
    %v7940 = vpop.f32.mrb[0].mxu0
    %v7941 = vadd.f32 0.0, %v7940
    %v7942 = vpop.f32.mrb[0].mxu0
    %7943 = vmatprep.mubr.f32.mxu0 0.0
    %7944 = vmatmul.mubr.f32.gmra.mrb[0].mxu0 %v7864
    %v7945 = vpop.f32.mrb[0].mxu0
    %v7946 = vadd.f32 0.0, %v7945
    %v7947 = vpop.f32.mrb[0].mxu0
    %7948 = vmatprep.mubr.f32.mxu0 0.0
    %7949 = vmatmul.mubr.f32.gmra.mrb[0].mxu0 %v7867
    %v7950 = vpop.f32.mrb[0].mxu0
    %v7951 = vadd.f32 0.0, %v7950
    %v7952 = vpop.f32.mrb[0].mxu0
    %7953 = vdwg.mxu0
    %v7954 = vsel %vm600, %v7838, 0.0
    %7955 = vadd.xlane.f32.xlu0 %v7954
    %v7956 = vpop.xlane.xlu0 %7955
    %v7957 = vsel %vm600, %v7840, 0.0
    %7958 = vadd.xlane.f32.xlu0 %v7957
    %v7959 = vpop.xlane.xlu0 %7958
    %v7960 = vsel %vm600, %v7842, 0.0
    %7961 = vadd.xlane.f32.xlu0 %v7960
    %v7962 = vpop.xlane.xlu0 %7961
    %v7963 = vsel %vm600, %v7844, 0.0
    %7964 = vadd.xlane.f32.xlu0 %v7963
    %v7965 = vpop.xlane.xlu0 %7964
    %v7966 = vrcp.pop %v7956
    %v7967 = vrcp.pop %v7959
    %v7968 = vrcp.pop %v7962
    %v7969 = vrcp.pop %v7965
    %v7970 = vmul.f32 %v7936, %v7966
    %v7971 = vmul.f32 %v7941, %v7967
    %v7972 = vmul.f32 %v7946, %v7968
    %v7973 = vmul.f32 %v7951, %v7969
    %7978 = vrot.lane.b32.xlu0 %v7970, 48
    %v7979 = vpop.permute.xlu0 %7978
    %7980 = vrot.lane.b32.xlu0 %v7971, 48
    %v7981 = vpop.permute.xlu0 %7980
    %7982 = vrot.lane.b32.xlu0 %v7972, 48
    %v7983 = vpop.permute.xlu0 %7982
    %7984 = vrot.lane.b32.xlu0 %v7973, 48
    %v7985 = vpop.permute.xlu0 %7984
    %7990 = vst.msk [vmem:[#allocation2 + $0x20] sm:$0xff] %vm1618, %v7979
    %7991 = vst.msk [vmem:[#allocation2 + $0x28] sm:$0xff] %vm1618, %v7981
    %7992 = vst.msk [vmem:[#allocation2 + $0x30] sm:$0xff] %vm1618, %v7983
    %7993 = vst.msk [vmem:[#allocation2 + $0x38] sm:$0xff] %vm1618, %v7985
    %v7994 = vld [vmem:[#allocation2] sm:$0xff]
    %v7995 = vld [vmem:[#allocation2 + $0x8] sm:$0xff]
    %v7996 = vld [vmem:[#allocation2 + $0x10] sm:$0xff]
    %v7997 = vld [vmem:[#allocation2 + $0x18] sm:$0xff]
    %v7998 = vld [vmem:[#allocation2 + $0x20] sm:$0xff]
    %v7999 = vld [vmem:[#allocation2 + $0x28] sm:$0xff]
    %v8000 = vld [vmem:[#allocation2 + $0x30] sm:$0xff]
    %v8001 = vld [vmem:[#allocation2 + $0x38] sm:$0xff]
    %s8002 = scalar_lea.vmem [#allocation11], 64
    %v8003 = vld [vmem:[%s8002] sm:$0xff]
    %v8004 = vld [vmem:[%s8002 + $0x8] sm:$0xff]
    %v8005 = vld [vmem:[%s8002 + $0x10] sm:$0xff]
    %v8006 = vld [vmem:[%s8002 + $0x18] sm:$0xff]
    %v8007 = vld [vmem:[%s8002 + $0x20] sm:$0xff]
    %v8008 = vld [vmem:[%s8002 + $0x28] sm:$0xff]
    %v8009 = vld [vmem:[%s8002 + $0x30] sm:$0xff]
    %v8010 = vld [vmem:[%s8002 + $0x38] sm:$0xff]
    %s8011 = scalar_lea.vmem [#allocation12], 1
    %v8012 = vld [vmem:[%s8011] sm:$0x1]
    %v8014 = vlaneseq
    %v8015 = vshrl.u32 %v8014, 7
    %v8016 = vsub.s32 0, %v8015
    %v8017 = vrot.slane %v8012, %v8016
    %v8020 = vsel %vm348, %v7994, 0
    %v8023 = vsel %vm348, %v7995, 0
    %v8026 = vsel %vm348, %v7996, 0
    %v8029 = vsel %vm348, %v7997, 0
    %v8032 = vsel %vm348, %v7998, 0
    %v8035 = vsel %vm348, %v7999, 0
    %v8038 = vsel %vm348, %v8000, 0
    %v8041 = vsel %vm348, %v8001, 0
    %8043 = vmatprep.subr.mxu0 0.0
    %8044 = vmatpush1.msra.mxu0 %v8003
    %8045 = vmatprep.subr.mxu0 0.0
    %8046 = vmatpush1.msra.mxu0 %v8004
    %8047 = vmatprep.subr.mxu0 0.0
    %8048 = vmatpush1.msra.mxu0 %v8005
    %8049 = vmatprep.subr.mxu0 0.0
    %8050 = vmatpush1.msra.mxu0 %v8006
    %8051 = vmatprep.subr.mxu0 0.0
    %8052 = vmatpush1.msra.mxu0 %v8007
    %8053 = vmatprep.subr.mxu0 0.0
    %8054 = vmatpush1.msra.mxu0 %v8008
    %8055 = vmatprep.subr.mxu0 0.0
    %8056 = vmatpush1.msra.mxu0 %v8009
    %8057 = vmatprep.subr.mxu0 0.0
    %8058 = vmatpush1.msra.mxu0 %v8010
    %8059 = vmatprep.subr.mxu0 0.0
    %8060 = vmatpush1.msra.mxu0 0.0
    %8061 = vmatprep.subr.mxu0 0.0
    %8062 = vmatpush1.msra.mxu0 0.0
    %8063 = vmatprep.subr.mxu0 0.0
    %8064 = vmatpush1.msra.mxu0 0.0
    %8065 = vmatprep.subr.mxu0 0.0
    %8066 = vmatpush1.msra.mxu0 0.0
    %8067 = vmatprep.subr.mxu0 0.0
    %8068 = vmatpush1.msra.mxu0 0.0
    %8069 = vmatprep.subr.mxu0 0.0
    %8070 = vmatpush1.msra.mxu0 0.0
    %8071 = vmatprep.subr.mxu0 0.0
    %8072 = vmatpush1.msra.mxu0 0.0
    %8073 = vmatprep.subr.mxu0 0.0
    %8074 = vmatpush1.msra.mxu0 0.0
    %8075 = vmatprep.subr.mxu0 0.0
    %8076 = vmatpush1.msra.mxu0 0.0
    %8077 = vmatprep.subr.mxu0 0.0
    %8078 = vmatpush1.msra.mxu0 0.0
    %8079 = vmatprep.subr.mxu0 0.0
    %8080 = vmatpush1.msra.mxu0 0.0
    %8081 = vmatprep.subr.mxu0 0.0
    %8082 = vmatpush1.msra.mxu0 0.0
    %8083 = vmatprep.subr.mxu0 0.0
    %8084 = vmatpush1.msra.mxu0 0.0
    %8085 = vmatprep.subr.mxu0 0.0
    %8086 = vmatpush1.msra.mxu0 0.0
    %8087 = vmatprep.subr.mxu0 0.0
    %8088 = vmatpush1.msra.mxu0 0.0
    %8089 = vmatprep.subr.mxu0 0.0
    %8090 = vmatpush1.msra.mxu0 0.0
    %8091 = vmatprep.subr.mxu0 0.0
    %8092 = vmatpush1.msra.mxu0 0.0
    %8093 = vmatprep.subr.mxu0 0.0
    %8094 = vmatpush1.msra.mxu0 0.0
    %8095 = vmatprep.subr.mxu0 0.0
    %8096 = vmatpush1.msra.mxu0 0.0
    %8097 = vmatprep.subr.mxu0 0.0
    %8098 = vmatpush1.msra.mxu0 0.0
    %8099 = vmatprep.subr.mxu0 0.0
    %8100 = vmatpush1.msra.mxu0 0.0
    %8101 = vmatprep.subr.mxu0 0.0
    %8102 = vmatpush1.msra.mxu0 0.0
    %8103 = vmatprep.subr.mxu0 0.0
    %8104 = vmatpush1.msra.mxu0 0.0
    %8105 = vmatprep.subr.mxu0 0.0
    %8106 = vmatpush1.msra.mxu0 0.0
    %8107 = vmatprep.mubr.f32.mxu0 0.0
    %8108 = vmatmul.mubr.f32.gmra.mrb[0].mxu0 %v8020
    %v8109 = vpop.f32.mrb[0].mxu0
    %v8110 = vadd.f32 %v8017, %v8109
    %v8111 = vpop.f32.mrb[0].mxu0
    %8112 = vmatprep.mubr.f32.mxu0 0.0
    %8113 = vmatmul.mubr.f32.gmra.mrb[0].mxu0 %v8023
    %v8114 = vpop.f32.mrb[0].mxu0
    %v8115 = vadd.f32 %v8017, %v8114
    %v8116 = vpop.f32.mrb[0].mxu0
    %8117 = vmatprep.mubr.f32.mxu0 0.0
    %8118 = vmatmul.mubr.f32.gmra.mrb[0].mxu0 %v8026
    %v8119 = vpop.f32.mrb[0].mxu0
    %v8120 = vadd.f32 %v8017, %v8119
    %v8121 = vpop.f32.mrb[0].mxu0
    %8122 = vmatprep.mubr.f32.mxu0 0.0
    %8123 = vmatmul.mubr.f32.gmra.mrb[0].mxu0 %v8029
    %v8124 = vpop.f32.mrb[0].mxu0
    %v8125 = vadd.f32 %v8017, %v8124
    %v8126 = vpop.f32.mrb[0].mxu0
    %8127 = vmatprep.mubr.f32.mxu0 0.0
    %8128 = vmatmul.mubr.f32.gmra.mrb[0].mxu0 %v8032
    %v8129 = vpop.f32.mrb[0].mxu0
    %v8130 = vadd.f32 %v8017, %v8129
    %v8131 = vpop.f32.mrb[0].mxu0
    %8132 = vmatprep.mubr.f32.mxu0 0.0
    %8133 = vmatmul.mubr.f32.gmra.mrb[0].mxu0 %v8035
    %v8134 = vpop.f32.mrb[0].mxu0
    %v8135 = vadd.f32 %v8017, %v8134
    %v8136 = vpop.f32.mrb[0].mxu0
    %8137 = vmatprep.mubr.f32.mxu0 0.0
    %8138 = vmatmul.mubr.f32.gmra.mrb[0].mxu0 %v8038
    %v8139 = vpop.f32.mrb[0].mxu0
    %v8140 = vadd.f32 %v8017, %v8139
    %v8141 = vpop.f32.mrb[0].mxu0
    %8142 = vmatprep.mubr.f32.mxu0 0.0
    %8143 = vmatmul.mubr.f32.gmra.mrb[0].mxu0 %v8041
    %v8144 = vpop.f32.mrb[0].mxu0
    %v8145 = vadd.f32 %v8017, %v8144
    %v8146 = vpop.f32.mrb[0].mxu0
    %8147 = vdwg.mxu0
    %v8148 = vadd.f32 %v5555, %v8110
    %v8149 = vadd.f32 %v5556, %v8115
    %v8150 = vadd.f32 %v5557, %v8120
    %v8151 = vadd.f32 %v5558, %v8125
    %v8152 = vadd.f32 %v5559, %v8130
    %v8153 = vadd.f32 %v5560, %v8135
    %v8154 = vadd.f32 %v5561, %v8140
    %v8155 = vadd.f32 %v5562, %v8145
    %s8156 = scalar_lea.vmem [#allocation14], 1
    %v8157 = vld [vmem:[%s8156] sm:$0x1]
    %s8158 = scalar_lea.vmem [#allocation15], 1
    %v8159 = vld [vmem:[%s8158] sm:$0x1]
    %v8160 = vsel %vm348, %v8148, 0.0
    %8161 = vadd.xlane.f32.xlu0 %v8160
    %v8162 = vpop.xlane.xlu0 %8161
    %v8163 = vsel %vm348, %v8149, 0.0
    %8164 = vadd.xlane.f32.xlu0 %v8163
    %v8165 = vpop.xlane.xlu0 %8164
    %v8166 = vsel %vm348, %v8150, 0.0
    %8167 = vadd.xlane.f32.xlu0 %v8166
    %v8168 = vpop.xlane.xlu0 %8167
    %v8169 = vsel %vm348, %v8151, 0.0
    %8170 = vadd.xlane.f32.xlu0 %v8169
    %v8171 = vpop.xlane.xlu0 %8170
    %v8172 = vsel %vm348, %v8152, 0.0
    %8173 = vadd.xlane.f32.xlu0 %v8172
    %v8174 = vpop.xlane.xlu0 %8173
    %v8175 = vsel %vm348, %v8153, 0.0
    %8176 = vadd.xlane.f32.xlu0 %v8175
    %v8177 = vpop.xlane.xlu0 %8176
    %v8178 = vsel %vm348, %v8154, 0.0
    %8179 = vadd.xlane.f32.xlu0 %v8178
    %v8180 = vpop.xlane.xlu0 %8179
    %v8181 = vsel %vm348, %v8155, 0.0
    %8182 = vadd.xlane.f32.xlu0 %v8181
    %v8183 = vpop.xlane.xlu0 %8182
    %v8184 = vmul.f32 %v8162, %v2941
    %v8185 = vmul.f32 %v8165, %v2941
    %v8186 = vmul.f32 %v8168, %v2941
    %v8187 = vmul.f32 %v8171, %v2941
    %v8188 = vmul.f32 %v8174, %v2941
    %v8189 = vmul.f32 %v8177, %v2941
    %v8190 = vmul.f32 %v8180, %v2941
    %v8191 = vmul.f32 %v8183, %v2941
    %v8192 = vsub.f32 %v8148, %v8184
    %v8193 = vsub.f32 %v8149, %v8185
    %v8194 = vsub.f32 %v8150, %v8186
    %v8195 = vsub.f32 %v8151, %v8187
    %v8196 = vsub.f32 %v8152, %v8188
    %v8197 = vsub.f32 %v8153, %v8189
    %v8198 = vsub.f32 %v8154, %v8190
    %v8199 = vsub.f32 %v8155, %v8191
    %v8200 = vmul.f32 %v8192, %v8192
    %v8201 = vmul.f32 %v8193, %v8193
    %v8202 = vmul.f32 %v8194, %v8194
    %v8203 = vmul.f32 %v8195, %v8195
    %v8204 = vmul.f32 %v8196, %v8196
    %v8205 = vmul.f32 %v8197, %v8197
    %v8206 = vmul.f32 %v8198, %v8198
    %v8207 = vmul.f32 %v8199, %v8199
    %v8208 = vsel %vm348, %v8200, 0.0
    %8209 = vadd.xlane.f32.xlu0 %v8208
    %v8210 = vpop.xlane.xlu0 %8209
    %v8211 = vsel %vm348, %v8201, 0.0
    %8212 = vadd.xlane.f32.xlu0 %v8211
    %v8213 = vpop.xlane.xlu0 %8212
    %v8214 = vsel %vm348, %v8202, 0.0
    %8215 = vadd.xlane.f32.xlu0 %v8214
    %v8216 = vpop.xlane.xlu0 %8215
    %v8217 = vsel %vm348, %v8203, 0.0
    %8218 = vadd.xlane.f32.xlu0 %v8217
    %v8219 = vpop.xlane.xlu0 %8218
    %v8220 = vsel %vm348, %v8204, 0.0
    %8221 = vadd.xlane.f32.xlu0 %v8220
    %v8222 = vpop.xlane.xlu0 %8221
    %v8223 = vsel %vm348, %v8205, 0.0
    %8224 = vadd.xlane.f32.xlu0 %v8223
    %v8225 = vpop.xlane.xlu0 %8224
    %v8226 = vsel %vm348, %v8206, 0.0
    %8227 = vadd.xlane.f32.xlu0 %v8226
    %v8228 = vpop.xlane.xlu0 %8227
    %v8229 = vsel %vm348, %v8207, 0.0
    %8230 = vadd.xlane.f32.xlu0 %v8229
    %v8231 = vpop.xlane.xlu0 %8230
    %v8232 = vmul.f32 %v8210, %v2941
    %v8233 = vmul.f32 %v8213, %v2941
    %v8234 = vmul.f32 %v8216, %v2941
    %v8235 = vmul.f32 %v8219, %v2941
    %v8236 = vmul.f32 %v8222, %v2941
    %v8237 = vmul.f32 %v8225, %v2941
    %v8238 = vmul.f32 %v8228, %v2941
    %v8239 = vmul.f32 %v8231, %v2941
    %v8240 = vadd.f32 %v8232, 1e-05
    %v8241 = vadd.f32 %v8233, 1e-05
    %v8242 = vadd.f32 %v8234, 1e-05
    %v8243 = vadd.f32 %v8235, 1e-05
    %v8244 = vadd.f32 %v8236, 1e-05
    %v8245 = vadd.f32 %v8237, 1e-05
    %v8246 = vadd.f32 %v8238, 1e-05
    %v8247 = vadd.f32 %v8239, 1e-05
    %v8248 = vrsqrt.pop %v8240
    %v8249 = vrsqrt.pop %v8241
    %v8250 = vrsqrt.pop %v8242
    %v8251 = vrsqrt.pop %v8243
    %v8252 = vrsqrt.pop %v8244
    %v8253 = vrsqrt.pop %v8245
    %v8254 = vrsqrt.pop %v8246
    %v8255 = vrsqrt.pop %v8247
    %v8256 = vmul.f32 %v8192, %v8248
    %v8257 = vmul.f32 %v8193, %v8249
    %v8258 = vmul.f32 %v8194, %v8250
    %v8259 = vmul.f32 %v8195, %v8251
    %v8260 = vmul.f32 %v8196, %v8252
    %v8261 = vmul.f32 %v8197, %v8253
    %v8262 = vmul.f32 %v8198, %v8254
    %v8263 = vmul.f32 %v8199, %v8255
    %v8265 = vlaneseq
    %v8266 = vshrl.u32 %v8265, 7
    %v8267 = vsub.s32 0, %v8266
    %v8268 = vrot.slane %v8157, %v8267
    %v8270 = vmul.f32 %v8256, %v8268
    %v8271 = vmul.f32 %v8257, %v8268
    %v8272 = vmul.f32 %v8258, %v8268
    %v8273 = vmul.f32 %v8259, %v8268
    %v8274 = vmul.f32 %v8260, %v8268
    %v8275 = vmul.f32 %v8261, %v8268
    %v8276 = vmul.f32 %v8262, %v8268
    %v8277 = vmul.f32 %v8263, %v8268
    %v8279 = vlaneseq
    %v8280 = vshrl.u32 %v8279, 7
    %v8281 = vsub.s32 0, %v8280
    %v8282 = vrot.slane %v8159, %v8281
    %v8284 = vadd.f32 %v8270, %v8282
    %v8285 = vadd.f32 %v8271, %v8282
    %v8286 = vadd.f32 %v8272, %v8282
    %v8287 = vadd.f32 %v8273, %v8282
    %v8288 = vadd.f32 %v8274, %v8282
    %v8289 = vadd.f32 %v8275, %v8282
    %v8290 = vadd.f32 %v8276, %v8282
    %v8291 = vadd.f32 %v8277, %v8282
    %s8292 = scalar_lea.vmem [#allocation17], 1024
    %v8293 = vld [vmem:[%s8292] sm:$0xff]
    %v8294 = vld [vmem:[%s8292 + $0x8] sm:$0xff]
    %v8295 = vld [vmem:[%s8292 + $0x10] sm:$0xff]
    %v8296 = vld [vmem:[%s8292 + $0x18] sm:$0xff]
    %v8297 = vld [vmem:[%s8292 + $0x20] sm:$0xff]
    %v8298 = vld [vmem:[%s8292 + $0x28] sm:$0xff]
    %v8299 = vld [vmem:[%s8292 + $0x30] sm:$0xff]
    %v8300 = vld [vmem:[%s8292 + $0x38] sm:$0xff]
    %v8301 = vld [vmem:[%s8292 + $0x40] sm:$0xff]
    %v8302 = vld [vmem:[%s8292 + $0x48] sm:$0xff]
    %v8303 = vld [vmem:[%s8292 + $0x50] sm:$0xff]
    %v8304 = vld [vmem:[%s8292 + $0x58] sm:$0xff]
    %v8305 = vld [vmem:[%s8292 + $0x60] sm:$0xff]
    %v8306 = vld [vmem:[%s8292 + $0x68] sm:$0xff]
    %v8307 = vld [vmem:[%s8292 + $0x70] sm:$0xff]
    %v8308 = vld [vmem:[%s8292 + $0x78] sm:$0xff]
    %v8309 = vld [vmem:[%s8292 + $0x80] sm:$0xff]
    %v8310 = vld [vmem:[%s8292 + $0x88] sm:$0xff]
    %v8311 = vld [vmem:[%s8292 + $0x90] sm:$0xff]
    %v8312 = vld [vmem:[%s8292 + $0x98] sm:$0xff]
    %v8313 = vld [vmem:[%s8292 + $0xa0] sm:$0xff]
    %v8314 = vld [vmem:[%s8292 + $0xa8] sm:$0xff]
    %v8315 = vld [vmem:[%s8292 + $0xb0] sm:$0xff]
    %v8316 = vld [vmem:[%s8292 + $0xb8] sm:$0xff]
    %v8317 = vld [vmem:[%s8292 + $0xc0] sm:$0xff]
    %v8318 = vld [vmem:[%s8292 + $0xc8] sm:$0xff]
    %v8319 = vld [vmem:[%s8292 + $0xd0] sm:$0xff]
    %v8320 = vld [vmem:[%s8292 + $0xd8] sm:$0xff]
    %v8321 = vld [vmem:[%s8292 + $0xe0] sm:$0xff]
    %v8322 = vld [vmem:[%s8292 + $0xe8] sm:$0xff]
    %v8323 = vld [vmem:[%s8292 + $0xf0] sm:$0xff]
    %v8324 = vld [vmem:[%s8292 + $0xf8] sm:$0xff]
    %v8325 = vld [vmem:[%s8292 + $0x100] sm:$0xff]
    %v8326 = vld [vmem:[%s8292 + $0x108] sm:$0xff]
    %v8327 = vld [vmem:[%s8292 + $0x110] sm:$0xff]
    %v8328 = vld [vmem:[%s8292 + $0x118] sm:$0xff]
    %v8329 = vld [vmem:[%s8292 + $0x120] sm:$0xff]
    %v8330 = vld [vmem:[%s8292 + $0x128] sm:$0xff]
    %v8331 = vld [vmem:[%s8292 + $0x130] sm:$0xff]
    %v8332 = vld [vmem:[%s8292 + $0x138] sm:$0xff]
    %v8333 = vld [vmem:[%s8292 + $0x140] sm:$0xff]
    %v8334 = vld [vmem:[%s8292 + $0x148] sm:$0xff]
    %v8335 = vld [vmem:[%s8292 + $0x150] sm:$0xff]
    %v8336 = vld [vmem:[%s8292 + $0x158] sm:$0xff]
    %v8337 = vld [vmem:[%s8292 + $0x160] sm:$0xff]
    %v8338 = vld [vmem:[%s8292 + $0x168] sm:$0xff]
    %v8339 = vld [vmem:[%s8292 + $0x170] sm:$0xff]
    %v8340 = vld [vmem:[%s8292 + $0x178] sm:$0xff]
    %v8341 = vld [vmem:[%s8292 + $0x180] sm:$0xff]
    %v8342 = vld [vmem:[%s8292 + $0x188] sm:$0xff]
    %v8343 = vld [vmem:[%s8292 + $0x190] sm:$0xff]
    %v8344 = vld [vmem:[%s8292 + $0x198] sm:$0xff]
    %v8345 = vld [vmem:[%s8292 + $0x1a0] sm:$0xff]
    %v8346 = vld [vmem:[%s8292 + $0x1a8] sm:$0xff]
    %v8347 = vld [vmem:[%s8292 + $0x1b0] sm:$0xff]
    %v8348 = vld [vmem:[%s8292 + $0x1b8] sm:$0xff]
    %v8349 = vld [vmem:[%s8292 + $0x1c0] sm:$0xff]
    %v8350 = vld [vmem:[%s8292 + $0x1c8] sm:$0xff]
    %v8351 = vld [vmem:[%s8292 + $0x1d0] sm:$0xff]
    %v8352 = vld [vmem:[%s8292 + $0x1d8] sm:$0xff]
    %v8353 = vld [vmem:[%s8292 + $0x1e0] sm:$0xff]
    %v8354 = vld [vmem:[%s8292 + $0x1e8] sm:$0xff]
    %v8355 = vld [vmem:[%s8292 + $0x1f0] sm:$0xff]
    %v8356 = vld [vmem:[%s8292 + $0x1f8] sm:$0xff]
    %v8357 = vld [vmem:[%s8292 + $0x200] sm:$0xff]
    %v8358 = vld [vmem:[%s8292 + $0x208] sm:$0xff]
    %v8359 = vld [vmem:[%s8292 + $0x210] sm:$0xff]
    %v8360 = vld [vmem:[%s8292 + $0x218] sm:$0xff]
    %v8361 = vld [vmem:[%s8292 + $0x220] sm:$0xff]
    %v8362 = vld [vmem:[%s8292 + $0x228] sm:$0xff]
    %v8363 = vld [vmem:[%s8292 + $0x230] sm:$0xff]
    %v8364 = vld [vmem:[%s8292 + $0x238] sm:$0xff]
    %v8365 = vld [vmem:[%s8292 + $0x240] sm:$0xff]
    %v8366 = vld [vmem:[%s8292 + $0x248] sm:$0xff]
    %v8367 = vld [vmem:[%s8292 + $0x250] sm:$0xff]
    %v8368 = vld [vmem:[%s8292 + $0x258] sm:$0xff]
    %v8369 = vld [vmem:[%s8292 + $0x260] sm:$0xff]
    %v8370 = vld [vmem:[%s8292 + $0x268] sm:$0xff]
    %v8371 = vld [vmem:[%s8292 + $0x270] sm:$0xff]
    %v8372 = vld [vmem:[%s8292 + $0x278] sm:$0xff]
    %v8373 = vld [vmem:[%s8292 + $0x280] sm:$0xff]
    %v8374 = vld [vmem:[%s8292 + $0x288] sm:$0xff]
    %v8375 = vld [vmem:[%s8292 + $0x290] sm:$0xff]
    %v8376 = vld [vmem:[%s8292 + $0x298] sm:$0xff]
    %v8377 = vld [vmem:[%s8292 + $0x2a0] sm:$0xff]
    %v8378 = vld [vmem:[%s8292 + $0x2a8] sm:$0xff]
    %v8379 = vld [vmem:[%s8292 + $0x2b0] sm:$0xff]
    %v8380 = vld [vmem:[%s8292 + $0x2b8] sm:$0xff]
    %v8381 = vld [vmem:[%s8292 + $0x2c0] sm:$0xff]
    %v8382 = vld [vmem:[%s8292 + $0x2c8] sm:$0xff]
    %v8383 = vld [vmem:[%s8292 + $0x2d0] sm:$0xff]
    %v8384 = vld [vmem:[%s8292 + $0x2d8] sm:$0xff]
    %v8385 = vld [vmem:[%s8292 + $0x2e0] sm:$0xff]
    %v8386 = vld [vmem:[%s8292 + $0x2e8] sm:$0xff]
    %v8387 = vld [vmem:[%s8292 + $0x2f0] sm:$0xff]
    %v8388 = vld [vmem:[%s8292 + $0x2f8] sm:$0xff]
    %v8389 = vld [vmem:[%s8292 + $0x300] sm:$0xff]
    %v8390 = vld [vmem:[%s8292 + $0x308] sm:$0xff]
    %v8391 = vld [vmem:[%s8292 + $0x310] sm:$0xff]
    %v8392 = vld [vmem:[%s8292 + $0x318] sm:$0xff]
    %v8393 = vld [vmem:[%s8292 + $0x320] sm:$0xff]
    %v8394 = vld [vmem:[%s8292 + $0x328] sm:$0xff]
    %v8395 = vld [vmem:[%s8292 + $0x330] sm:$0xff]
    %v8396 = vld [vmem:[%s8292 + $0x338] sm:$0xff]
    %v8397 = vld [vmem:[%s8292 + $0x340] sm:$0xff]
    %v8398 = vld [vmem:[%s8292 + $0x348] sm:$0xff]
    %v8399 = vld [vmem:[%s8292 + $0x350] sm:$0xff]
    %v8400 = vld [vmem:[%s8292 + $0x358] sm:$0xff]
    %v8401 = vld [vmem:[%s8292 + $0x360] sm:$0xff]
    %v8402 = vld [vmem:[%s8292 + $0x368] sm:$0xff]
    %v8403 = vld [vmem:[%s8292 + $0x370] sm:$0xff]
    %v8404 = vld [vmem:[%s8292 + $0x378] sm:$0xff]
    %v8405 = vld [vmem:[%s8292 + $0x380] sm:$0xff]
    %v8406 = vld [vmem:[%s8292 + $0x388] sm:$0xff]
    %v8407 = vld [vmem:[%s8292 + $0x390] sm:$0xff]
    %v8408 = vld [vmem:[%s8292 + $0x398] sm:$0xff]
    %v8409 = vld [vmem:[%s8292 + $0x3a0] sm:$0xff]
    %v8410 = vld [vmem:[%s8292 + $0x3a8] sm:$0xff]
    %v8411 = vld [vmem:[%s8292 + $0x3b0] sm:$0xff]
    %v8412 = vld [vmem:[%s8292 + $0x3b8] sm:$0xff]
    %v8413 = vld [vmem:[%s8292 + $0x3c0] sm:$0xff]
    %v8414 = vld [vmem:[%s8292 + $0x3c8] sm:$0xff]
    %v8415 = vld [vmem:[%s8292 + $0x3d0] sm:$0xff]
    %v8416 = vld [vmem:[%s8292 + $0x3d8] sm:$0xff]
    %v8417 = vld [vmem:[%s8292 + $0x3e0] sm:$0xff]
    %v8418 = vld [vmem:[%s8292 + $0x3e8] sm:$0xff]
    %v8419 = vld [vmem:[%s8292 + $0x3f0] sm:$0xff]
    %v8420 = vld [vmem:[%s8292 + $0x3f8] sm:$0xff]
    %s8421 = scalar_lea.vmem [#allocation18], 16
    %v8422 = vld [vmem:[%s8421] sm:$0xff]
    %v8423 = vld [vmem:[%s8421 + $0x8] sm:$0xff]
    %v8426 = vlaneseq
    %v8427 = vshrl.u32 %v8426, 7
    %v8428 = vsub.s32 0, %v8427
    %v8429 = vrot.slane %v8422, %v8428
    %v8430 = vlaneseq
    %v8431 = vshrl.u32 %v8430, 7
    %v8432 = vsub.s32 1, %v8431
    %v8433 = vrot.slane %v8422, %v8432
    %v8434 = vlaneseq
    %v8435 = vshrl.u32 %v8434, 7
    %v8436 = vsub.s32 2, %v8435
    %v8437 = vrot.slane %v8422, %v8436
    %v8438 = vlaneseq
    %v8439 = vshrl.u32 %v8438, 7
    %v8440 = vsub.s32 3, %v8439
    %v8441 = vrot.slane %v8422, %v8440
    %v8442 = vlaneseq
    %v8443 = vshrl.u32 %v8442, 7
    %v8444 = vsub.s32 4, %v8443
    %v8445 = vrot.slane %v8422, %v8444
    %v8446 = vlaneseq
    %v8447 = vshrl.u32 %v8446, 7
    %v8448 = vsub.s32 5, %v8447
    %v8449 = vrot.slane %v8422, %v8448
    %v8450 = vlaneseq
    %v8451 = vshrl.u32 %v8450, 7
    %v8452 = vsub.s32 6, %v8451
    %v8453 = vrot.slane %v8422, %v8452
    %v8454 = vlaneseq
    %v8455 = vshrl.u32 %v8454, 7
    %v8456 = vsub.s32 7, %v8455
    %v8457 = vrot.slane %v8422, %v8456
    %v8458 = vlaneseq
    %v8459 = vshrl.u32 %v8458, 7
    %v8460 = vsub.s32 0, %v8459
    %v8461 = vrot.slane %v8423, %v8460
    %v8462 = vlaneseq
    %v8463 = vshrl.u32 %v8462, 7
    %v8464 = vsub.s32 1, %v8463
    %v8465 = vrot.slane %v8423, %v8464
    %v8466 = vlaneseq
    %v8467 = vshrl.u32 %v8466, 7
    %v8468 = vsub.s32 2, %v8467
    %v8469 = vrot.slane %v8423, %v8468
    %v8470 = vlaneseq
    %v8471 = vshrl.u32 %v8470, 7
    %v8472 = vsub.s32 3, %v8471
    %v8473 = vrot.slane %v8423, %v8472
    %v8474 = vlaneseq
    %v8475 = vshrl.u32 %v8474, 7
    %v8476 = vsub.s32 4, %v8475
    %v8477 = vrot.slane %v8423, %v8476
    %v8478 = vlaneseq
    %v8479 = vshrl.u32 %v8478, 7
    %v8480 = vsub.s32 5, %v8479
    %v8481 = vrot.slane %v8423, %v8480
    %v8482 = vlaneseq
    %v8483 = vshrl.u32 %v8482, 7
    %v8484 = vsub.s32 6, %v8483
    %v8485 = vrot.slane %v8423, %v8484
    %v8486 = vlaneseq
    %v8487 = vshrl.u32 %v8486, 7
    %v8488 = vsub.s32 7, %v8487
    %v8489 = vrot.slane %v8423, %v8488
    %v8507 = vsel %vm348, %v8284, 0
    %v8510 = vsel %vm348, %v8285, 0
    %v8513 = vsel %vm348, %v8286, 0
    %v8516 = vsel %vm348, %v8287, 0
    %v8519 = vsel %vm348, %v8288, 0
    %v8522 = vsel %vm348, %v8289, 0
    %v8525 = vsel %vm348, %v8290, 0
    %v8528 = vsel %vm348, %v8291, 0
    %8530 = vmatprep.subr.mxu0 %v8294
    %8531 = vmatpush1.msra.mxu0 %v8293
    %8532 = vmatprep.subr.mxu0 %v8310
    %8533 = vmatpush1.msra.mxu0 %v8309
    %8534 = vmatprep.subr.mxu0 %v8326
    %8535 = vmatpush1.msra.mxu0 %v8325
    %8536 = vmatprep.subr.mxu0 %v8342
    %8537 = vmatpush1.msra.mxu0 %v8341
    %8538 = vmatprep.subr.mxu0 %v8358
    %8539 = vmatpush1.msra.mxu0 %v8357
    %8540 = vmatprep.subr.mxu0 %v8374
    %8541 = vmatpush1.msra.mxu0 %v8373
    %8542 = vmatprep.subr.mxu0 %v8390
    %8543 = vmatpush1.msra.mxu0 %v8389
    %8544 = vmatprep.subr.mxu0 %v8406
    %8545 = vmatpush1.msra.mxu0 %v8405
    %8546 = vmatprep.subr.mxu0 0.0
    %8547 = vmatpush1.msra.mxu0 0.0
    %8548 = vmatprep.subr.mxu0 0.0
    %8549 = vmatpush1.msra.mxu0 0.0
    %8550 = vmatprep.subr.mxu0 0.0
    %8551 = vmatpush1.msra.mxu0 0.0
    %8552 = vmatprep.subr.mxu0 0.0
    %8553 = vmatpush1.msra.mxu0 0.0
    %8554 = vmatprep.subr.mxu0 0.0
    %8555 = vmatpush1.msra.mxu0 0.0
    %8556 = vmatprep.subr.mxu0 0.0
    %8557 = vmatpush1.msra.mxu0 0.0
    %8558 = vmatprep.subr.mxu0 0.0
    %8559 = vmatpush1.msra.mxu0 0.0
    %8560 = vmatprep.subr.mxu0 0.0
    %8561 = vmatpush1.msra.mxu0 0.0
    %8562 = vmatprep.subr.mxu0 0.0
    %8563 = vmatpush1.msra.mxu0 0.0
    %8564 = vmatprep.subr.mxu0 0.0
    %8565 = vmatpush1.msra.mxu0 0.0
    %8566 = vmatprep.subr.mxu0 0.0
    %8567 = vmatpush1.msra.mxu0 0.0
    %8568 = vmatprep.subr.mxu0 0.0
    %8569 = vmatpush1.msra.mxu0 0.0
    %8570 = vmatprep.subr.mxu0 0.0
    %8571 = vmatpush1.msra.mxu0 0.0
    %8572 = vmatprep.subr.mxu0 0.0
    %8573 = vmatpush1.msra.mxu0 0.0
    %8574 = vmatprep.subr.mxu0 0.0
    %8575 = vmatpush1.msra.mxu0 0.0
    %8576 = vmatprep.subr.mxu0 0.0
    %8577 = vmatpush1.msra.mxu0 0.0
    %8578 = vmatprep.subr.mxu0 0.0
    %8579 = vmatpush1.msra.mxu0 0.0
    %8580 = vmatprep.subr.mxu0 0.0
    %8581 = vmatpush1.msra.mxu0 0.0
    %8582 = vmatprep.subr.mxu0 0.0
    %8583 = vmatpush1.msra.mxu0 0.0
    %8584 = vmatprep.subr.mxu0 0.0
    %8585 = vmatpush1.msra.mxu0 0.0
    %8586 = vmatprep.subr.mxu0 0.0
    %8587 = vmatpush1.msra.mxu0 0.0
    %8588 = vmatprep.subr.mxu0 0.0
    %8589 = vmatpush1.msra.mxu0 0.0
    %8590 = vmatprep.subr.mxu0 0.0
    %8591 = vmatpush1.msra.mxu0 0.0
    %8592 = vmatprep.subr.mxu0 0.0
    %8593 = vmatpush1.msra.mxu0 0.0
    %8594 = vmatprep.mubr.f32.mxu0 0.0
    %8595 = vmatmul.mubr.f32.gmra.mrb[0].mxu0 %v8507
    %v8596 = vpop.f32.mrb[0].mxu0
    %v8597 = vadd.f32 %v8429, %v8596
    %v8598 = vpop.f32.mrb[0].mxu0
    %v8599 = vadd.f32 %v8433, %v8598
    %8600 = vmatprep.mubr.f32.mxu0 0.0
    %8601 = vmatmul.mubr.f32.gmra.mrb[0].mxu0 %v8510
    %v8602 = vpop.f32.mrb[0].mxu0
    %v8603 = vadd.f32 %v8429, %v8602
    %v8604 = vpop.f32.mrb[0].mxu0
    %v8605 = vadd.f32 %v8433, %v8604
    %8606 = vmatprep.mubr.f32.mxu0 0.0
    %8607 = vmatmul.mubr.f32.gmra.mrb[0].mxu0 %v8513
    %v8608 = vpop.f32.mrb[0].mxu0
    %v8609 = vadd.f32 %v8429, %v8608
    %v8610 = vpop.f32.mrb[0].mxu0
    %v8611 = vadd.f32 %v8433, %v8610
    %8612 = vmatprep.mubr.f32.mxu0 0.0
    %8613 = vmatmul.mubr.f32.gmra.mrb[0].mxu0 %v8516
    %v8614 = vpop.f32.mrb[0].mxu0
    %v8615 = vadd.f32 %v8429, %v8614
    %v8616 = vpop.f32.mrb[0].mxu0
    %v8617 = vadd.f32 %v8433, %v8616
    %8618 = vmatprep.mubr.f32.mxu0 0.0
    %8619 = vmatmul.mubr.f32.gmra.mrb[0].mxu0 %v8519
    %v8620 = vpop.f32.mrb[0].mxu0
    %v8621 = vadd.f32 %v8429, %v8620
    %v8622 = vpop.f32.mrb[0].mxu0
    %v8623 = vadd.f32 %v8433, %v8622
    %8624 = vmatprep.mubr.f32.mxu0 0.0
    %8625 = vmatmul.mubr.f32.gmra.mrb[0].mxu0 %v8522
    %v8626 = vpop.f32.mrb[0].mxu0
    %v8627 = vadd.f32 %v8429, %v8626
    %v8628 = vpop.f32.mrb[0].mxu0
    %v8629 = vadd.f32 %v8433, %v8628
    %8630 = vmatprep.mubr.f32.mxu0 0.0
    %8631 = vmatmul.mubr.f32.gmra.mrb[0].mxu0 %v8525
    %v8632 = vpop.f32.mrb[0].mxu0
    %v8633 = vadd.f32 %v8429, %v8632
    %v8634 = vpop.f32.mrb[0].mxu0
    %v8635 = vadd.f32 %v8433, %v8634
    %8636 = vmatprep.mubr.f32.mxu0 0.0
    %8637 = vmatmul.mubr.f32.gmra.mrb[0].mxu0 %v8528
    %v8638 = vpop.f32.mrb[0].mxu0
    %v8639 = vadd.f32 %v8429, %v8638
    %v8640 = vpop.f32.mrb[0].mxu0
    %v8641 = vadd.f32 %v8433, %v8640
    %8642 = vdwg.mxu0
    %8643 = vmatprep.subr.mxu0 %v8296
    %8644 = vmatpush1.msra.mxu0 %v8295
    %8645 = vmatprep.subr.mxu0 %v8312
    %8646 = vmatpush1.msra.mxu0 %v8311
    %8647 = vmatprep.subr.mxu0 %v8328
    %8648 = vmatpush1.msra.mxu0 %v8327
    %8649 = vmatprep.subr.mxu0 %v8344
    %8650 = vmatpush1.msra.mxu0 %v8343
    %8651 = vmatprep.subr.mxu0 %v8360
    %8652 = vmatpush1.msra.mxu0 %v8359
    %8653 = vmatprep.subr.mxu0 %v8376
    %8654 = vmatpush1.msra.mxu0 %v8375
    %8655 = vmatprep.subr.mxu0 %v8392
    %8656 = vmatpush1.msra.mxu0 %v8391
    %8657 = vmatprep.subr.mxu0 %v8408
    %8658 = vmatpush1.msra.mxu0 %v8407
    %8659 = vmatprep.subr.mxu0 0.0
    %8660 = vmatpush1.msra.mxu0 0.0
    %8661 = vmatprep.subr.mxu0 0.0
    %8662 = vmatpush1.msra.mxu0 0.0
    %8663 = vmatprep.subr.mxu0 0.0
    %8664 = vmatpush1.msra.mxu0 0.0
    %8665 = vmatprep.subr.mxu0 0.0
    %8666 = vmatpush1.msra.mxu0 0.0
    %8667 = vmatprep.subr.mxu0 0.0
    %8668 = vmatpush1.msra.mxu0 0.0
    %8669 = vmatprep.subr.mxu0 0.0
    %8670 = vmatpush1.msra.mxu0 0.0
    %8671 = vmatprep.subr.mxu0 0.0
    %8672 = vmatpush1.msra.mxu0 0.0
    %8673 = vmatprep.subr.mxu0 0.0
    %8674 = vmatpush1.msra.mxu0 0.0
    %8675 = vmatprep.subr.mxu0 0.0
    %8676 = vmatpush1.msra.mxu0 0.0
    %8677 = vmatprep.subr.mxu0 0.0
    %8678 = vmatpush1.msra.mxu0 0.0
    %8679 = vmatprep.subr.mxu0 0.0
    %8680 = vmatpush1.msra.mxu0 0.0
    %8681 = vmatprep.subr.mxu0 0.0
    %8682 = vmatpush1.msra.mxu0 0.0
    %8683 = vmatprep.subr.mxu0 0.0
    %8684 = vmatpush1.msra.mxu0 0.0
    %8685 = vmatprep.subr.mxu0 0.0
    %8686 = vmatpush1.msra.mxu0 0.0
    %8687 = vmatprep.subr.mxu0 0.0
    %8688 = vmatpush1.msra.mxu0 0.0
    %8689 = vmatprep.subr.mxu0 0.0
    %8690 = vmatpush1.msra.mxu0 0.0
    %8691 = vmatprep.subr.mxu0 0.0
    %8692 = vmatpush1.msra.mxu0 0.0
    %8693 = vmatprep.subr.mxu0 0.0
    %8694 = vmatpush1.msra.mxu0 0.0
    %8695 = vmatprep.subr.mxu0 0.0
    %8696 = vmatpush1.msra.mxu0 0.0
    %8697 = vmatprep.subr.mxu0 0.0
    %8698 = vmatpush1.msra.mxu0 0.0
    %8699 = vmatprep.subr.mxu0 0.0
    %8700 = vmatpush1.msra.mxu0 0.0
    %8701 = vmatprep.subr.mxu0 0.0
    %8702 = vmatpush1.msra.mxu0 0.0
    %8703 = vmatprep.subr.mxu0 0.0
    %8704 = vmatpush1.msra.mxu0 0.0
    %8705 = vmatprep.subr.mxu0 0.0
    %8706 = vmatpush1.msra.mxu0 0.0
    %8707 = vmatprep.mubr.f32.mxu0 0.0
    %8708 = vmatmul.mubr.f32.gmra.mrb[0].mxu0 %v8507
    %v8709 = vpop.f32.mrb[0].mxu0
    %v8710 = vadd.f32 %v8437, %v8709
    %v8711 = vpop.f32.mrb[0].mxu0
    %v8712 = vadd.f32 %v8441, %v8711
    %8713 = vmatprep.mubr.f32.mxu0 0.0
    %8714 = vmatmul.mubr.f32.gmra.mrb[0].mxu0 %v8510
    %v8715 = vpop.f32.mrb[0].mxu0
    %v8716 = vadd.f32 %v8437, %v8715
    %v8717 = vpop.f32.mrb[0].mxu0
    %v8718 = vadd.f32 %v8441, %v8717
    %8719 = vmatprep.mubr.f32.mxu0 0.0
    %8720 = vmatmul.mubr.f32.gmra.mrb[0].mxu0 %v8513
    %v8721 = vpop.f32.mrb[0].mxu0
    %v8722 = vadd.f32 %v8437, %v8721
    %v8723 = vpop.f32.mrb[0].mxu0
    %v8724 = vadd.f32 %v8441, %v8723
    %8725 = vmatprep.mubr.f32.mxu0 0.0
    %8726 = vmatmul.mubr.f32.gmra.mrb[0].mxu0 %v8516
    %v8727 = vpop.f32.mrb[0].mxu0
    %v8728 = vadd.f32 %v8437, %v8727
    %v8729 = vpop.f32.mrb[0].mxu0
    %v8730 = vadd.f32 %v8441, %v8729
    %8731 = vmatprep.mubr.f32.mxu0 0.0
    %8732 = vmatmul.mubr.f32.gmra.mrb[0].mxu0 %v8519
    %v8733 = vpop.f32.mrb[0].mxu0
    %v8734 = vadd.f32 %v8437, %v8733
    %v8735 = vpop.f32.mrb[0].mxu0
    %v8736 = vadd.f32 %v8441, %v8735
    %8737 = vmatprep.mubr.f32.mxu0 0.0
    %8738 = vmatmul.mubr.f32.gmra.mrb[0].mxu0 %v8522
    %v8739 = vpop.f32.mrb[0].mxu0
    %v8740 = vadd.f32 %v8437, %v8739
    %v8741 = vpop.f32.mrb[0].mxu0
    %v8742 = vadd.f32 %v8441, %v8741
    %8743 = vmatprep.mubr.f32.mxu0 0.0
    %8744 = vmatmul.mubr.f32.gmra.mrb[0].mxu0 %v8525
    %v8745 = vpop.f32.mrb[0].mxu0
    %v8746 = vadd.f32 %v8437, %v8745
    %v8747 = vpop.f32.mrb[0].mxu0
    %v8748 = vadd.f32 %v8441, %v8747
    %8749 = vmatprep.mubr.f32.mxu0 0.0
    %8750 = vmatmul.mubr.f32.gmra.mrb[0].mxu0 %v8528
    %v8751 = vpop.f32.mrb[0].mxu0
    %v8752 = vadd.f32 %v8437, %v8751
    %v8753 = vpop.f32.mrb[0].mxu0
    %v8754 = vadd.f32 %v8441, %v8753
    %8755 = vdwg.mxu0
    %8756 = vmatprep.subr.mxu0 %v8298
    %8757 = vmatpush1.msra.mxu0 %v8297
    %8758 = vmatprep.subr.mxu0 %v8314
    %8759 = vmatpush1.msra.mxu0 %v8313
    %8760 = vmatprep.subr.mxu0 %v8330
    %8761 = vmatpush1.msra.mxu0 %v8329
    %8762 = vmatprep.subr.mxu0 %v8346
    %8763 = vmatpush1.msra.mxu0 %v8345
    %8764 = vmatprep.subr.mxu0 %v8362
    %8765 = vmatpush1.msra.mxu0 %v8361
    %8766 = vmatprep.subr.mxu0 %v8378
    %8767 = vmatpush1.msra.mxu0 %v8377
    %8768 = vmatprep.subr.mxu0 %v8394
    %8769 = vmatpush1.msra.mxu0 %v8393
    %8770 = vmatprep.subr.mxu0 %v8410
    %8771 = vmatpush1.msra.mxu0 %v8409
    %8772 = vmatprep.subr.mxu0 0.0
    %8773 = vmatpush1.msra.mxu0 0.0
    %8774 = vmatprep.subr.mxu0 0.0
    %8775 = vmatpush1.msra.mxu0 0.0
    %8776 = vmatprep.subr.mxu0 0.0
    %8777 = vmatpush1.msra.mxu0 0.0
    %8778 = vmatprep.subr.mxu0 0.0
    %8779 = vmatpush1.msra.mxu0 0.0
    %8780 = vmatprep.subr.mxu0 0.0
    %8781 = vmatpush1.msra.mxu0 0.0
    %8782 = vmatprep.subr.mxu0 0.0
    %8783 = vmatpush1.msra.mxu0 0.0
    %8784 = vmatprep.subr.mxu0 0.0
    %8785 = vmatpush1.msra.mxu0 0.0
    %8786 = vmatprep.subr.mxu0 0.0
    %8787 = vmatpush1.msra.mxu0 0.0
    %8788 = vmatprep.subr.mxu0 0.0
    %8789 = vmatpush1.msra.mxu0 0.0
    %8790 = vmatprep.subr.mxu0 0.0
    %8791 = vmatpush1.msra.mxu0 0.0
    %8792 = vmatprep.subr.mxu0 0.0
    %8793 = vmatpush1.msra.mxu0 0.0
    %8794 = vmatprep.subr.mxu0 0.0
    %8795 = vmatpush1.msra.mxu0 0.0
    %8796 = vmatprep.subr.mxu0 0.0
    %8797 = vmatpush1.msra.mxu0 0.0
    %8798 = vmatprep.subr.mxu0 0.0
    %8799 = vmatpush1.msra.mxu0 0.0
    %8800 = vmatprep.subr.mxu0 0.0
    %8801 = vmatpush1.msra.mxu0 0.0
    %8802 = vmatprep.subr.mxu0 0.0
    %8803 = vmatpush1.msra.mxu0 0.0
    %8804 = vmatprep.subr.mxu0 0.0
    %8805 = vmatpush1.msra.mxu0 0.0
    %8806 = vmatprep.subr.mxu0 0.0
    %8807 = vmatpush1.msra.mxu0 0.0
    %8808 = vmatprep.subr.mxu0 0.0
    %8809 = vmatpush1.msra.mxu0 0.0
    %8810 = vmatprep.subr.mxu0 0.0
    %8811 = vmatpush1.msra.mxu0 0.0
    %8812 = vmatprep.subr.mxu0 0.0
    %8813 = vmatpush1.msra.mxu0 0.0
    %8814 = vmatprep.subr.mxu0 0.0
    %8815 = vmatpush1.msra.mxu0 0.0
    %8816 = vmatprep.subr.mxu0 0.0
    %8817 = vmatpush1.msra.mxu0 0.0
    %8818 = vmatprep.subr.mxu0 0.0
    %8819 = vmatpush1.msra.mxu0 0.0
    %8820 = vmatprep.mubr.f32.mxu0 0.0
    %8821 = vmatmul.mubr.f32.gmra.mrb[0].mxu0 %v8507
    %v8822 = vpop.f32.mrb[0].mxu0
    %v8823 = vadd.f32 %v8445, %v8822
    %v8824 = vpop.f32.mrb[0].mxu0
    %v8825 = vadd.f32 %v8449, %v8824
    %8826 = vmatprep.mubr.f32.mxu0 0.0
    %8827 = vmatmul.mubr.f32.gmra.mrb[0].mxu0 %v8510
    %v8828 = vpop.f32.mrb[0].mxu0
    %v8829 = vadd.f32 %v8445, %v8828
    %v8830 = vpop.f32.mrb[0].mxu0
    %v8831 = vadd.f32 %v8449, %v8830
    %8832 = vmatprep.mubr.f32.mxu0 0.0
    %8833 = vmatmul.mubr.f32.gmra.mrb[0].mxu0 %v8513
    %v8834 = vpop.f32.mrb[0].mxu0
    %v8835 = vadd.f32 %v8445, %v8834
    %v8836 = vpop.f32.mrb[0].mxu0
    %v8837 = vadd.f32 %v8449, %v8836
    %8838 = vmatprep.mubr.f32.mxu0 0.0
    %8839 = vmatmul.mubr.f32.gmra.mrb[0].mxu0 %v8516
    %v8840 = vpop.f32.mrb[0].mxu0
    %v8841 = vadd.f32 %v8445, %v8840
    %v8842 = vpop.f32.mrb[0].mxu0
    %v8843 = vadd.f32 %v8449, %v8842
    %8844 = vmatprep.mubr.f32.mxu0 0.0
    %8845 = vmatmul.mubr.f32.gmra.mrb[0].mxu0 %v8519
    %v8846 = vpop.f32.mrb[0].mxu0
    %v8847 = vadd.f32 %v8445, %v8846
    %v8848 = vpop.f32.mrb[0].mxu0
    %v8849 = vadd.f32 %v8449, %v8848
    %8850 = vmatprep.mubr.f32.mxu0 0.0
    %8851 = vmatmul.mubr.f32.gmra.mrb[0].mxu0 %v8522
    %v8852 = vpop.f32.mrb[0].mxu0
    %v8853 = vadd.f32 %v8445, %v8852
    %v8854 = vpop.f32.mrb[0].mxu0
    %v8855 = vadd.f32 %v8449, %v8854
    %8856 = vmatprep.mubr.f32.mxu0 0.0
    %8857 = vmatmul.mubr.f32.gmra.mrb[0].mxu0 %v8525
    %v8858 = vpop.f32.mrb[0].mxu0
    %v8859 = vadd.f32 %v8445, %v8858
    %v8860 = vpop.f32.mrb[0].mxu0
    %v8861 = vadd.f32 %v8449, %v8860
    %8862 = vmatprep.mubr.f32.mxu0 0.0
    %8863 = vmatmul.mubr.f32.gmra.mrb[0].mxu0 %v8528
    %v8864 = vpop.f32.mrb[0].mxu0
    %v8865 = vadd.f32 %v8445, %v8864
    %v8866 = vpop.f32.mrb[0].mxu0
    %v8867 = vadd.f32 %v8449, %v8866
    %8868 = vdwg.mxu0
    %8869 = vmatprep.subr.mxu0 %v8300
    %8870 = vmatpush1.msra.mxu0 %v8299
    %8871 = vmatprep.subr.mxu0 %v8316
    %8872 = vmatpush1.msra.mxu0 %v8315
    %8873 = vmatprep.subr.mxu0 %v8332
    %8874 = vmatpush1.msra.mxu0 %v8331
    %8875 = vmatprep.subr.mxu0 %v8348
    %8876 = vmatpush1.msra.mxu0 %v8347
    %8877 = vmatprep.subr.mxu0 %v8364
    %8878 = vmatpush1.msra.mxu0 %v8363
    %8879 = vmatprep.subr.mxu0 %v8380
    %8880 = vmatpush1.msra.mxu0 %v8379
    %8881 = vmatprep.subr.mxu0 %v8396
    %8882 = vmatpush1.msra.mxu0 %v8395
    %8883 = vmatprep.subr.mxu0 %v8412
    %8884 = vmatpush1.msra.mxu0 %v8411
    %8885 = vmatprep.subr.mxu0 0.0
    %8886 = vmatpush1.msra.mxu0 0.0
    %8887 = vmatprep.subr.mxu0 0.0
    %8888 = vmatpush1.msra.mxu0 0.0
    %8889 = vmatprep.subr.mxu0 0.0
    %8890 = vmatpush1.msra.mxu0 0.0
    %8891 = vmatprep.subr.mxu0 0.0
    %8892 = vmatpush1.msra.mxu0 0.0
    %8893 = vmatprep.subr.mxu0 0.0
    %8894 = vmatpush1.msra.mxu0 0.0
    %8895 = vmatprep.subr.mxu0 0.0
    %8896 = vmatpush1.msra.mxu0 0.0
    %8897 = vmatprep.subr.mxu0 0.0
    %8898 = vmatpush1.msra.mxu0 0.0
    %8899 = vmatprep.subr.mxu0 0.0
    %8900 = vmatpush1.msra.mxu0 0.0
    %8901 = vmatprep.subr.mxu0 0.0
    %8902 = vmatpush1.msra.mxu0 0.0
    %8903 = vmatprep.subr.mxu0 0.0
    %8904 = vmatpush1.msra.mxu0 0.0
    %8905 = vmatprep.subr.mxu0 0.0
    %8906 = vmatpush1.msra.mxu0 0.0
    %8907 = vmatprep.subr.mxu0 0.0
    %8908 = vmatpush1.msra.mxu0 0.0
    %8909 = vmatprep.subr.mxu0 0.0
    %8910 = vmatpush1.msra.mxu0 0.0
    %8911 = vmatprep.subr.mxu0 0.0
    %8912 = vmatpush1.msra.mxu0 0.0
    %8913 = vmatprep.subr.mxu0 0.0
    %8914 = vmatpush1.msra.mxu0 0.0
    %8915 = vmatprep.subr.mxu0 0.0
    %8916 = vmatpush1.msra.mxu0 0.0
    %8917 = vmatprep.subr.mxu0 0.0
    %8918 = vmatpush1.msra.mxu0 0.0
    %8919 = vmatprep.subr.mxu0 0.0
    %8920 = vmatpush1.msra.mxu0 0.0
    %8921 = vmatprep.subr.mxu0 0.0
    %8922 = vmatpush1.msra.mxu0 0.0
    %8923 = vmatprep.subr.mxu0 0.0
    %8924 = vmatpush1.msra.mxu0 0.0
    %8925 = vmatprep.subr.mxu0 0.0
    %8926 = vmatpush1.msra.mxu0 0.0
    %8927 = vmatprep.subr.mxu0 0.0
    %8928 = vmatpush1.msra.mxu0 0.0
    %8929 = vmatprep.subr.mxu0 0.0
    %8930 = vmatpush1.msra.mxu0 0.0
    %8931 = vmatprep.subr.mxu0 0.0
    %8932 = vmatpush1.msra.mxu0 0.0
    %8933 = vmatprep.mubr.f32.mxu0 0.0
    %8934 = vmatmul.mubr.f32.gmra.mrb[0].mxu0 %v8507
    %v8935 = vpop.f32.mrb[0].mxu0
    %v8936 = vadd.f32 %v8453, %v8935
    %v8937 = vpop.f32.mrb[0].mxu0
    %v8938 = vadd.f32 %v8457, %v8937
    %8939 = vmatprep.mubr.f32.mxu0 0.0
    %8940 = vmatmul.mubr.f32.gmra.mrb[0].mxu0 %v8510
    %v8941 = vpop.f32.mrb[0].mxu0
    %v8942 = vadd.f32 %v8453, %v8941
    %v8943 = vpop.f32.mrb[0].mxu0
    %v8944 = vadd.f32 %v8457, %v8943
    %8945 = vmatprep.mubr.f32.mxu0 0.0
    %8946 = vmatmul.mubr.f32.gmra.mrb[0].mxu0 %v8513
    %v8947 = vpop.f32.mrb[0].mxu0
    %v8948 = vadd.f32 %v8453, %v8947
    %v8949 = vpop.f32.mrb[0].mxu0
    %v8950 = vadd.f32 %v8457, %v8949
    %8951 = vmatprep.mubr.f32.mxu0 0.0
    %8952 = vmatmul.mubr.f32.gmra.mrb[0].mxu0 %v8516
    %v8953 = vpop.f32.mrb[0].mxu0
    %v8954 = vadd.f32 %v8453, %v8953
    %v8955 = vpop.f32.mrb[0].mxu0
    %v8956 = vadd.f32 %v8457, %v8955
    %8957 = vmatprep.mubr.f32.mxu0 0.0
    %8958 = vmatmul.mubr.f32.gmra.mrb[0].mxu0 %v8519
    %v8959 = vpop.f32.mrb[0].mxu0
    %v8960 = vadd.f32 %v8453, %v8959
    %v8961 = vpop.f32.mrb[0].mxu0
    %v8962 = vadd.f32 %v8457, %v8961
    %8963 = vmatprep.mubr.f32.mxu0 0.0
    %8964 = vmatmul.mubr.f32.gmra.mrb[0].mxu0 %v8522
    %v8965 = vpop.f32.mrb[0].mxu0
    %v8966 = vadd.f32 %v8453, %v8965
    %v8967 = vpop.f32.mrb[0].mxu0
    %v8968 = vadd.f32 %v8457, %v8967
    %8969 = vmatprep.mubr.f32.mxu0 0.0
    %8970 = vmatmul.mubr.f32.gmra.mrb[0].mxu0 %v8525
    %v8971 = vpop.f32.mrb[0].mxu0
    %v8972 = vadd.f32 %v8453, %v8971
    %v8973 = vpop.f32.mrb[0].mxu0
    %v8974 = vadd.f32 %v8457, %v8973
    %8975 = vmatprep.mubr.f32.mxu0 0.0
    %8976 = vmatmul.mubr.f32.gmra.mrb[0].mxu0 %v8528
    %v8977 = vpop.f32.mrb[0].mxu0
    %v8978 = vadd.f32 %v8453, %v8977
    %v8979 = vpop.f32.mrb[0].mxu0
    %v8980 = vadd.f32 %v8457, %v8979
    %8981 = vdwg.mxu0
    %8982 = vmatprep.subr.mxu0 %v8302
    %8983 = vmatpush1.msra.mxu0 %v8301
    %8984 = vmatprep.subr.mxu0 %v8318
    %8985 = vmatpush1.msra.mxu0 %v8317
    %8986 = vmatprep.subr.mxu0 %v8334
    %8987 = vmatpush1.msra.mxu0 %v8333
    %8988 = vmatprep.subr.mxu0 %v8350
    %8989 = vmatpush1.msra.mxu0 %v8349
    %8990 = vmatprep.subr.mxu0 %v8366
    %8991 = vmatpush1.msra.mxu0 %v8365
    %8992 = vmatprep.subr.mxu0 %v8382
    %8993 = vmatpush1.msra.mxu0 %v8381
    %8994 = vmatprep.subr.mxu0 %v8398
    %8995 = vmatpush1.msra.mxu0 %v8397
    %8996 = vmatprep.subr.mxu0 %v8414
    %8997 = vmatpush1.msra.mxu0 %v8413
    %8998 = vmatprep.subr.mxu0 0.0
    %8999 = vmatpush1.msra.mxu0 0.0
    %9000 = vmatprep.subr.mxu0 0.0
    %9001 = vmatpush1.msra.mxu0 0.0
    %9002 = vmatprep.subr.mxu0 0.0
    %9003 = vmatpush1.msra.mxu0 0.0
    %9004 = vmatprep.subr.mxu0 0.0
    %9005 = vmatpush1.msra.mxu0 0.0
    %9006 = vmatprep.subr.mxu0 0.0
    %9007 = vmatpush1.msra.mxu0 0.0
    %9008 = vmatprep.subr.mxu0 0.0
    %9009 = vmatpush1.msra.mxu0 0.0
    %9010 = vmatprep.subr.mxu0 0.0
    %9011 = vmatpush1.msra.mxu0 0.0
    %9012 = vmatprep.subr.mxu0 0.0
    %9013 = vmatpush1.msra.mxu0 0.0
    %9014 = vmatprep.subr.mxu0 0.0
    %9015 = vmatpush1.msra.mxu0 0.0
    %9016 = vmatprep.subr.mxu0 0.0
    %9017 = vmatpush1.msra.mxu0 0.0
    %9018 = vmatprep.subr.mxu0 0.0
    %9019 = vmatpush1.msra.mxu0 0.0
    %9020 = vmatprep.subr.mxu0 0.0
    %9021 = vmatpush1.msra.mxu0 0.0
    %9022 = vmatprep.subr.mxu0 0.0
    %9023 = vmatpush1.msra.mxu0 0.0
    %9024 = vmatprep.subr.mxu0 0.0
    %9025 = vmatpush1.msra.mxu0 0.0
    %9026 = vmatprep.subr.mxu0 0.0
    %9027 = vmatpush1.msra.mxu0 0.0
    %9028 = vmatprep.subr.mxu0 0.0
    %9029 = vmatpush1.msra.mxu0 0.0
    %9030 = vmatprep.subr.mxu0 0.0
    %9031 = vmatpush1.msra.mxu0 0.0
    %9032 = vmatprep.subr.mxu0 0.0
    %9033 = vmatpush1.msra.mxu0 0.0
    %9034 = vmatprep.subr.mxu0 0.0
    %9035 = vmatpush1.msra.mxu0 0.0
    %9036 = vmatprep.subr.mxu0 0.0
    %9037 = vmatpush1.msra.mxu0 0.0
    %9038 = vmatprep.subr.mxu0 0.0
    %9039 = vmatpush1.msra.mxu0 0.0
    %9040 = vmatprep.subr.mxu0 0.0
    %9041 = vmatpush1.msra.mxu0 0.0
    %9042 = vmatprep.subr.mxu0 0.0
    %9043 = vmatpush1.msra.mxu0 0.0
    %9044 = vmatprep.subr.mxu0 0.0
    %9045 = vmatpush1.msra.mxu0 0.0
    %9046 = vmatprep.mubr.f32.mxu0 0.0
    %9047 = vmatmul.mubr.f32.gmra.mrb[0].mxu0 %v8507
    %v9048 = vpop.f32.mrb[0].mxu0
    %v9049 = vadd.f32 %v8461, %v9048
    %v9050 = vpop.f32.mrb[0].mxu0
    %v9051 = vadd.f32 %v8465, %v9050
    %9052 = vmatprep.mubr.f32.mxu0 0.0
    %9053 = vmatmul.mubr.f32.gmra.mrb[0].mxu0 %v8510
    %v9054 = vpop.f32.mrb[0].mxu0
    %v9055 = vadd.f32 %v8461, %v9054
    %v9056 = vpop.f32.mrb[0].mxu0
    %v9057 = vadd.f32 %v8465, %v9056
    %9058 = vmatprep.mubr.f32.mxu0 0.0
    %9059 = vmatmul.mubr.f32.gmra.mrb[0].mxu0 %v8513
    %v9060 = vpop.f32.mrb[0].mxu0
    %v9061 = vadd.f32 %v8461, %v9060
    %v9062 = vpop.f32.mrb[0].mxu0
    %v9063 = vadd.f32 %v8465, %v9062
    %9064 = vmatprep.mubr.f32.mxu0 0.0
    %9065 = vmatmul.mubr.f32.gmra.mrb[0].mxu0 %v8516
    %v9066 = vpop.f32.mrb[0].mxu0
    %v9067 = vadd.f32 %v8461, %v9066
    %v9068 = vpop.f32.mrb[0].mxu0
    %v9069 = vadd.f32 %v8465, %v9068
    %9070 = vmatprep.mubr.f32.mxu0 0.0
    %9071 = vmatmul.mubr.f32.gmra.mrb[0].mxu0 %v8519
    %v9072 = vpop.f32.mrb[0].mxu0
    %v9073 = vadd.f32 %v8461, %v9072
    %v9074 = vpop.f32.mrb[0].mxu0
    %v9075 = vadd.f32 %v8465, %v9074
    %9076 = vmatprep.mubr.f32.mxu0 0.0
    %9077 = vmatmul.mubr.f32.gmra.mrb[0].mxu0 %v8522
    %v9078 = vpop.f32.mrb[0].mxu0
    %v9079 = vadd.f32 %v8461, %v9078
    %v9080 = vpop.f32.mrb[0].mxu0
    %v9081 = vadd.f32 %v8465, %v9080
    %9082 = vmatprep.mubr.f32.mxu0 0.0
    %9083 = vmatmul.mubr.f32.gmra.mrb[0].mxu0 %v8525
    %v9084 = vpop.f32.mrb[0].mxu0
    %v9085 = vadd.f32 %v8461, %v9084
    %v9086 = vpop.f32.mrb[0].mxu0
    %v9087 = vadd.f32 %v8465, %v9086
    %9088 = vmatprep.mubr.f32.mxu0 0.0
    %9089 = vmatmul.mubr.f32.gmra.mrb[0].mxu0 %v8528
    %v9090 = vpop.f32.mrb[0].mxu0
    %v9091 = vadd.f32 %v8461, %v9090
    %v9092 = vpop.f32.mrb[0].mxu0
    %v9093 = vadd.f32 %v8465, %v9092
    %9094 = vdwg.mxu0
    %9095 = vmatprep.subr.mxu0 %v8304
    %9096 = vmatpush1.msra.mxu0 %v8303
    %9097 = vmatprep.subr.mxu0 %v8320
    %9098 = vmatpush1.msra.mxu0 %v8319
    %9099 = vmatprep.subr.mxu0 %v8336
    %9100 = vmatpush1.msra.mxu0 %v8335
    %9101 = vmatprep.subr.mxu0 %v8352
    %9102 = vmatpush1.msra.mxu0 %v8351
    %9103 = vmatprep.subr.mxu0 %v8368
    %9104 = vmatpush1.msra.mxu0 %v8367
    %9105 = vmatprep.subr.mxu0 %v8384
    %9106 = vmatpush1.msra.mxu0 %v8383
    %9107 = vmatprep.subr.mxu0 %v8400
    %9108 = vmatpush1.msra.mxu0 %v8399
    %9109 = vmatprep.subr.mxu0 %v8416
    %9110 = vmatpush1.msra.mxu0 %v8415
    %9111 = vmatprep.subr.mxu0 0.0
    %9112 = vmatpush1.msra.mxu0 0.0
    %9113 = vmatprep.subr.mxu0 0.0
    %9114 = vmatpush1.msra.mxu0 0.0
    %9115 = vmatprep.subr.mxu0 0.0
    %9116 = vmatpush1.msra.mxu0 0.0
    %9117 = vmatprep.subr.mxu0 0.0
    %9118 = vmatpush1.msra.mxu0 0.0
    %9119 = vmatprep.subr.mxu0 0.0
    %9120 = vmatpush1.msra.mxu0 0.0
    %9121 = vmatprep.subr.mxu0 0.0
    %9122 = vmatpush1.msra.mxu0 0.0
    %9123 = vmatprep.subr.mxu0 0.0
    %9124 = vmatpush1.msra.mxu0 0.0
    %9125 = vmatprep.subr.mxu0 0.0
    %9126 = vmatpush1.msra.mxu0 0.0
    %9127 = vmatprep.subr.mxu0 0.0
    %9128 = vmatpush1.msra.mxu0 0.0
    %9129 = vmatprep.subr.mxu0 0.0
    %9130 = vmatpush1.msra.mxu0 0.0
    %9131 = vmatprep.subr.mxu0 0.0
    %9132 = vmatpush1.msra.mxu0 0.0
    %9133 = vmatprep.subr.mxu0 0.0
    %9134 = vmatpush1.msra.mxu0 0.0
    %9135 = vmatprep.subr.mxu0 0.0
    %9136 = vmatpush1.msra.mxu0 0.0
    %9137 = vmatprep.subr.mxu0 0.0
    %9138 = vmatpush1.msra.mxu0 0.0
    %9139 = vmatprep.subr.mxu0 0.0
    %9140 = vmatpush1.msra.mxu0 0.0
    %9141 = vmatprep.subr.mxu0 0.0
    %9142 = vmatpush1.msra.mxu0 0.0
    %9143 = vmatprep.subr.mxu0 0.0
    %9144 = vmatpush1.msra.mxu0 0.0
    %9145 = vmatprep.subr.mxu0 0.0
    %9146 = vmatpush1.msra.mxu0 0.0
    %9147 = vmatprep.subr.mxu0 0.0
    %9148 = vmatpush1.msra.mxu0 0.0
    %9149 = vmatprep.subr.mxu0 0.0
    %9150 = vmatpush1.msra.mxu0 0.0
    %9151 = vmatprep.subr.mxu0 0.0
    %9152 = vmatpush1.msra.mxu0 0.0
    %9153 = vmatprep.subr.mxu0 0.0
    %9154 = vmatpush1.msra.mxu0 0.0
    %9155 = vmatprep.subr.mxu0 0.0
    %9156 = vmatpush1.msra.mxu0 0.0
    %9157 = vmatprep.subr.mxu0 0.0
    %9158 = vmatpush1.msra.mxu0 0.0
    %9159 = vmatprep.mubr.f32.mxu0 0.0
    %9160 = vmatmul.mubr.f32.gmra.mrb[0].mxu0 %v8507
    %v9161 = vpop.f32.mrb[0].mxu0
    %v9162 = vadd.f32 %v8469, %v9161
    %v9163 = vpop.f32.mrb[0].mxu0
    %v9164 = vadd.f32 %v8473, %v9163
    %9165 = vmatprep.mubr.f32.mxu0 0.0
    %9166 = vmatmul.mubr.f32.gmra.mrb[0].mxu0 %v8510
    %v9167 = vpop.f32.mrb[0].mxu0
    %v9168 = vadd.f32 %v8469, %v9167
    %v9169 = vpop.f32.mrb[0].mxu0
    %v9170 = vadd.f32 %v8473, %v9169
    %9171 = vmatprep.mubr.f32.mxu0 0.0
    %9172 = vmatmul.mubr.f32.gmra.mrb[0].mxu0 %v8513
    %v9173 = vpop.f32.mrb[0].mxu0
    %v9174 = vadd.f32 %v8469, %v9173
    %v9175 = vpop.f32.mrb[0].mxu0
    %v9176 = vadd.f32 %v8473, %v9175
    %9177 = vmatprep.mubr.f32.mxu0 0.0
    %9178 = vmatmul.mubr.f32.gmra.mrb[0].mxu0 %v8516
    %v9179 = vpop.f32.mrb[0].mxu0
    %v9180 = vadd.f32 %v8469, %v9179
    %v9181 = vpop.f32.mrb[0].mxu0
    %v9182 = vadd.f32 %v8473, %v9181
    %9183 = vmatprep.mubr.f32.mxu0 0.0
    %9184 = vmatmul.mubr.f32.gmra.mrb[0].mxu0 %v8519
    %v9185 = vpop.f32.mrb[0].mxu0
    %v9186 = vadd.f32 %v8469, %v9185
    %v9187 = vpop.f32.mrb[0].mxu0
    %v9188 = vadd.f32 %v8473, %v9187
    %9189 = vmatprep.mubr.f32.mxu0 0.0
    %9190 = vmatmul.mubr.f32.gmra.mrb[0].mxu0 %v8522
    %v9191 = vpop.f32.mrb[0].mxu0
    %v9192 = vadd.f32 %v8469, %v9191
    %v9193 = vpop.f32.mrb[0].mxu0
    %v9194 = vadd.f32 %v8473, %v9193
    %9195 = vmatprep.mubr.f32.mxu0 0.0
    %9196 = vmatmul.mubr.f32.gmra.mrb[0].mxu0 %v8525
    %v9197 = vpop.f32.mrb[0].mxu0
    %v9198 = vadd.f32 %v8469, %v9197
    %v9199 = vpop.f32.mrb[0].mxu0
    %v9200 = vadd.f32 %v8473, %v9199
    %9201 = vmatprep.mubr.f32.mxu0 0.0
    %9202 = vmatmul.mubr.f32.gmra.mrb[0].mxu0 %v8528
    %v9203 = vpop.f32.mrb[0].mxu0
    %v9204 = vadd.f32 %v8469, %v9203
    %v9205 = vpop.f32.mrb[0].mxu0
    %v9206 = vadd.f32 %v8473, %v9205
    %9207 = vdwg.mxu0
    %9208 = vmatprep.subr.mxu0 %v8306
    %9209 = vmatpush1.msra.mxu0 %v8305
    %9210 = vmatprep.subr.mxu0 %v8322
    %9211 = vmatpush1.msra.mxu0 %v8321
    %9212 = vmatprep.subr.mxu0 %v8338
    %9213 = vmatpush1.msra.mxu0 %v8337
    %9214 = vmatprep.subr.mxu0 %v8354
    %9215 = vmatpush1.msra.mxu0 %v8353
    %9216 = vmatprep.subr.mxu0 %v8370
    %9217 = vmatpush1.msra.mxu0 %v8369
    %9218 = vmatprep.subr.mxu0 %v8386
    %9219 = vmatpush1.msra.mxu0 %v8385
    %9220 = vmatprep.subr.mxu0 %v8402
    %9221 = vmatpush1.msra.mxu0 %v8401
    %9222 = vmatprep.subr.mxu0 %v8418
    %9223 = vmatpush1.msra.mxu0 %v8417
    %9224 = vmatprep.subr.mxu0 0.0
    %9225 = vmatpush1.msra.mxu0 0.0
    %9226 = vmatprep.subr.mxu0 0.0
    %9227 = vmatpush1.msra.mxu0 0.0
    %9228 = vmatprep.subr.mxu0 0.0
    %9229 = vmatpush1.msra.mxu0 0.0
    %9230 = vmatprep.subr.mxu0 0.0
    %9231 = vmatpush1.msra.mxu0 0.0
    %9232 = vmatprep.subr.mxu0 0.0
    %9233 = vmatpush1.msra.mxu0 0.0
    %9234 = vmatprep.subr.mxu0 0.0
    %9235 = vmatpush1.msra.mxu0 0.0
    %9236 = vmatprep.subr.mxu0 0.0
    %9237 = vmatpush1.msra.mxu0 0.0
    %9238 = vmatprep.subr.mxu0 0.0
    %9239 = vmatpush1.msra.mxu0 0.0
    %9240 = vmatprep.subr.mxu0 0.0
    %9241 = vmatpush1.msra.mxu0 0.0
    %9242 = vmatprep.subr.mxu0 0.0
    %9243 = vmatpush1.msra.mxu0 0.0
    %9244 = vmatprep.subr.mxu0 0.0
    %9245 = vmatpush1.msra.mxu0 0.0
    %9246 = vmatprep.subr.mxu0 0.0
    %9247 = vmatpush1.msra.mxu0 0.0
    %9248 = vmatprep.subr.mxu0 0.0
    %9249 = vmatpush1.msra.mxu0 0.0
    %9250 = vmatprep.subr.mxu0 0.0
    %9251 = vmatpush1.msra.mxu0 0.0
    %9252 = vmatprep.subr.mxu0 0.0
    %9253 = vmatpush1.msra.mxu0 0.0
    %9254 = vmatprep.subr.mxu0 0.0
    %9255 = vmatpush1.msra.mxu0 0.0
    %9256 = vmatprep.subr.mxu0 0.0
    %9257 = vmatpush1.msra.mxu0 0.0
    %9258 = vmatprep.subr.mxu0 0.0
    %9259 = vmatpush1.msra.mxu0 0.0
    %9260 = vmatprep.subr.mxu0 0.0
    %9261 = vmatpush1.msra.mxu0 0.0
    %9262 = vmatprep.subr.mxu0 0.0
    %9263 = vmatpush1.msra.mxu0 0.0
    %9264 = vmatprep.subr.mxu0 0.0
    %9265 = vmatpush1.msra.mxu0 0.0
    %9266 = vmatprep.subr.mxu0 0.0
    %9267 = vmatpush1.msra.mxu0 0.0
    %9268 = vmatprep.subr.mxu0 0.0
    %9269 = vmatpush1.msra.mxu0 0.0
    %9270 = vmatprep.subr.mxu0 0.0
    %9271 = vmatpush1.msra.mxu0 0.0
    %9272 = vmatprep.mubr.f32.mxu0 0.0
    %9273 = vmatmul.mubr.f32.gmra.mrb[0].mxu0 %v8507
    %v9274 = vpop.f32.mrb[0].mxu0
    %v9275 = vadd.f32 %v8477, %v9274
    %v9276 = vpop.f32.mrb[0].mxu0
    %v9277 = vadd.f32 %v8481, %v9276
    %9278 = vmatprep.mubr.f32.mxu0 0.0
    %9279 = vmatmul.mubr.f32.gmra.mrb[0].mxu0 %v8510
    %v9280 = vpop.f32.mrb[0].mxu0
    %v9281 = vadd.f32 %v8477, %v9280
    %v9282 = vpop.f32.mrb[0].mxu0
    %v9283 = vadd.f32 %v8481, %v9282
    %9284 = vmatprep.mubr.f32.mxu0 0.0
    %9285 = vmatmul.mubr.f32.gmra.mrb[0].mxu0 %v8513
    %v9286 = vpop.f32.mrb[0].mxu0
    %v9287 = vadd.f32 %v8477, %v9286
    %v9288 = vpop.f32.mrb[0].mxu0
    %v9289 = vadd.f32 %v8481, %v9288
    %9290 = vmatprep.mubr.f32.mxu0 0.0
    %9291 = vmatmul.mubr.f32.gmra.mrb[0].mxu0 %v8516
    %v9292 = vpop.f32.mrb[0].mxu0
    %v9293 = vadd.f32 %v8477, %v9292
    %v9294 = vpop.f32.mrb[0].mxu0
    %v9295 = vadd.f32 %v8481, %v9294
    %9296 = vmatprep.mubr.f32.mxu0 0.0
    %9297 = vmatmul.mubr.f32.gmra.mrb[0].mxu0 %v8519
    %v9298 = vpop.f32.mrb[0].mxu0
    %v9299 = vadd.f32 %v8477, %v9298
    %v9300 = vpop.f32.mrb[0].mxu0
    %v9301 = vadd.f32 %v8481, %v9300
    %9302 = vmatprep.mubr.f32.mxu0 0.0
    %9303 = vmatmul.mubr.f32.gmra.mrb[0].mxu0 %v8522
    %v9304 = vpop.f32.mrb[0].mxu0
    %v9305 = vadd.f32 %v8477, %v9304
    %v9306 = vpop.f32.mrb[0].mxu0
    %v9307 = vadd.f32 %v8481, %v9306
    %9308 = vmatprep.mubr.f32.mxu0 0.0
    %9309 = vmatmul.mubr.f32.gmra.mrb[0].mxu0 %v8525
    %v9310 = vpop.f32.mrb[0].mxu0
    %v9311 = vadd.f32 %v8477, %v9310
    %v9312 = vpop.f32.mrb[0].mxu0
    %v9313 = vadd.f32 %v8481, %v9312
    %9314 = vmatprep.mubr.f32.mxu0 0.0
    %9315 = vmatmul.mubr.f32.gmra.mrb[0].mxu0 %v8528
    %v9316 = vpop.f32.mrb[0].mxu0
    %v9317 = vadd.f32 %v8477, %v9316
    %v9318 = vpop.f32.mrb[0].mxu0
    %v9319 = vadd.f32 %v8481, %v9318
    %9320 = vdwg.mxu0
    %9321 = vmatprep.subr.mxu0 %v8308
    %9322 = vmatpush1.msra.mxu0 %v8307
    %9323 = vmatprep.subr.mxu0 %v8324
    %9324 = vmatpush1.msra.mxu0 %v8323
    %9325 = vmatprep.subr.mxu0 %v8340
    %9326 = vmatpush1.msra.mxu0 %v8339
    %9327 = vmatprep.subr.mxu0 %v8356
    %9328 = vmatpush1.msra.mxu0 %v8355
    %9329 = vmatprep.subr.mxu0 %v8372
    %9330 = vmatpush1.msra.mxu0 %v8371
    %9331 = vmatprep.subr.mxu0 %v8388
    %9332 = vmatpush1.msra.mxu0 %v8387
    %9333 = vmatprep.subr.mxu0 %v8404
    %9334 = vmatpush1.msra.mxu0 %v8403
    %9335 = vmatprep.subr.mxu0 %v8420
    %9336 = vmatpush1.msra.mxu0 %v8419
    %9337 = vmatprep.subr.mxu0 0.0
    %9338 = vmatpush1.msra.mxu0 0.0
    %9339 = vmatprep.subr.mxu0 0.0
    %9340 = vmatpush1.msra.mxu0 0.0
    %9341 = vmatprep.subr.mxu0 0.0
    %9342 = vmatpush1.msra.mxu0 0.0
    %9343 = vmatprep.subr.mxu0 0.0
    %9344 = vmatpush1.msra.mxu0 0.0
    %9345 = vmatprep.subr.mxu0 0.0
    %9346 = vmatpush1.msra.mxu0 0.0
    %9347 = vmatprep.subr.mxu0 0.0
    %9348 = vmatpush1.msra.mxu0 0.0
    %9349 = vmatprep.subr.mxu0 0.0
    %9350 = vmatpush1.msra.mxu0 0.0
    %9351 = vmatprep.subr.mxu0 0.0
    %9352 = vmatpush1.msra.mxu0 0.0
    %9353 = vmatprep.subr.mxu0 0.0
    %9354 = vmatpush1.msra.mxu0 0.0
    %9355 = vmatprep.subr.mxu0 0.0
    %9356 = vmatpush1.msra.mxu0 0.0
    %9357 = vmatprep.subr.mxu0 0.0
    %9358 = vmatpush1.msra.mxu0 0.0
    %9359 = vmatprep.subr.mxu0 0.0
    %9360 = vmatpush1.msra.mxu0 0.0
    %9361 = vmatprep.subr.mxu0 0.0
    %9362 = vmatpush1.msra.mxu0 0.0
    %9363 = vmatprep.subr.mxu0 0.0
    %9364 = vmatpush1.msra.mxu0 0.0
    %9365 = vmatprep.subr.mxu0 0.0
    %9366 = vmatpush1.msra.mxu0 0.0
    %9367 = vmatprep.subr.mxu0 0.0
    %9368 = vmatpush1.msra.mxu0 0.0
    %9369 = vmatprep.subr.mxu0 0.0
    %9370 = vmatpush1.msra.mxu0 0.0
    %9371 = vmatprep.subr.mxu0 0.0
    %9372 = vmatpush1.msra.mxu0 0.0
    %9373 = vmatprep.subr.mxu0 0.0
    %9374 = vmatpush1.msra.mxu0 0.0
    %9375 = vmatprep.subr.mxu0 0.0
    %9376 = vmatpush1.msra.mxu0 0.0
    %9377 = vmatprep.subr.mxu0 0.0
    %9378 = vmatpush1.msra.mxu0 0.0
    %9379 = vmatprep.subr.mxu0 0.0
    %9380 = vmatpush1.msra.mxu0 0.0
    %9381 = vmatprep.subr.mxu0 0.0
    %9382 = vmatpush1.msra.mxu0 0.0
    %9383 = vmatprep.subr.mxu0 0.0
    %9384 = vmatpush1.msra.mxu0 0.0
    %9385 = vmatprep.mubr.f32.mxu0 0.0
    %9386 = vmatmul.mubr.f32.gmra.mrb[0].mxu0 %v8507
    %v9387 = vpop.f32.mrb[0].mxu0
    %v9388 = vadd.f32 %v8485, %v9387
    %v9389 = vpop.f32.mrb[0].mxu0
    %v9390 = vadd.f32 %v8489, %v9389
    %9391 = vmatprep.mubr.f32.mxu0 0.0
    %9392 = vmatmul.mubr.f32.gmra.mrb[0].mxu0 %v8510
    %v9393 = vpop.f32.mrb[0].mxu0
    %v9394 = vadd.f32 %v8485, %v9393
    %v9395 = vpop.f32.mrb[0].mxu0
    %v9396 = vadd.f32 %v8489, %v9395
    %9397 = vmatprep.mubr.f32.mxu0 0.0
    %9398 = vmatmul.mubr.f32.gmra.mrb[0].mxu0 %v8513
    %v9399 = vpop.f32.mrb[0].mxu0
    %v9400 = vadd.f32 %v8485, %v9399
    %v9401 = vpop.f32.mrb[0].mxu0
    %v9402 = vadd.f32 %v8489, %v9401
    %9403 = vmatprep.mubr.f32.mxu0 0.0
    %9404 = vmatmul.mubr.f32.gmra.mrb[0].mxu0 %v8516
    %v9405 = vpop.f32.mrb[0].mxu0
    %v9406 = vadd.f32 %v8485, %v9405
    %v9407 = vpop.f32.mrb[0].mxu0
    %v9408 = vadd.f32 %v8489, %v9407
    %9409 = vmatprep.mubr.f32.mxu0 0.0
    %9410 = vmatmul.mubr.f32.gmra.mrb[0].mxu0 %v8519
    %v9411 = vpop.f32.mrb[0].mxu0
    %v9412 = vadd.f32 %v8485, %v9411
    %v9413 = vpop.f32.mrb[0].mxu0
    %v9414 = vadd.f32 %v8489, %v9413
    %9415 = vmatprep.mubr.f32.mxu0 0.0
    %9416 = vmatmul.mubr.f32.gmra.mrb[0].mxu0 %v8522
    %v9417 = vpop.f32.mrb[0].mxu0
    %v9418 = vadd.f32 %v8485, %v9417
    %v9419 = vpop.f32.mrb[0].mxu0
    %v9420 = vadd.f32 %v8489, %v9419
    %9421 = vmatprep.mubr.f32.mxu0 0.0
    %9422 = vmatmul.mubr.f32.gmra.mrb[0].mxu0 %v8525
    %v9423 = vpop.f32.mrb[0].mxu0
    %v9424 = vadd.f32 %v8485, %v9423
    %v9425 = vpop.f32.mrb[0].mxu0
    %v9426 = vadd.f32 %v8489, %v9425
    %9427 = vmatprep.mubr.f32.mxu0 0.0
    %9428 = vmatmul.mubr.f32.gmra.mrb[0].mxu0 %v8528
    %v9429 = vpop.f32.mrb[0].mxu0
    %v9430 = vadd.f32 %v8485, %v9429
    %v9431 = vpop.f32.mrb[0].mxu0
    %v9432 = vadd.f32 %v8489, %v9431
    %9433 = vdwg.mxu0
    %v9434 = vmax.f32 %v8597, 0.0
    %v9435 = vmax.f32 %v8599, 0.0
    %v9436 = vmax.f32 %v8710, 0.0
    %v9437 = vmax.f32 %v8712, 0.0
    %v9438 = vmax.f32 %v8823, 0.0
    %v9439 = vmax.f32 %v8825, 0.0
    %v9440 = vmax.f32 %v8936, 0.0
    %v9441 = vmax.f32 %v8938, 0.0
    %v9442 = vmax.f32 %v9049, 0.0
    %v9443 = vmax.f32 %v9051, 0.0
    %v9444 = vmax.f32 %v9162, 0.0
    %v9445 = vmax.f32 %v9164, 0.0
    %v9446 = vmax.f32 %v9275, 0.0
    %v9447 = vmax.f32 %v9277, 0.0
    %v9448 = vmax.f32 %v9388, 0.0
    %v9449 = vmax.f32 %v9390, 0.0
    %v9450 = vmax.f32 %v8603, 0.0
    %v9451 = vmax.f32 %v8605, 0.0
    %v9452 = vmax.f32 %v8716, 0.0
    %v9453 = vmax.f32 %v8718, 0.0
    %v9454 = vmax.f32 %v8829, 0.0
    %v9455 = vmax.f32 %v8831, 0.0
    %v9456 = vmax.f32 %v8942, 0.0
    %v9457 = vmax.f32 %v8944, 0.0
    %v9458 = vmax.f32 %v9055, 0.0
    %v9459 = vmax.f32 %v9057, 0.0
    %v9460 = vmax.f32 %v9168, 0.0
    %v9461 = vmax.f32 %v9170, 0.0
    %v9462 = vmax.f32 %v9281, 0.0
    %v9463 = vmax.f32 %v9283, 0.0
    %v9464 = vmax.f32 %v9394, 0.0
    %v9465 = vmax.f32 %v9396, 0.0
    %v9466 = vmax.f32 %v8609, 0.0
    %v9467 = vmax.f32 %v8611, 0.0
    %v9468 = vmax.f32 %v8722, 0.0
    %v9469 = vmax.f32 %v8724, 0.0
    %v9470 = vmax.f32 %v8835, 0.0
    %v9471 = vmax.f32 %v8837, 0.0
    %v9472 = vmax.f32 %v8948, 0.0
    %v9473 = vmax.f32 %v8950, 0.0
    %v9474 = vmax.f32 %v9061, 0.0
    %v9475 = vmax.f32 %v9063, 0.0
    %v9476 = vmax.f32 %v9174, 0.0
    %v9477 = vmax.f32 %v9176, 0.0
    %v9478 = vmax.f32 %v9287, 0.0
    %v9479 = vmax.f32 %v9289, 0.0
    %v9480 = vmax.f32 %v9400, 0.0
    %v9481 = vmax.f32 %v9402, 0.0
    %v9482 = vmax.f32 %v8615, 0.0
    %v9483 = vmax.f32 %v8617, 0.0
    %v9484 = vmax.f32 %v8728, 0.0
    %v9485 = vmax.f32 %v8730, 0.0
    %v9486 = vmax.f32 %v8841, 0.0
    %v9487 = vmax.f32 %v8843, 0.0
    %v9488 = vmax.f32 %v8954, 0.0
    %v9489 = vmax.f32 %v8956, 0.0
    %v9490 = vmax.f32 %v9067, 0.0
    %v9491 = vmax.f32 %v9069, 0.0
    %v9492 = vmax.f32 %v9180, 0.0
    %v9493 = vmax.f32 %v9182, 0.0
    %v9494 = vmax.f32 %v9293, 0.0
    %v9495 = vmax.f32 %v9295, 0.0
    %v9496 = vmax.f32 %v9406, 0.0
    %v9497 = vmax.f32 %v9408, 0.0
    %v9498 = vmax.f32 %v8621, 0.0
    %v9499 = vmax.f32 %v8623, 0.0
    %v9500 = vmax.f32 %v8734, 0.0
    %v9501 = vmax.f32 %v8736, 0.0
    %v9502 = vmax.f32 %v8847, 0.0
    %v9503 = vmax.f32 %v8849, 0.0
    %v9504 = vmax.f32 %v8960, 0.0
    %v9505 = vmax.f32 %v8962, 0.0
    %v9506 = vmax.f32 %v9073, 0.0
    %v9507 = vmax.f32 %v9075, 0.0
    %v9508 = vmax.f32 %v9186, 0.0
    %v9509 = vmax.f32 %v9188, 0.0
    %v9510 = vmax.f32 %v9299, 0.0
    %v9511 = vmax.f32 %v9301, 0.0
    %v9512 = vmax.f32 %v9412, 0.0
    %v9513 = vmax.f32 %v9414, 0.0
    %v9514 = vmax.f32 %v8627, 0.0
    %v9515 = vmax.f32 %v8629, 0.0
    %v9516 = vmax.f32 %v8740, 0.0
    %v9517 = vmax.f32 %v8742, 0.0
    %v9518 = vmax.f32 %v8853, 0.0
    %v9519 = vmax.f32 %v8855, 0.0
    %v9520 = vmax.f32 %v8966, 0.0
    %v9521 = vmax.f32 %v8968, 0.0
    %v9522 = vmax.f32 %v9079, 0.0
    %v9523 = vmax.f32 %v9081, 0.0
    %v9524 = vmax.f32 %v9192, 0.0
    %v9525 = vmax.f32 %v9194, 0.0
    %v9526 = vmax.f32 %v9305, 0.0
    %v9527 = vmax.f32 %v9307, 0.0
    %v9528 = vmax.f32 %v9418, 0.0
    %v9529 = vmax.f32 %v9420, 0.0
    %v9530 = vmax.f32 %v8633, 0.0
    %v9531 = vmax.f32 %v8635, 0.0
    %v9532 = vmax.f32 %v8746, 0.0
    %v9533 = vmax.f32 %v8748, 0.0
    %v9534 = vmax.f32 %v8859, 0.0
    %v9535 = vmax.f32 %v8861, 0.0
    %v9536 = vmax.f32 %v8972, 0.0
    %v9537 = vmax.f32 %v8974, 0.0
    %v9538 = vmax.f32 %v9085, 0.0
    %v9539 = vmax.f32 %v9087, 0.0
    %v9540 = vmax.f32 %v9198, 0.0
    %v9541 = vmax.f32 %v9200, 0.0
    %v9542 = vmax.f32 %v9311, 0.0
    %v9543 = vmax.f32 %v9313, 0.0
    %v9544 = vmax.f32 %v9424, 0.0
    %v9545 = vmax.f32 %v9426, 0.0
    %v9546 = vmax.f32 %v8639, 0.0
    %v9547 = vmax.f32 %v8641, 0.0
    %v9548 = vmax.f32 %v8752, 0.0
    %v9549 = vmax.f32 %v8754, 0.0
    %v9550 = vmax.f32 %v8865, 0.0
    %v9551 = vmax.f32 %v8867, 0.0
    %v9552 = vmax.f32 %v8978, 0.0
    %v9553 = vmax.f32 %v8980, 0.0
    %v9554 = vmax.f32 %v9091, 0.0
    %v9555 = vmax.f32 %v9093, 0.0
    %v9556 = vmax.f32 %v9204, 0.0
    %v9557 = vmax.f32 %v9206, 0.0
    %v9558 = vmax.f32 %v9317, 0.0
    %v9559 = vmax.f32 %v9319, 0.0
    %v9560 = vmax.f32 %v9430, 0.0
    %v9561 = vmax.f32 %v9432, 0.0
    %s9562 = scalar_lea.vmem [#allocation20], 2048
    %v9563 = vld [vmem:[%s9562] sm:$0xff]
    %v9564 = vld [vmem:[%s9562 + $0x8] sm:$0xff]
    %v9565 = vld [vmem:[%s9562 + $0x10] sm:$0xff]
    %v9566 = vld [vmem:[%s9562 + $0x18] sm:$0xff]
    %v9567 = vld [vmem:[%s9562 + $0x20] sm:$0xff]
    %v9568 = vld [vmem:[%s9562 + $0x28] sm:$0xff]
    %v9569 = vld [vmem:[%s9562 + $0x30] sm:$0xff]
    %v9570 = vld [vmem:[%s9562 + $0x38] sm:$0xff]
    %v9571 = vld [vmem:[%s9562 + $0x40] sm:$0xff]
    %v9572 = vld [vmem:[%s9562 + $0x48] sm:$0xff]
    %v9573 = vld [vmem:[%s9562 + $0x50] sm:$0xff]
    %v9574 = vld [vmem:[%s9562 + $0x58] sm:$0xff]
    %v9575 = vld [vmem:[%s9562 + $0x60] sm:$0xff]
    %v9576 = vld [vmem:[%s9562 + $0x68] sm:$0xff]
    %v9577 = vld [vmem:[%s9562 + $0x70] sm:$0xff]
    %v9578 = vld [vmem:[%s9562 + $0x78] sm:$0xff]
    %v9579 = vld [vmem:[%s9562 + $0x80] sm:$0xff]
    %v9580 = vld [vmem:[%s9562 + $0x88] sm:$0xff]
    %v9581 = vld [vmem:[%s9562 + $0x90] sm:$0xff]
    %v9582 = vld [vmem:[%s9562 + $0x98] sm:$0xff]
    %v9583 = vld [vmem:[%s9562 + $0xa0] sm:$0xff]
    %v9584 = vld [vmem:[%s9562 + $0xa8] sm:$0xff]
    %v9585 = vld [vmem:[%s9562 + $0xb0] sm:$0xff]
    %v9586 = vld [vmem:[%s9562 + $0xb8] sm:$0xff]
    %v9587 = vld [vmem:[%s9562 + $0xc0] sm:$0xff]
    %v9588 = vld [vmem:[%s9562 + $0xc8] sm:$0xff]
    %v9589 = vld [vmem:[%s9562 + $0xd0] sm:$0xff]
    %v9590 = vld [vmem:[%s9562 + $0xd8] sm:$0xff]
    %v9591 = vld [vmem:[%s9562 + $0xe0] sm:$0xff]
    %v9592 = vld [vmem:[%s9562 + $0xe8] sm:$0xff]
    %v9593 = vld [vmem:[%s9562 + $0xf0] sm:$0xff]
    %v9594 = vld [vmem:[%s9562 + $0xf8] sm:$0xff]
    %v9595 = vld [vmem:[%s9562 + $0x100] sm:$0xff]
    %v9596 = vld [vmem:[%s9562 + $0x108] sm:$0xff]
    %v9597 = vld [vmem:[%s9562 + $0x110] sm:$0xff]
    %v9598 = vld [vmem:[%s9562 + $0x118] sm:$0xff]
    %v9599 = vld [vmem:[%s9562 + $0x120] sm:$0xff]
    %v9600 = vld [vmem:[%s9562 + $0x128] sm:$0xff]
    %v9601 = vld [vmem:[%s9562 + $0x130] sm:$0xff]
    %v9602 = vld [vmem:[%s9562 + $0x138] sm:$0xff]
    %v9603 = vld [vmem:[%s9562 + $0x140] sm:$0xff]
    %v9604 = vld [vmem:[%s9562 + $0x148] sm:$0xff]
    %v9605 = vld [vmem:[%s9562 + $0x150] sm:$0xff]
    %v9606 = vld [vmem:[%s9562 + $0x158] sm:$0xff]
    %v9607 = vld [vmem:[%s9562 + $0x160] sm:$0xff]
    %v9608 = vld [vmem:[%s9562 + $0x168] sm:$0xff]
    %v9609 = vld [vmem:[%s9562 + $0x170] sm:$0xff]
    %v9610 = vld [vmem:[%s9562 + $0x178] sm:$0xff]
    %v9611 = vld [vmem:[%s9562 + $0x180] sm:$0xff]
    %v9612 = vld [vmem:[%s9562 + $0x188] sm:$0xff]
    %v9613 = vld [vmem:[%s9562 + $0x190] sm:$0xff]
    %v9614 = vld [vmem:[%s9562 + $0x198] sm:$0xff]
    %v9615 = vld [vmem:[%s9562 + $0x1a0] sm:$0xff]
    %v9616 = vld [vmem:[%s9562 + $0x1a8] sm:$0xff]
    %v9617 = vld [vmem:[%s9562 + $0x1b0] sm:$0xff]
    %v9618 = vld [vmem:[%s9562 + $0x1b8] sm:$0xff]
    %v9619 = vld [vmem:[%s9562 + $0x1c0] sm:$0xff]
    %v9620 = vld [vmem:[%s9562 + $0x1c8] sm:$0xff]
    %v9621 = vld [vmem:[%s9562 + $0x1d0] sm:$0xff]
    %v9622 = vld [vmem:[%s9562 + $0x1d8] sm:$0xff]
    %v9623 = vld [vmem:[%s9562 + $0x1e0] sm:$0xff]
    %v9624 = vld [vmem:[%s9562 + $0x1e8] sm:$0xff]
    %v9625 = vld [vmem:[%s9562 + $0x1f0] sm:$0xff]
    %v9626 = vld [vmem:[%s9562 + $0x1f8] sm:$0xff]
    %v9627 = vld [vmem:[%s9562 + $0x200] sm:$0xff]
    %v9628 = vld [vmem:[%s9562 + $0x208] sm:$0xff]
    %v9629 = vld [vmem:[%s9562 + $0x210] sm:$0xff]
    %v9630 = vld [vmem:[%s9562 + $0x218] sm:$0xff]
    %v9631 = vld [vmem:[%s9562 + $0x220] sm:$0xff]
    %v9632 = vld [vmem:[%s9562 + $0x228] sm:$0xff]
    %v9633 = vld [vmem:[%s9562 + $0x230] sm:$0xff]
    %v9634 = vld [vmem:[%s9562 + $0x238] sm:$0xff]
    %v9635 = vld [vmem:[%s9562 + $0x240] sm:$0xff]
    %v9636 = vld [vmem:[%s9562 + $0x248] sm:$0xff]
    %v9637 = vld [vmem:[%s9562 + $0x250] sm:$0xff]
    %v9638 = vld [vmem:[%s9562 + $0x258] sm:$0xff]
    %v9639 = vld [vmem:[%s9562 + $0x260] sm:$0xff]
    %v9640 = vld [vmem:[%s9562 + $0x268] sm:$0xff]
    %v9641 = vld [vmem:[%s9562 + $0x270] sm:$0xff]
    %v9642 = vld [vmem:[%s9562 + $0x278] sm:$0xff]
    %v9643 = vld [vmem:[%s9562 + $0x280] sm:$0xff]
    %v9644 = vld [vmem:[%s9562 + $0x288] sm:$0xff]
    %v9645 = vld [vmem:[%s9562 + $0x290] sm:$0xff]
    %v9646 = vld [vmem:[%s9562 + $0x298] sm:$0xff]
    %v9647 = vld [vmem:[%s9562 + $0x2a0] sm:$0xff]
    %v9648 = vld [vmem:[%s9562 + $0x2a8] sm:$0xff]
    %v9649 = vld [vmem:[%s9562 + $0x2b0] sm:$0xff]
    %v9650 = vld [vmem:[%s9562 + $0x2b8] sm:$0xff]
    %v9651 = vld [vmem:[%s9562 + $0x2c0] sm:$0xff]
    %v9652 = vld [vmem:[%s9562 + $0x2c8] sm:$0xff]
    %v9653 = vld [vmem:[%s9562 + $0x2d0] sm:$0xff]
    %v9654 = vld [vmem:[%s9562 + $0x2d8] sm:$0xff]
    %v9655 = vld [vmem:[%s9562 + $0x2e0] sm:$0xff]
    %v9656 = vld [vmem:[%s9562 + $0x2e8] sm:$0xff]
    %v9657 = vld [vmem:[%s9562 + $0x2f0] sm:$0xff]
    %v9658 = vld [vmem:[%s9562 + $0x2f8] sm:$0xff]
    %v9659 = vld [vmem:[%s9562 + $0x300] sm:$0xff]
    %v9660 = vld [vmem:[%s9562 + $0x308] sm:$0xff]
    %v9661 = vld [vmem:[%s9562 + $0x310] sm:$0xff]
    %v9662 = vld [vmem:[%s9562 + $0x318] sm:$0xff]
    %v9663 = vld [vmem:[%s9562 + $0x320] sm:$0xff]
    %v9664 = vld [vmem:[%s9562 + $0x328] sm:$0xff]
    %v9665 = vld [vmem:[%s9562 + $0x330] sm:$0xff]
    %v9666 = vld [vmem:[%s9562 + $0x338] sm:$0xff]
    %v9667 = vld [vmem:[%s9562 + $0x340] sm:$0xff]
    %v9668 = vld [vmem:[%s9562 + $0x348] sm:$0xff]
    %v9669 = vld [vmem:[%s9562 + $0x350] sm:$0xff]
    %v9670 = vld [vmem:[%s9562 + $0x358] sm:$0xff]
    %v9671 = vld [vmem:[%s9562 + $0x360] sm:$0xff]
    %v9672 = vld [vmem:[%s9562 + $0x368] sm:$0xff]
    %v9673 = vld [vmem:[%s9562 + $0x370] sm:$0xff]
    %v9674 = vld [vmem:[%s9562 + $0x378] sm:$0xff]
    %v9675 = vld [vmem:[%s9562 + $0x380] sm:$0xff]
    %v9676 = vld [vmem:[%s9562 + $0x388] sm:$0xff]
    %v9677 = vld [vmem:[%s9562 + $0x390] sm:$0xff]
    %v9678 = vld [vmem:[%s9562 + $0x398] sm:$0xff]
    %v9679 = vld [vmem:[%s9562 + $0x3a0] sm:$0xff]
    %v9680 = vld [vmem:[%s9562 + $0x3a8] sm:$0xff]
    %v9681 = vld [vmem:[%s9562 + $0x3b0] sm:$0xff]
    %v9682 = vld [vmem:[%s9562 + $0x3b8] sm:$0xff]
    %v9683 = vld [vmem:[%s9562 + $0x3c0] sm:$0xff]
    %v9684 = vld [vmem:[%s9562 + $0x3c8] sm:$0xff]
    %v9685 = vld [vmem:[%s9562 + $0x3d0] sm:$0xff]
    %v9686 = vld [vmem:[%s9562 + $0x3d8] sm:$0xff]
    %v9687 = vld [vmem:[%s9562 + $0x3e0] sm:$0xff]
    %v9688 = vld [vmem:[%s9562 + $0x3e8] sm:$0xff]
    %v9689 = vld [vmem:[%s9562 + $0x3f0] sm:$0xff]
    %v9690 = vld [vmem:[%s9562 + $0x3f8] sm:$0xff]
    %v9691 = vld [vmem:[%s9562 + $0x400] sm:$0xff]
    %v9692 = vld [vmem:[%s9562 + $0x408] sm:$0xff]
    %v9693 = vld [vmem:[%s9562 + $0x410] sm:$0xff]
    %v9694 = vld [vmem:[%s9562 + $0x418] sm:$0xff]
    %v9695 = vld [vmem:[%s9562 + $0x420] sm:$0xff]
    %v9696 = vld [vmem:[%s9562 + $0x428] sm:$0xff]
    %v9697 = vld [vmem:[%s9562 + $0x430] sm:$0xff]
    %v9698 = vld [vmem:[%s9562 + $0x438] sm:$0xff]
    %v9699 = vld [vmem:[%s9562 + $0x440] sm:$0xff]
    %v9700 = vld [vmem:[%s9562 + $0x448] sm:$0xff]
    %v9701 = vld [vmem:[%s9562 + $0x450] sm:$0xff]
    %v9702 = vld [vmem:[%s9562 + $0x458] sm:$0xff]
    %v9703 = vld [vmem:[%s9562 + $0x460] sm:$0xff]
    %v9704 = vld [vmem:[%s9562 + $0x468] sm:$0xff]
    %v9705 = vld [vmem:[%s9562 + $0x470] sm:$0xff]
    %v9706 = vld [vmem:[%s9562 + $0x478] sm:$0xff]
    %v9707 = vld [vmem:[%s9562 + $0x480] sm:$0xff]
    %v9708 = vld [vmem:[%s9562 + $0x488] sm:$0xff]
    %v9709 = vld [vmem:[%s9562 + $0x490] sm:$0xff]
    %v9710 = vld [vmem:[%s9562 + $0x498] sm:$0xff]
    %v9711 = vld [vmem:[%s9562 + $0x4a0] sm:$0xff]
    %v9712 = vld [vmem:[%s9562 + $0x4a8] sm:$0xff]
    %v9713 = vld [vmem:[%s9562 + $0x4b0] sm:$0xff]
    %v9714 = vld [vmem:[%s9562 + $0x4b8] sm:$0xff]
    %v9715 = vld [vmem:[%s9562 + $0x4c0] sm:$0xff]
    %v9716 = vld [vmem:[%s9562 + $0x4c8] sm:$0xff]
    %v9717 = vld [vmem:[%s9562 + $0x4d0] sm:$0xff]
    %v9718 = vld [vmem:[%s9562 + $0x4d8] sm:$0xff]
    %v9719 = vld [vmem:[%s9562 + $0x4e0] sm:$0xff]
    %v9720 = vld [vmem:[%s9562 + $0x4e8] sm:$0xff]
    %v9721 = vld [vmem:[%s9562 + $0x4f0] sm:$0xff]
    %v9722 = vld [vmem:[%s9562 + $0x4f8] sm:$0xff]
    %v9723 = vld [vmem:[%s9562 + $0x500] sm:$0xff]
    %v9724 = vld [vmem:[%s9562 + $0x508] sm:$0xff]
    %v9725 = vld [vmem:[%s9562 + $0x510] sm:$0xff]
    %v9726 = vld [vmem:[%s9562 + $0x518] sm:$0xff]
    %v9727 = vld [vmem:[%s9562 + $0x520] sm:$0xff]
    %v9728 = vld [vmem:[%s9562 + $0x528] sm:$0xff]
    %v9729 = vld [vmem:[%s9562 + $0x530] sm:$0xff]
    %v9730 = vld [vmem:[%s9562 + $0x538] sm:$0xff]
    %v9731 = vld [vmem:[%s9562 + $0x540] sm:$0xff]
    %v9732 = vld [vmem:[%s9562 + $0x548] sm:$0xff]
    %v9733 = vld [vmem:[%s9562 + $0x550] sm:$0xff]
    %v9734 = vld [vmem:[%s9562 + $0x558] sm:$0xff]
    %v9735 = vld [vmem:[%s9562 + $0x560] sm:$0xff]
    %v9736 = vld [vmem:[%s9562 + $0x568] sm:$0xff]
    %v9737 = vld [vmem:[%s9562 + $0x570] sm:$0xff]
    %v9738 = vld [vmem:[%s9562 + $0x578] sm:$0xff]
    %v9739 = vld [vmem:[%s9562 + $0x580] sm:$0xff]
    %v9740 = vld [vmem:[%s9562 + $0x588] sm:$0xff]
    %v9741 = vld [vmem:[%s9562 + $0x590] sm:$0xff]
    %v9742 = vld [vmem:[%s9562 + $0x598] sm:$0xff]
    %v9743 = vld [vmem:[%s9562 + $0x5a0] sm:$0xff]
    %v9744 = vld [vmem:[%s9562 + $0x5a8] sm:$0xff]
    %v9745 = vld [vmem:[%s9562 + $0x5b0] sm:$0xff]
    %v9746 = vld [vmem:[%s9562 + $0x5b8] sm:$0xff]
    %v9747 = vld [vmem:[%s9562 + $0x5c0] sm:$0xff]
    %v9748 = vld [vmem:[%s9562 + $0x5c8] sm:$0xff]
    %v9749 = vld [vmem:[%s9562 + $0x5d0] sm:$0xff]
    %v9750 = vld [vmem:[%s9562 + $0x5d8] sm:$0xff]
    %v9751 = vld [vmem:[%s9562 + $0x5e0] sm:$0xff]
    %v9752 = vld [vmem:[%s9562 + $0x5e8] sm:$0xff]
    %v9753 = vld [vmem:[%s9562 + $0x5f0] sm:$0xff]
    %v9754 = vld [vmem:[%s9562 + $0x5f8] sm:$0xff]
    %v9755 = vld [vmem:[%s9562 + $0x600] sm:$0xff]
    %v9756 = vld [vmem:[%s9562 + $0x608] sm:$0xff]
    %v9757 = vld [vmem:[%s9562 + $0x610] sm:$0xff]
    %v9758 = vld [vmem:[%s9562 + $0x618] sm:$0xff]
    %v9759 = vld [vmem:[%s9562 + $0x620] sm:$0xff]
    %v9760 = vld [vmem:[%s9562 + $0x628] sm:$0xff]
    %v9761 = vld [vmem:[%s9562 + $0x630] sm:$0xff]
    %v9762 = vld [vmem:[%s9562 + $0x638] sm:$0xff]
    %v9763 = vld [vmem:[%s9562 + $0x640] sm:$0xff]
    %v9764 = vld [vmem:[%s9562 + $0x648] sm:$0xff]
    %v9765 = vld [vmem:[%s9562 + $0x650] sm:$0xff]
    %v9766 = vld [vmem:[%s9562 + $0x658] sm:$0xff]
    %v9767 = vld [vmem:[%s9562 + $0x660] sm:$0xff]
    %v9768 = vld [vmem:[%s9562 + $0x668] sm:$0xff]
    %v9769 = vld [vmem:[%s9562 + $0x670] sm:$0xff]
    %v9770 = vld [vmem:[%s9562 + $0x678] sm:$0xff]
    %v9771 = vld [vmem:[%s9562 + $0x680] sm:$0xff]
    %v9772 = vld [vmem:[%s9562 + $0x688] sm:$0xff]
    %v9773 = vld [vmem:[%s9562 + $0x690] sm:$0xff]
    %v9774 = vld [vmem:[%s9562 + $0x698] sm:$0xff]
    %v9775 = vld [vmem:[%s9562 + $0x6a0] sm:$0xff]
    %v9776 = vld [vmem:[%s9562 + $0x6a8] sm:$0xff]
    %v9777 = vld [vmem:[%s9562 + $0x6b0] sm:$0xff]
    %v9778 = vld [vmem:[%s9562 + $0x6b8] sm:$0xff]
    %v9779 = vld [vmem:[%s9562 + $0x6c0] sm:$0xff]
    %v9780 = vld [vmem:[%s9562 + $0x6c8] sm:$0xff]
    %v9781 = vld [vmem:[%s9562 + $0x6d0] sm:$0xff]
    %v9782 = vld [vmem:[%s9562 + $0x6d8] sm:$0xff]
    %v9783 = vld [vmem:[%s9562 + $0x6e0] sm:$0xff]
    %v9784 = vld [vmem:[%s9562 + $0x6e8] sm:$0xff]
    %v9785 = vld [vmem:[%s9562 + $0x6f0] sm:$0xff]
    %v9786 = vld [vmem:[%s9562 + $0x6f8] sm:$0xff]
    %v9787 = vld [vmem:[%s9562 + $0x700] sm:$0xff]
    %v9788 = vld [vmem:[%s9562 + $0x708] sm:$0xff]
    %v9789 = vld [vmem:[%s9562 + $0x710] sm:$0xff]
    %v9790 = vld [vmem:[%s9562 + $0x718] sm:$0xff]
    %v9791 = vld [vmem:[%s9562 + $0x720] sm:$0xff]
    %v9792 = vld [vmem:[%s9562 + $0x728] sm:$0xff]
    %v9793 = vld [vmem:[%s9562 + $0x730] sm:$0xff]
    %v9794 = vld [vmem:[%s9562 + $0x738] sm:$0xff]
    %v9795 = vld [vmem:[%s9562 + $0x740] sm:$0xff]
    %v9796 = vld [vmem:[%s9562 + $0x748] sm:$0xff]
    %v9797 = vld [vmem:[%s9562 + $0x750] sm:$0xff]
    %v9798 = vld [vmem:[%s9562 + $0x758] sm:$0xff]
    %v9799 = vld [vmem:[%s9562 + $0x760] sm:$0xff]
    %v9800 = vld [vmem:[%s9562 + $0x768] sm:$0xff]
    %v9801 = vld [vmem:[%s9562 + $0x770] sm:$0xff]
    %v9802 = vld [vmem:[%s9562 + $0x778] sm:$0xff]
    %v9803 = vld [vmem:[%s9562 + $0x780] sm:$0xff]
    %v9804 = vld [vmem:[%s9562 + $0x788] sm:$0xff]
    %v9805 = vld [vmem:[%s9562 + $0x790] sm:$0xff]
    %v9806 = vld [vmem:[%s9562 + $0x798] sm:$0xff]
    %v9807 = vld [vmem:[%s9562 + $0x7a0] sm:$0xff]
    %v9808 = vld [vmem:[%s9562 + $0x7a8] sm:$0xff]
    %v9809 = vld [vmem:[%s9562 + $0x7b0] sm:$0xff]
    %v9810 = vld [vmem:[%s9562 + $0x7b8] sm:$0xff]
    %v9811 = vld [vmem:[%s9562 + $0x7c0] sm:$0xff]
    %v9812 = vld [vmem:[%s9562 + $0x7c8] sm:$0xff]
    %v9813 = vld [vmem:[%s9562 + $0x7d0] sm:$0xff]
    %v9814 = vld [vmem:[%s9562 + $0x7d8] sm:$0xff]
    %v9815 = vld [vmem:[%s9562 + $0x7e0] sm:$0xff]
    %v9816 = vld [vmem:[%s9562 + $0x7e8] sm:$0xff]
    %v9817 = vld [vmem:[%s9562 + $0x7f0] sm:$0xff]
    %v9818 = vld [vmem:[%s9562 + $0x7f8] sm:$0xff]
    %s9819 = scalar_lea.vmem [#allocation21], 1
    %v9820 = vld [vmem:[%s9819] sm:$0x1]
    %v9822 = vlaneseq
    %v9823 = vshrl.u32 %v9822, 7
    %v9824 = vsub.s32 0, %v9823
    %v9825 = vrot.slane %v9820, %v9824
    %9827 = vmatprep.subr.mxu0 0.0
    %9828 = vmatpush1.msra.mxu0 %v9563
    %9829 = vmatprep.subr.mxu0 0.0
    %9830 = vmatpush1.msra.mxu0 %v9564
    %9831 = vmatprep.subr.mxu0 0.0
    %9832 = vmatpush1.msra.mxu0 %v9565
    %9833 = vmatprep.subr.mxu0 0.0
    %9834 = vmatpush1.msra.mxu0 %v9566
    %9835 = vmatprep.subr.mxu0 0.0
    %9836 = vmatpush1.msra.mxu0 %v9567
    %9837 = vmatprep.subr.mxu0 0.0
    %9838 = vmatpush1.msra.mxu0 %v9568
    %9839 = vmatprep.subr.mxu0 0.0
    %9840 = vmatpush1.msra.mxu0 %v9569
    %9841 = vmatprep.subr.mxu0 0.0
    %9842 = vmatpush1.msra.mxu0 %v9570
    %9843 = vmatprep.subr.mxu0 0.0
    %9844 = vmatpush1.msra.mxu0 %v9571
    %9845 = vmatprep.subr.mxu0 0.0
    %9846 = vmatpush1.msra.mxu0 %v9572
    %9847 = vmatprep.subr.mxu0 0.0
    %9848 = vmatpush1.msra.mxu0 %v9573
    %9849 = vmatprep.subr.mxu0 0.0
    %9850 = vmatpush1.msra.mxu0 %v9574
    %9851 = vmatprep.subr.mxu0 0.0
    %9852 = vmatpush1.msra.mxu0 %v9575
    %9853 = vmatprep.subr.mxu0 0.0
    %9854 = vmatpush1.msra.mxu0 %v9576
    %9855 = vmatprep.subr.mxu0 0.0
    %9856 = vmatpush1.msra.mxu0 %v9577
    %9857 = vmatprep.subr.mxu0 0.0
    %9858 = vmatpush1.msra.mxu0 %v9578
    %9859 = vmatprep.subr.mxu0 0.0
    %9860 = vmatpush1.msra.mxu0 %v9579
    %9861 = vmatprep.subr.mxu0 0.0
    %9862 = vmatpush1.msra.mxu0 %v9580
    %9863 = vmatprep.subr.mxu0 0.0
    %9864 = vmatpush1.msra.mxu0 %v9581
    %9865 = vmatprep.subr.mxu0 0.0
    %9866 = vmatpush1.msra.mxu0 %v9582
    %9867 = vmatprep.subr.mxu0 0.0
    %9868 = vmatpush1.msra.mxu0 %v9583
    %9869 = vmatprep.subr.mxu0 0.0
    %9870 = vmatpush1.msra.mxu0 %v9584
    %9871 = vmatprep.subr.mxu0 0.0
    %9872 = vmatpush1.msra.mxu0 %v9585
    %9873 = vmatprep.subr.mxu0 0.0
    %9874 = vmatpush1.msra.mxu0 %v9586
    %9875 = vmatprep.subr.mxu0 0.0
    %9876 = vmatpush1.msra.mxu0 %v9587
    %9877 = vmatprep.subr.mxu0 0.0
    %9878 = vmatpush1.msra.mxu0 %v9588
    %9879 = vmatprep.subr.mxu0 0.0
    %9880 = vmatpush1.msra.mxu0 %v9589
    %9881 = vmatprep.subr.mxu0 0.0
    %9882 = vmatpush1.msra.mxu0 %v9590
    %9883 = vmatprep.subr.mxu0 0.0
    %9884 = vmatpush1.msra.mxu0 %v9591
    %9885 = vmatprep.subr.mxu0 0.0
    %9886 = vmatpush1.msra.mxu0 %v9592
    %9887 = vmatprep.subr.mxu0 0.0
    %9888 = vmatpush1.msra.mxu0 %v9593
    %9889 = vmatprep.subr.mxu0 0.0
    %9890 = vmatpush1.msra.mxu0 %v9594
    %9891 = vmatprep.mubr.f32.mxu0 %v9435
    %9892 = vmatmul.mubr.f32.gmra.mrb[0].mxu0 %v9434
    %v9893 = vpop.f32.mrb[0].mxu0
    %v9894 = vadd.f32 %v9825, %v9893
    %v9895 = vpop.f32.mrb[0].mxu0
    %9896 = vmatprep.mubr.f32.mxu0 %v9451
    %9897 = vmatmul.mubr.f32.gmra.mrb[0].mxu0 %v9450
    %v9898 = vpop.f32.mrb[0].mxu0
    %v9899 = vadd.f32 %v9825, %v9898
    %v9900 = vpop.f32.mrb[0].mxu0
    %9901 = vmatprep.mubr.f32.mxu0 %v9467
    %9902 = vmatmul.mubr.f32.gmra.mrb[0].mxu0 %v9466
    %v9903 = vpop.f32.mrb[0].mxu0
    %v9904 = vadd.f32 %v9825, %v9903
    %v9905 = vpop.f32.mrb[0].mxu0
    %9906 = vmatprep.mubr.f32.mxu0 %v9483
    %9907 = vmatmul.mubr.f32.gmra.mrb[0].mxu0 %v9482
    %v9908 = vpop.f32.mrb[0].mxu0
    %v9909 = vadd.f32 %v9825, %v9908
    %v9910 = vpop.f32.mrb[0].mxu0
    %9911 = vmatprep.mubr.f32.mxu0 %v9499
    %9912 = vmatmul.mubr.f32.gmra.mrb[0].mxu0 %v9498
    %v9913 = vpop.f32.mrb[0].mxu0
    %v9914 = vadd.f32 %v9825, %v9913
    %v9915 = vpop.f32.mrb[0].mxu0
    %9916 = vmatprep.mubr.f32.mxu0 %v9515
    %9917 = vmatmul.mubr.f32.gmra.mrb[0].mxu0 %v9514
    %v9918 = vpop.f32.mrb[0].mxu0
    %v9919 = vadd.f32 %v9825, %v9918
    %v9920 = vpop.f32.mrb[0].mxu0
    %9921 = vmatprep.mubr.f32.mxu0 %v9531
    %9922 = vmatmul.mubr.f32.gmra.mrb[0].mxu0 %v9530
    %v9923 = vpop.f32.mrb[0].mxu0
    %v9924 = vadd.f32 %v9825, %v9923
    %v9925 = vpop.f32.mrb[0].mxu0
    %9926 = vmatprep.mubr.f32.mxu0 %v9547
    %9927 = vmatmul.mubr.f32.gmra.mrb[0].mxu0 %v9546
    %v9928 = vpop.f32.mrb[0].mxu0
    %v9929 = vadd.f32 %v9825, %v9928
    %v9930 = vpop.f32.mrb[0].mxu0
    %9931 = vdwg.mxu0
    %9932 = vmatprep.subr.mxu0 0.0
    %9933 = vmatpush1.msra.mxu0 %v9595
    %9934 = vmatprep.subr.mxu0 0.0
    %9935 = vmatpush1.msra.mxu0 %v9596
    %9936 = vmatprep.subr.mxu0 0.0
    %9937 = vmatpush1.msra.mxu0 %v9597
    %9938 = vmatprep.subr.mxu0 0.0
    %9939 = vmatpush1.msra.mxu0 %v9598
    %9940 = vmatprep.subr.mxu0 0.0
    %9941 = vmatpush1.msra.mxu0 %v9599
    %9942 = vmatprep.subr.mxu0 0.0
    %9943 = vmatpush1.msra.mxu0 %v9600
    %9944 = vmatprep.subr.mxu0 0.0
    %9945 = vmatpush1.msra.mxu0 %v9601
    %9946 = vmatprep.subr.mxu0 0.0
    %9947 = vmatpush1.msra.mxu0 %v9602
    %9948 = vmatprep.subr.mxu0 0.0
    %9949 = vmatpush1.msra.mxu0 %v9603
    %9950 = vmatprep.subr.mxu0 0.0
    %9951 = vmatpush1.msra.mxu0 %v9604
    %9952 = vmatprep.subr.mxu0 0.0
    %9953 = vmatpush1.msra.mxu0 %v9605
    %9954 = vmatprep.subr.mxu0 0.0
    %9955 = vmatpush1.msra.mxu0 %v9606
    %9956 = vmatprep.subr.mxu0 0.0
    %9957 = vmatpush1.msra.mxu0 %v9607
    %9958 = vmatprep.subr.mxu0 0.0
    %9959 = vmatpush1.msra.mxu0 %v9608
    %9960 = vmatprep.subr.mxu0 0.0
    %9961 = vmatpush1.msra.mxu0 %v9609
    %9962 = vmatprep.subr.mxu0 0.0
    %9963 = vmatpush1.msra.mxu0 %v9610
    %9964 = vmatprep.subr.mxu0 0.0
    %9965 = vmatpush1.msra.mxu0 %v9611
    %9966 = vmatprep.subr.mxu0 0.0
    %9967 = vmatpush1.msra.mxu0 %v9612
    %9968 = vmatprep.subr.mxu0 0.0
    %9969 = vmatpush1.msra.mxu0 %v9613
    %9970 = vmatprep.subr.mxu0 0.0
    %9971 = vmatpush1.msra.mxu0 %v9614
    %9972 = vmatprep.subr.mxu0 0.0
    %9973 = vmatpush1.msra.mxu0 %v9615
    %9974 = vmatprep.subr.mxu0 0.0
    %9975 = vmatpush1.msra.mxu0 %v9616
    %9976 = vmatprep.subr.mxu0 0.0
    %9977 = vmatpush1.msra.mxu0 %v9617
    %9978 = vmatprep.subr.mxu0 0.0
    %9979 = vmatpush1.msra.mxu0 %v9618
    %9980 = vmatprep.subr.mxu0 0.0
    %9981 = vmatpush1.msra.mxu0 %v9619
    %9982 = vmatprep.subr.mxu0 0.0
    %9983 = vmatpush1.msra.mxu0 %v9620
    %9984 = vmatprep.subr.mxu0 0.0
    %9985 = vmatpush1.msra.mxu0 %v9621
    %9986 = vmatprep.subr.mxu0 0.0
    %9987 = vmatpush1.msra.mxu0 %v9622
    %9988 = vmatprep.subr.mxu0 0.0
    %9989 = vmatpush1.msra.mxu0 %v9623
    %9990 = vmatprep.subr.mxu0 0.0
    %9991 = vmatpush1.msra.mxu0 %v9624
    %9992 = vmatprep.subr.mxu0 0.0
    %9993 = vmatpush1.msra.mxu0 %v9625
    %9994 = vmatprep.subr.mxu0 0.0
    %9995 = vmatpush1.msra.mxu0 %v9626
    %9996 = vmatprep.mubr.f32.mxu0 %v9437
    %9997 = vmatmul.mubr.f32.gmra.mrb[0].mxu0 %v9436
    %v9998 = vpop.f32.mrb[0].mxu0
    %v9999 = vadd.f32 %v9894, %v9998
    %v10000 = vpop.f32.mrb[0].mxu0
    %10001 = vmatprep.mubr.f32.mxu0 %v9453
    %10002 = vmatmul.mubr.f32.gmra.mrb[0].mxu0 %v9452
    %v10003 = vpop.f32.mrb[0].mxu0
    %v10004 = vadd.f32 %v9899, %v10003
    %v10005 = vpop.f32.mrb[0].mxu0
    %10006 = vmatprep.mubr.f32.mxu0 %v9469
    %10007 = vmatmul.mubr.f32.gmra.mrb[0].mxu0 %v9468
    %v10008 = vpop.f32.mrb[0].mxu0
    %v10009 = vadd.f32 %v9904, %v10008
    %v10010 = vpop.f32.mrb[0].mxu0
    %10011 = vmatprep.mubr.f32.mxu0 %v9485
    %10012 = vmatmul.mubr.f32.gmra.mrb[0].mxu0 %v9484
    %v10013 = vpop.f32.mrb[0].mxu0
    %v10014 = vadd.f32 %v9909, %v10013
    %v10015 = vpop.f32.mrb[0].mxu0
    %10016 = vmatprep.mubr.f32.mxu0 %v9501
    %10017 = vmatmul.mubr.f32.gmra.mrb[0].mxu0 %v9500
    %v10018 = vpop.f32.mrb[0].mxu0
    %v10019 = vadd.f32 %v9914, %v10018
    %v10020 = vpop.f32.mrb[0].mxu0
    %10021 = vmatprep.mubr.f32.mxu0 %v9517
    %10022 = vmatmul.mubr.f32.gmra.mrb[0].mxu0 %v9516
    %v10023 = vpop.f32.mrb[0].mxu0
    %v10024 = vadd.f32 %v9919, %v10023
    %v10025 = vpop.f32.mrb[0].mxu0
    %10026 = vmatprep.mubr.f32.mxu0 %v9533
    %10027 = vmatmul.mubr.f32.gmra.mrb[0].mxu0 %v9532
    %v10028 = vpop.f32.mrb[0].mxu0
    %v10029 = vadd.f32 %v9924, %v10028
    %v10030 = vpop.f32.mrb[0].mxu0
    %10031 = vmatprep.mubr.f32.mxu0 %v9549
    %10032 = vmatmul.mubr.f32.gmra.mrb[0].mxu0 %v9548
    %v10033 = vpop.f32.mrb[0].mxu0
    %v10034 = vadd.f32 %v9929, %v10033
    %v10035 = vpop.f32.mrb[0].mxu0
    %10036 = vdwg.mxu0
    %10037 = vmatprep.subr.mxu0 0.0
    %10038 = vmatpush1.msra.mxu0 %v9627
    %10039 = vmatprep.subr.mxu0 0.0
    %10040 = vmatpush1.msra.mxu0 %v9628
    %10041 = vmatprep.subr.mxu0 0.0
    %10042 = vmatpush1.msra.mxu0 %v9629
    %10043 = vmatprep.subr.mxu0 0.0
    %10044 = vmatpush1.msra.mxu0 %v9630
    %10045 = vmatprep.subr.mxu0 0.0
    %10046 = vmatpush1.msra.mxu0 %v9631
    %10047 = vmatprep.subr.mxu0 0.0
    %10048 = vmatpush1.msra.mxu0 %v9632
    %10049 = vmatprep.subr.mxu0 0.0
    %10050 = vmatpush1.msra.mxu0 %v9633
    %10051 = vmatprep.subr.mxu0 0.0
    %10052 = vmatpush1.msra.mxu0 %v9634
    %10053 = vmatprep.subr.mxu0 0.0
    %10054 = vmatpush1.msra.mxu0 %v9635
    %10055 = vmatprep.subr.mxu0 0.0
    %10056 = vmatpush1.msra.mxu0 %v9636
    %10057 = vmatprep.subr.mxu0 0.0
    %10058 = vmatpush1.msra.mxu0 %v9637
    %10059 = vmatprep.subr.mxu0 0.0
    %10060 = vmatpush1.msra.mxu0 %v9638
    %10061 = vmatprep.subr.mxu0 0.0
    %10062 = vmatpush1.msra.mxu0 %v9639
    %10063 = vmatprep.subr.mxu0 0.0
    %10064 = vmatpush1.msra.mxu0 %v9640
    %10065 = vmatprep.subr.mxu0 0.0
    %10066 = vmatpush1.msra.mxu0 %v9641
    %10067 = vmatprep.subr.mxu0 0.0
    %10068 = vmatpush1.msra.mxu0 %v9642
    %10069 = vmatprep.subr.mxu0 0.0
    %10070 = vmatpush1.msra.mxu0 %v9643
    %10071 = vmatprep.subr.mxu0 0.0
    %10072 = vmatpush1.msra.mxu0 %v9644
    %10073 = vmatprep.subr.mxu0 0.0
    %10074 = vmatpush1.msra.mxu0 %v9645
    %10075 = vmatprep.subr.mxu0 0.0
    %10076 = vmatpush1.msra.mxu0 %v9646
    %10077 = vmatprep.subr.mxu0 0.0
    %10078 = vmatpush1.msra.mxu0 %v9647
    %10079 = vmatprep.subr.mxu0 0.0
    %10080 = vmatpush1.msra.mxu0 %v9648
    %10081 = vmatprep.subr.mxu0 0.0
    %10082 = vmatpush1.msra.mxu0 %v9649
    %10083 = vmatprep.subr.mxu0 0.0
    %10084 = vmatpush1.msra.mxu0 %v9650
    %10085 = vmatprep.subr.mxu0 0.0
    %10086 = vmatpush1.msra.mxu0 %v9651
    %10087 = vmatprep.subr.mxu0 0.0
    %10088 = vmatpush1.msra.mxu0 %v9652
    %10089 = vmatprep.subr.mxu0 0.0
    %10090 = vmatpush1.msra.mxu0 %v9653
    %10091 = vmatprep.subr.mxu0 0.0
    %10092 = vmatpush1.msra.mxu0 %v9654
    %10093 = vmatprep.subr.mxu0 0.0
    %10094 = vmatpush1.msra.mxu0 %v9655
    %10095 = vmatprep.subr.mxu0 0.0
    %10096 = vmatpush1.msra.mxu0 %v9656
    %10097 = vmatprep.subr.mxu0 0.0
    %10098 = vmatpush1.msra.mxu0 %v9657
    %10099 = vmatprep.subr.mxu0 0.0
    %10100 = vmatpush1.msra.mxu0 %v9658
    %10101 = vmatprep.mubr.f32.mxu0 %v9439
    %10102 = vmatmul.mubr.f32.gmra.mrb[0].mxu0 %v9438
    %v10103 = vpop.f32.mrb[0].mxu0
    %v10104 = vadd.f32 %v9999, %v10103
    %v10105 = vpop.f32.mrb[0].mxu0
    %10106 = vmatprep.mubr.f32.mxu0 %v9455
    %10107 = vmatmul.mubr.f32.gmra.mrb[0].mxu0 %v9454
    %v10108 = vpop.f32.mrb[0].mxu0
    %v10109 = vadd.f32 %v10004, %v10108
    %v10110 = vpop.f32.mrb[0].mxu0
    %10111 = vmatprep.mubr.f32.mxu0 %v9471
    %10112 = vmatmul.mubr.f32.gmra.mrb[0].mxu0 %v9470
    %v10113 = vpop.f32.mrb[0].mxu0
    %v10114 = vadd.f32 %v10009, %v10113
    %v10115 = vpop.f32.mrb[0].mxu0
    %10116 = vmatprep.mubr.f32.mxu0 %v9487
    %10117 = vmatmul.mubr.f32.gmra.mrb[0].mxu0 %v9486
    %v10118 = vpop.f32.mrb[0].mxu0
    %v10119 = vadd.f32 %v10014, %v10118
    %v10120 = vpop.f32.mrb[0].mxu0
    %10121 = vmatprep.mubr.f32.mxu0 %v9503
    %10122 = vmatmul.mubr.f32.gmra.mrb[0].mxu0 %v9502
    %v10123 = vpop.f32.mrb[0].mxu0
    %v10124 = vadd.f32 %v10019, %v10123
    %v10125 = vpop.f32.mrb[0].mxu0
    %10126 = vmatprep.mubr.f32.mxu0 %v9519
    %10127 = vmatmul.mubr.f32.gmra.mrb[0].mxu0 %v9518
    %v10128 = vpop.f32.mrb[0].mxu0
    %v10129 = vadd.f32 %v10024, %v10128
    %v10130 = vpop.f32.mrb[0].mxu0
    %10131 = vmatprep.mubr.f32.mxu0 %v9535
    %10132 = vmatmul.mubr.f32.gmra.mrb[0].mxu0 %v9534
    %v10133 = vpop.f32.mrb[0].mxu0
    %v10134 = vadd.f32 %v10029, %v10133
    %v10135 = vpop.f32.mrb[0].mxu0
    %10136 = vmatprep.mubr.f32.mxu0 %v9551
    %10137 = vmatmul.mubr.f32.gmra.mrb[0].mxu0 %v9550
    %v10138 = vpop.f32.mrb[0].mxu0
    %v10139 = vadd.f32 %v10034, %v10138
    %v10140 = vpop.f32.mrb[0].mxu0
    %10141 = vdwg.mxu0
    %10142 = vmatprep.subr.mxu0 0.0
    %10143 = vmatpush1.msra.mxu0 %v9659
    %10144 = vmatprep.subr.mxu0 0.0
    %10145 = vmatpush1.msra.mxu0 %v9660
    %10146 = vmatprep.subr.mxu0 0.0
    %10147 = vmatpush1.msra.mxu0 %v9661
    %10148 = vmatprep.subr.mxu0 0.0
    %10149 = vmatpush1.msra.mxu0 %v9662
    %10150 = vmatprep.subr.mxu0 0.0
    %10151 = vmatpush1.msra.mxu0 %v9663
    %10152 = vmatprep.subr.mxu0 0.0
    %10153 = vmatpush1.msra.mxu0 %v9664
    %10154 = vmatprep.subr.mxu0 0.0
    %10155 = vmatpush1.msra.mxu0 %v9665
    %10156 = vmatprep.subr.mxu0 0.0
    %10157 = vmatpush1.msra.mxu0 %v9666
    %10158 = vmatprep.subr.mxu0 0.0
    %10159 = vmatpush1.msra.mxu0 %v9667
    %10160 = vmatprep.subr.mxu0 0.0
    %10161 = vmatpush1.msra.mxu0 %v9668
    %10162 = vmatprep.subr.mxu0 0.0
    %10163 = vmatpush1.msra.mxu0 %v9669
    %10164 = vmatprep.subr.mxu0 0.0
    %10165 = vmatpush1.msra.mxu0 %v9670
    %10166 = vmatprep.subr.mxu0 0.0
    %10167 = vmatpush1.msra.mxu0 %v9671
    %10168 = vmatprep.subr.mxu0 0.0
    %10169 = vmatpush1.msra.mxu0 %v9672
    %10170 = vmatprep.subr.mxu0 0.0
    %10171 = vmatpush1.msra.mxu0 %v9673
    %10172 = vmatprep.subr.mxu0 0.0
    %10173 = vmatpush1.msra.mxu0 %v9674
    %10174 = vmatprep.subr.mxu0 0.0
    %10175 = vmatpush1.msra.mxu0 %v9675
    %10176 = vmatprep.subr.mxu0 0.0
    %10177 = vmatpush1.msra.mxu0 %v9676
    %10178 = vmatprep.subr.mxu0 0.0
    %10179 = vmatpush1.msra.mxu0 %v9677
    %10180 = vmatprep.subr.mxu0 0.0
    %10181 = vmatpush1.msra.mxu0 %v9678
    %10182 = vmatprep.subr.mxu0 0.0
    %10183 = vmatpush1.msra.mxu0 %v9679
    %10184 = vmatprep.subr.mxu0 0.0
    %10185 = vmatpush1.msra.mxu0 %v9680
    %10186 = vmatprep.subr.mxu0 0.0
    %10187 = vmatpush1.msra.mxu0 %v9681
    %10188 = vmatprep.subr.mxu0 0.0
    %10189 = vmatpush1.msra.mxu0 %v9682
    %10190 = vmatprep.subr.mxu0 0.0
    %10191 = vmatpush1.msra.mxu0 %v9683
    %10192 = vmatprep.subr.mxu0 0.0
    %10193 = vmatpush1.msra.mxu0 %v9684
    %10194 = vmatprep.subr.mxu0 0.0
    %10195 = vmatpush1.msra.mxu0 %v9685
    %10196 = vmatprep.subr.mxu0 0.0
    %10197 = vmatpush1.msra.mxu0 %v9686
    %10198 = vmatprep.subr.mxu0 0.0
    %10199 = vmatpush1.msra.mxu0 %v9687
    %10200 = vmatprep.subr.mxu0 0.0
    %10201 = vmatpush1.msra.mxu0 %v9688
    %10202 = vmatprep.subr.mxu0 0.0
    %10203 = vmatpush1.msra.mxu0 %v9689
    %10204 = vmatprep.subr.mxu0 0.0
    %10205 = vmatpush1.msra.mxu0 %v9690
    %10206 = vmatprep.mubr.f32.mxu0 %v9441
    %10207 = vmatmul.mubr.f32.gmra.mrb[0].mxu0 %v9440
    %v10208 = vpop.f32.mrb[0].mxu0
    %v10209 = vadd.f32 %v10104, %v10208
    %v10210 = vpop.f32.mrb[0].mxu0
    %10211 = vmatprep.mubr.f32.mxu0 %v9457
    %10212 = vmatmul.mubr.f32.gmra.mrb[0].mxu0 %v9456
    %v10213 = vpop.f32.mrb[0].mxu0
    %v10214 = vadd.f32 %v10109, %v10213
    %v10215 = vpop.f32.mrb[0].mxu0
    %10216 = vmatprep.mubr.f32.mxu0 %v9473
    %10217 = vmatmul.mubr.f32.gmra.mrb[0].mxu0 %v9472
    %v10218 = vpop.f32.mrb[0].mxu0
    %v10219 = vadd.f32 %v10114, %v10218
    %v10220 = vpop.f32.mrb[0].mxu0
    %10221 = vmatprep.mubr.f32.mxu0 %v9489
    %10222 = vmatmul.mubr.f32.gmra.mrb[0].mxu0 %v9488
    %v10223 = vpop.f32.mrb[0].mxu0
    %v10224 = vadd.f32 %v10119, %v10223
    %v10225 = vpop.f32.mrb[0].mxu0
    %10226 = vmatprep.mubr.f32.mxu0 %v9505
    %10227 = vmatmul.mubr.f32.gmra.mrb[0].mxu0 %v9504
    %v10228 = vpop.f32.mrb[0].mxu0
    %v10229 = vadd.f32 %v10124, %v10228
    %v10230 = vpop.f32.mrb[0].mxu0
    %10231 = vmatprep.mubr.f32.mxu0 %v9521
    %10232 = vmatmul.mubr.f32.gmra.mrb[0].mxu0 %v9520
    %v10233 = vpop.f32.mrb[0].mxu0
    %v10234 = vadd.f32 %v10129, %v10233
    %v10235 = vpop.f32.mrb[0].mxu0
    %10236 = vmatprep.mubr.f32.mxu0 %v9537
    %10237 = vmatmul.mubr.f32.gmra.mrb[0].mxu0 %v9536
    %v10238 = vpop.f32.mrb[0].mxu0
    %v10239 = vadd.f32 %v10134, %v10238
    %v10240 = vpop.f32.mrb[0].mxu0
    %10241 = vmatprep.mubr.f32.mxu0 %v9553
    %10242 = vmatmul.mubr.f32.gmra.mrb[0].mxu0 %v9552
    %v10243 = vpop.f32.mrb[0].mxu0
    %v10244 = vadd.f32 %v10139, %v10243
    %v10245 = vpop.f32.mrb[0].mxu0
    %10246 = vdwg.mxu0
    %10247 = vmatprep.subr.mxu0 0.0
    %10248 = vmatpush1.msra.mxu0 %v9691
    %10249 = vmatprep.subr.mxu0 0.0
    %10250 = vmatpush1.msra.mxu0 %v9692
    %10251 = vmatprep.subr.mxu0 0.0
    %10252 = vmatpush1.msra.mxu0 %v9693
    %10253 = vmatprep.subr.mxu0 0.0
    %10254 = vmatpush1.msra.mxu0 %v9694
    %10255 = vmatprep.subr.mxu0 0.0
    %10256 = vmatpush1.msra.mxu0 %v9695
    %10257 = vmatprep.subr.mxu0 0.0
    %10258 = vmatpush1.msra.mxu0 %v9696
    %10259 = vmatprep.subr.mxu0 0.0
    %10260 = vmatpush1.msra.mxu0 %v9697
    %10261 = vmatprep.subr.mxu0 0.0
    %10262 = vmatpush1.msra.mxu0 %v9698
    %10263 = vmatprep.subr.mxu0 0.0
    %10264 = vmatpush1.msra.mxu0 %v9699
    %10265 = vmatprep.subr.mxu0 0.0
    %10266 = vmatpush1.msra.mxu0 %v9700
    %10267 = vmatprep.subr.mxu0 0.0
    %10268 = vmatpush1.msra.mxu0 %v9701
    %10269 = vmatprep.subr.mxu0 0.0
    %10270 = vmatpush1.msra.mxu0 %v9702
    %10271 = vmatprep.subr.mxu0 0.0
    %10272 = vmatpush1.msra.mxu0 %v9703
    %10273 = vmatprep.subr.mxu0 0.0
    %10274 = vmatpush1.msra.mxu0 %v9704
    %10275 = vmatprep.subr.mxu0 0.0
    %10276 = vmatpush1.msra.mxu0 %v9705
    %10277 = vmatprep.subr.mxu0 0.0
    %10278 = vmatpush1.msra.mxu0 %v9706
    %10279 = vmatprep.subr.mxu0 0.0
    %10280 = vmatpush1.msra.mxu0 %v9707
    %10281 = vmatprep.subr.mxu0 0.0
    %10282 = vmatpush1.msra.mxu0 %v9708
    %10283 = vmatprep.subr.mxu0 0.0
    %10284 = vmatpush1.msra.mxu0 %v9709
    %10285 = vmatprep.subr.mxu0 0.0
    %10286 = vmatpush1.msra.mxu0 %v9710
    %10287 = vmatprep.subr.mxu0 0.0
    %10288 = vmatpush1.msra.mxu0 %v9711
    %10289 = vmatprep.subr.mxu0 0.0
    %10290 = vmatpush1.msra.mxu0 %v9712
    %10291 = vmatprep.subr.mxu0 0.0
    %10292 = vmatpush1.msra.mxu0 %v9713
    %10293 = vmatprep.subr.mxu0 0.0
    %10294 = vmatpush1.msra.mxu0 %v9714
    %10295 = vmatprep.subr.mxu0 0.0
    %10296 = vmatpush1.msra.mxu0 %v9715
    %10297 = vmatprep.subr.mxu0 0.0
    %10298 = vmatpush1.msra.mxu0 %v9716
    %10299 = vmatprep.subr.mxu0 0.0
    %10300 = vmatpush1.msra.mxu0 %v9717
    %10301 = vmatprep.subr.mxu0 0.0
    %10302 = vmatpush1.msra.mxu0 %v9718
    %10303 = vmatprep.subr.mxu0 0.0
    %10304 = vmatpush1.msra.mxu0 %v9719
    %10305 = vmatprep.subr.mxu0 0.0
    %10306 = vmatpush1.msra.mxu0 %v9720
    %10307 = vmatprep.subr.mxu0 0.0
    %10308 = vmatpush1.msra.mxu0 %v9721
    %10309 = vmatprep.subr.mxu0 0.0
    %10310 = vmatpush1.msra.mxu0 %v9722
    %10311 = vmatprep.mubr.f32.mxu0 %v9443
    %10312 = vmatmul.mubr.f32.gmra.mrb[0].mxu0 %v9442
    %v10313 = vpop.f32.mrb[0].mxu0
    %v10314 = vadd.f32 %v10209, %v10313
    %v10315 = vpop.f32.mrb[0].mxu0
    %10316 = vmatprep.mubr.f32.mxu0 %v9459
    %10317 = vmatmul.mubr.f32.gmra.mrb[0].mxu0 %v9458
    %v10318 = vpop.f32.mrb[0].mxu0
    %v10319 = vadd.f32 %v10214, %v10318
    %v10320 = vpop.f32.mrb[0].mxu0
    %10321 = vmatprep.mubr.f32.mxu0 %v9475
    %10322 = vmatmul.mubr.f32.gmra.mrb[0].mxu0 %v9474
    %v10323 = vpop.f32.mrb[0].mxu0
    %v10324 = vadd.f32 %v10219, %v10323
    %v10325 = vpop.f32.mrb[0].mxu0
    %10326 = vmatprep.mubr.f32.mxu0 %v9491
    %10327 = vmatmul.mubr.f32.gmra.mrb[0].mxu0 %v9490
    %v10328 = vpop.f32.mrb[0].mxu0
    %v10329 = vadd.f32 %v10224, %v10328
    %v10330 = vpop.f32.mrb[0].mxu0
    %10331 = vmatprep.mubr.f32.mxu0 %v9507
    %10332 = vmatmul.mubr.f32.gmra.mrb[0].mxu0 %v9506
    %v10333 = vpop.f32.mrb[0].mxu0
    %v10334 = vadd.f32 %v10229, %v10333
    %v10335 = vpop.f32.mrb[0].mxu0
    %10336 = vmatprep.mubr.f32.mxu0 %v9523
    %10337 = vmatmul.mubr.f32.gmra.mrb[0].mxu0 %v9522
    %v10338 = vpop.f32.mrb[0].mxu0
    %v10339 = vadd.f32 %v10234, %v10338
    %v10340 = vpop.f32.mrb[0].mxu0
    %10341 = vmatprep.mubr.f32.mxu0 %v9539
    %10342 = vmatmul.mubr.f32.gmra.mrb[0].mxu0 %v9538
    %v10343 = vpop.f32.mrb[0].mxu0
    %v10344 = vadd.f32 %v10239, %v10343
    %v10345 = vpop.f32.mrb[0].mxu0
    %10346 = vmatprep.mubr.f32.mxu0 %v9555
    %10347 = vmatmul.mubr.f32.gmra.mrb[0].mxu0 %v9554
    %v10348 = vpop.f32.mrb[0].mxu0
    %v10349 = vadd.f32 %v10244, %v10348
    %v10350 = vpop.f32.mrb[0].mxu0
    %10351 = vdwg.mxu0
    %10352 = vmatprep.subr.mxu0 0.0
    %10353 = vmatpush1.msra.mxu0 %v9723
    %10354 = vmatprep.subr.mxu0 0.0
    %10355 = vmatpush1.msra.mxu0 %v9724
    %10356 = vmatprep.subr.mxu0 0.0
    %10357 = vmatpush1.msra.mxu0 %v9725
    %10358 = vmatprep.subr.mxu0 0.0
    %10359 = vmatpush1.msra.mxu0 %v9726
    %10360 = vmatprep.subr.mxu0 0.0
    %10361 = vmatpush1.msra.mxu0 %v9727
    %10362 = vmatprep.subr.mxu0 0.0
    %10363 = vmatpush1.msra.mxu0 %v9728
    %10364 = vmatprep.subr.mxu0 0.0
    %10365 = vmatpush1.msra.mxu0 %v9729
    %10366 = vmatprep.subr.mxu0 0.0
    %10367 = vmatpush1.msra.mxu0 %v9730
    %10368 = vmatprep.subr.mxu0 0.0
    %10369 = vmatpush1.msra.mxu0 %v9731
    %10370 = vmatprep.subr.mxu0 0.0
    %10371 = vmatpush1.msra.mxu0 %v9732
    %10372 = vmatprep.subr.mxu0 0.0
    %10373 = vmatpush1.msra.mxu0 %v9733
    %10374 = vmatprep.subr.mxu0 0.0
    %10375 = vmatpush1.msra.mxu0 %v9734
    %10376 = vmatprep.subr.mxu0 0.0
    %10377 = vmatpush1.msra.mxu0 %v9735
    %10378 = vmatprep.subr.mxu0 0.0
    %10379 = vmatpush1.msra.mxu0 %v9736
    %10380 = vmatprep.subr.mxu0 0.0
    %10381 = vmatpush1.msra.mxu0 %v9737
    %10382 = vmatprep.subr.mxu0 0.0
    %10383 = vmatpush1.msra.mxu0 %v9738
    %10384 = vmatprep.subr.mxu0 0.0
    %10385 = vmatpush1.msra.mxu0 %v9739
    %10386 = vmatprep.subr.mxu0 0.0
    %10387 = vmatpush1.msra.mxu0 %v9740
    %10388 = vmatprep.subr.mxu0 0.0
    %10389 = vmatpush1.msra.mxu0 %v9741
    %10390 = vmatprep.subr.mxu0 0.0
    %10391 = vmatpush1.msra.mxu0 %v9742
    %10392 = vmatprep.subr.mxu0 0.0
    %10393 = vmatpush1.msra.mxu0 %v9743
    %10394 = vmatprep.subr.mxu0 0.0
    %10395 = vmatpush1.msra.mxu0 %v9744
    %10396 = vmatprep.subr.mxu0 0.0
    %10397 = vmatpush1.msra.mxu0 %v9745
    %10398 = vmatprep.subr.mxu0 0.0
    %10399 = vmatpush1.msra.mxu0 %v9746
    %10400 = vmatprep.subr.mxu0 0.0
    %10401 = vmatpush1.msra.mxu0 %v9747
    %10402 = vmatprep.subr.mxu0 0.0
    %10403 = vmatpush1.msra.mxu0 %v9748
    %10404 = vmatprep.subr.mxu0 0.0
    %10405 = vmatpush1.msra.mxu0 %v9749
    %10406 = vmatprep.subr.mxu0 0.0
    %10407 = vmatpush1.msra.mxu0 %v9750
    %10408 = vmatprep.subr.mxu0 0.0
    %10409 = vmatpush1.msra.mxu0 %v9751
    %10410 = vmatprep.subr.mxu0 0.0
    %10411 = vmatpush1.msra.mxu0 %v9752
    %10412 = vmatprep.subr.mxu0 0.0
    %10413 = vmatpush1.msra.mxu0 %v9753
    %10414 = vmatprep.subr.mxu0 0.0
    %10415 = vmatpush1.msra.mxu0 %v9754
    %10416 = vmatprep.mubr.f32.mxu0 %v9445
    %10417 = vmatmul.mubr.f32.gmra.mrb[0].mxu0 %v9444
    %v10418 = vpop.f32.mrb[0].mxu0
    %v10419 = vadd.f32 %v10314, %v10418
    %v10420 = vpop.f32.mrb[0].mxu0
    %10421 = vmatprep.mubr.f32.mxu0 %v9461
    %10422 = vmatmul.mubr.f32.gmra.mrb[0].mxu0 %v9460
    %v10423 = vpop.f32.mrb[0].mxu0
    %v10424 = vadd.f32 %v10319, %v10423
    %v10425 = vpop.f32.mrb[0].mxu0
    %10426 = vmatprep.mubr.f32.mxu0 %v9477
    %10427 = vmatmul.mubr.f32.gmra.mrb[0].mxu0 %v9476
    %v10428 = vpop.f32.mrb[0].mxu0
    %v10429 = vadd.f32 %v10324, %v10428
    %v10430 = vpop.f32.mrb[0].mxu0
    %10431 = vmatprep.mubr.f32.mxu0 %v9493
    %10432 = vmatmul.mubr.f32.gmra.mrb[0].mxu0 %v9492
    %v10433 = vpop.f32.mrb[0].mxu0
    %v10434 = vadd.f32 %v10329, %v10433
    %v10435 = vpop.f32.mrb[0].mxu0
    %10436 = vmatprep.mubr.f32.mxu0 %v9509
    %10437 = vmatmul.mubr.f32.gmra.mrb[0].mxu0 %v9508
    %v10438 = vpop.f32.mrb[0].mxu0
    %v10439 = vadd.f32 %v10334, %v10438
    %v10440 = vpop.f32.mrb[0].mxu0
    %10441 = vmatprep.mubr.f32.mxu0 %v9525
    %10442 = vmatmul.mubr.f32.gmra.mrb[0].mxu0 %v9524
    %v10443 = vpop.f32.mrb[0].mxu0
    %v10444 = vadd.f32 %v10339, %v10443
    %v10445 = vpop.f32.mrb[0].mxu0
    %10446 = vmatprep.mubr.f32.mxu0 %v9541
    %10447 = vmatmul.mubr.f32.gmra.mrb[0].mxu0 %v9540
    %v10448 = vpop.f32.mrb[0].mxu0
    %v10449 = vadd.f32 %v10344, %v10448
    %v10450 = vpop.f32.mrb[0].mxu0
    %10451 = vmatprep.mubr.f32.mxu0 %v9557
    %10452 = vmatmul.mubr.f32.gmra.mrb[0].mxu0 %v9556
    %v10453 = vpop.f32.mrb[0].mxu0
    %v10454 = vadd.f32 %v10349, %v10453
    %v10455 = vpop.f32.mrb[0].mxu0
    %10456 = vdwg.mxu0
    %10457 = vmatprep.subr.mxu0 0.0
    %10458 = vmatpush1.msra.mxu0 %v9755
    %10459 = vmatprep.subr.mxu0 0.0
    %10460 = vmatpush1.msra.mxu0 %v9756
    %10461 = vmatprep.subr.mxu0 0.0
    %10462 = vmatpush1.msra.mxu0 %v9757
    %10463 = vmatprep.subr.mxu0 0.0
    %10464 = vmatpush1.msra.mxu0 %v9758
    %10465 = vmatprep.subr.mxu0 0.0
    %10466 = vmatpush1.msra.mxu0 %v9759
    %10467 = vmatprep.subr.mxu0 0.0
    %10468 = vmatpush1.msra.mxu0 %v9760
    %10469 = vmatprep.subr.mxu0 0.0
    %10470 = vmatpush1.msra.mxu0 %v9761
    %10471 = vmatprep.subr.mxu0 0.0
    %10472 = vmatpush1.msra.mxu0 %v9762
    %10473 = vmatprep.subr.mxu0 0.0
    %10474 = vmatpush1.msra.mxu0 %v9763
    %10475 = vmatprep.subr.mxu0 0.0
    %10476 = vmatpush1.msra.mxu0 %v9764
    %10477 = vmatprep.subr.mxu0 0.0
    %10478 = vmatpush1.msra.mxu0 %v9765
    %10479 = vmatprep.subr.mxu0 0.0
    %10480 = vmatpush1.msra.mxu0 %v9766
    %10481 = vmatprep.subr.mxu0 0.0
    %10482 = vmatpush1.msra.mxu0 %v9767
    %10483 = vmatprep.subr.mxu0 0.0
    %10484 = vmatpush1.msra.mxu0 %v9768
    %10485 = vmatprep.subr.mxu0 0.0
    %10486 = vmatpush1.msra.mxu0 %v9769
    %10487 = vmatprep.subr.mxu0 0.0
    %10488 = vmatpush1.msra.mxu0 %v9770
    %10489 = vmatprep.subr.mxu0 0.0
    %10490 = vmatpush1.msra.mxu0 %v9771
    %10491 = vmatprep.subr.mxu0 0.0
    %10492 = vmatpush1.msra.mxu0 %v9772
    %10493 = vmatprep.subr.mxu0 0.0
    %10494 = vmatpush1.msra.mxu0 %v9773
    %10495 = vmatprep.subr.mxu0 0.0
    %10496 = vmatpush1.msra.mxu0 %v9774
    %10497 = vmatprep.subr.mxu0 0.0
    %10498 = vmatpush1.msra.mxu0 %v9775
    %10499 = vmatprep.subr.mxu0 0.0
    %10500 = vmatpush1.msra.mxu0 %v9776
    %10501 = vmatprep.subr.mxu0 0.0
    %10502 = vmatpush1.msra.mxu0 %v9777
    %10503 = vmatprep.subr.mxu0 0.0
    %10504 = vmatpush1.msra.mxu0 %v9778
    %10505 = vmatprep.subr.mxu0 0.0
    %10506 = vmatpush1.msra.mxu0 %v9779
    %10507 = vmatprep.subr.mxu0 0.0
    %10508 = vmatpush1.msra.mxu0 %v9780
    %10509 = vmatprep.subr.mxu0 0.0
    %10510 = vmatpush1.msra.mxu0 %v9781
    %10511 = vmatprep.subr.mxu0 0.0
    %10512 = vmatpush1.msra.mxu0 %v9782
    %10513 = vmatprep.subr.mxu0 0.0
    %10514 = vmatpush1.msra.mxu0 %v9783
    %10515 = vmatprep.subr.mxu0 0.0
    %10516 = vmatpush1.msra.mxu0 %v9784
    %10517 = vmatprep.subr.mxu0 0.0
    %10518 = vmatpush1.msra.mxu0 %v9785
    %10519 = vmatprep.subr.mxu0 0.0
    %10520 = vmatpush1.msra.mxu0 %v9786
    %10521 = vmatprep.mubr.f32.mxu0 %v9447
    %10522 = vmatmul.mubr.f32.gmra.mrb[0].mxu0 %v9446
    %v10523 = vpop.f32.mrb[0].mxu0
    %v10524 = vadd.f32 %v10419, %v10523
    %v10525 = vpop.f32.mrb[0].mxu0
    %10526 = vmatprep.mubr.f32.mxu0 %v9463
    %10527 = vmatmul.mubr.f32.gmra.mrb[0].mxu0 %v9462
    %v10528 = vpop.f32.mrb[0].mxu0
    %v10529 = vadd.f32 %v10424, %v10528
    %v10530 = vpop.f32.mrb[0].mxu0
    %10531 = vmatprep.mubr.f32.mxu0 %v9479
    %10532 = vmatmul.mubr.f32.gmra.mrb[0].mxu0 %v9478
    %v10533 = vpop.f32.mrb[0].mxu0
    %v10534 = vadd.f32 %v10429, %v10533
    %v10535 = vpop.f32.mrb[0].mxu0
    %10536 = vmatprep.mubr.f32.mxu0 %v9495
    %10537 = vmatmul.mubr.f32.gmra.mrb[0].mxu0 %v9494
    %v10538 = vpop.f32.mrb[0].mxu0
    %v10539 = vadd.f32 %v10434, %v10538
    %v10540 = vpop.f32.mrb[0].mxu0
    %10541 = vmatprep.mubr.f32.mxu0 %v9511
    %10542 = vmatmul.mubr.f32.gmra.mrb[0].mxu0 %v9510
    %v10543 = vpop.f32.mrb[0].mxu0
    %v10544 = vadd.f32 %v10439, %v10543
    %v10545 = vpop.f32.mrb[0].mxu0
    %10546 = vmatprep.mubr.f32.mxu0 %v9527
    %10547 = vmatmul.mubr.f32.gmra.mrb[0].mxu0 %v9526
    %v10548 = vpop.f32.mrb[0].mxu0
    %v10549 = vadd.f32 %v10444, %v10548
    %v10550 = vpop.f32.mrb[0].mxu0
    %10551 = vmatprep.mubr.f32.mxu0 %v9543
    %10552 = vmatmul.mubr.f32.gmra.mrb[0].mxu0 %v9542
    %v10553 = vpop.f32.mrb[0].mxu0
    %v10554 = vadd.f32 %v10449, %v10553
    %v10555 = vpop.f32.mrb[0].mxu0
    %10556 = vmatprep.mubr.f32.mxu0 %v9559
    %10557 = vmatmul.mubr.f32.gmra.mrb[0].mxu0 %v9558
    %v10558 = vpop.f32.mrb[0].mxu0
    %v10559 = vadd.f32 %v10454, %v10558
    %v10560 = vpop.f32.mrb[0].mxu0
    %10561 = vdwg.mxu0
    %10562 = vmatprep.subr.mxu0 0.0
    %10563 = vmatpush1.msra.mxu0 %v9787
    %10564 = vmatprep.subr.mxu0 0.0
    %10565 = vmatpush1.msra.mxu0 %v9788
    %10566 = vmatprep.subr.mxu0 0.0
    %10567 = vmatpush1.msra.mxu0 %v9789
    %10568 = vmatprep.subr.mxu0 0.0
    %10569 = vmatpush1.msra.mxu0 %v9790
    %10570 = vmatprep.subr.mxu0 0.0
    %10571 = vmatpush1.msra.mxu0 %v9791
    %10572 = vmatprep.subr.mxu0 0.0
    %10573 = vmatpush1.msra.mxu0 %v9792
    %10574 = vmatprep.subr.mxu0 0.0
    %10575 = vmatpush1.msra.mxu0 %v9793
    %10576 = vmatprep.subr.mxu0 0.0
    %10577 = vmatpush1.msra.mxu0 %v9794
    %10578 = vmatprep.subr.mxu0 0.0
    %10579 = vmatpush1.msra.mxu0 %v9795
    %10580 = vmatprep.subr.mxu0 0.0
    %10581 = vmatpush1.msra.mxu0 %v9796
    %10582 = vmatprep.subr.mxu0 0.0
    %10583 = vmatpush1.msra.mxu0 %v9797
    %10584 = vmatprep.subr.mxu0 0.0
    %10585 = vmatpush1.msra.mxu0 %v9798
    %10586 = vmatprep.subr.mxu0 0.0
    %10587 = vmatpush1.msra.mxu0 %v9799
    %10588 = vmatprep.subr.mxu0 0.0
    %10589 = vmatpush1.msra.mxu0 %v9800
    %10590 = vmatprep.subr.mxu0 0.0
    %10591 = vmatpush1.msra.mxu0 %v9801
    %10592 = vmatprep.subr.mxu0 0.0
    %10593 = vmatpush1.msra.mxu0 %v9802
    %10594 = vmatprep.subr.mxu0 0.0
    %10595 = vmatpush1.msra.mxu0 %v9803
    %10596 = vmatprep.subr.mxu0 0.0
    %10597 = vmatpush1.msra.mxu0 %v9804
    %10598 = vmatprep.subr.mxu0 0.0
    %10599 = vmatpush1.msra.mxu0 %v9805
    %10600 = vmatprep.subr.mxu0 0.0
    %10601 = vmatpush1.msra.mxu0 %v9806
    %10602 = vmatprep.subr.mxu0 0.0
    %10603 = vmatpush1.msra.mxu0 %v9807
    %10604 = vmatprep.subr.mxu0 0.0
    %10605 = vmatpush1.msra.mxu0 %v9808
    %10606 = vmatprep.subr.mxu0 0.0
    %10607 = vmatpush1.msra.mxu0 %v9809
    %10608 = vmatprep.subr.mxu0 0.0
    %10609 = vmatpush1.msra.mxu0 %v9810
    %10610 = vmatprep.subr.mxu0 0.0
    %10611 = vmatpush1.msra.mxu0 %v9811
    %10612 = vmatprep.subr.mxu0 0.0
    %10613 = vmatpush1.msra.mxu0 %v9812
    %10614 = vmatprep.subr.mxu0 0.0
    %10615 = vmatpush1.msra.mxu0 %v9813
    %10616 = vmatprep.subr.mxu0 0.0
    %10617 = vmatpush1.msra.mxu0 %v9814
    %10618 = vmatprep.subr.mxu0 0.0
    %10619 = vmatpush1.msra.mxu0 %v9815
    %10620 = vmatprep.subr.mxu0 0.0
    %10621 = vmatpush1.msra.mxu0 %v9816
    %10622 = vmatprep.subr.mxu0 0.0
    %10623 = vmatpush1.msra.mxu0 %v9817
    %10624 = vmatprep.subr.mxu0 0.0
    %10625 = vmatpush1.msra.mxu0 %v9818
    %10626 = vmatprep.mubr.f32.mxu0 %v9449
    %10627 = vmatmul.mubr.f32.gmra.mrb[0].mxu0 %v9448
    %v10628 = vpop.f32.mrb[0].mxu0
    %v10629 = vadd.f32 %v10524, %v10628
    %v10630 = vpop.f32.mrb[0].mxu0
    %10631 = vmatprep.mubr.f32.mxu0 %v9465
    %10632 = vmatmul.mubr.f32.gmra.mrb[0].mxu0 %v9464
    %v10633 = vpop.f32.mrb[0].mxu0
    %v10634 = vadd.f32 %v10529, %v10633
    %v10635 = vpop.f32.mrb[0].mxu0
    %10636 = vmatprep.mubr.f32.mxu0 %v9481
    %10637 = vmatmul.mubr.f32.gmra.mrb[0].mxu0 %v9480
    %v10638 = vpop.f32.mrb[0].mxu0
    %v10639 = vadd.f32 %v10534, %v10638
    %v10640 = vpop.f32.mrb[0].mxu0
    %10641 = vmatprep.mubr.f32.mxu0 %v9497
    %10642 = vmatmul.mubr.f32.gmra.mrb[0].mxu0 %v9496
    %v10643 = vpop.f32.mrb[0].mxu0
    %v10644 = vadd.f32 %v10539, %v10643
    %v10645 = vpop.f32.mrb[0].mxu0
    %10646 = vmatprep.mubr.f32.mxu0 %v9513
    %10647 = vmatmul.mubr.f32.gmra.mrb[0].mxu0 %v9512
    %v10648 = vpop.f32.mrb[0].mxu0
    %v10649 = vadd.f32 %v10544, %v10648
    %v10650 = vpop.f32.mrb[0].mxu0
    %10651 = vmatprep.mubr.f32.mxu0 %v9529
    %10652 = vmatmul.mubr.f32.gmra.mrb[0].mxu0 %v9528
    %v10653 = vpop.f32.mrb[0].mxu0
    %v10654 = vadd.f32 %v10549, %v10653
    %v10655 = vpop.f32.mrb[0].mxu0
    %10656 = vmatprep.mubr.f32.mxu0 %v9545
    %10657 = vmatmul.mubr.f32.gmra.mrb[0].mxu0 %v9544
    %v10658 = vpop.f32.mrb[0].mxu0
    %v10659 = vadd.f32 %v10554, %v10658
    %v10660 = vpop.f32.mrb[0].mxu0
    %10661 = vmatprep.mubr.f32.mxu0 %v9561
    %10662 = vmatmul.mubr.f32.gmra.mrb[0].mxu0 %v9560
    %v10663 = vpop.f32.mrb[0].mxu0
    %v10664 = vadd.f32 %v10559, %v10663
    %v10665 = vpop.f32.mrb[0].mxu0
    %10666 = vdwg.mxu0
    %v10667 = vadd.f32 %v8284, %v10629
    %v10668 = vadd.f32 %v8285, %v10634
    %v10669 = vadd.f32 %v8286, %v10639
    %v10670 = vadd.f32 %v8287, %v10644
    %v10671 = vadd.f32 %v8288, %v10649
    %v10672 = vadd.f32 %v8289, %v10654
    %v10673 = vadd.f32 %v8290, %v10659
    %v10674 = vadd.f32 %v8291, %v10664
    %s10675 = scalar_lea.vmem [#allocation23], 1
    %v10676 = vld [vmem:[%s10675] sm:$0x1]
    %s10677 = scalar_lea.vmem [#allocation24], 1
    %v10678 = vld [vmem:[%s10677] sm:$0x1]
    %v10679 = vsel %vm348, %v10667, 0.0
    %10680 = vadd.xlane.f32.xlu0 %v10679
    %v10681 = vpop.xlane.xlu0 %10680
    %v10682 = vsel %vm348, %v10668, 0.0
    %10683 = vadd.xlane.f32.xlu0 %v10682
    %v10684 = vpop.xlane.xlu0 %10683
    %v10685 = vsel %vm348, %v10669, 0.0
    %10686 = vadd.xlane.f32.xlu0 %v10685
    %v10687 = vpop.xlane.xlu0 %10686
    %v10688 = vsel %vm348, %v10670, 0.0
    %10689 = vadd.xlane.f32.xlu0 %v10688
    %v10690 = vpop.xlane.xlu0 %10689
    %v10691 = vsel %vm348, %v10671, 0.0
    %10692 = vadd.xlane.f32.xlu0 %v10691
    %v10693 = vpop.xlane.xlu0 %10692
    %v10694 = vsel %vm348, %v10672, 0.0
    %10695 = vadd.xlane.f32.xlu0 %v10694
    %v10696 = vpop.xlane.xlu0 %10695
    %v10697 = vsel %vm348, %v10673, 0.0
    %10698 = vadd.xlane.f32.xlu0 %v10697
    %v10699 = vpop.xlane.xlu0 %10698
    %v10700 = vsel %vm348, %v10674, 0.0
    %10701 = vadd.xlane.f32.xlu0 %v10700
    %v10702 = vpop.xlane.xlu0 %10701
    %v10703 = vmul.f32 %v10681, %v2941
    %v10704 = vmul.f32 %v10684, %v2941
    %v10705 = vmul.f32 %v10687, %v2941
    %v10706 = vmul.f32 %v10690, %v2941
    %v10707 = vmul.f32 %v10693, %v2941
    %v10708 = vmul.f32 %v10696, %v2941
    %v10709 = vmul.f32 %v10699, %v2941
    %v10710 = vmul.f32 %v10702, %v2941
    %v10711 = vsub.f32 %v10667, %v10703
    %v10712 = vsub.f32 %v10668, %v10704
    %v10713 = vsub.f32 %v10669, %v10705
    %v10714 = vsub.f32 %v10670, %v10706
    %v10715 = vsub.f32 %v10671, %v10707
    %v10716 = vsub.f32 %v10672, %v10708
    %v10717 = vsub.f32 %v10673, %v10709
    %v10718 = vsub.f32 %v10674, %v10710
    %v10719 = vmul.f32 %v10711, %v10711
    %v10720 = vmul.f32 %v10712, %v10712
    %v10721 = vmul.f32 %v10713, %v10713
    %v10722 = vmul.f32 %v10714, %v10714
    %v10723 = vmul.f32 %v10715, %v10715
    %v10724 = vmul.f32 %v10716, %v10716
    %v10725 = vmul.f32 %v10717, %v10717
    %v10726 = vmul.f32 %v10718, %v10718
    %v10727 = vsel %vm348, %v10719, 0.0
    %10728 = vadd.xlane.f32.xlu0 %v10727
    %v10729 = vpop.xlane.xlu0 %10728
    %v10730 = vsel %vm348, %v10720, 0.0
    %10731 = vadd.xlane.f32.xlu0 %v10730
    %v10732 = vpop.xlane.xlu0 %10731
    %v10733 = vsel %vm348, %v10721, 0.0
    %10734 = vadd.xlane.f32.xlu0 %v10733
    %v10735 = vpop.xlane.xlu0 %10734
    %v10736 = vsel %vm348, %v10722, 0.0
    %10737 = vadd.xlane.f32.xlu0 %v10736
    %v10738 = vpop.xlane.xlu0 %10737
    %v10739 = vsel %vm348, %v10723, 0.0
    %10740 = vadd.xlane.f32.xlu0 %v10739
    %v10741 = vpop.xlane.xlu0 %10740
    %v10742 = vsel %vm348, %v10724, 0.0
    %10743 = vadd.xlane.f32.xlu0 %v10742
    %v10744 = vpop.xlane.xlu0 %10743
    %v10745 = vsel %vm348, %v10725, 0.0
    %10746 = vadd.xlane.f32.xlu0 %v10745
    %v10747 = vpop.xlane.xlu0 %10746
    %v10748 = vsel %vm348, %v10726, 0.0
    %10749 = vadd.xlane.f32.xlu0 %v10748
    %v10750 = vpop.xlane.xlu0 %10749
    %v10751 = vmul.f32 %v10729, %v2941
    %v10752 = vmul.f32 %v10732, %v2941
    %v10753 = vmul.f32 %v10735, %v2941
    %v10754 = vmul.f32 %v10738, %v2941
    %v10755 = vmul.f32 %v10741, %v2941
    %v10756 = vmul.f32 %v10744, %v2941
    %v10757 = vmul.f32 %v10747, %v2941
    %v10758 = vmul.f32 %v10750, %v2941
    %v10759 = vadd.f32 %v10751, 1e-05
    %v10760 = vadd.f32 %v10752, 1e-05
    %v10761 = vadd.f32 %v10753, 1e-05
    %v10762 = vadd.f32 %v10754, 1e-05
    %v10763 = vadd.f32 %v10755, 1e-05
    %v10764 = vadd.f32 %v10756, 1e-05
    %v10765 = vadd.f32 %v10757, 1e-05
    %v10766 = vadd.f32 %v10758, 1e-05
    %v10767 = vrsqrt.pop %v10759
    %v10768 = vrsqrt.pop %v10760
    %v10769 = vrsqrt.pop %v10761
    %v10770 = vrsqrt.pop %v10762
    %v10771 = vrsqrt.pop %v10763
    %v10772 = vrsqrt.pop %v10764
    %v10773 = vrsqrt.pop %v10765
    %v10774 = vrsqrt.pop %v10766
    %v10775 = vmul.f32 %v10711, %v10767
    %v10776 = vmul.f32 %v10712, %v10768
    %v10777 = vmul.f32 %v10713, %v10769
    %v10778 = vmul.f32 %v10714, %v10770
    %v10779 = vmul.f32 %v10715, %v10771
    %v10780 = vmul.f32 %v10716, %v10772
    %v10781 = vmul.f32 %v10717, %v10773
    %v10782 = vmul.f32 %v10718, %v10774
    %v10784 = vlaneseq
    %v10785 = vshrl.u32 %v10784, 7
    %v10786 = vsub.s32 0, %v10785
    %v10787 = vrot.slane %v10676, %v10786
    %v10789 = vmul.f32 %v10775, %v10787
    %v10790 = vmul.f32 %v10776, %v10787
    %v10791 = vmul.f32 %v10777, %v10787
    %v10792 = vmul.f32 %v10778, %v10787
    %v10793 = vmul.f32 %v10779, %v10787
    %v10794 = vmul.f32 %v10780, %v10787
    %v10795 = vmul.f32 %v10781, %v10787
    %v10796 = vmul.f32 %v10782, %v10787
    %v10798 = vlaneseq
    %v10799 = vshrl.u32 %v10798, 7
    %v10800 = vsub.s32 0, %v10799
    %v10801 = vrot.slane %v10678, %v10800
    %v10803 = vadd.f32 %v10789, %v10801
    %v10804 = vadd.f32 %v10790, %v10801
    %v10805 = vadd.f32 %v10791, %v10801
    %v10806 = vadd.f32 %v10792, %v10801
    %v10807 = vadd.f32 %v10793, %v10801
    %v10808 = vadd.f32 %v10794, %v10801
    %v10809 = vadd.f32 %v10795, %v10801
    %v10810 = vadd.f32 %v10796, %v10801
    %v10811 = vld [vmem:[#allocation26] sm:$0xff]
    %v10812 = vld [vmem:[#allocation26 + $0x8] sm:$0xff]
    %v10813 = vld [vmem:[#allocation26 + $0x10] sm:$0xff]
    %v10814 = vld [vmem:[#allocation26 + $0x18] sm:$0xff]
    %v10815 = vld [vmem:[#allocation26 + $0x20] sm:$0xff]
    %v10816 = vld [vmem:[#allocation26 + $0x28] sm:$0xff]
    %v10817 = vld [vmem:[#allocation26 + $0x30] sm:$0xff]
    %v10818 = vld [vmem:[#allocation26 + $0x38] sm:$0xff]
    %v10819 = vld [vmem:[#allocation27] sm:$0x1]
    %v10821 = vlaneseq
    %v10822 = vshrl.u32 %v10821, 7
    %v10823 = vsub.s32 0, %v10822
    %v10824 = vrot.slane %v10819, %v10823
    %v10827 = vsel %vm348, %v10803, 0
    %v10830 = vsel %vm348, %v10804, 0
    %v10833 = vsel %vm348, %v10805, 0
    %v10836 = vsel %vm348, %v10806, 0
    %v10839 = vsel %vm348, %v10807, 0
    %v10842 = vsel %vm348, %v10808, 0
    %v10845 = vsel %vm348, %v10809, 0
    %v10848 = vsel %vm348, %v10810, 0
    %10850 = vmatprep.subr.mxu0 0.0
    %10851 = vmatpush1.msra.mxu0 %v10811
    %10852 = vmatprep.subr.mxu0 0.0
    %10853 = vmatpush1.msra.mxu0 %v10812
    %10854 = vmatprep.subr.mxu0 0.0
    %10855 = vmatpush1.msra.mxu0 %v10813
    %10856 = vmatprep.subr.mxu0 0.0
    %10857 = vmatpush1.msra.mxu0 %v10814
    %10858 = vmatprep.subr.mxu0 0.0
    %10859 = vmatpush1.msra.mxu0 %v10815
    %10860 = vmatprep.subr.mxu0 0.0
    %10861 = vmatpush1.msra.mxu0 %v10816
    %10862 = vmatprep.subr.mxu0 0.0
    %10863 = vmatpush1.msra.mxu0 %v10817
    %10864 = vmatprep.subr.mxu0 0.0
    %10865 = vmatpush1.msra.mxu0 %v10818
    %10866 = vmatprep.subr.mxu0 0.0
    %10867 = vmatpush1.msra.mxu0 0.0
    %10868 = vmatprep.subr.mxu0 0.0
    %10869 = vmatpush1.msra.mxu0 0.0
    %10870 = vmatprep.subr.mxu0 0.0
    %10871 = vmatpush1.msra.mxu0 0.0
    %10872 = vmatprep.subr.mxu0 0.0
    %10873 = vmatpush1.msra.mxu0 0.0
    %10874 = vmatprep.subr.mxu0 0.0
    %10875 = vmatpush1.msra.mxu0 0.0
    %10876 = vmatprep.subr.mxu0 0.0
    %10877 = vmatpush1.msra.mxu0 0.0
    %10878 = vmatprep.subr.mxu0 0.0
    %10879 = vmatpush1.msra.mxu0 0.0
    %10880 = vmatprep.subr.mxu0 0.0
    %10881 = vmatpush1.msra.mxu0 0.0
    %10882 = vmatprep.subr.mxu0 0.0
    %10883 = vmatpush1.msra.mxu0 0.0
    %10884 = vmatprep.subr.mxu0 0.0
    %10885 = vmatpush1.msra.mxu0 0.0
    %10886 = vmatprep.subr.mxu0 0.0
    %10887 = vmatpush1.msra.mxu0 0.0
    %10888 = vmatprep.subr.mxu0 0.0
    %10889 = vmatpush1.msra.mxu0 0.0
    %10890 = vmatprep.subr.mxu0 0.0
    %10891 = vmatpush1.msra.mxu0 0.0
    %10892 = vmatprep.subr.mxu0 0.0
    %10893 = vmatpush1.msra.mxu0 0.0
    %10894 = vmatprep.subr.mxu0 0.0
    %10895 = vmatpush1.msra.mxu0 0.0
    %10896 = vmatprep.subr.mxu0 0.0
    %10897 = vmatpush1.msra.mxu0 0.0
    %10898 = vmatprep.subr.mxu0 0.0
    %10899 = vmatpush1.msra.mxu0 0.0
    %10900 = vmatprep.subr.mxu0 0.0
    %10901 = vmatpush1.msra.mxu0 0.0
    %10902 = vmatprep.subr.mxu0 0.0
    %10903 = vmatpush1.msra.mxu0 0.0
    %10904 = vmatprep.subr.mxu0 0.0
    %10905 = vmatpush1.msra.mxu0 0.0
    %10906 = vmatprep.subr.mxu0 0.0
    %10907 = vmatpush1.msra.mxu0 0.0
    %10908 = vmatprep.subr.mxu0 0.0
    %10909 = vmatpush1.msra.mxu0 0.0
    %10910 = vmatprep.subr.mxu0 0.0
    %10911 = vmatpush1.msra.mxu0 0.0
    %10912 = vmatprep.subr.mxu0 0.0
    %10913 = vmatpush1.msra.mxu0 0.0
    %10914 = vmatprep.mubr.f32.mxu0 0.0
    %10915 = vmatmul.mubr.f32.gmra.mrb[0].mxu0 %v10827
    %v10916 = vpop.f32.mrb[0].mxu0
    %v10917 = vadd.f32 %v10824, %v10916
    %v10918 = vpop.f32.mrb[0].mxu0
    %10919 = vmatprep.mubr.f32.mxu0 0.0
    %10920 = vmatmul.mubr.f32.gmra.mrb[0].mxu0 %v10830
    %v10921 = vpop.f32.mrb[0].mxu0
    %v10922 = vadd.f32 %v10824, %v10921
    %v10923 = vpop.f32.mrb[0].mxu0
    %10924 = vmatprep.mubr.f32.mxu0 0.0
    %10925 = vmatmul.mubr.f32.gmra.mrb[0].mxu0 %v10833
    %v10926 = vpop.f32.mrb[0].mxu0
    %v10927 = vadd.f32 %v10824, %v10926
    %v10928 = vpop.f32.mrb[0].mxu0
    %10929 = vmatprep.mubr.f32.mxu0 0.0
    %10930 = vmatmul.mubr.f32.gmra.mrb[0].mxu0 %v10836
    %v10931 = vpop.f32.mrb[0].mxu0
    %v10932 = vadd.f32 %v10824, %v10931
    %v10933 = vpop.f32.mrb[0].mxu0
    %10934 = vmatprep.mubr.f32.mxu0 0.0
    %10935 = vmatmul.mubr.f32.gmra.mrb[0].mxu0 %v10839
    %v10936 = vpop.f32.mrb[0].mxu0
    %v10937 = vadd.f32 %v10824, %v10936
    %v10938 = vpop.f32.mrb[0].mxu0
    %10939 = vmatprep.mubr.f32.mxu0 0.0
    %10940 = vmatmul.mubr.f32.gmra.mrb[0].mxu0 %v10842
    %v10941 = vpop.f32.mrb[0].mxu0
    %v10942 = vadd.f32 %v10824, %v10941
    %v10943 = vpop.f32.mrb[0].mxu0
    %10944 = vmatprep.mubr.f32.mxu0 0.0
    %10945 = vmatmul.mubr.f32.gmra.mrb[0].mxu0 %v10845
    %v10946 = vpop.f32.mrb[0].mxu0
    %v10947 = vadd.f32 %v10824, %v10946
    %v10948 = vpop.f32.mrb[0].mxu0
    %10949 = vmatprep.mubr.f32.mxu0 0.0
    %10950 = vmatmul.mubr.f32.gmra.mrb[0].mxu0 %v10848
    %v10951 = vpop.f32.mrb[0].mxu0
    %v10952 = vadd.f32 %v10824, %v10951
    %v10953 = vpop.f32.mrb[0].mxu0
    %10954 = vdwg.mxu0
    %10955 = vst.msk [vmem:[#allocation29] sm:$0xff] %vm600, %v10917
    %10956 = vst.msk [vmem:[#allocation29 + $0x8] sm:$0xff] %vm600, %v10922
    %10957 = vst.msk [vmem:[#allocation29 + $0x10] sm:$0xff] %vm600, %v10927
    %10958 = vst.msk [vmem:[#allocation29 + $0x18] sm:$0xff] %vm600, %v10932
    %10959 = vst.msk [vmem:[#allocation29 + $0x20] sm:$0xff] %vm600, %v10937
    %10960 = vst.msk [vmem:[#allocation29 + $0x28] sm:$0xff] %vm600, %v10942
    %10961 = vst.msk [vmem:[#allocation29 + $0x30] sm:$0xff] %vm600, %v10947
    %10962 = vst.msk [vmem:[#allocation29 + $0x38] sm:$0xff] %vm600, %v10952
    // Predicated region
    $region130: #{tpu_custom_call.1} parent=1 // pred_check
      _
    $region131: #{tpu_custom_call.1} parent=1 // pred_check_branch
      %10964 = sbr.rel (0) target = $region133
    $region132: #{tpu_custom_call.1} parent=1 // pred_region
      %s10966 = ssub.s32 1024, 1024
      %10967 = vsyncadd [#allocation5], %s10966
      %s10968 = sshll.u32 [#allocation29], 4
      %s10969 = int_to_ptr.vmem [resolvable:$true] %s10968
      %10974 = dma.vmem_to_hbm [thread:$0]  %s10969, 1024, %s16, [#allocation5], 128, 128, 8
    $region133: #{tpu_custom_call.1} parent=1 // pred_fallthru
      _
    // Predicated region
    $region134: #{tpu_custom_call.1} parent=1 // pred_check
      _
    $region135: #{tpu_custom_call.1} parent=1 // pred_check_branch
      %10976 = sbr.rel (0) target = $region137
    $region136: #{tpu_custom_call.1} parent=1 // pred_region
      %10977 = dma.done [#allocation5], 1024
    $region137: #{tpu_custom_call.1} parent=1 // pred_fallthru
      _
    %10978 = vsyncpa [#allocation4], 1
    %10979 = vsyncpa [#allocation7], 1
    %10980 = vsyncpa [#allocation10], 1
    %10981 = vsyncpa [#allocation13], 1
    %10982 = vsyncpa [#allocation16], 1
    %10983 = vsyncpa [#allocation19], 1
    %10984 = vsyncpa [#allocation22], 1
    %10985 = vsyncpa [#allocation25], 1
    %10986 = vsyncpa [#allocation28], 1
    %10987 = vsyncpa [#allocation5], 1

</llo_original>
